<compile_context>
chip_gen: v6e
topology: v6e:2x2x1
jax: 0.10.0
libtpu: 0.0.40
codegen_flags: <defaults>
</compile_context>

<pallas_src>
import functools

import jax
import jax.numpy as jnp
import numpy as np
from jax import lax
from jax.experimental import pallas as pl
from jax.experimental.pallas import tpu as pltpu


# ----------------------------- Pallas kernel -------------------------------


def landmark_decoder_kernel(
    a_ref, l_ref,                         # (T_BLK, F) blocks of audio / landmark (batch row B-1)
    wih0_ref, b0_ref, whh0_ref,           # layer-0 LSTM params (pre-transposed)
    w1cat_ref, b1_ref,                    # layer-1 LSTM params, [W_ih1; W_hh1] stacked
    fw1_ref, fb1_ref, fw2_ref, fb2_ref,   # fc head params (pre-transposed, fc2 lane-padded)
    out_ref,                              # (T_BLK, OUT_PAD) lane-dense output block
    gx0_ref, hseq_ref,                    # (T_BLK, 4H), (T_BLK, H) per-block scratch
    h0_ref, c0_ref, h1_ref, c1_ref,       # (1, H) carry scratch (persist across grid steps)
    *, hidden, t_blk, unroll):
  H = hidden
  blk = pl.program_id(0)

  @pl.when(blk == 0)
  def _():
    h0_ref[...] = jnp.zeros_like(h0_ref)
    c0_ref[...] = jnp.zeros_like(c0_ref)
    h1_ref[...] = jnp.zeros_like(h1_ref)
    c1_ref[...] = jnp.zeros_like(c1_ref)

  # Prologue: combined = audio + landmark, and the whole layer-0 input
  # projection for this block in a single matmul (bias folded in here).
  x_blk = (a_ref[...] + l_ref[...]).astype(jnp.float32)            # (T_BLK, F)
  gx0_ref[...] = (
      jnp.dot(x_blk, wih0_ref[...], preferred_element_type=jnp.float32)
      + b0_ref[...])                                               # (T_BLK, 4H)

  def step(t, carry):
    h0, c0, h1, c1 = carry
    # Layer 0: only the recurrent projection remains per step.
    g0 = gx0_ref[pl.ds(t, 1), :] + jnp.dot(
        h0, whh0_ref[...], preferred_element_type=jnp.float32)      # (1, 4H)
    i0 = jax.nn.sigmoid(g0[:, 0 * H:1 * H])
    f0 = jax.nn.sigmoid(g0[:, 1 * H:2 * H])
    n0 = jnp.tanh(g0[:, 2 * H:3 * H])
    o0 = jax.nn.sigmoid(g0[:, 3 * H:4 * H])
    c0 = f0 * c0 + i0 * n0
    h0 = o0 * jnp.tanh(c0)

    # Layer 1: fused [x | h] contraction, K = 2H (single pass on 256-wide MXU).
    xh = jnp.concatenate([h0, h1], axis=1)                          # (1, 2H)
    g1 = jnp.dot(xh, w1cat_ref[...],
                 preferred_element_type=jnp.float32) + b1_ref[...]  # (1, 4H)
    i1 = jax.nn.sigmoid(g1[:, 0 * H:1 * H])
    f1 = jax.nn.sigmoid(g1[:, 1 * H:2 * H])
    n1 = jnp.tanh(g1[:, 2 * H:3 * H])
    o1 = jax.nn.sigmoid(g1[:, 3 * H:4 * H])
    c1 = f1 * c1 + i1 * n1
    h1 = o1 * jnp.tanh(c1)

    hseq_ref[pl.ds(t, 1), :] = h1                                   # defer fc head
    return (h0, c0, h1, c1)

  carry = (h0_ref[...], c0_ref[...], h1_ref[...], c1_ref[...])
  carry = lax.fori_loop(0, t_blk, step, carry, unroll=unroll)
  h0_ref[...], c0_ref[...], h1_ref[...], c1_ref[...] = carry

  # Deferred fc head: batched matmuls over the whole block + lane-dense store.
  hs = hseq_ref[...]                                                # (T_BLK, H)
  z = jnp.maximum(
      jnp.dot(hs, fw1_ref[...], preferred_element_type=jnp.float32)
      + fb1_ref[...], 0.0)
  y = (jnp.dot(z, fw2_ref[...], preferred_element_type=jnp.float32)
       + fb2_ref[...])                                              # (T_BLK, OUT_PAD)
  out_ref[...] = y.astype(out_ref.dtype)


# ------------------------------- wrapper ------------------------------------


def _round_up(x, m):
  return ((x + m - 1) // m) * m


def landmark_decoder_forward(params, audio_feature, landmark_feature,
                             llfs_feature=None):
  assert audio_feature.shape == landmark_feature.shape
  S, B, F = audio_feature.shape
  H = params["w_hh_l0"].shape[1]
  out_size = params["fc2_w"].shape[0]
  OUT_PAD = _round_up(out_size, 128)

  # x[:, -1, :] selects LSTM-batch row B-1 at every time step; LSTM batch rows
  # are independent (zero initial state), so the other rows are dead compute.
  a = audio_feature[:, B - 1, :]                                    # (S, F)
  l = landmark_feature[:, B - 1, :]
  if llfs_feature is not None:
    l = l + llfs_feature[:, B - 1, :]

  # Time-block size: amortize per-grid-step overhead; whole sequence in one
  # invocation for small/moderate S.
  T_BLK = min(128, _round_up(S, 8))
  S_pad = _round_up(S, T_BLK)
  if S_pad != S:
    pad = ((0, S_pad - S), (0, 0))
    a = jnp.pad(a, pad)
    l = jnp.pad(l, pad)
  num_blocks = S_pad // T_BLK
  unroll = True if T_BLK <= 32 else 8

  # Pre-transpose to "x @ W" form; combine biases; stack layer-1 weights; pad
  # fc2 to a lane-dense 128-multiple output width.
  wih0 = params["w_ih_l0"].T                                        # (F, 4H)
  b0 = (params["b_ih_l0"] + params["b_hh_l0"]).reshape(1, 4 * H)
  whh0 = params["w_hh_l0"].T                                        # (H, 4H)
  w1cat = jnp.concatenate(
      [params["w_ih_l1"].T, params["w_hh_l1"].T], axis=0)           # (2H, 4H)
  b1 = (params["b_ih_l1"] + params["b_hh_l1"]).reshape(1, 4 * H)
  fw1 = params["fc1_w"].T                                           # (H, H)
  fb1 = params["fc1_b"].reshape(1, H)
  fw2 = jnp.zeros((H, OUT_PAD), jnp.float32).at[:, :out_size].set(
      params["fc2_w"].T)                                            # (H, OUT_PAD)
  fb2 = jnp.zeros((1, OUT_PAD), jnp.float32).at[:, :out_size].set(
      params["fc2_b"])

  def full(shape):
    return pl.BlockSpec(shape, lambda b, _s=shape: tuple(0 for _ in _s))

  kernel = functools.partial(
      landmark_decoder_kernel, hidden=H, t_blk=T_BLK, unroll=unroll)

  out = pl.pallas_call(
      kernel,
      out_shape=jax.ShapeDtypeStruct((S_pad, OUT_PAD), jnp.float32),
      grid_spec=pltpu.PrefetchScalarGridSpec(
          num_scalar_prefetch=0,
          grid=(num_blocks,),
          in_specs=[
              pl.BlockSpec((T_BLK, F), lambda b: (b, 0)),
              pl.BlockSpec((T_BLK, F), lambda b: (b, 0)),
              full((F, 4 * H)),
              full((1, 4 * H)),
              full((H, 4 * H)),
              full((2 * H, 4 * H)),
              full((1, 4 * H)),
              full((H, H)),
              full((1, H)),
              full((H, OUT_PAD)),
              full((1, OUT_PAD)),
          ],
          out_specs=pl.BlockSpec((T_BLK, OUT_PAD), lambda b: (b, 0)),
          scratch_shapes=[
              pltpu.VMEM((T_BLK, 4 * H), jnp.float32),   # gx0 (layer-0 input proj)
              pltpu.VMEM((T_BLK, H), jnp.float32),       # h1 sequence for fc head
              pltpu.VMEM((1, H), jnp.float32),           # h0
              pltpu.VMEM((1, H), jnp.float32),           # c0
              pltpu.VMEM((1, H), jnp.float32),           # h1
              pltpu.VMEM((1, H), jnp.float32),           # c1
          ],
      ),
      compiler_params=pltpu.CompilerParams(
          dimension_semantics=("arbitrary",)),  # time recurrence: sequential
  )(a, l, wih0, b0, whh0, w1cat, b1, fw1, fb1, fw2, fb2)

  out = out[:S, :out_size]
  # out = x.reshape(x.shape[0], -1, 2)
  return out.reshape(S, out_size // 2, 2)


# --------------------------- parameters / reference --------------------------


def init_params(key, input_size, hidden, out_size):
  ks = jax.random.split(key, 12)
  bound = 1.0 / np.sqrt(hidden)

  def u(k, shape):
    return jax.random.uniform(k, shape, jnp.float32, -bound, bound)

  return {
      "w_ih_l0": u(ks[0], (4 * hidden, input_size)),
      "w_hh_l0": u(ks[1], (4 * hidden, hidden)),
      "b_ih_l0": u(ks[2], (4 * hidden,)),
      "b_hh_l0": u(ks[3], (4 * hidden,)),
      "w_ih_l1": u(ks[4], (4 * hidden, hidden)),
      "w_hh_l1": u(ks[5], (4 * hidden, hidden)),
      "b_ih_l1": u(ks[6], (4 * hidden,)),
      "b_hh_l1": u(ks[7], (4 * hidden,)),
      "fc1_w": u(ks[8], (hidden, hidden)),
      "fc1_b": u(ks[9], (hidden,)),
      "fc2_w": u(ks[10], (out_size, hidden)),
      "fc2_b": u(ks[11], (out_size,)),
  }


def reference_forward(params, audio, landmark, llfs=None):
  combined = audio + landmark
  if llfs is not None:
    combined = combined + llfs
  H = params["w_hh_l0"].shape[1]

  def lstm_layer(x_seq, w_ih, w_hh, b_ih, b_hh):
    B = x_seq.shape[1]

    def step(carry, x_t):
      h, c = carry
      gates = (x_t @ w_ih.T + b_ih) + (h @ w_hh.T + b_hh)
      i = jax.nn.sigmoid(gates[:, :H])
      f = jax.nn.sigmoid(gates[:, H:2 * H])
      g = jnp.tanh(gates[:, 2 * H:3 * H])
      o = jax.nn.sigmoid(gates[:, 3 * H:])
      c = f * c + i * g
      h = o * jnp.tanh(c)
      return (h, c), h

    init = (jnp.zeros((B, H), jnp.float32), jnp.zeros((B, H), jnp.float32))
    _, hs = lax.scan(step, init, x_seq)
    return hs

  h0s = lstm_layer(combined, params["w_ih_l0"], params["w_hh_l0"],
                   params["b_ih_l0"], params["b_hh_l0"])
  h1s = lstm_layer(h0s, params["w_ih_l1"], params["w_hh_l1"],
                   params["b_ih_l1"], params["b_hh_l1"])
  x = h1s[:, -1, :]
  z = jax.nn.relu(x @ params["fc1_w"].T + params["fc1_b"])
  y = z @ params["fc2_w"].T + params["fc2_b"]
  return y.reshape(y.shape[0], -1, 2)


# ---------------------------------- main -------------------------------------


if __name__ == "__main__":
  # Small shapes consistent with the module: LSTM batch_first=False -> input
  # is (S, B, F); hidden H; output (OUT0, 2).
  S, B, F, H = 8, 4, 32, 128
  OUT0 = 13
  out_size = OUT0 * 2

  key = jax.random.PRNGKey(0)
  kp, ka, kl = jax.random.split(key, 3)
  params = init_params(kp, F, H, out_size)
  audio = jax.random.normal(ka, (S, B, F), jnp.float32)
  landmark = jax.random.normal(kl, (S, B, F), jnp.float32)

  out = jax.block_until_ready(landmark_decoder_forward(params, audio, landmark))
  assert out.shape == (S, OUT0, 2), out.shape

  ref = jax.block_until_ready(reference_forward(params, audio, landmark))
  err = float(jnp.max(jnp.abs(out - ref)))
  assert err < 1e-2, f"kernel/reference mismatch: max abs err {err}"

  print("KERNEL_OK")
</pallas_src>

<mosaic_0001>
module attributes {stable_mosaic.version = 11 : i64} {
  func.func @landmark_decoder_kernel(%arg0: i32, %arg1: memref<8x32xf32, #tpu.memory_space<vmem>>, %arg2: memref<8x32xf32, #tpu.memory_space<vmem>>, %arg3: memref<32x512xf32, #tpu.memory_space<vmem>>, %arg4: memref<1x512xf32, #tpu.memory_space<vmem>>, %arg5: memref<128x512xf32, #tpu.memory_space<vmem>>, %arg6: memref<256x512xf32, #tpu.memory_space<vmem>>, %arg7: memref<1x512xf32, #tpu.memory_space<vmem>>, %arg8: memref<128x128xf32, #tpu.memory_space<vmem>>, %arg9: memref<1x128xf32, #tpu.memory_space<vmem>>, %arg10: memref<128x128xf32, #tpu.memory_space<vmem>>, %arg11: memref<1x128xf32, #tpu.memory_space<vmem>>, %arg12: memref<8x128xf32, #tpu.memory_space<vmem>>, %arg13: memref<8x512xf32, #tpu.memory_space<vmem>>, %arg14: memref<8x128xf32, #tpu.memory_space<vmem>>, %arg15: memref<1x128xf32, #tpu.memory_space<vmem>>, %arg16: memref<1x128xf32, #tpu.memory_space<vmem>>, %arg17: memref<1x128xf32, #tpu.memory_space<vmem>>, %arg18: memref<1x128xf32, #tpu.memory_space<vmem>>) attributes {dimension_semantics = [#tpu.dimension_semantics<arbitrary>], iteration_bounds = array<i64: 1>, scalar_prefetch = 0 : i64, scratch_operands = 6 : i64, tpu.core_type = #tpu.core_type<tc>, window_params = [{transform_indices = @transform_0, window_bounds = array<i64: 8, 32>}, {transform_indices = @transform_1, window_bounds = array<i64: 8, 32>}, {pipeline_mode = #tpu.pipeline_mode<synchronous>, transform_indices = @transform_2, window_bounds = array<i64: 32, 512>}, {pipeline_mode = #tpu.pipeline_mode<synchronous>, transform_indices = @transform_3, window_bounds = array<i64: 1, 512>}, {pipeline_mode = #tpu.pipeline_mode<synchronous>, transform_indices = @transform_4, window_bounds = array<i64: 128, 512>}, {pipeline_mode = #tpu.pipeline_mode<synchronous>, transform_indices = @transform_5, window_bounds = array<i64: 256, 512>}, {pipeline_mode = #tpu.pipeline_mode<synchronous>, transform_indices = @transform_6, window_bounds = array<i64: 1, 512>}, {pipeline_mode = #tpu.pipeline_mode<synchronous>, transform_indices = @transform_7, window_bounds = array<i64: 128, 128>}, {pipeline_mode = #tpu.pipeline_mode<synchronous>, transform_indices = @transform_8, window_bounds = array<i64: 1, 128>}, {pipeline_mode = #tpu.pipeline_mode<synchronous>, transform_indices = @transform_9, window_bounds = array<i64: 128, 128>}, {pipeline_mode = #tpu.pipeline_mode<synchronous>, transform_indices = @transform_10, window_bounds = array<i64: 1, 128>}, {transform_indices = @transform_11, window_bounds = array<i64: 8, 128>}]} {
    %c0_i32 = arith.constant 0 : i32
    %0 = arith.cmpi eq, %arg0, %c0_i32 : i32
    %1 = arith.extui %0 : i1 to i32
    %c0_i32_0 = arith.constant 0 : i32
    %2 = arith.cmpi ne, %1, %c0_i32_0 : i32
    scf.if %2 {
      %cst_170 = arith.constant 0.000000e+00 : f32
      %530 = vector.broadcast %cst_170 : f32 to vector<1x128xf32>
      %c0_171 = arith.constant 0 : index
      %c0_172 = arith.constant 0 : index
      %531 = vector.load %arg15[%c0_171, %c0_172] : memref<1x128xf32, #tpu.memory_space<vmem>>, vector<1x128xf32>
      tpu.vector_store %arg15[%c0_171, %c0_172], %530 {strides = array<i32>} : memref<1x128xf32, #tpu.memory_space<vmem>>, vector<1x128xf32>,
      %cst_173 = arith.constant 0.000000e+00 : f32
      %532 = vector.broadcast %cst_173 : f32 to vector<1x128xf32>
      %c0_174 = arith.constant 0 : index
      %c0_175 = arith.constant 0 : index
      %533 = vector.load %arg16[%c0_174, %c0_175] : memref<1x128xf32, #tpu.memory_space<vmem>>, vector<1x128xf32>
      tpu.vector_store %arg16[%c0_174, %c0_175], %532 {strides = array<i32>} : memref<1x128xf32, #tpu.memory_space<vmem>>, vector<1x128xf32>,
      %cst_176 = arith.constant 0.000000e+00 : f32
      %534 = vector.broadcast %cst_176 : f32 to vector<1x128xf32>
      %c0_177 = arith.constant 0 : index
      %c0_178 = arith.constant 0 : index
      %535 = vector.load %arg17[%c0_177, %c0_178] : memref<1x128xf32, #tpu.memory_space<vmem>>, vector<1x128xf32>
      tpu.vector_store %arg17[%c0_177, %c0_178], %534 {strides = array<i32>} : memref<1x128xf32, #tpu.memory_space<vmem>>, vector<1x128xf32>,
      %cst_179 = arith.constant 0.000000e+00 : f32
      %536 = vector.broadcast %cst_179 : f32 to vector<1x128xf32>
      %c0_180 = arith.constant 0 : index
      %c0_181 = arith.constant 0 : index
      %537 = vector.load %arg18[%c0_180, %c0_181] : memref<1x128xf32, #tpu.memory_space<vmem>>, vector<1x128xf32>
      tpu.vector_store %arg18[%c0_180, %c0_181], %536 {strides = array<i32>} : memref<1x128xf32, #tpu.memory_space<vmem>>, vector<1x128xf32>,
    } else {
    }
    %c0 = arith.constant 0 : index
    %c0_1 = arith.constant 0 : index
    %3 = vector.load %arg1[%c0, %c0_1] : memref<8x32xf32, #tpu.memory_space<vmem>>, vector<8x32xf32>
    %c0_2 = arith.constant 0 : index
    %c0_3 = arith.constant 0 : index
    %4 = vector.load %arg2[%c0_2, %c0_3] : memref<8x32xf32, #tpu.memory_space<vmem>>, vector<8x32xf32>
    %5 = arith.addf %3, %4 : vector<8x32xf32>
    %c0_4 = arith.constant 0 : index
    %c0_5 = arith.constant 0 : index
    %6 = vector.load %arg3[%c0_4, %c0_5] : memref<32x512xf32, #tpu.memory_space<vmem>>, vector<32x512xf32>
    %cst = arith.constant dense<0.000000e+00> : vector<8x512xf32>
    %7 = tpu.matmul %5, %6, %cst {dimension_numbers = #tpu.dot_dimension_numbers<[1], [0], [0], [1], [0, 0, 1, 1], [], []>} : vector<8x32xf32>, vector<32x512xf32>, vector<8x512xf32> -> vector<8x512xf32>
    %c0_6 = arith.constant 0 : index
    %c0_7 = arith.constant 0 : index
    %8 = vector.load %arg4[%c0_6, %c0_7] : memref<1x512xf32, #tpu.memory_space<vmem>>, vector<1x512xf32>
    %9 = vector.broadcast %8 : vector<1x512xf32> to vector<8x512xf32>
    %10 = arith.addf %7, %9 : vector<8x512xf32>
    %c0_8 = arith.constant 0 : index
    %c0_9 = arith.constant 0 : index
    %11 = vector.load %arg13[%c0_8, %c0_9] : memref<8x512xf32, #tpu.memory_space<vmem>>, vector<8x512xf32>
    tpu.vector_store %arg13[%c0_8, %c0_9], %10 {strides = array<i32>} : memref<8x512xf32, #tpu.memory_space<vmem>>, vector<8x512xf32>,
    %c0_10 = arith.constant 0 : index
    %c0_11 = arith.constant 0 : index
    %12 = vector.load %arg15[%c0_10, %c0_11] : memref<1x128xf32, #tpu.memory_space<vmem>>, vector<1x128xf32>
    %c0_12 = arith.constant 0 : index
    %c0_13 = arith.constant 0 : index
    %13 = vector.load %arg16[%c0_12, %c0_13] : memref<1x128xf32, #tpu.memory_space<vmem>>, vector<1x128xf32>
    %c0_14 = arith.constant 0 : index
    %c0_15 = arith.constant 0 : index
    %14 = vector.load %arg17[%c0_14, %c0_15] : memref<1x128xf32, #tpu.memory_space<vmem>>, vector<1x128xf32>
    %c0_16 = arith.constant 0 : index
    %c0_17 = arith.constant 0 : index
    %15 = vector.load %arg18[%c0_16, %c0_17] : memref<1x128xf32, #tpu.memory_space<vmem>>, vector<1x128xf32>
    %c0_i32_18 = arith.constant 0 : i32
    %16 = arith.index_cast %c0_i32_18 : i32 to index
    %c0_19 = arith.constant 0 : index
    %17 = vector.load %arg13[%16, %c0_19] : memref<8x512xf32, #tpu.memory_space<vmem>>, vector<1x512xf32>
    %c0_20 = arith.constant 0 : index
    %c0_21 = arith.constant 0 : index
    %18 = vector.load %arg5[%c0_20, %c0_21] : memref<128x512xf32, #tpu.memory_space<vmem>>, vector<128x512xf32>
    %cst_22 = arith.constant dense<0.000000e+00> : vector<1x512xf32>
    %19 = tpu.matmul %12, %18, %cst_22 {dimension_numbers = #tpu.dot_dimension_numbers<[1], [0], [0], [1], [0, 0, 1, 1], [], []>} : vector<1x128xf32>, vector<128x512xf32>, vector<1x512xf32> -> vector<1x512xf32>
    %20 = arith.addf %17, %19 : vector<1x512xf32>
    %21 = vector.extract_strided_slice %20 {offsets = [0, 0], sizes = [1, 128], strides = [1, 1]} : vector<1x512xf32> to vector<1x128xf32>
    %22 = arith.negf %21 : vector<1x128xf32>
    %23 = math.exp %22 : vector<1x128xf32>
    %cst_23 = arith.constant 1.000000e+00 : f32
    %24 = vector.broadcast %cst_23 : f32 to vector<1x128xf32>
    %25 = arith.addf %24, %23 : vector<1x128xf32>
    %26 = arith.divf %24, %25 : vector<1x128xf32>
    %27 = vector.extract_strided_slice %20 {offsets = [0, 128], sizes = [1, 128], strides = [1, 1]} : vector<1x512xf32> to vector<1x128xf32>
    %28 = arith.negf %27 : vector<1x128xf32>
    %29 = math.exp %28 : vector<1x128xf32>
    %cst_24 = arith.constant 1.000000e+00 : f32
    %30 = vector.broadcast %cst_24 : f32 to vector<1x128xf32>
    %31 = arith.addf %30, %29 : vector<1x128xf32>
    %32 = arith.divf %30, %31 : vector<1x128xf32>
    %33 = vector.extract_strided_slice %20 {offsets = [0, 256], sizes = [1, 128], strides = [1, 1]} : vector<1x512xf32> to vector<1x128xf32>
    %34 = math.tanh %33 : vector<1x128xf32>
    %35 = vector.extract_strided_slice %20 {offsets = [0, 384], sizes = [1, 128], strides = [1, 1]} : vector<1x512xf32> to vector<1x128xf32>
    %36 = arith.negf %35 : vector<1x128xf32>
    %37 = math.exp %36 : vector<1x128xf32>
    %cst_25 = arith.constant 1.000000e+00 : f32
    %38 = vector.broadcast %cst_25 : f32 to vector<1x128xf32>
    %39 = arith.addf %38, %37 : vector<1x128xf32>
    %40 = arith.divf %38, %39 : vector<1x128xf32>
    %41 = arith.mulf %32, %13 : vector<1x128xf32>
    %42 = arith.mulf %26, %34 : vector<1x128xf32>
    %43 = arith.addf %41, %42 : vector<1x128xf32>
    %44 = math.tanh %43 : vector<1x128xf32>
    %45 = arith.mulf %40, %44 : vector<1x128xf32>
    %46 = tpu.concatenate %45, %14 in 1 : vector<1x128xf32>, vector<1x128xf32> -> vector<1x256xf32>
    %c0_26 = arith.constant 0 : index
    %c0_27 = arith.constant 0 : index
    %47 = vector.load %arg6[%c0_26, %c0_27] : memref<256x512xf32, #tpu.memory_space<vmem>>, vector<256x512xf32>
    %cst_28 = arith.constant dense<0.000000e+00> : vector<1x512xf32>
    %48 = tpu.matmul %46, %47, %cst_28 {dimension_numbers = #tpu.dot_dimension_numbers<[1], [0], [0], [1], [0, 0, 1, 1], [], []>} : vector<1x256xf32>, vector<256x512xf32>, vector<1x512xf32> -> vector<1x512xf32>
    %c0_29 = arith.constant 0 : index
    %c0_30 = arith.constant 0 : index
    %49 = vector.load %arg7[%c0_29, %c0_30] : memref<1x512xf32, #tpu.memory_space<vmem>>, vector<1x512xf32>
    %50 = arith.addf %48, %49 : vector<1x512xf32>
    %51 = vector.extract_strided_slice %50 {offsets = [0, 0], sizes = [1, 128], strides = [1, 1]} : vector<1x512xf32> to vector<1x128xf32>
    %52 = arith.negf %51 : vector<1x128xf32>
    %53 = math.exp %52 : vector<1x128xf32>
    %cst_31 = arith.constant 1.000000e+00 : f32
    %54 = vector.broadcast %cst_31 : f32 to vector<1x128xf32>
    %55 = arith.addf %54, %53 : vector<1x128xf32>
    %56 = arith.divf %54, %55 : vector<1x128xf32>
    %57 = vector.extract_strided_slice %50 {offsets = [0, 128], sizes = [1, 128], strides = [1, 1]} : vector<1x512xf32> to vector<1x128xf32>
    %58 = arith.negf %57 : vector<1x128xf32>
    %59 = math.exp %58 : vector<1x128xf32>
    %cst_32 = arith.constant 1.000000e+00 : f32
    %60 = vector.broadcast %cst_32 : f32 to vector<1x128xf32>
    %61 = arith.addf %60, %59 : vector<1x128xf32>
    %62 = arith.divf %60, %61 : vector<1x128xf32>
    %63 = vector.extract_strided_slice %50 {offsets = [0, 256], sizes = [1, 128], strides = [1, 1]} : vector<1x512xf32> to vector<1x128xf32>
    %64 = math.tanh %63 : vector<1x128xf32>
    %65 = vector.extract_strided_slice %50 {offsets = [0, 384], sizes = [1, 128], strides = [1, 1]} : vector<1x512xf32> to vector<1x128xf32>
    %66 = arith.negf %65 : vector<1x128xf32>
    %67 = math.exp %66 : vector<1x128xf32>
    %cst_33 = arith.constant 1.000000e+00 : f32
    %68 = vector.broadcast %cst_33 : f32 to vector<1x128xf32>
    %69 = arith.addf %68, %67 : vector<1x128xf32>
    %70 = arith.divf %68, %69 : vector<1x128xf32>
    %71 = arith.mulf %62, %15 : vector<1x128xf32>
    %72 = arith.mulf %56, %64 : vector<1x128xf32>
    %73 = arith.addf %71, %72 : vector<1x128xf32>
    %74 = math.tanh %73 : vector<1x128xf32>
    %75 = arith.mulf %70, %74 : vector<1x128xf32>
    %76 = arith.index_cast %c0_i32_18 : i32 to index
    %c0_34 = arith.constant 0 : index
    %77 = vector.load %arg14[%76, %c0_34] : memref<8x128xf32, #tpu.memory_space<vmem>>, vector<1x128xf32>
    tpu.vector_store %arg14[%76, %c0_34], %75 {strides = array<i32>} : memref<8x128xf32, #tpu.memory_space<vmem>>, vector<1x128xf32>,
    %c1_i32 = arith.constant 1 : i32
    %78 = arith.index_cast %c1_i32 : i32 to index
    %c0_35 = arith.constant 0 : index
    %79 = vector.load %arg13[%78, %c0_35] : memref<8x512xf32, #tpu.memory_space<vmem>>, vector<1x512xf32>
    %c0_36 = arith.constant 0 : index
    %c0_37 = arith.constant 0 : index
    %80 = vector.load %arg5[%c0_36, %c0_37] : memref<128x512xf32, #tpu.memory_space<vmem>>, vector<128x512xf32>
    %cst_38 = arith.constant dense<0.000000e+00> : vector<1x512xf32>
    %81 = tpu.matmul %45, %80, %cst_38 {dimension_numbers = #tpu.dot_dimension_numbers<[1], [0], [0], [1], [0, 0, 1, 1], [], []>} : vector<1x128xf32>, vector<128x512xf32>, vector<1x512xf32> -> vector<1x512xf32>
    %82 = arith.addf %79, %81 : vector<1x512xf32>
    %83 = vector.extract_strided_slice %82 {offsets = [0, 0], sizes = [1, 128], strides = [1, 1]} : vector<1x512xf32> to vector<1x128xf32>
    %84 = arith.negf %83 : vector<1x128xf32>
    %85 = math.exp %84 : vector<1x128xf32>
    %cst_39 = arith.constant 1.000000e+00 : f32
    %86 = vector.broadcast %cst_39 : f32 to vector<1x128xf32>
    %87 = arith.addf %86, %85 : vector<1x128xf32>
    %88 = arith.divf %86, %87 : vector<1x128xf32>
    %89 = vector.extract_strided_slice %82 {offsets = [0, 128], sizes = [1, 128], strides = [1, 1]} : vector<1x512xf32> to vector<1x128xf32>
    %90 = arith.negf %89 : vector<1x128xf32>
    %91 = math.exp %90 : vector<1x128xf32>
    %cst_40 = arith.constant 1.000000e+00 : f32
    %92 = vector.broadcast %cst_40 : f32 to vector<1x128xf32>
    %93 = arith.addf %92, %91 : vector<1x128xf32>
    %94 = arith.divf %92, %93 : vector<1x128xf32>
    %95 = vector.extract_strided_slice %82 {offsets = [0, 256], sizes = [1, 128], strides = [1, 1]} : vector<1x512xf32> to vector<1x128xf32>
    %96 = math.tanh %95 : vector<1x128xf32>
    %97 = vector.extract_strided_slice %82 {offsets = [0, 384], sizes = [1, 128], strides = [1, 1]} : vector<1x512xf32> to vector<1x128xf32>
    %98 = arith.negf %97 : vector<1x128xf32>
    %99 = math.exp %98 : vector<1x128xf32>
    %cst_41 = arith.constant 1.000000e+00 : f32
    %100 = vector.broadcast %cst_41 : f32 to vector<1x128xf32>
    %101 = arith.addf %100, %99 : vector<1x128xf32>
    %102 = arith.divf %100, %101 : vector<1x128xf32>
    %103 = arith.mulf %94, %43 : vector<1x128xf32>
    %104 = arith.mulf %88, %96 : vector<1x128xf32>
    %105 = arith.addf %103, %104 : vector<1x128xf32>
    %106 = math.tanh %105 : vector<1x128xf32>
    %107 = arith.mulf %102, %106 : vector<1x128xf32>
    %108 = tpu.concatenate %107, %75 in 1 : vector<1x128xf32>, vector<1x128xf32> -> vector<1x256xf32>
    %c0_42 = arith.constant 0 : index
    %c0_43 = arith.constant 0 : index
    %109 = vector.load %arg6[%c0_42, %c0_43] : memref<256x512xf32, #tpu.memory_space<vmem>>, vector<256x512xf32>
    %cst_44 = arith.constant dense<0.000000e+00> : vector<1x512xf32>
    %110 = tpu.matmul %108, %109, %cst_44 {dimension_numbers = #tpu.dot_dimension_numbers<[1], [0], [0], [1], [0, 0, 1, 1], [], []>} : vector<1x256xf32>, vector<256x512xf32>, vector<1x512xf32> -> vector<1x512xf32>
    %c0_45 = arith.constant 0 : index
    %c0_46 = arith.constant 0 : index
    %111 = vector.load %arg7[%c0_45, %c0_46] : memref<1x512xf32, #tpu.memory_space<vmem>>, vector<1x512xf32>
    %112 = arith.addf %110, %111 : vector<1x512xf32>
    %113 = vector.extract_strided_slice %112 {offsets = [0, 0], sizes = [1, 128], strides = [1, 1]} : vector<1x512xf32> to vector<1x128xf32>
    %114 = arith.negf %113 : vector<1x128xf32>
    %115 = math.exp %114 : vector<1x128xf32>
    %cst_47 = arith.constant 1.000000e+00 : f32
    %116 = vector.broadcast %cst_47 : f32 to vector<1x128xf32>
    %117 = arith.addf %116, %115 : vector<1x128xf32>
    %118 = arith.divf %116, %117 : vector<1x128xf32>
    %119 = vector.extract_strided_slice %112 {offsets = [0, 128], sizes = [1, 128], strides = [1, 1]} : vector<1x512xf32> to vector<1x128xf32>
    %120 = arith.negf %119 : vector<1x128xf32>
    %121 = math.exp %120 : vector<1x128xf32>
    %cst_48 = arith.constant 1.000000e+00 : f32
    %122 = vector.broadcast %cst_48 : f32 to vector<1x128xf32>
    %123 = arith.addf %122, %121 : vector<1x128xf32>
    %124 = arith.divf %122, %123 : vector<1x128xf32>
    %125 = vector.extract_strided_slice %112 {offsets = [0, 256], sizes = [1, 128], strides = [1, 1]} : vector<1x512xf32> to vector<1x128xf32>
    %126 = math.tanh %125 : vector<1x128xf32>
    %127 = vector.extract_strided_slice %112 {offsets = [0, 384], sizes = [1, 128], strides = [1, 1]} : vector<1x512xf32> to vector<1x128xf32>
    %128 = arith.negf %127 : vector<1x128xf32>
    %129 = math.exp %128 : vector<1x128xf32>
    %cst_49 = arith.constant 1.000000e+00 : f32
    %130 = vector.broadcast %cst_49 : f32 to vector<1x128xf32>
    %131 = arith.addf %130, %129 : vector<1x128xf32>
    %132 = arith.divf %130, %131 : vector<1x128xf32>
    %133 = arith.mulf %124, %73 : vector<1x128xf32>
    %134 = arith.mulf %118, %126 : vector<1x128xf32>
    %135 = arith.addf %133, %134 : vector<1x128xf32>
    %136 = math.tanh %135 : vector<1x128xf32>
    %137 = arith.mulf %132, %136 : vector<1x128xf32>
    %138 = arith.index_cast %c1_i32 : i32 to index
    %c0_50 = arith.constant 0 : index
    %139 = vector.load %arg14[%138, %c0_50] : memref<8x128xf32, #tpu.memory_space<vmem>>, vector<1x128xf32>
    tpu.vector_store %arg14[%138, %c0_50], %137 {strides = array<i32>} : memref<8x128xf32, #tpu.memory_space<vmem>>, vector<1x128xf32>,
    %c2_i32 = arith.constant 2 : i32
    %140 = arith.index_cast %c2_i32 : i32 to index
    %c0_51 = arith.constant 0 : index
    %141 = vector.load %arg13[%140, %c0_51] : memref<8x512xf32, #tpu.memory_space<vmem>>, vector<1x512xf32>
    %c0_52 = arith.constant 0 : index
    %c0_53 = arith.constant 0 : index
    %142 = vector.load %arg5[%c0_52, %c0_53] : memref<128x512xf32, #tpu.memory_space<vmem>>, vector<128x512xf32>
    %cst_54 = arith.constant dense<0.000000e+00> : vector<1x512xf32>
    %143 = tpu.matmul %107, %142, %cst_54 {dimension_numbers = #tpu.dot_dimension_numbers<[1], [0], [0], [1], [0, 0, 1, 1], [], []>} : vector<1x128xf32>, vector<128x512xf32>, vector<1x512xf32> -> vector<1x512xf32>
    %144 = arith.addf %141, %143 : vector<1x512xf32>
    %145 = vector.extract_strided_slice %144 {offsets = [0, 0], sizes = [1, 128], strides = [1, 1]} : vector<1x512xf32> to vector<1x128xf32>
    %146 = arith.negf %145 : vector<1x128xf32>
    %147 = math.exp %146 : vector<1x128xf32>
    %cst_55 = arith.constant 1.000000e+00 : f32
    %148 = vector.broadcast %cst_55 : f32 to vector<1x128xf32>
    %149 = arith.addf %148, %147 : vector<1x128xf32>
    %150 = arith.divf %148, %149 : vector<1x128xf32>
    %151 = vector.extract_strided_slice %144 {offsets = [0, 128], sizes = [1, 128], strides = [1, 1]} : vector<1x512xf32> to vector<1x128xf32>
    %152 = arith.negf %151 : vector<1x128xf32>
    %153 = math.exp %152 : vector<1x128xf32>
    %cst_56 = arith.constant 1.000000e+00 : f32
    %154 = vector.broadcast %cst_56 : f32 to vector<1x128xf32>
    %155 = arith.addf %154, %153 : vector<1x128xf32>
    %156 = arith.divf %154, %155 : vector<1x128xf32>
    %157 = vector.extract_strided_slice %144 {offsets = [0, 256], sizes = [1, 128], strides = [1, 1]} : vector<1x512xf32> to vector<1x128xf32>
    %158 = math.tanh %157 : vector<1x128xf32>
    %159 = vector.extract_strided_slice %144 {offsets = [0, 384], sizes = [1, 128], strides = [1, 1]} : vector<1x512xf32> to vector<1x128xf32>
    %160 = arith.negf %159 : vector<1x128xf32>
    %161 = math.exp %160 : vector<1x128xf32>
    %cst_57 = arith.constant 1.000000e+00 : f32
    %162 = vector.broadcast %cst_57 : f32 to vector<1x128xf32>
    %163 = arith.addf %162, %161 : vector<1x128xf32>
    %164 = arith.divf %162, %163 : vector<1x128xf32>
    %165 = arith.mulf %156, %105 : vector<1x128xf32>
    %166 = arith.mulf %150, %158 : vector<1x128xf32>
    %167 = arith.addf %165, %166 : vector<1x128xf32>
    %168 = math.tanh %167 : vector<1x128xf32>
    %169 = arith.mulf %164, %168 : vector<1x128xf32>
    %170 = tpu.concatenate %169, %137 in 1 : vector<1x128xf32>, vector<1x128xf32> -> vector<1x256xf32>
    %c0_58 = arith.constant 0 : index
    %c0_59 = arith.constant 0 : index
    %171 = vector.load %arg6[%c0_58, %c0_59] : memref<256x512xf32, #tpu.memory_space<vmem>>, vector<256x512xf32>
    %cst_60 = arith.constant dense<0.000000e+00> : vector<1x512xf32>
    %172 = tpu.matmul %170, %171, %cst_60 {dimension_numbers = #tpu.dot_dimension_numbers<[1], [0], [0], [1], [0, 0, 1, 1], [], []>} : vector<1x256xf32>, vector<256x512xf32>, vector<1x512xf32> -> vector<1x512xf32>
    %c0_61 = arith.constant 0 : index
    %c0_62 = arith.constant 0 : index
    %173 = vector.load %arg7[%c0_61, %c0_62] : memref<1x512xf32, #tpu.memory_space<vmem>>, vector<1x512xf32>
    %174 = arith.addf %172, %173 : vector<1x512xf32>
    %175 = vector.extract_strided_slice %174 {offsets = [0, 0], sizes = [1, 128], strides = [1, 1]} : vector<1x512xf32> to vector<1x128xf32>
    %176 = arith.negf %175 : vector<1x128xf32>
    %177 = math.exp %176 : vector<1x128xf32>
    %cst_63 = arith.constant 1.000000e+00 : f32
    %178 = vector.broadcast %cst_63 : f32 to vector<1x128xf32>
    %179 = arith.addf %178, %177 : vector<1x128xf32>
    %180 = arith.divf %178, %179 : vector<1x128xf32>
    %181 = vector.extract_strided_slice %174 {offsets = [0, 128], sizes = [1, 128], strides = [1, 1]} : vector<1x512xf32> to vector<1x128xf32>
    %182 = arith.negf %181 : vector<1x128xf32>
    %183 = math.exp %182 : vector<1x128xf32>
    %cst_64 = arith.constant 1.000000e+00 : f32
    %184 = vector.broadcast %cst_64 : f32 to vector<1x128xf32>
    %185 = arith.addf %184, %183 : vector<1x128xf32>
    %186 = arith.divf %184, %185 : vector<1x128xf32>
    %187 = vector.extract_strided_slice %174 {offsets = [0, 256], sizes = [1, 128], strides = [1, 1]} : vector<1x512xf32> to vector<1x128xf32>
    %188 = math.tanh %187 : vector<1x128xf32>
    %189 = vector.extract_strided_slice %174 {offsets = [0, 384], sizes = [1, 128], strides = [1, 1]} : vector<1x512xf32> to vector<1x128xf32>
    %190 = arith.negf %189 : vector<1x128xf32>
    %191 = math.exp %190 : vector<1x128xf32>
    %cst_65 = arith.constant 1.000000e+00 : f32
    %192 = vector.broadcast %cst_65 : f32 to vector<1x128xf32>
    %193 = arith.addf %192, %191 : vector<1x128xf32>
    %194 = arith.divf %192, %193 : vector<1x128xf32>
    %195 = arith.mulf %186, %135 : vector<1x128xf32>
    %196 = arith.mulf %180, %188 : vector<1x128xf32>
    %197 = arith.addf %195, %196 : vector<1x128xf32>
    %198 = math.tanh %197 : vector<1x128xf32>
    %199 = arith.mulf %194, %198 : vector<1x128xf32>
    %200 = arith.index_cast %c2_i32 : i32 to index
    %c0_66 = arith.constant 0 : index
    %201 = vector.load %arg14[%200, %c0_66] : memref<8x128xf32, #tpu.memory_space<vmem>>, vector<1x128xf32>
    tpu.vector_store %arg14[%200, %c0_66], %199 {strides = array<i32>} : memref<8x128xf32, #tpu.memory_space<vmem>>, vector<1x128xf32>,
    %c3_i32 = arith.constant 3 : i32
    %202 = arith.index_cast %c3_i32 : i32 to index
    %c0_67 = arith.constant 0 : index
    %203 = vector.load %arg13[%202, %c0_67] : memref<8x512xf32, #tpu.memory_space<vmem>>, vector<1x512xf32>
    %c0_68 = arith.constant 0 : index
    %c0_69 = arith.constant 0 : index
    %204 = vector.load %arg5[%c0_68, %c0_69] : memref<128x512xf32, #tpu.memory_space<vmem>>, vector<128x512xf32>
    %cst_70 = arith.constant dense<0.000000e+00> : vector<1x512xf32>
    %205 = tpu.matmul %169, %204, %cst_70 {dimension_numbers = #tpu.dot_dimension_numbers<[1], [0], [0], [1], [0, 0, 1, 1], [], []>} : vector<1x128xf32>, vector<128x512xf32>, vector<1x512xf32> -> vector<1x512xf32>
    %206 = arith.addf %203, %205 : vector<1x512xf32>
    %207 = vector.extract_strided_slice %206 {offsets = [0, 0], sizes = [1, 128], strides = [1, 1]} : vector<1x512xf32> to vector<1x128xf32>
    %208 = arith.negf %207 : vector<1x128xf32>
    %209 = math.exp %208 : vector<1x128xf32>
    %cst_71 = arith.constant 1.000000e+00 : f32
    %210 = vector.broadcast %cst_71 : f32 to vector<1x128xf32>
    %211 = arith.addf %210, %209 : vector<1x128xf32>
    %212 = arith.divf %210, %211 : vector<1x128xf32>
    %213 = vector.extract_strided_slice %206 {offsets = [0, 128], sizes = [1, 128], strides = [1, 1]} : vector<1x512xf32> to vector<1x128xf32>
    %214 = arith.negf %213 : vector<1x128xf32>
    %215 = math.exp %214 : vector<1x128xf32>
    %cst_72 = arith.constant 1.000000e+00 : f32
    %216 = vector.broadcast %cst_72 : f32 to vector<1x128xf32>
    %217 = arith.addf %216, %215 : vector<1x128xf32>
    %218 = arith.divf %216, %217 : vector<1x128xf32>
    %219 = vector.extract_strided_slice %206 {offsets = [0, 256], sizes = [1, 128], strides = [1, 1]} : vector<1x512xf32> to vector<1x128xf32>
    %220 = math.tanh %219 : vector<1x128xf32>
    %221 = vector.extract_strided_slice %206 {offsets = [0, 384], sizes = [1, 128], strides = [1, 1]} : vector<1x512xf32> to vector<1x128xf32>
    %222 = arith.negf %221 : vector<1x128xf32>
    %223 = math.exp %222 : vector<1x128xf32>
    %cst_73 = arith.constant 1.000000e+00 : f32
    %224 = vector.broadcast %cst_73 : f32 to vector<1x128xf32>
    %225 = arith.addf %224, %223 : vector<1x128xf32>
    %226 = arith.divf %224, %225 : vector<1x128xf32>
    %227 = arith.mulf %218, %167 : vector<1x128xf32>
    %228 = arith.mulf %212, %220 : vector<1x128xf32>
    %229 = arith.addf %227, %228 : vector<1x128xf32>
    %230 = math.tanh %229 : vector<1x128xf32>
    %231 = arith.mulf %226, %230 : vector<1x128xf32>
    %232 = tpu.concatenate %231, %199 in 1 : vector<1x128xf32>, vector<1x128xf32> -> vector<1x256xf32>
    %c0_74 = arith.constant 0 : index
    %c0_75 = arith.constant 0 : index
    %233 = vector.load %arg6[%c0_74, %c0_75] : memref<256x512xf32, #tpu.memory_space<vmem>>, vector<256x512xf32>
    %cst_76 = arith.constant dense<0.000000e+00> : vector<1x512xf32>
    %234 = tpu.matmul %232, %233, %cst_76 {dimension_numbers = #tpu.dot_dimension_numbers<[1], [0], [0], [1], [0, 0, 1, 1], [], []>} : vector<1x256xf32>, vector<256x512xf32>, vector<1x512xf32> -> vector<1x512xf32>
    %c0_77 = arith.constant 0 : index
    %c0_78 = arith.constant 0 : index
    %235 = vector.load %arg7[%c0_77, %c0_78] : memref<1x512xf32, #tpu.memory_space<vmem>>, vector<1x512xf32>
    %236 = arith.addf %234, %235 : vector<1x512xf32>
    %237 = vector.extract_strided_slice %236 {offsets = [0, 0], sizes = [1, 128], strides = [1, 1]} : vector<1x512xf32> to vector<1x128xf32>
    %238 = arith.negf %237 : vector<1x128xf32>
    %239 = math.exp %238 : vector<1x128xf32>
    %cst_79 = arith.constant 1.000000e+00 : f32
    %240 = vector.broadcast %cst_79 : f32 to vector<1x128xf32>
    %241 = arith.addf %240, %239 : vector<1x128xf32>
    %242 = arith.divf %240, %241 : vector<1x128xf32>
    %243 = vector.extract_strided_slice %236 {offsets = [0, 128], sizes = [1, 128], strides = [1, 1]} : vector<1x512xf32> to vector<1x128xf32>
    %244 = arith.negf %243 : vector<1x128xf32>
    %245 = math.exp %244 : vector<1x128xf32>
    %cst_80 = arith.constant 1.000000e+00 : f32
    %246 = vector.broadcast %cst_80 : f32 to vector<1x128xf32>
    %247 = arith.addf %246, %245 : vector<1x128xf32>
    %248 = arith.divf %246, %247 : vector<1x128xf32>
    %249 = vector.extract_strided_slice %236 {offsets = [0, 256], sizes = [1, 128], strides = [1, 1]} : vector<1x512xf32> to vector<1x128xf32>
    %250 = math.tanh %249 : vector<1x128xf32>
    %251 = vector.extract_strided_slice %236 {offsets = [0, 384], sizes = [1, 128], strides = [1, 1]} : vector<1x512xf32> to vector<1x128xf32>
    %252 = arith.negf %251 : vector<1x128xf32>
    %253 = math.exp %252 : vector<1x128xf32>
    %cst_81 = arith.constant 1.000000e+00 : f32
    %254 = vector.broadcast %cst_81 : f32 to vector<1x128xf32>
    %255 = arith.addf %254, %253 : vector<1x128xf32>
    %256 = arith.divf %254, %255 : vector<1x128xf32>
    %257 = arith.mulf %248, %197 : vector<1x128xf32>
    %258 = arith.mulf %242, %250 : vector<1x128xf32>
    %259 = arith.addf %257, %258 : vector<1x128xf32>
    %260 = math.tanh %259 : vector<1x128xf32>
    %261 = arith.mulf %256, %260 : vector<1x128xf32>
    %262 = arith.index_cast %c3_i32 : i32 to index
    %c0_82 = arith.constant 0 : index
    %263 = vector.load %arg14[%262, %c0_82] : memref<8x128xf32, #tpu.memory_space<vmem>>, vector<1x128xf32>
    tpu.vector_store %arg14[%262, %c0_82], %261 {strides = array<i32>} : memref<8x128xf32, #tpu.memory_space<vmem>>, vector<1x128xf32>,
    %c4_i32 = arith.constant 4 : i32
    %264 = arith.index_cast %c4_i32 : i32 to index
    %c0_83 = arith.constant 0 : index
    %265 = vector.load %arg13[%264, %c0_83] : memref<8x512xf32, #tpu.memory_space<vmem>>, vector<1x512xf32>
    %c0_84 = arith.constant 0 : index
    %c0_85 = arith.constant 0 : index
    %266 = vector.load %arg5[%c0_84, %c0_85] : memref<128x512xf32, #tpu.memory_space<vmem>>, vector<128x512xf32>
    %cst_86 = arith.constant dense<0.000000e+00> : vector<1x512xf32>
    %267 = tpu.matmul %231, %266, %cst_86 {dimension_numbers = #tpu.dot_dimension_numbers<[1], [0], [0], [1], [0, 0, 1, 1], [], []>} : vector<1x128xf32>, vector<128x512xf32>, vector<1x512xf32> -> vector<1x512xf32>
    %268 = arith.addf %265, %267 : vector<1x512xf32>
    %269 = vector.extract_strided_slice %268 {offsets = [0, 0], sizes = [1, 128], strides = [1, 1]} : vector<1x512xf32> to vector<1x128xf32>
    %270 = arith.negf %269 : vector<1x128xf32>
    %271 = math.exp %270 : vector<1x128xf32>
    %cst_87 = arith.constant 1.000000e+00 : f32
    %272 = vector.broadcast %cst_87 : f32 to vector<1x128xf32>
    %273 = arith.addf %272, %271 : vector<1x128xf32>
    %274 = arith.divf %272, %273 : vector<1x128xf32>
    %275 = vector.extract_strided_slice %268 {offsets = [0, 128], sizes = [1, 128], strides = [1, 1]} : vector<1x512xf32> to vector<1x128xf32>
    %276 = arith.negf %275 : vector<1x128xf32>
    %277 = math.exp %276 : vector<1x128xf32>
    %cst_88 = arith.constant 1.000000e+00 : f32
    %278 = vector.broadcast %cst_88 : f32 to vector<1x128xf32>
    %279 = arith.addf %278, %277 : vector<1x128xf32>
    %280 = arith.divf %278, %279 : vector<1x128xf32>
    %281 = vector.extract_strided_slice %268 {offsets = [0, 256], sizes = [1, 128], strides = [1, 1]} : vector<1x512xf32> to vector<1x128xf32>
    %282 = math.tanh %281 : vector<1x128xf32>
    %283 = vector.extract_strided_slice %268 {offsets = [0, 384], sizes = [1, 128], strides = [1, 1]} : vector<1x512xf32> to vector<1x128xf32>
    %284 = arith.negf %283 : vector<1x128xf32>
    %285 = math.exp %284 : vector<1x128xf32>
    %cst_89 = arith.constant 1.000000e+00 : f32
    %286 = vector.broadcast %cst_89 : f32 to vector<1x128xf32>
    %287 = arith.addf %286, %285 : vector<1x128xf32>
    %288 = arith.divf %286, %287 : vector<1x128xf32>
    %289 = arith.mulf %280, %229 : vector<1x128xf32>
    %290 = arith.mulf %274, %282 : vector<1x128xf32>
    %291 = arith.addf %289, %290 : vector<1x128xf32>
    %292 = math.tanh %291 : vector<1x128xf32>
    %293 = arith.mulf %288, %292 : vector<1x128xf32>
    %294 = tpu.concatenate %293, %261 in 1 : vector<1x128xf32>, vector<1x128xf32> -> vector<1x256xf32>
    %c0_90 = arith.constant 0 : index
    %c0_91 = arith.constant 0 : index
    %295 = vector.load %arg6[%c0_90, %c0_91] : memref<256x512xf32, #tpu.memory_space<vmem>>, vector<256x512xf32>
    %cst_92 = arith.constant dense<0.000000e+00> : vector<1x512xf32>
    %296 = tpu.matmul %294, %295, %cst_92 {dimension_numbers = #tpu.dot_dimension_numbers<[1], [0], [0], [1], [0, 0, 1, 1], [], []>} : vector<1x256xf32>, vector<256x512xf32>, vector<1x512xf32> -> vector<1x512xf32>
    %c0_93 = arith.constant 0 : index
    %c0_94 = arith.constant 0 : index
    %297 = vector.load %arg7[%c0_93, %c0_94] : memref<1x512xf32, #tpu.memory_space<vmem>>, vector<1x512xf32>
    %298 = arith.addf %296, %297 : vector<1x512xf32>
    %299 = vector.extract_strided_slice %298 {offsets = [0, 0], sizes = [1, 128], strides = [1, 1]} : vector<1x512xf32> to vector<1x128xf32>
    %300 = arith.negf %299 : vector<1x128xf32>
    %301 = math.exp %300 : vector<1x128xf32>
    %cst_95 = arith.constant 1.000000e+00 : f32
    %302 = vector.broadcast %cst_95 : f32 to vector<1x128xf32>
    %303 = arith.addf %302, %301 : vector<1x128xf32>
    %304 = arith.divf %302, %303 : vector<1x128xf32>
    %305 = vector.extract_strided_slice %298 {offsets = [0, 128], sizes = [1, 128], strides = [1, 1]} : vector<1x512xf32> to vector<1x128xf32>
    %306 = arith.negf %305 : vector<1x128xf32>
    %307 = math.exp %306 : vector<1x128xf32>
    %cst_96 = arith.constant 1.000000e+00 : f32
    %308 = vector.broadcast %cst_96 : f32 to vector<1x128xf32>
    %309 = arith.addf %308, %307 : vector<1x128xf32>
    %310 = arith.divf %308, %309 : vector<1x128xf32>
    %311 = vector.extract_strided_slice %298 {offsets = [0, 256], sizes = [1, 128], strides = [1, 1]} : vector<1x512xf32> to vector<1x128xf32>
    %312 = math.tanh %311 : vector<1x128xf32>
    %313 = vector.extract_strided_slice %298 {offsets = [0, 384], sizes = [1, 128], strides = [1, 1]} : vector<1x512xf32> to vector<1x128xf32>
    %314 = arith.negf %313 : vector<1x128xf32>
    %315 = math.exp %314 : vector<1x128xf32>
    %cst_97 = arith.constant 1.000000e+00 : f32
    %316 = vector.broadcast %cst_97 : f32 to vector<1x128xf32>
    %317 = arith.addf %316, %315 : vector<1x128xf32>
    %318 = arith.divf %316, %317 : vector<1x128xf32>
    %319 = arith.mulf %310, %259 : vector<1x128xf32>
    %320 = arith.mulf %304, %312 : vector<1x128xf32>
    %321 = arith.addf %319, %320 : vector<1x128xf32>
    %322 = math.tanh %321 : vector<1x128xf32>
    %323 = arith.mulf %318, %322 : vector<1x128xf32>
    %324 = arith.index_cast %c4_i32 : i32 to index
    %c0_98 = arith.constant 0 : index
    %325 = vector.load %arg14[%324, %c0_98] : memref<8x128xf32, #tpu.memory_space<vmem>>, vector<1x128xf32>
    tpu.vector_store %arg14[%324, %c0_98], %323 {strides = array<i32>} : memref<8x128xf32, #tpu.memory_space<vmem>>, vector<1x128xf32>,
    %c5_i32 = arith.constant 5 : i32
    %326 = arith.index_cast %c5_i32 : i32 to index
    %c0_99 = arith.constant 0 : index
    %327 = vector.load %arg13[%326, %c0_99] : memref<8x512xf32, #tpu.memory_space<vmem>>, vector<1x512xf32>
    %c0_100 = arith.constant 0 : index
    %c0_101 = arith.constant 0 : index
    %328 = vector.load %arg5[%c0_100, %c0_101] : memref<128x512xf32, #tpu.memory_space<vmem>>, vector<128x512xf32>
    %cst_102 = arith.constant dense<0.000000e+00> : vector<1x512xf32>
    %329 = tpu.matmul %293, %328, %cst_102 {dimension_numbers = #tpu.dot_dimension_numbers<[1], [0], [0], [1], [0, 0, 1, 1], [], []>} : vector<1x128xf32>, vector<128x512xf32>, vector<1x512xf32> -> vector<1x512xf32>
    %330 = arith.addf %327, %329 : vector<1x512xf32>
    %331 = vector.extract_strided_slice %330 {offsets = [0, 0], sizes = [1, 128], strides = [1, 1]} : vector<1x512xf32> to vector<1x128xf32>
    %332 = arith.negf %331 : vector<1x128xf32>
    %333 = math.exp %332 : vector<1x128xf32>
    %cst_103 = arith.constant 1.000000e+00 : f32
    %334 = vector.broadcast %cst_103 : f32 to vector<1x128xf32>
    %335 = arith.addf %334, %333 : vector<1x128xf32>
    %336 = arith.divf %334, %335 : vector<1x128xf32>
    %337 = vector.extract_strided_slice %330 {offsets = [0, 128], sizes = [1, 128], strides = [1, 1]} : vector<1x512xf32> to vector<1x128xf32>
    %338 = arith.negf %337 : vector<1x128xf32>
    %339 = math.exp %338 : vector<1x128xf32>
    %cst_104 = arith.constant 1.000000e+00 : f32
    %340 = vector.broadcast %cst_104 : f32 to vector<1x128xf32>
    %341 = arith.addf %340, %339 : vector<1x128xf32>
    %342 = arith.divf %340, %341 : vector<1x128xf32>
    %343 = vector.extract_strided_slice %330 {offsets = [0, 256], sizes = [1, 128], strides = [1, 1]} : vector<1x512xf32> to vector<1x128xf32>
    %344 = math.tanh %343 : vector<1x128xf32>
    %345 = vector.extract_strided_slice %330 {offsets = [0, 384], sizes = [1, 128], strides = [1, 1]} : vector<1x512xf32> to vector<1x128xf32>
    %346 = arith.negf %345 : vector<1x128xf32>
    %347 = math.exp %346 : vector<1x128xf32>
    %cst_105 = arith.constant 1.000000e+00 : f32
    %348 = vector.broadcast %cst_105 : f32 to vector<1x128xf32>
    %349 = arith.addf %348, %347 : vector<1x128xf32>
    %350 = arith.divf %348, %349 : vector<1x128xf32>
    %351 = arith.mulf %342, %291 : vector<1x128xf32>
    %352 = arith.mulf %336, %344 : vector<1x128xf32>
    %353 = arith.addf %351, %352 : vector<1x128xf32>
    %354 = math.tanh %353 : vector<1x128xf32>
    %355 = arith.mulf %350, %354 : vector<1x128xf32>
    %356 = tpu.concatenate %355, %323 in 1 : vector<1x128xf32>, vector<1x128xf32> -> vector<1x256xf32>
    %c0_106 = arith.constant 0 : index
    %c0_107 = arith.constant 0 : index
    %357 = vector.load %arg6[%c0_106, %c0_107] : memref<256x512xf32, #tpu.memory_space<vmem>>, vector<256x512xf32>
    %cst_108 = arith.constant dense<0.000000e+00> : vector<1x512xf32>
    %358 = tpu.matmul %356, %357, %cst_108 {dimension_numbers = #tpu.dot_dimension_numbers<[1], [0], [0], [1], [0, 0, 1, 1], [], []>} : vector<1x256xf32>, vector<256x512xf32>, vector<1x512xf32> -> vector<1x512xf32>
    %c0_109 = arith.constant 0 : index
    %c0_110 = arith.constant 0 : index
    %359 = vector.load %arg7[%c0_109, %c0_110] : memref<1x512xf32, #tpu.memory_space<vmem>>, vector<1x512xf32>
    %360 = arith.addf %358, %359 : vector<1x512xf32>
    %361 = vector.extract_strided_slice %360 {offsets = [0, 0], sizes = [1, 128], strides = [1, 1]} : vector<1x512xf32> to vector<1x128xf32>
    %362 = arith.negf %361 : vector<1x128xf32>
    %363 = math.exp %362 : vector<1x128xf32>
    %cst_111 = arith.constant 1.000000e+00 : f32
    %364 = vector.broadcast %cst_111 : f32 to vector<1x128xf32>
    %365 = arith.addf %364, %363 : vector<1x128xf32>
    %366 = arith.divf %364, %365 : vector<1x128xf32>
    %367 = vector.extract_strided_slice %360 {offsets = [0, 128], sizes = [1, 128], strides = [1, 1]} : vector<1x512xf32> to vector<1x128xf32>
    %368 = arith.negf %367 : vector<1x128xf32>
    %369 = math.exp %368 : vector<1x128xf32>
    %cst_112 = arith.constant 1.000000e+00 : f32
    %370 = vector.broadcast %cst_112 : f32 to vector<1x128xf32>
    %371 = arith.addf %370, %369 : vector<1x128xf32>
    %372 = arith.divf %370, %371 : vector<1x128xf32>
    %373 = vector.extract_strided_slice %360 {offsets = [0, 256], sizes = [1, 128], strides = [1, 1]} : vector<1x512xf32> to vector<1x128xf32>
    %374 = math.tanh %373 : vector<1x128xf32>
    %375 = vector.extract_strided_slice %360 {offsets = [0, 384], sizes = [1, 128], strides = [1, 1]} : vector<1x512xf32> to vector<1x128xf32>
    %376 = arith.negf %375 : vector<1x128xf32>
    %377 = math.exp %376 : vector<1x128xf32>
    %cst_113 = arith.constant 1.000000e+00 : f32
    %378 = vector.broadcast %cst_113 : f32 to vector<1x128xf32>
    %379 = arith.addf %378, %377 : vector<1x128xf32>
    %380 = arith.divf %378, %379 : vector<1x128xf32>
    %381 = arith.mulf %372, %321 : vector<1x128xf32>
    %382 = arith.mulf %366, %374 : vector<1x128xf32>
    %383 = arith.addf %381, %382 : vector<1x128xf32>
    %384 = math.tanh %383 : vector<1x128xf32>
    %385 = arith.mulf %380, %384 : vector<1x128xf32>
    %386 = arith.index_cast %c5_i32 : i32 to index
    %c0_114 = arith.constant 0 : index
    %387 = vector.load %arg14[%386, %c0_114] : memref<8x128xf32, #tpu.memory_space<vmem>>, vector<1x128xf32>
    tpu.vector_store %arg14[%386, %c0_114], %385 {strides = array<i32>} : memref<8x128xf32, #tpu.memory_space<vmem>>, vector<1x128xf32>,
    %c6_i32 = arith.constant 6 : i32
    %388 = arith.index_cast %c6_i32 : i32 to index
    %c0_115 = arith.constant 0 : index
    %389 = vector.load %arg13[%388, %c0_115] : memref<8x512xf32, #tpu.memory_space<vmem>>, vector<1x512xf32>
    %c0_116 = arith.constant 0 : index
    %c0_117 = arith.constant 0 : index
    %390 = vector.load %arg5[%c0_116, %c0_117] : memref<128x512xf32, #tpu.memory_space<vmem>>, vector<128x512xf32>
    %cst_118 = arith.constant dense<0.000000e+00> : vector<1x512xf32>
    %391 = tpu.matmul %355, %390, %cst_118 {dimension_numbers = #tpu.dot_dimension_numbers<[1], [0], [0], [1], [0, 0, 1, 1], [], []>} : vector<1x128xf32>, vector<128x512xf32>, vector<1x512xf32> -> vector<1x512xf32>
    %392 = arith.addf %389, %391 : vector<1x512xf32>
    %393 = vector.extract_strided_slice %392 {offsets = [0, 0], sizes = [1, 128], strides = [1, 1]} : vector<1x512xf32> to vector<1x128xf32>
    %394 = arith.negf %393 : vector<1x128xf32>
    %395 = math.exp %394 : vector<1x128xf32>
    %cst_119 = arith.constant 1.000000e+00 : f32
    %396 = vector.broadcast %cst_119 : f32 to vector<1x128xf32>
    %397 = arith.addf %396, %395 : vector<1x128xf32>
    %398 = arith.divf %396, %397 : vector<1x128xf32>
    %399 = vector.extract_strided_slice %392 {offsets = [0, 128], sizes = [1, 128], strides = [1, 1]} : vector<1x512xf32> to vector<1x128xf32>
    %400 = arith.negf %399 : vector<1x128xf32>
    %401 = math.exp %400 : vector<1x128xf32>
    %cst_120 = arith.constant 1.000000e+00 : f32
    %402 = vector.broadcast %cst_120 : f32 to vector<1x128xf32>
    %403 = arith.addf %402, %401 : vector<1x128xf32>
    %404 = arith.divf %402, %403 : vector<1x128xf32>
    %405 = vector.extract_strided_slice %392 {offsets = [0, 256], sizes = [1, 128], strides = [1, 1]} : vector<1x512xf32> to vector<1x128xf32>
    %406 = math.tanh %405 : vector<1x128xf32>
    %407 = vector.extract_strided_slice %392 {offsets = [0, 384], sizes = [1, 128], strides = [1, 1]} : vector<1x512xf32> to vector<1x128xf32>
    %408 = arith.negf %407 : vector<1x128xf32>
    %409 = math.exp %408 : vector<1x128xf32>
    %cst_121 = arith.constant 1.000000e+00 : f32
    %410 = vector.broadcast %cst_121 : f32 to vector<1x128xf32>
    %411 = arith.addf %410, %409 : vector<1x128xf32>
    %412 = arith.divf %410, %411 : vector<1x128xf32>
    %413 = arith.mulf %404, %353 : vector<1x128xf32>
    %414 = arith.mulf %398, %406 : vector<1x128xf32>
    %415 = arith.addf %413, %414 : vector<1x128xf32>
    %416 = math.tanh %415 : vector<1x128xf32>
    %417 = arith.mulf %412, %416 : vector<1x128xf32>
    %418 = tpu.concatenate %417, %385 in 1 : vector<1x128xf32>, vector<1x128xf32> -> vector<1x256xf32>
    %c0_122 = arith.constant 0 : index
    %c0_123 = arith.constant 0 : index
    %419 = vector.load %arg6[%c0_122, %c0_123] : memref<256x512xf32, #tpu.memory_space<vmem>>, vector<256x512xf32>
    %cst_124 = arith.constant dense<0.000000e+00> : vector<1x512xf32>
    %420 = tpu.matmul %418, %419, %cst_124 {dimension_numbers = #tpu.dot_dimension_numbers<[1], [0], [0], [1], [0, 0, 1, 1], [], []>} : vector<1x256xf32>, vector<256x512xf32>, vector<1x512xf32> -> vector<1x512xf32>
    %c0_125 = arith.constant 0 : index
    %c0_126 = arith.constant 0 : index
    %421 = vector.load %arg7[%c0_125, %c0_126] : memref<1x512xf32, #tpu.memory_space<vmem>>, vector<1x512xf32>
    %422 = arith.addf %420, %421 : vector<1x512xf32>
    %423 = vector.extract_strided_slice %422 {offsets = [0, 0], sizes = [1, 128], strides = [1, 1]} : vector<1x512xf32> to vector<1x128xf32>
    %424 = arith.negf %423 : vector<1x128xf32>
    %425 = math.exp %424 : vector<1x128xf32>
    %cst_127 = arith.constant 1.000000e+00 : f32
    %426 = vector.broadcast %cst_127 : f32 to vector<1x128xf32>
    %427 = arith.addf %426, %425 : vector<1x128xf32>
    %428 = arith.divf %426, %427 : vector<1x128xf32>
    %429 = vector.extract_strided_slice %422 {offsets = [0, 128], sizes = [1, 128], strides = [1, 1]} : vector<1x512xf32> to vector<1x128xf32>
    %430 = arith.negf %429 : vector<1x128xf32>
    %431 = math.exp %430 : vector<1x128xf32>
    %cst_128 = arith.constant 1.000000e+00 : f32
    %432 = vector.broadcast %cst_128 : f32 to vector<1x128xf32>
    %433 = arith.addf %432, %431 : vector<1x128xf32>
    %434 = arith.divf %432, %433 : vector<1x128xf32>
    %435 = vector.extract_strided_slice %422 {offsets = [0, 256], sizes = [1, 128], strides = [1, 1]} : vector<1x512xf32> to vector<1x128xf32>
    %436 = math.tanh %435 : vector<1x128xf32>
    %437 = vector.extract_strided_slice %422 {offsets = [0, 384], sizes = [1, 128], strides = [1, 1]} : vector<1x512xf32> to vector<1x128xf32>
    %438 = arith.negf %437 : vector<1x128xf32>
    %439 = math.exp %438 : vector<1x128xf32>
    %cst_129 = arith.constant 1.000000e+00 : f32
    %440 = vector.broadcast %cst_129 : f32 to vector<1x128xf32>
    %441 = arith.addf %440, %439 : vector<1x128xf32>
    %442 = arith.divf %440, %441 : vector<1x128xf32>
    %443 = arith.mulf %434, %383 : vector<1x128xf32>
    %444 = arith.mulf %428, %436 : vector<1x128xf32>
    %445 = arith.addf %443, %444 : vector<1x128xf32>
    %446 = math.tanh %445 : vector<1x128xf32>
    %447 = arith.mulf %442, %446 : vector<1x128xf32>
    %448 = arith.index_cast %c6_i32 : i32 to index
    %c0_130 = arith.constant 0 : index
    %449 = vector.load %arg14[%448, %c0_130] : memref<8x128xf32, #tpu.memory_space<vmem>>, vector<1x128xf32>
    tpu.vector_store %arg14[%448, %c0_130], %447 {strides = array<i32>} : memref<8x128xf32, #tpu.memory_space<vmem>>, vector<1x128xf32>,
    %c7_i32 = arith.constant 7 : i32
    %450 = arith.index_cast %c7_i32 : i32 to index
    %c0_131 = arith.constant 0 : index
    %451 = vector.load %arg13[%450, %c0_131] : memref<8x512xf32, #tpu.memory_space<vmem>>, vector<1x512xf32>
    %c0_132 = arith.constant 0 : index
    %c0_133 = arith.constant 0 : index
    %452 = vector.load %arg5[%c0_132, %c0_133] : memref<128x512xf32, #tpu.memory_space<vmem>>, vector<128x512xf32>
    %cst_134 = arith.constant dense<0.000000e+00> : vector<1x512xf32>
    %453 = tpu.matmul %417, %452, %cst_134 {dimension_numbers = #tpu.dot_dimension_numbers<[1], [0], [0], [1], [0, 0, 1, 1], [], []>} : vector<1x128xf32>, vector<128x512xf32>, vector<1x512xf32> -> vector<1x512xf32>
    %454 = arith.addf %451, %453 : vector<1x512xf32>
    %455 = vector.extract_strided_slice %454 {offsets = [0, 0], sizes = [1, 128], strides = [1, 1]} : vector<1x512xf32> to vector<1x128xf32>
    %456 = arith.negf %455 : vector<1x128xf32>
    %457 = math.exp %456 : vector<1x128xf32>
    %cst_135 = arith.constant 1.000000e+00 : f32
    %458 = vector.broadcast %cst_135 : f32 to vector<1x128xf32>
    %459 = arith.addf %458, %457 : vector<1x128xf32>
    %460 = arith.divf %458, %459 : vector<1x128xf32>
    %461 = vector.extract_strided_slice %454 {offsets = [0, 128], sizes = [1, 128], strides = [1, 1]} : vector<1x512xf32> to vector<1x128xf32>
    %462 = arith.negf %461 : vector<1x128xf32>
    %463 = math.exp %462 : vector<1x128xf32>
    %cst_136 = arith.constant 1.000000e+00 : f32
    %464 = vector.broadcast %cst_136 : f32 to vector<1x128xf32>
    %465 = arith.addf %464, %463 : vector<1x128xf32>
    %466 = arith.divf %464, %465 : vector<1x128xf32>
    %467 = vector.extract_strided_slice %454 {offsets = [0, 256], sizes = [1, 128], strides = [1, 1]} : vector<1x512xf32> to vector<1x128xf32>
    %468 = math.tanh %467 : vector<1x128xf32>
    %469 = vector.extract_strided_slice %454 {offsets = [0, 384], sizes = [1, 128], strides = [1, 1]} : vector<1x512xf32> to vector<1x128xf32>
    %470 = arith.negf %469 : vector<1x128xf32>
    %471 = math.exp %470 : vector<1x128xf32>
    %cst_137 = arith.constant 1.000000e+00 : f32
    %472 = vector.broadcast %cst_137 : f32 to vector<1x128xf32>
    %473 = arith.addf %472, %471 : vector<1x128xf32>
    %474 = arith.divf %472, %473 : vector<1x128xf32>
    %475 = arith.mulf %466, %415 : vector<1x128xf32>
    %476 = arith.mulf %460, %468 : vector<1x128xf32>
    %477 = arith.addf %475, %476 : vector<1x128xf32>
    %478 = math.tanh %477 : vector<1x128xf32>
    %479 = arith.mulf %474, %478 : vector<1x128xf32>
    %480 = tpu.concatenate %479, %447 in 1 : vector<1x128xf32>, vector<1x128xf32> -> vector<1x256xf32>
    %c0_138 = arith.constant 0 : index
    %c0_139 = arith.constant 0 : index
    %481 = vector.load %arg6[%c0_138, %c0_139] : memref<256x512xf32, #tpu.memory_space<vmem>>, vector<256x512xf32>
    %cst_140 = arith.constant dense<0.000000e+00> : vector<1x512xf32>
    %482 = tpu.matmul %480, %481, %cst_140 {dimension_numbers = #tpu.dot_dimension_numbers<[1], [0], [0], [1], [0, 0, 1, 1], [], []>} : vector<1x256xf32>, vector<256x512xf32>, vector<1x512xf32> -> vector<1x512xf32>
    %c0_141 = arith.constant 0 : index
    %c0_142 = arith.constant 0 : index
    %483 = vector.load %arg7[%c0_141, %c0_142] : memref<1x512xf32, #tpu.memory_space<vmem>>, vector<1x512xf32>
    %484 = arith.addf %482, %483 : vector<1x512xf32>
    %485 = vector.extract_strided_slice %484 {offsets = [0, 0], sizes = [1, 128], strides = [1, 1]} : vector<1x512xf32> to vector<1x128xf32>
    %486 = arith.negf %485 : vector<1x128xf32>
    %487 = math.exp %486 : vector<1x128xf32>
    %cst_143 = arith.constant 1.000000e+00 : f32
    %488 = vector.broadcast %cst_143 : f32 to vector<1x128xf32>
    %489 = arith.addf %488, %487 : vector<1x128xf32>
    %490 = arith.divf %488, %489 : vector<1x128xf32>
    %491 = vector.extract_strided_slice %484 {offsets = [0, 128], sizes = [1, 128], strides = [1, 1]} : vector<1x512xf32> to vector<1x128xf32>
    %492 = arith.negf %491 : vector<1x128xf32>
    %493 = math.exp %492 : vector<1x128xf32>
    %cst_144 = arith.constant 1.000000e+00 : f32
    %494 = vector.broadcast %cst_144 : f32 to vector<1x128xf32>
    %495 = arith.addf %494, %493 : vector<1x128xf32>
    %496 = arith.divf %494, %495 : vector<1x128xf32>
    %497 = vector.extract_strided_slice %484 {offsets = [0, 256], sizes = [1, 128], strides = [1, 1]} : vector<1x512xf32> to vector<1x128xf32>
    %498 = math.tanh %497 : vector<1x128xf32>
    %499 = vector.extract_strided_slice %484 {offsets = [0, 384], sizes = [1, 128], strides = [1, 1]} : vector<1x512xf32> to vector<1x128xf32>
    %500 = arith.negf %499 : vector<1x128xf32>
    %501 = math.exp %500 : vector<1x128xf32>
    %cst_145 = arith.constant 1.000000e+00 : f32
    %502 = vector.broadcast %cst_145 : f32 to vector<1x128xf32>
    %503 = arith.addf %502, %501 : vector<1x128xf32>
    %504 = arith.divf %502, %503 : vector<1x128xf32>
    %505 = arith.mulf %496, %445 : vector<1x128xf32>
    %506 = arith.mulf %490, %498 : vector<1x128xf32>
    %507 = arith.addf %505, %506 : vector<1x128xf32>
    %508 = math.tanh %507 : vector<1x128xf32>
    %509 = arith.mulf %504, %508 : vector<1x128xf32>
    %510 = arith.index_cast %c7_i32 : i32 to index
    %c0_146 = arith.constant 0 : index
    %511 = vector.load %arg14[%510, %c0_146] : memref<8x128xf32, #tpu.memory_space<vmem>>, vector<1x128xf32>
    tpu.vector_store %arg14[%510, %c0_146], %509 {strides = array<i32>} : memref<8x128xf32, #tpu.memory_space<vmem>>, vector<1x128xf32>,
    %c8_i32 = arith.constant 8 : i32
    %c0_147 = arith.constant 0 : index
    %c0_148 = arith.constant 0 : index
    %512 = vector.load %arg15[%c0_147, %c0_148] : memref<1x128xf32, #tpu.memory_space<vmem>>, vector<1x128xf32>
    tpu.vector_store %arg15[%c0_147, %c0_148], %479 {strides = array<i32>} : memref<1x128xf32, #tpu.memory_space<vmem>>, vector<1x128xf32>,
    %c0_149 = arith.constant 0 : index
    %c0_150 = arith.constant 0 : index
    %513 = vector.load %arg16[%c0_149, %c0_150] : memref<1x128xf32, #tpu.memory_space<vmem>>, vector<1x128xf32>
    tpu.vector_store %arg16[%c0_149, %c0_150], %477 {strides = array<i32>} : memref<1x128xf32, #tpu.memory_space<vmem>>, vector<1x128xf32>,
    %c0_151 = arith.constant 0 : index
    %c0_152 = arith.constant 0 : index
    %514 = vector.load %arg17[%c0_151, %c0_152] : memref<1x128xf32, #tpu.memory_space<vmem>>, vector<1x128xf32>
    tpu.vector_store %arg17[%c0_151, %c0_152], %509 {strides = array<i32>} : memref<1x128xf32, #tpu.memory_space<vmem>>, vector<1x128xf32>,
    %c0_153 = arith.constant 0 : index
    %c0_154 = arith.constant 0 : index
    %515 = vector.load %arg18[%c0_153, %c0_154] : memref<1x128xf32, #tpu.memory_space<vmem>>, vector<1x128xf32>
    tpu.vector_store %arg18[%c0_153, %c0_154], %507 {strides = array<i32>} : memref<1x128xf32, #tpu.memory_space<vmem>>, vector<1x128xf32>,
    %c0_155 = arith.constant 0 : index
    %c0_156 = arith.constant 0 : index
    %516 = vector.load %arg14[%c0_155, %c0_156] : memref<8x128xf32, #tpu.memory_space<vmem>>, vector<8x128xf32>
    %c0_157 = arith.constant 0 : index
    %c0_158 = arith.constant 0 : index
    %517 = vector.load %arg8[%c0_157, %c0_158] : memref<128x128xf32, #tpu.memory_space<vmem>>, vector<128x128xf32>
    %cst_159 = arith.constant dense<0.000000e+00> : vector<8x128xf32>
    %518 = tpu.matmul %516, %517, %cst_159 {dimension_numbers = #tpu.dot_dimension_numbers<[1], [0], [0], [1], [0, 0, 1, 1], [], []>} : vector<8x128xf32>, vector<128x128xf32>, vector<8x128xf32> -> vector<8x128xf32>
    %c0_160 = arith.constant 0 : index
    %c0_161 = arith.constant 0 : index
    %519 = vector.load %arg9[%c0_160, %c0_161] : memref<1x128xf32, #tpu.memory_space<vmem>>, vector<1x128xf32>
    %520 = vector.broadcast %519 : vector<1x128xf32> to vector<8x128xf32>
    %521 = arith.addf %518, %520 : vector<8x128xf32>
    %cst_162 = arith.constant 0.000000e+00 : f32
    %522 = vector.broadcast %cst_162 : f32 to vector<8x128xf32>
    %523 = arith.maximumf %521, %522 : vector<8x128xf32>
    %c0_163 = arith.constant 0 : index
    %c0_164 = arith.constant 0 : index
    %524 = vector.load %arg10[%c0_163, %c0_164] : memref<128x128xf32, #tpu.memory_space<vmem>>, vector<128x128xf32>
    %cst_165 = arith.constant dense<0.000000e+00> : vector<8x128xf32>
    %525 = tpu.matmul %523, %524, %cst_165 {dimension_numbers = #tpu.dot_dimension_numbers<[1], [0], [0], [1], [0, 0, 1, 1], [], []>} : vector<8x128xf32>, vector<128x128xf32>, vector<8x128xf32> -> vector<8x128xf32>
    %c0_166 = arith.constant 0 : index
    %c0_167 = arith.constant 0 : index
    %526 = vector.load %arg11[%c0_166, %c0_167] : memref<1x128xf32, #tpu.memory_space<vmem>>, vector<1x128xf32>
    %527 = vector.broadcast %526 : vector<1x128xf32> to vector<8x128xf32>
    %528 = arith.addf %525, %527 : vector<8x128xf32>
    %c0_168 = arith.constant 0 : index
    %c0_169 = arith.constant 0 : index
    %529 = vector.load %arg12[%c0_168, %c0_169] : memref<8x128xf32, #tpu.memory_space<vmem>>, vector<8x128xf32>
    tpu.vector_store %arg12[%c0_168, %c0_169], %528 {strides = array<i32>} : memref<8x128xf32, #tpu.memory_space<vmem>>, vector<8x128xf32>,
    return
  }
  func.func @transform_0(%arg0: i32) -> (i32, i32) {
    %c0_i32 = arith.constant 0 : i32
    %c0_i32_0 = arith.constant 0 : i32
    return %arg0, %c0_i32 : i32, i32
  }
  func.func @transform_1(%arg0: i32) -> (i32, i32) {
    %c0_i32 = arith.constant 0 : i32
    %c0_i32_0 = arith.constant 0 : i32
    return %arg0, %c0_i32 : i32, i32
  }
  func.func @transform_2(%arg0: i32) -> (i32, i32) {
    %c0_i32 = arith.constant 0 : i32
    %c0_i32_0 = arith.constant 0 : i32
    %c0_i32_1 = arith.constant 0 : i32
    return %c0_i32, %c0_i32_0 : i32, i32
  }
  func.func @transform_3(%arg0: i32) -> (i32, i32) {
    %c0_i32 = arith.constant 0 : i32
    %c0_i32_0 = arith.constant 0 : i32
    %c0_i32_1 = arith.constant 0 : i32
    return %c0_i32, %c0_i32_0 : i32, i32
  }
  func.func @transform_4(%arg0: i32) -> (i32, i32) {
    %c0_i32 = arith.constant 0 : i32
    %c0_i32_0 = arith.constant 0 : i32
    %c0_i32_1 = arith.constant 0 : i32
    return %c0_i32, %c0_i32_0 : i32, i32
  }
  func.func @transform_5(%arg0: i32) -> (i32, i32) {
    %c0_i32 = arith.constant 0 : i32
    %c0_i32_0 = arith.constant 0 : i32
    %c0_i32_1 = arith.constant 0 : i32
    return %c0_i32, %c0_i32_0 : i32, i32
  }
  func.func @transform_6(%arg0: i32) -> (i32, i32) {
    %c0_i32 = arith.constant 0 : i32
    %c0_i32_0 = arith.constant 0 : i32
    %c0_i32_1 = arith.constant 0 : i32
    return %c0_i32, %c0_i32_0 : i32, i32
  }
  func.func @transform_7(%arg0: i32) -> (i32, i32) {
    %c0_i32 = arith.constant 0 : i32
    %c0_i32_0 = arith.constant 0 : i32
    %c0_i32_1 = arith.constant 0 : i32
    return %c0_i32, %c0_i32_0 : i32, i32
  }
  func.func @transform_8(%arg0: i32) -> (i32, i32) {
    %c0_i32 = arith.constant 0 : i32
    %c0_i32_0 = arith.constant 0 : i32
    %c0_i32_1 = arith.constant 0 : i32
    return %c0_i32, %c0_i32_0 : i32, i32
  }
  func.func @transform_9(%arg0: i32) -> (i32, i32) {
    %c0_i32 = arith.constant 0 : i32
    %c0_i32_0 = arith.constant 0 : i32
    %c0_i32_1 = arith.constant 0 : i32
    return %c0_i32, %c0_i32_0 : i32, i32
  }
  func.func @transform_10(%arg0: i32) -> (i32, i32) {
    %c0_i32 = arith.constant 0 : i32
    %c0_i32_0 = arith.constant 0 : i32
    %c0_i32_1 = arith.constant 0 : i32
    return %c0_i32, %c0_i32_0 : i32, i32
  }
  func.func @transform_11(%arg0: i32) -> (i32, i32) {
    %c0_i32 = arith.constant 0 : i32
    %c0_i32_0 = arith.constant 0 : i32
    return %arg0, %c0_i32 : i32, i32
  }
}

</mosaic_0001>

<llo_original>
// kernel: tpu_custom_call.1
$region0: #{tpu_custom_call.1}
  #allocation0 [shape = 'u32[]', space=smem, size = 0x4, offset = 0x4, fixed_abs, tag = 'smem constant byte address 0x4 - core index']
  #allocation1 [shape = 'u32[144,128]{1,0:T(1,128)}', space=vmem, size = 0x12000, scoped, tag = 'internal scratch']
  #allocation2 [shape = 'f32[8,512]{1,0:T(8,128)}', space=vmem, size = 0x4000, scoped, tag = 'scratch operand']
  #allocation3 [shape = 'f32[8,128]{1,0:T(8,128)}', space=vmem, size = 0x1000, scoped, tag = 'scratch operand']
  #allocation4 [shape = 'f32[1,128]{1,0:T(1,128)}', space=vmem, size = 0x200, scoped, tag = 'scratch operand']
  #allocation5 [shape = 'f32[1,128]{1,0:T(1,128)}', space=vmem, size = 0x200, scoped, tag = 'scratch operand']
  #allocation6 [shape = 'f32[1,128]{1,0:T(1,128)}', space=vmem, size = 0x200, scoped, tag = 'scratch operand']
  #allocation7 [shape = 'f32[1,128]{1,0:T(1,128)}', space=vmem, size = 0x200, scoped, tag = 'scratch operand']
  %s0 = inlined_call_operand.hbm [shape: f32[8,32], index: 0, kind: input, shape index: {}]
  %s1 = inlined_call_operand.hbm [shape: f32[8,32], index: 1, kind: input, shape index: {}]
  %s2 = inlined_call_operand.hbm [shape: f32[32,512], index: 2, kind: input, shape index: {}]
  %s3 = inlined_call_operand.vmem [shape: f32[1,512], index: 3, kind: input, shape index: {}]
  %s4 = inlined_call_operand.hbm [shape: f32[128,512], index: 4, kind: input, shape index: {}]
  %s5 = inlined_call_operand.hbm [shape: f32[256,512], index: 5, kind: input, shape index: {}]
  %s6 = inlined_call_operand.vmem [shape: f32[1,512], index: 6, kind: input, shape index: {}]
  %s7 = inlined_call_operand.hbm [shape: f32[128,128], index: 7, kind: input, shape index: {}]
  %s8 = inlined_call_operand.vmem [shape: f32[1,128], index: 8, kind: input, shape index: {}]
  %s9 = inlined_call_operand.hbm [shape: f32[128,128], index: 9, kind: input, shape index: {}]
  %s10 = inlined_call_operand.vmem [shape: f32[1,128], index: 10, kind: input, shape index: {}]
  %s11 = inlined_call_operand.hbm [shape: f32[8,128], index: 11, kind: output, shape index: {}]
  %s12 = sld [smem:[#allocation0]]
  $region86: #{tpu_custom_call.1} parent=0
    _
  %s14 = ssub.s32 1, %s12
  %s15 = scalar_select 0, %s14, %s12
  $region1: #{tpu_custom_call.1} parent=0
    #allocation8 [shape = 'u8[4096]{0}', space=vmem, size = 0x1000, scoped, tag = 'input window, operand 0, single buffered']
    #allocation9 [shape = 's32[1]{0}', space=sflag, size = 0x4, scoped, tag = 'scoped memory for tpu_custom_call.1']
    #allocation10 [shape = 's32[1]{0}', space=sflag, size = 0x4, scoped, tag = 'scoped memory for tpu_custom_call.1']
    #allocation11 [shape = 'u8[4096]{0}', space=vmem, size = 0x1000, scoped, tag = 'input window, operand 1, single buffered']
    #allocation12 [shape = 's32[1]{0}', space=sflag, size = 0x4, scoped, tag = 'scoped memory for tpu_custom_call.1']
    #allocation13 [shape = 'u8[65536]{0}', space=vmem, size = 0x10000, scoped, tag = 'input window, operand 2, single buffered']
    #allocation14 [shape = 'u8[262144]{0}', space=vmem, size = 0x40000, scoped, tag = 'input window, operand 4, single buffered']
    #allocation15 [shape = 's32[1]{0}', space=sflag, size = 0x4, scoped, tag = 'scoped memory for tpu_custom_call.1']
    #allocation16 [shape = 'u8[524288]{0}', space=vmem, size = 0x80000, scoped, tag = 'input window, operand 5, single buffered']
    #allocation17 [shape = 'u8[65536]{0}', space=vmem, size = 0x10000, scoped, tag = 'input window, operand 7, single buffered']
    #allocation18 [shape = 's32[1]{0}', space=sflag, size = 0x4, scoped, tag = 'scoped memory for tpu_custom_call.1']
    #allocation19 [shape = 'u8[65536]{0}', space=vmem, size = 0x10000, scoped, tag = 'input window, operand 9, single buffered']
    #allocation20 [shape = 'u8[4096]{0}', space=vmem, size = 0x1000, scoped, tag = 'output window, operand 0, single buffered']
    %16 = vsyncpa [#allocation9], 0
    %17 = vsyncpa [#allocation12], 0
    %18 = vsyncpa [#allocation15], 0
    %19 = vsyncpa [#allocation18], 0
    %20 = vsyncpa [#allocation10], 0
    // Predicated region
    $region2: #{tpu_custom_call.1} parent=1 // pred_check
      _
    $region3: #{tpu_custom_call.1} parent=1 // pred_check_branch
      %22 = sbr.rel (0) target = $region5
    $region4: #{tpu_custom_call.1} parent=1 // pred_region
      %s24 = ssub.s32 128, 128
      %25 = vsyncadd [#allocation9], %s24
      %s27 = sshll.u32 [#allocation8], 4
      %s28 = int_to_ptr.vmem [resolvable:$true] %s27
      %30 = dma.hbm_to_vmem [thread:$0]  %s0, 128, %s28, [#allocation9]
    $region5: #{tpu_custom_call.1} parent=1 // pred_fallthru
      _
    // Predicated region
    $region6: #{tpu_custom_call.1} parent=1 // pred_check
      _
    $region7: #{tpu_custom_call.1} parent=1 // pred_check_branch
      %32 = sbr.rel (0) target = $region9
    $region8: #{tpu_custom_call.1} parent=1 // pred_region
      %s34 = ssub.s32 128, 128
      %35 = vsyncadd [#allocation12], %s34
      %s37 = sshll.u32 [#allocation11], 4
      %s38 = int_to_ptr.vmem [resolvable:$true] %s37
      %40 = dma.hbm_to_vmem [thread:$0]  %s1, 128, %s38, [#allocation12]
    $region9: #{tpu_custom_call.1} parent=1 // pred_fallthru
      _
    // Predicated region
    $region10: #{tpu_custom_call.1} parent=1 // pred_check
      _
    $region11: #{tpu_custom_call.1} parent=1 // pred_check_branch
      %42 = sbr.rel (0) target = $region13
    $region12: #{tpu_custom_call.1} parent=1 // pred_region
      %s44 = ssub.s32 2048, 2048
      %45 = vsyncadd [#allocation12], %s44
      %s46 = sshll.u32 [#allocation13], 4
      %s47 = int_to_ptr.vmem [resolvable:$true] %s46
      %52 = dma.hbm_to_vmem [thread:$0]  %s2, 2048, %s47, [#allocation12], 512, 512, 32
    $region13: #{tpu_custom_call.1} parent=1 // pred_fallthru
      _
    // Predicated region
    $region14: #{tpu_custom_call.1} parent=1 // pred_check
      _
    $region15: #{tpu_custom_call.1} parent=1 // pred_check_branch
      %54 = sbr.rel (0) target = $region17
    $region16: #{tpu_custom_call.1} parent=1 // pred_region
      _
    $region17: #{tpu_custom_call.1} parent=1 // pred_fallthru
      _
    // Predicated region
    $region18: #{tpu_custom_call.1} parent=1 // pred_check
      _
    $region19: #{tpu_custom_call.1} parent=1 // pred_check_branch
      %56 = sbr.rel (0) target = $region21
    $region20: #{tpu_custom_call.1} parent=1 // pred_region
      %s58 = ssub.s32 8192, 8192
      %59 = vsyncadd [#allocation15], %s58
      %s60 = sshll.u32 [#allocation14], 4
      %s61 = int_to_ptr.vmem [resolvable:$true] %s60
      %66 = dma.hbm_to_vmem [thread:$0]  %s4, 8192, %s61, [#allocation15], 512, 512, 32
    $region21: #{tpu_custom_call.1} parent=1 // pred_fallthru
      _
    // Predicated region
    $region22: #{tpu_custom_call.1} parent=1 // pred_check
      _
    $region23: #{tpu_custom_call.1} parent=1 // pred_check_branch
      %68 = sbr.rel (0) target = $region25
    $region24: #{tpu_custom_call.1} parent=1 // pred_region
      %s70 = ssub.s32 16384, 16384
      %71 = vsyncadd [#allocation15], %s70
      %s72 = sshll.u32 [#allocation16], 4
      %s73 = int_to_ptr.vmem [resolvable:$true] %s72
      %78 = dma.hbm_to_vmem [thread:$0]  %s5, 16384, %s73, [#allocation15], 512, 512, 32
    $region25: #{tpu_custom_call.1} parent=1 // pred_fallthru
      _
    // Predicated region
    $region26: #{tpu_custom_call.1} parent=1 // pred_check
      _
    $region27: #{tpu_custom_call.1} parent=1 // pred_check_branch
      %80 = sbr.rel (0) target = $region29
    $region28: #{tpu_custom_call.1} parent=1 // pred_region
      _
    $region29: #{tpu_custom_call.1} parent=1 // pred_fallthru
      _
    // Predicated region
    $region30: #{tpu_custom_call.1} parent=1 // pred_check
      _
    $region31: #{tpu_custom_call.1} parent=1 // pred_check_branch
      %82 = sbr.rel (0) target = $region33
    $region32: #{tpu_custom_call.1} parent=1 // pred_region
      %s84 = ssub.s32 2048, 2048
      %85 = vsyncadd [#allocation18], %s84
      %s86 = sshll.u32 [#allocation17], 4
      %s87 = int_to_ptr.vmem [resolvable:$true] %s86
      %92 = dma.hbm_to_vmem [thread:$0]  %s7, 2048, %s87, [#allocation18], 128, 128, 8
    $region33: #{tpu_custom_call.1} parent=1 // pred_fallthru
      _
    // Predicated region
    $region34: #{tpu_custom_call.1} parent=1 // pred_check
      _
    $region35: #{tpu_custom_call.1} parent=1 // pred_check_branch
      %94 = sbr.rel (0) target = $region37
    $region36: #{tpu_custom_call.1} parent=1 // pred_region
      _
    $region37: #{tpu_custom_call.1} parent=1 // pred_fallthru
      _
    // Predicated region
    $region38: #{tpu_custom_call.1} parent=1 // pred_check
      _
    $region39: #{tpu_custom_call.1} parent=1 // pred_check_branch
      %96 = sbr.rel (0) target = $region41
    $region40: #{tpu_custom_call.1} parent=1 // pred_region
      %s98 = ssub.s32 2048, 2048
      %99 = vsyncadd [#allocation18], %s98
      %s100 = sshll.u32 [#allocation19], 4
      %s101 = int_to_ptr.vmem [resolvable:$true] %s100
      %106 = dma.hbm_to_vmem [thread:$0]  %s9, 2048, %s101, [#allocation18], 128, 128, 8
    $region41: #{tpu_custom_call.1} parent=1 // pred_fallthru
      _
    // Predicated region
    $region42: #{tpu_custom_call.1} parent=1 // pred_check
      _
    $region43: #{tpu_custom_call.1} parent=1 // pred_check_branch
      %108 = sbr.rel (0) target = $region45
    $region44: #{tpu_custom_call.1} parent=1 // pred_region
      _
    $region45: #{tpu_custom_call.1} parent=1 // pred_fallthru
      _
    // Predicated region
    $region46: #{tpu_custom_call.1} parent=1 // pred_check
      _
    $region47: #{tpu_custom_call.1} parent=1 // pred_check_branch
      %110 = sbr.rel (0) target = $region49
    $region48: #{tpu_custom_call.1} parent=1 // pred_region
      %111 = dma.done [#allocation9], 128
    $region49: #{tpu_custom_call.1} parent=1 // pred_fallthru
      _
    // Predicated region
    $region50: #{tpu_custom_call.1} parent=1 // pred_check
      _
    $region51: #{tpu_custom_call.1} parent=1 // pred_check_branch
      %113 = sbr.rel (0) target = $region53
    $region52: #{tpu_custom_call.1} parent=1 // pred_region
      %114 = dma.done [#allocation12], 128
    $region53: #{tpu_custom_call.1} parent=1 // pred_fallthru
      _
    // Predicated region
    $region54: #{tpu_custom_call.1} parent=1 // pred_check
      _
    $region55: #{tpu_custom_call.1} parent=1 // pred_check_branch
      %116 = sbr.rel (0) target = $region57
    $region56: #{tpu_custom_call.1} parent=1 // pred_region
      %117 = dma.done [#allocation12], 2048
    $region57: #{tpu_custom_call.1} parent=1 // pred_fallthru
      _
    // Predicated region
    $region58: #{tpu_custom_call.1} parent=1 // pred_check
      _
    $region59: #{tpu_custom_call.1} parent=1 // pred_check_branch
      %119 = sbr.rel (0) target = $region61
    $region60: #{tpu_custom_call.1} parent=1 // pred_region
      %120 = dma.done [#allocation15], 8192
    $region61: #{tpu_custom_call.1} parent=1 // pred_fallthru
      _
    // Predicated region
    $region62: #{tpu_custom_call.1} parent=1 // pred_check
      _
    $region63: #{tpu_custom_call.1} parent=1 // pred_check_branch
      %122 = sbr.rel (0) target = $region65
    $region64: #{tpu_custom_call.1} parent=1 // pred_region
      %123 = dma.done [#allocation15], 16384
    $region65: #{tpu_custom_call.1} parent=1 // pred_fallthru
      _
    // Predicated region
    $region66: #{tpu_custom_call.1} parent=1 // pred_check
      _
    $region67: #{tpu_custom_call.1} parent=1 // pred_check_branch
      %125 = sbr.rel (0) target = $region69
    $region68: #{tpu_custom_call.1} parent=1 // pred_region
      %126 = dma.done [#allocation18], 2048
    $region69: #{tpu_custom_call.1} parent=1 // pred_fallthru
      _
    // Predicated region
    $region70: #{tpu_custom_call.1} parent=1 // pred_check
      _
    $region71: #{tpu_custom_call.1} parent=1 // pred_check_branch
      %128 = sbr.rel (0) target = $region73
    $region72: #{tpu_custom_call.1} parent=1 // pred_region
      %129 = dma.done [#allocation18], 2048
    $region73: #{tpu_custom_call.1} parent=1 // pred_fallthru
      _
    %p130 = scmp.eq.s32.totalorder 0, 0
    // Predicated region
    $region74: #{tpu_custom_call.1} parent=1 // pred_check
      %p131 = pneg %p130
    $region75: #{tpu_custom_call.1} parent=1 // pred_check_branch
      %133 = sbr.rel (%p131) target = $region77
    $region76: #{tpu_custom_call.1} parent=1 // pred_region
      %134 = vst [vmem:[#allocation4] sm:$0x1] 0.0
      %135 = vst [vmem:[#allocation5] sm:$0x1] 0.0
      %136 = vst [vmem:[#allocation6] sm:$0x1] 0.0
      %137 = vst [vmem:[#allocation7] sm:$0x1] 0.0
    $region77: #{tpu_custom_call.1} parent=1 // pred_fallthru
      _
    %v138 = vld [vmem:[#allocation8] sm:$0xff]
    %v139 = vld [vmem:[#allocation11] sm:$0xff]
    %v140 = vadd.f32 %v138, %v139
    %v141 = vld [vmem:[#allocation13] sm:$0xff]
    %v142 = vld [vmem:[#allocation13 + $0x8] sm:$0xff]
    %v143 = vld [vmem:[#allocation13 + $0x10] sm:$0xff]
    %v144 = vld [vmem:[#allocation13 + $0x18] sm:$0xff]
    %v145 = vld [vmem:[#allocation13 + $0x20] sm:$0xff]
    %v146 = vld [vmem:[#allocation13 + $0x28] sm:$0xff]
    %v147 = vld [vmem:[#allocation13 + $0x30] sm:$0xff]
    %v148 = vld [vmem:[#allocation13 + $0x38] sm:$0xff]
    %v149 = vld [vmem:[#allocation13 + $0x40] sm:$0xff]
    %v150 = vld [vmem:[#allocation13 + $0x48] sm:$0xff]
    %v151 = vld [vmem:[#allocation13 + $0x50] sm:$0xff]
    %v152 = vld [vmem:[#allocation13 + $0x58] sm:$0xff]
    %v153 = vld [vmem:[#allocation13 + $0x60] sm:$0xff]
    %v154 = vld [vmem:[#allocation13 + $0x68] sm:$0xff]
    %v155 = vld [vmem:[#allocation13 + $0x70] sm:$0xff]
    %v156 = vld [vmem:[#allocation13 + $0x78] sm:$0xff]
    %v157 = vld [vmem:[%s3] sm:$0xf]
    %v159 = vlaneseq
    %v160 = vshrl.u32 %v159, 7
    %v161 = vsub.s32 0, %v160
    %v162 = vrot.slane %v157, %v161
    %v163 = vlaneseq
    %v164 = vshrl.u32 %v163, 7
    %v165 = vsub.s32 1, %v164
    %v166 = vrot.slane %v157, %v165
    %v167 = vlaneseq
    %v168 = vshrl.u32 %v167, 7
    %v169 = vsub.s32 2, %v168
    %v170 = vrot.slane %v157, %v169
    %v171 = vlaneseq
    %v172 = vshrl.u32 %v171, 7
    %v173 = vsub.s32 3, %v172
    %v174 = vrot.slane %v157, %v173
    %vm179 = vcmask 261120
    %v181 = vsel %vm179, %v140, 0
    %183 = vmatprep.subr.mxu0 0.0
    %184 = vmatpush1.msra.mxu0 0.0
    %185 = vmatprep.subr.mxu0 0.0
    %186 = vmatpush1.msra.mxu0 0.0
    %187 = vmatprep.subr.mxu0 0.0
    %188 = vmatpush1.msra.mxu0 0.0
    %189 = vmatprep.subr.mxu0 0.0
    %190 = vmatpush1.msra.mxu0 0.0
    %191 = vmatprep.subr.mxu0 0.0
    %192 = vmatpush1.msra.mxu0 0.0
    %193 = vmatprep.subr.mxu0 0.0
    %194 = vmatpush1.msra.mxu0 0.0
    %195 = vmatprep.subr.mxu0 0.0
    %196 = vmatpush1.msra.mxu0 0.0
    %197 = vmatprep.subr.mxu0 0.0
    %198 = vmatpush1.msra.mxu0 0.0
    %199 = vmatprep.subr.mxu0 0.0
    %200 = vmatpush1.msra.mxu0 0.0
    %201 = vmatprep.subr.mxu0 0.0
    %202 = vmatpush1.msra.mxu0 0.0
    %203 = vmatprep.subr.mxu0 0.0
    %204 = vmatpush1.msra.mxu0 0.0
    %205 = vmatprep.subr.mxu0 0.0
    %206 = vmatpush1.msra.mxu0 0.0
    %207 = vmatprep.subr.mxu0 %v154
    %208 = vmatpush1.msra.mxu0 %v153
    %209 = vmatprep.subr.mxu0 %v150
    %210 = vmatpush1.msra.mxu0 %v149
    %211 = vmatprep.subr.mxu0 %v146
    %212 = vmatpush1.msra.mxu0 %v145
    %213 = vmatprep.subr.mxu0 %v142
    %214 = vmatpush1.msra.mxu0 %v141
    %215 = vmatprep.subr.mxu0 0.0
    %216 = vmatpush2.msra.mxu0 0.0
    %217 = vmatprep.subr.mxu0 0.0
    %218 = vmatpush2.msra.mxu0 0.0
    %219 = vmatprep.subr.mxu0 0.0
    %220 = vmatpush2.msra.mxu0 0.0
    %221 = vmatprep.subr.mxu0 0.0
    %222 = vmatpush2.msra.mxu0 0.0
    %223 = vmatprep.subr.mxu0 0.0
    %224 = vmatpush2.msra.mxu0 0.0
    %225 = vmatprep.subr.mxu0 0.0
    %226 = vmatpush2.msra.mxu0 0.0
    %227 = vmatprep.subr.mxu0 0.0
    %228 = vmatpush2.msra.mxu0 0.0
    %229 = vmatprep.subr.mxu0 0.0
    %230 = vmatpush2.msra.mxu0 0.0
    %231 = vmatprep.subr.mxu0 0.0
    %232 = vmatpush2.msra.mxu0 0.0
    %233 = vmatprep.subr.mxu0 0.0
    %234 = vmatpush2.msra.mxu0 0.0
    %235 = vmatprep.subr.mxu0 0.0
    %236 = vmatpush2.msra.mxu0 0.0
    %237 = vmatprep.subr.mxu0 0.0
    %238 = vmatpush2.msra.mxu0 0.0
    %239 = vmatprep.subr.mxu0 0.0
    %240 = vmatpush2.msra.mxu0 0.0
    %241 = vmatprep.subr.mxu0 0.0
    %242 = vmatpush2.msra.mxu0 0.0
    %243 = vmatprep.subr.mxu0 0.0
    %244 = vmatpush2.msra.mxu0 0.0
    %245 = vmatprep.subr.mxu0 0.0
    %246 = vmatpush2.msra.mxu0 0.0
    %247 = vmatprep.mubr.f32.mxu0 0.0
    %248 = vmatmul.mubr.f32.gmra.mxu0 %v181
    %v249 = vpop.f32.mrf.mxu0
    %v250 = vadd.f32 %v162, %v249
    %v251 = vpop.f32.mrf.mxu0
    %v252 = vadd.f32 %v166, %v251
    %253 = vdwg.mxu0
    %254 = vmatprep.subr.mxu0 0.0
    %255 = vmatpush1.msra.mxu0 0.0
    %256 = vmatprep.subr.mxu0 0.0
    %257 = vmatpush1.msra.mxu0 0.0
    %258 = vmatprep.subr.mxu0 0.0
    %259 = vmatpush1.msra.mxu0 0.0
    %260 = vmatprep.subr.mxu0 0.0
    %261 = vmatpush1.msra.mxu0 0.0
    %262 = vmatprep.subr.mxu0 0.0
    %263 = vmatpush1.msra.mxu0 0.0
    %264 = vmatprep.subr.mxu0 0.0
    %265 = vmatpush1.msra.mxu0 0.0
    %266 = vmatprep.subr.mxu0 0.0
    %267 = vmatpush1.msra.mxu0 0.0
    %268 = vmatprep.subr.mxu0 0.0
    %269 = vmatpush1.msra.mxu0 0.0
    %270 = vmatprep.subr.mxu0 0.0
    %271 = vmatpush1.msra.mxu0 0.0
    %272 = vmatprep.subr.mxu0 0.0
    %273 = vmatpush1.msra.mxu0 0.0
    %274 = vmatprep.subr.mxu0 0.0
    %275 = vmatpush1.msra.mxu0 0.0
    %276 = vmatprep.subr.mxu0 0.0
    %277 = vmatpush1.msra.mxu0 0.0
    %278 = vmatprep.subr.mxu0 %v156
    %279 = vmatpush1.msra.mxu0 %v155
    %280 = vmatprep.subr.mxu0 %v152
    %281 = vmatpush1.msra.mxu0 %v151
    %282 = vmatprep.subr.mxu0 %v148
    %283 = vmatpush1.msra.mxu0 %v147
    %284 = vmatprep.subr.mxu0 %v144
    %285 = vmatpush1.msra.mxu0 %v143
    %286 = vmatprep.subr.mxu0 0.0
    %287 = vmatpush2.msra.mxu0 0.0
    %288 = vmatprep.subr.mxu0 0.0
    %289 = vmatpush2.msra.mxu0 0.0
    %290 = vmatprep.subr.mxu0 0.0
    %291 = vmatpush2.msra.mxu0 0.0
    %292 = vmatprep.subr.mxu0 0.0
    %293 = vmatpush2.msra.mxu0 0.0
    %294 = vmatprep.subr.mxu0 0.0
    %295 = vmatpush2.msra.mxu0 0.0
    %296 = vmatprep.subr.mxu0 0.0
    %297 = vmatpush2.msra.mxu0 0.0
    %298 = vmatprep.subr.mxu0 0.0
    %299 = vmatpush2.msra.mxu0 0.0
    %300 = vmatprep.subr.mxu0 0.0
    %301 = vmatpush2.msra.mxu0 0.0
    %302 = vmatprep.subr.mxu0 0.0
    %303 = vmatpush2.msra.mxu0 0.0
    %304 = vmatprep.subr.mxu0 0.0
    %305 = vmatpush2.msra.mxu0 0.0
    %306 = vmatprep.subr.mxu0 0.0
    %307 = vmatpush2.msra.mxu0 0.0
    %308 = vmatprep.subr.mxu0 0.0
    %309 = vmatpush2.msra.mxu0 0.0
    %310 = vmatprep.subr.mxu0 0.0
    %311 = vmatpush2.msra.mxu0 0.0
    %312 = vmatprep.subr.mxu0 0.0
    %313 = vmatpush2.msra.mxu0 0.0
    %314 = vmatprep.subr.mxu0 0.0
    %315 = vmatpush2.msra.mxu0 0.0
    %316 = vmatprep.subr.mxu0 0.0
    %317 = vmatpush2.msra.mxu0 0.0
    %318 = vmatprep.mubr.f32.mxu0 0.0
    %319 = vmatmul.mubr.f32.gmra.mxu0 %v181
    %v320 = vpop.f32.mrf.mxu0
    %v321 = vadd.f32 %v170, %v320
    %v322 = vpop.f32.mrf.mxu0
    %v323 = vadd.f32 %v174, %v322
    %324 = vdwg.mxu0
    %325 = vst [vmem:[#allocation2] sm:$0xff] %v250
    %326 = vst [vmem:[#allocation2 + $0x8] sm:$0xff] %v252
    %327 = vst [vmem:[#allocation2 + $0x10] sm:$0xff] %v321
    %328 = vst [vmem:[#allocation2 + $0x18] sm:$0xff] %v323
    %v329 = vld [vmem:[#allocation4] sm:$0x1]
    %v330 = vld [vmem:[#allocation5] sm:$0x1]
    %v331 = vld [vmem:[#allocation6] sm:$0x1]
    %v332 = vld [vmem:[#allocation7] sm:$0x1]
    %v333 = vld [vmem:[#allocation2] ss:$8 sm:$0xf]
    %v334 = vld [vmem:[#allocation14] sm:$0xff]
    %v335 = vld [vmem:[#allocation14 + $0x8] sm:$0xff]
    %v336 = vld [vmem:[#allocation14 + $0x10] sm:$0xff]
    %v337 = vld [vmem:[#allocation14 + $0x18] sm:$0xff]
    %v338 = vld [vmem:[#allocation14 + $0x20] sm:$0xff]
    %v339 = vld [vmem:[#allocation14 + $0x28] sm:$0xff]
    %v340 = vld [vmem:[#allocation14 + $0x30] sm:$0xff]
    %v341 = vld [vmem:[#allocation14 + $0x38] sm:$0xff]
    %v342 = vld [vmem:[#allocation14 + $0x40] sm:$0xff]
    %v343 = vld [vmem:[#allocation14 + $0x48] sm:$0xff]
    %v344 = vld [vmem:[#allocation14 + $0x50] sm:$0xff]
    %v345 = vld [vmem:[#allocation14 + $0x58] sm:$0xff]
    %v346 = vld [vmem:[#allocation14 + $0x60] sm:$0xff]
    %v347 = vld [vmem:[#allocation14 + $0x68] sm:$0xff]
    %v348 = vld [vmem:[#allocation14 + $0x70] sm:$0xff]
    %v349 = vld [vmem:[#allocation14 + $0x78] sm:$0xff]
    %v350 = vld [vmem:[#allocation14 + $0x80] sm:$0xff]
    %v351 = vld [vmem:[#allocation14 + $0x88] sm:$0xff]
    %v352 = vld [vmem:[#allocation14 + $0x90] sm:$0xff]
    %v353 = vld [vmem:[#allocation14 + $0x98] sm:$0xff]
    %v354 = vld [vmem:[#allocation14 + $0xa0] sm:$0xff]
    %v355 = vld [vmem:[#allocation14 + $0xa8] sm:$0xff]
    %v356 = vld [vmem:[#allocation14 + $0xb0] sm:$0xff]
    %v357 = vld [vmem:[#allocation14 + $0xb8] sm:$0xff]
    %v358 = vld [vmem:[#allocation14 + $0xc0] sm:$0xff]
    %v359 = vld [vmem:[#allocation14 + $0xc8] sm:$0xff]
    %v360 = vld [vmem:[#allocation14 + $0xd0] sm:$0xff]
    %v361 = vld [vmem:[#allocation14 + $0xd8] sm:$0xff]
    %v362 = vld [vmem:[#allocation14 + $0xe0] sm:$0xff]
    %v363 = vld [vmem:[#allocation14 + $0xe8] sm:$0xff]
    %v364 = vld [vmem:[#allocation14 + $0xf0] sm:$0xff]
    %v365 = vld [vmem:[#allocation14 + $0xf8] sm:$0xff]
    %v366 = vld [vmem:[#allocation14 + $0x100] sm:$0xff]
    %v367 = vld [vmem:[#allocation14 + $0x108] sm:$0xff]
    %v368 = vld [vmem:[#allocation14 + $0x110] sm:$0xff]
    %v369 = vld [vmem:[#allocation14 + $0x118] sm:$0xff]
    %v370 = vld [vmem:[#allocation14 + $0x120] sm:$0xff]
    %v371 = vld [vmem:[#allocation14 + $0x128] sm:$0xff]
    %v372 = vld [vmem:[#allocation14 + $0x130] sm:$0xff]
    %v373 = vld [vmem:[#allocation14 + $0x138] sm:$0xff]
    %v374 = vld [vmem:[#allocation14 + $0x140] sm:$0xff]
    %v375 = vld [vmem:[#allocation14 + $0x148] sm:$0xff]
    %v376 = vld [vmem:[#allocation14 + $0x150] sm:$0xff]
    %v377 = vld [vmem:[#allocation14 + $0x158] sm:$0xff]
    %v378 = vld [vmem:[#allocation14 + $0x160] sm:$0xff]
    %v379 = vld [vmem:[#allocation14 + $0x168] sm:$0xff]
    %v380 = vld [vmem:[#allocation14 + $0x170] sm:$0xff]
    %v381 = vld [vmem:[#allocation14 + $0x178] sm:$0xff]
    %v382 = vld [vmem:[#allocation14 + $0x180] sm:$0xff]
    %v383 = vld [vmem:[#allocation14 + $0x188] sm:$0xff]
    %v384 = vld [vmem:[#allocation14 + $0x190] sm:$0xff]
    %v385 = vld [vmem:[#allocation14 + $0x198] sm:$0xff]
    %v386 = vld [vmem:[#allocation14 + $0x1a0] sm:$0xff]
    %v387 = vld [vmem:[#allocation14 + $0x1a8] sm:$0xff]
    %v388 = vld [vmem:[#allocation14 + $0x1b0] sm:$0xff]
    %v389 = vld [vmem:[#allocation14 + $0x1b8] sm:$0xff]
    %v390 = vld [vmem:[#allocation14 + $0x1c0] sm:$0xff]
    %v391 = vld [vmem:[#allocation14 + $0x1c8] sm:$0xff]
    %v392 = vld [vmem:[#allocation14 + $0x1d0] sm:$0xff]
    %v393 = vld [vmem:[#allocation14 + $0x1d8] sm:$0xff]
    %v394 = vld [vmem:[#allocation14 + $0x1e0] sm:$0xff]
    %v395 = vld [vmem:[#allocation14 + $0x1e8] sm:$0xff]
    %v396 = vld [vmem:[#allocation14 + $0x1f0] sm:$0xff]
    %v397 = vld [vmem:[#allocation14 + $0x1f8] sm:$0xff]
    %398 = vmatprep.subr.mxu0 %v395
    %399 = vmatpush1.msra.mxu0 %v394
    %400 = vmatprep.subr.mxu0 %v391
    %401 = vmatpush1.msra.mxu0 %v390
    %402 = vmatprep.subr.mxu0 %v387
    %403 = vmatpush1.msra.mxu0 %v386
    %404 = vmatprep.subr.mxu0 %v383
    %405 = vmatpush1.msra.mxu0 %v382
    %406 = vmatprep.subr.mxu0 %v379
    %407 = vmatpush1.msra.mxu0 %v378
    %408 = vmatprep.subr.mxu0 %v375
    %409 = vmatpush1.msra.mxu0 %v374
    %410 = vmatprep.subr.mxu0 %v371
    %411 = vmatpush1.msra.mxu0 %v370
    %412 = vmatprep.subr.mxu0 %v367
    %413 = vmatpush1.msra.mxu0 %v366
    %414 = vmatprep.subr.mxu0 %v363
    %415 = vmatpush1.msra.mxu0 %v362
    %416 = vmatprep.subr.mxu0 %v359
    %417 = vmatpush1.msra.mxu0 %v358
    %418 = vmatprep.subr.mxu0 %v355
    %419 = vmatpush1.msra.mxu0 %v354
    %420 = vmatprep.subr.mxu0 %v351
    %421 = vmatpush1.msra.mxu0 %v350
    %422 = vmatprep.subr.mxu0 %v347
    %423 = vmatpush1.msra.mxu0 %v346
    %424 = vmatprep.subr.mxu0 %v343
    %425 = vmatpush1.msra.mxu0 %v342
    %426 = vmatprep.subr.mxu0 %v339
    %427 = vmatpush1.msra.mxu0 %v338
    %428 = vmatprep.subr.mxu0 %v335
    %429 = vmatpush1.msra.mxu0 %v334
    %430 = vmatprep.subr.mxu0 0.0
    %431 = vmatpush2.msra.mxu0 0.0
    %432 = vmatprep.subr.mxu0 0.0
    %433 = vmatpush2.msra.mxu0 0.0
    %434 = vmatprep.subr.mxu0 0.0
    %435 = vmatpush2.msra.mxu0 0.0
    %436 = vmatprep.subr.mxu0 0.0
    %437 = vmatpush2.msra.mxu0 0.0
    %438 = vmatprep.subr.mxu0 0.0
    %439 = vmatpush2.msra.mxu0 0.0
    %440 = vmatprep.subr.mxu0 0.0
    %441 = vmatpush2.msra.mxu0 0.0
    %442 = vmatprep.subr.mxu0 0.0
    %443 = vmatpush2.msra.mxu0 0.0
    %444 = vmatprep.subr.mxu0 0.0
    %445 = vmatpush2.msra.mxu0 0.0
    %446 = vmatprep.subr.mxu0 0.0
    %447 = vmatpush2.msra.mxu0 0.0
    %448 = vmatprep.subr.mxu0 0.0
    %449 = vmatpush2.msra.mxu0 0.0
    %450 = vmatprep.subr.mxu0 0.0
    %451 = vmatpush2.msra.mxu0 0.0
    %452 = vmatprep.subr.mxu0 0.0
    %453 = vmatpush2.msra.mxu0 0.0
    %454 = vmatprep.subr.mxu0 0.0
    %455 = vmatpush2.msra.mxu0 0.0
    %456 = vmatprep.subr.mxu0 0.0
    %457 = vmatpush2.msra.mxu0 0.0
    %458 = vmatprep.subr.mxu0 0.0
    %459 = vmatpush2.msra.mxu0 0.0
    %460 = vmatprep.subr.mxu0 0.0
    %461 = vmatpush2.msra.mxu0 0.0
    %462 = vmatprep.mubr.f32.mxu0 0.0
    %463 = vmatmul.mubr.f32.gmra.mxu0 %v329
    %v464 = vpop.f32.mrf.mxu0
    %v465 = vadd.f32 0.0, %v464
    %v466 = vpop.f32.mrf.mxu0
    %v467 = vadd.f32 0.0, %v466
    %468 = vdwg.mxu0
    %469 = vmatprep.subr.mxu0 %v397
    %470 = vmatpush1.msra.mxu0 %v396
    %471 = vmatprep.subr.mxu0 %v393
    %472 = vmatpush1.msra.mxu0 %v392
    %473 = vmatprep.subr.mxu0 %v389
    %474 = vmatpush1.msra.mxu0 %v388
    %475 = vmatprep.subr.mxu0 %v385
    %476 = vmatpush1.msra.mxu0 %v384
    %477 = vmatprep.subr.mxu0 %v381
    %478 = vmatpush1.msra.mxu0 %v380
    %479 = vmatprep.subr.mxu0 %v377
    %480 = vmatpush1.msra.mxu0 %v376
    %481 = vmatprep.subr.mxu0 %v373
    %482 = vmatpush1.msra.mxu0 %v372
    %483 = vmatprep.subr.mxu0 %v369
    %484 = vmatpush1.msra.mxu0 %v368
    %485 = vmatprep.subr.mxu0 %v365
    %486 = vmatpush1.msra.mxu0 %v364
    %487 = vmatprep.subr.mxu0 %v361
    %488 = vmatpush1.msra.mxu0 %v360
    %489 = vmatprep.subr.mxu0 %v357
    %490 = vmatpush1.msra.mxu0 %v356
    %491 = vmatprep.subr.mxu0 %v353
    %492 = vmatpush1.msra.mxu0 %v352
    %493 = vmatprep.subr.mxu0 %v349
    %494 = vmatpush1.msra.mxu0 %v348
    %495 = vmatprep.subr.mxu0 %v345
    %496 = vmatpush1.msra.mxu0 %v344
    %497 = vmatprep.subr.mxu0 %v341
    %498 = vmatpush1.msra.mxu0 %v340
    %499 = vmatprep.subr.mxu0 %v337
    %500 = vmatpush1.msra.mxu0 %v336
    %501 = vmatprep.subr.mxu0 0.0
    %502 = vmatpush2.msra.mxu0 0.0
    %503 = vmatprep.subr.mxu0 0.0
    %504 = vmatpush2.msra.mxu0 0.0
    %505 = vmatprep.subr.mxu0 0.0
    %506 = vmatpush2.msra.mxu0 0.0
    %507 = vmatprep.subr.mxu0 0.0
    %508 = vmatpush2.msra.mxu0 0.0
    %509 = vmatprep.subr.mxu0 0.0
    %510 = vmatpush2.msra.mxu0 0.0
    %511 = vmatprep.subr.mxu0 0.0
    %512 = vmatpush2.msra.mxu0 0.0
    %513 = vmatprep.subr.mxu0 0.0
    %514 = vmatpush2.msra.mxu0 0.0
    %515 = vmatprep.subr.mxu0 0.0
    %516 = vmatpush2.msra.mxu0 0.0
    %517 = vmatprep.subr.mxu0 0.0
    %518 = vmatpush2.msra.mxu0 0.0
    %519 = vmatprep.subr.mxu0 0.0
    %520 = vmatpush2.msra.mxu0 0.0
    %521 = vmatprep.subr.mxu0 0.0
    %522 = vmatpush2.msra.mxu0 0.0
    %523 = vmatprep.subr.mxu0 0.0
    %524 = vmatpush2.msra.mxu0 0.0
    %525 = vmatprep.subr.mxu0 0.0
    %526 = vmatpush2.msra.mxu0 0.0
    %527 = vmatprep.subr.mxu0 0.0
    %528 = vmatpush2.msra.mxu0 0.0
    %529 = vmatprep.subr.mxu0 0.0
    %530 = vmatpush2.msra.mxu0 0.0
    %531 = vmatprep.subr.mxu0 0.0
    %532 = vmatpush2.msra.mxu0 0.0
    %533 = vmatprep.mubr.f32.mxu0 0.0
    %534 = vmatmul.mubr.f32.gmra.mxu0 %v329
    %v535 = vpop.f32.mrf.mxu0
    %v536 = vadd.f32 0.0, %v535
    %v537 = vpop.f32.mrf.mxu0
    %v538 = vadd.f32 0.0, %v537
    %539 = vdwg.mxu0
    %v544 = vcombine.low %v465, %v467
    %v545 = vcombine.low %v536, %v538
    %v547 = vunpack.c.l.s4 1966171168
    %v548 = vunpack.c.0.s8 %v547
    %v549 = vlaneseq
    %v550 = vshrl.u32 %v549, 7
    %v551 = vsub.s32 %v548, %v550
    %v552 = vrot.slane %v544, %v551
    %v554 = vunpack.c.l.s4 1966171168
    %v555 = vunpack.c.0.s8 %v554
    %v556 = vlaneseq
    %v557 = vshrl.u32 %v556, 7
    %v558 = vsub.s32 %v555, %v557
    %v559 = vrot.slane %v545, %v558
    %v560 = vcombine.low %v552, %v559
    %v562 = vunpack.c.l.s4 1966171168
    %v563 = vunpack.c.0.s8 %v562
    %v564 = vlaneseq
    %v565 = vshrl.u32 %v564, 7
    %v566 = vsub.s32 %v563, %v565
    %v567 = vrot.slane %v560, %v566
    %v569 = vadd.f32 %v333, %v567
    %v570 = vxor.u32 %v569, 2147483648
    %v571 = vmul.f32 %v570, 1.442695
    %v572 = vpow.pop %v571
    %v573 = vadd.f32 %v572, 1.0
    %v574 = vrcp.pop %v573
    %v575 = vmul.f32 1.0, %v574
    %v577 = vrot.slane %v569, 1
    %v579 = vxor.u32 %v577, 2147483648
    %v580 = vmul.f32 %v579, 1.442695
    %v581 = vpow.pop %v580
    %v582 = vadd.f32 %v581, 1.0
    %v583 = vrcp.pop %v582
    %v584 = vmul.f32 1.0, %v583
    %v585 = vrot.slane %v569, 2
    %v587 = vtanh.pop %v585
    %v588 = vrot.slane %v569, 3
    %v590 = vxor.u32 %v588, 2147483648
    %v591 = vmul.f32 %v590, 1.442695
    %v592 = vpow.pop %v591
    %v593 = vadd.f32 %v592, 1.0
    %v594 = vrcp.pop %v593
    %v595 = vmul.f32 1.0, %v594
    %v596 = vmul.f32 %v584, %v330
    %v597 = vmul.f32 %v575, %v587
    %v598 = vadd.f32 %v596, %v597
    %v599 = vtanh.pop %v598
    %v600 = vmul.f32 %v595, %v599
    %v601 = vld [vmem:[#allocation16] sm:$0xff]
    %v602 = vld [vmem:[#allocation16 + $0x8] sm:$0xff]
    %v603 = vld [vmem:[#allocation16 + $0x10] sm:$0xff]
    %v604 = vld [vmem:[#allocation16 + $0x18] sm:$0xff]
    %v605 = vld [vmem:[#allocation16 + $0x20] sm:$0xff]
    %v606 = vld [vmem:[#allocation16 + $0x28] sm:$0xff]
    %v607 = vld [vmem:[#allocation16 + $0x30] sm:$0xff]
    %v608 = vld [vmem:[#allocation16 + $0x38] sm:$0xff]
    %v609 = vld [vmem:[#allocation16 + $0x40] sm:$0xff]
    %v610 = vld [vmem:[#allocation16 + $0x48] sm:$0xff]
    %v611 = vld [vmem:[#allocation16 + $0x50] sm:$0xff]
    %v612 = vld [vmem:[#allocation16 + $0x58] sm:$0xff]
    %v613 = vld [vmem:[#allocation16 + $0x60] sm:$0xff]
    %v614 = vld [vmem:[#allocation16 + $0x68] sm:$0xff]
    %v615 = vld [vmem:[#allocation16 + $0x70] sm:$0xff]
    %v616 = vld [vmem:[#allocation16 + $0x78] sm:$0xff]
    %v617 = vld [vmem:[#allocation16 + $0x80] sm:$0xff]
    %v618 = vld [vmem:[#allocation16 + $0x88] sm:$0xff]
    %v619 = vld [vmem:[#allocation16 + $0x90] sm:$0xff]
    %v620 = vld [vmem:[#allocation16 + $0x98] sm:$0xff]
    %v621 = vld [vmem:[#allocation16 + $0xa0] sm:$0xff]
    %v622 = vld [vmem:[#allocation16 + $0xa8] sm:$0xff]
    %v623 = vld [vmem:[#allocation16 + $0xb0] sm:$0xff]
    %v624 = vld [vmem:[#allocation16 + $0xb8] sm:$0xff]
    %v625 = vld [vmem:[#allocation16 + $0xc0] sm:$0xff]
    %v626 = vld [vmem:[#allocation16 + $0xc8] sm:$0xff]
    %v627 = vld [vmem:[#allocation16 + $0xd0] sm:$0xff]
    %v628 = vld [vmem:[#allocation16 + $0xd8] sm:$0xff]
    %v629 = vld [vmem:[#allocation16 + $0xe0] sm:$0xff]
    %v630 = vld [vmem:[#allocation16 + $0xe8] sm:$0xff]
    %v631 = vld [vmem:[#allocation16 + $0xf0] sm:$0xff]
    %v632 = vld [vmem:[#allocation16 + $0xf8] sm:$0xff]
    %v633 = vld [vmem:[#allocation16 + $0x100] sm:$0xff]
    %v634 = vld [vmem:[#allocation16 + $0x108] sm:$0xff]
    %v635 = vld [vmem:[#allocation16 + $0x110] sm:$0xff]
    %v636 = vld [vmem:[#allocation16 + $0x118] sm:$0xff]
    %v637 = vld [vmem:[#allocation16 + $0x120] sm:$0xff]
    %v638 = vld [vmem:[#allocation16 + $0x128] sm:$0xff]
    %v639 = vld [vmem:[#allocation16 + $0x130] sm:$0xff]
    %v640 = vld [vmem:[#allocation16 + $0x138] sm:$0xff]
    %v641 = vld [vmem:[#allocation16 + $0x140] sm:$0xff]
    %v642 = vld [vmem:[#allocation16 + $0x148] sm:$0xff]
    %v643 = vld [vmem:[#allocation16 + $0x150] sm:$0xff]
    %v644 = vld [vmem:[#allocation16 + $0x158] sm:$0xff]
    %v645 = vld [vmem:[#allocation16 + $0x160] sm:$0xff]
    %v646 = vld [vmem:[#allocation16 + $0x168] sm:$0xff]
    %v647 = vld [vmem:[#allocation16 + $0x170] sm:$0xff]
    %v648 = vld [vmem:[#allocation16 + $0x178] sm:$0xff]
    %v649 = vld [vmem:[#allocation16 + $0x180] sm:$0xff]
    %v650 = vld [vmem:[#allocation16 + $0x188] sm:$0xff]
    %v651 = vld [vmem:[#allocation16 + $0x190] sm:$0xff]
    %v652 = vld [vmem:[#allocation16 + $0x198] sm:$0xff]
    %v653 = vld [vmem:[#allocation16 + $0x1a0] sm:$0xff]
    %v654 = vld [vmem:[#allocation16 + $0x1a8] sm:$0xff]
    %v655 = vld [vmem:[#allocation16 + $0x1b0] sm:$0xff]
    %v656 = vld [vmem:[#allocation16 + $0x1b8] sm:$0xff]
    %v657 = vld [vmem:[#allocation16 + $0x1c0] sm:$0xff]
    %v658 = vld [vmem:[#allocation16 + $0x1c8] sm:$0xff]
    %v659 = vld [vmem:[#allocation16 + $0x1d0] sm:$0xff]
    %v660 = vld [vmem:[#allocation16 + $0x1d8] sm:$0xff]
    %v661 = vld [vmem:[#allocation16 + $0x1e0] sm:$0xff]
    %v662 = vld [vmem:[#allocation16 + $0x1e8] sm:$0xff]
    %v663 = vld [vmem:[#allocation16 + $0x1f0] sm:$0xff]
    %v664 = vld [vmem:[#allocation16 + $0x1f8] sm:$0xff]
    %v665 = vld [vmem:[#allocation16 + $0x200] sm:$0xff]
    %v666 = vld [vmem:[#allocation16 + $0x208] sm:$0xff]
    %v667 = vld [vmem:[#allocation16 + $0x210] sm:$0xff]
    %v668 = vld [vmem:[#allocation16 + $0x218] sm:$0xff]
    %v669 = vld [vmem:[#allocation16 + $0x220] sm:$0xff]
    %v670 = vld [vmem:[#allocation16 + $0x228] sm:$0xff]
    %v671 = vld [vmem:[#allocation16 + $0x230] sm:$0xff]
    %v672 = vld [vmem:[#allocation16 + $0x238] sm:$0xff]
    %v673 = vld [vmem:[#allocation16 + $0x240] sm:$0xff]
    %v674 = vld [vmem:[#allocation16 + $0x248] sm:$0xff]
    %v675 = vld [vmem:[#allocation16 + $0x250] sm:$0xff]
    %v676 = vld [vmem:[#allocation16 + $0x258] sm:$0xff]
    %v677 = vld [vmem:[#allocation16 + $0x260] sm:$0xff]
    %v678 = vld [vmem:[#allocation16 + $0x268] sm:$0xff]
    %v679 = vld [vmem:[#allocation16 + $0x270] sm:$0xff]
    %v680 = vld [vmem:[#allocation16 + $0x278] sm:$0xff]
    %v681 = vld [vmem:[#allocation16 + $0x280] sm:$0xff]
    %v682 = vld [vmem:[#allocation16 + $0x288] sm:$0xff]
    %v683 = vld [vmem:[#allocation16 + $0x290] sm:$0xff]
    %v684 = vld [vmem:[#allocation16 + $0x298] sm:$0xff]
    %v685 = vld [vmem:[#allocation16 + $0x2a0] sm:$0xff]
    %v686 = vld [vmem:[#allocation16 + $0x2a8] sm:$0xff]
    %v687 = vld [vmem:[#allocation16 + $0x2b0] sm:$0xff]
    %v688 = vld [vmem:[#allocation16 + $0x2b8] sm:$0xff]
    %v689 = vld [vmem:[#allocation16 + $0x2c0] sm:$0xff]
    %v690 = vld [vmem:[#allocation16 + $0x2c8] sm:$0xff]
    %v691 = vld [vmem:[#allocation16 + $0x2d0] sm:$0xff]
    %v692 = vld [vmem:[#allocation16 + $0x2d8] sm:$0xff]
    %v693 = vld [vmem:[#allocation16 + $0x2e0] sm:$0xff]
    %v694 = vld [vmem:[#allocation16 + $0x2e8] sm:$0xff]
    %v695 = vld [vmem:[#allocation16 + $0x2f0] sm:$0xff]
    %v696 = vld [vmem:[#allocation16 + $0x2f8] sm:$0xff]
    %v697 = vld [vmem:[#allocation16 + $0x300] sm:$0xff]
    %v698 = vld [vmem:[#allocation16 + $0x308] sm:$0xff]
    %v699 = vld [vmem:[#allocation16 + $0x310] sm:$0xff]
    %v700 = vld [vmem:[#allocation16 + $0x318] sm:$0xff]
    %v701 = vld [vmem:[#allocation16 + $0x320] sm:$0xff]
    %v702 = vld [vmem:[#allocation16 + $0x328] sm:$0xff]
    %v703 = vld [vmem:[#allocation16 + $0x330] sm:$0xff]
    %v704 = vld [vmem:[#allocation16 + $0x338] sm:$0xff]
    %v705 = vld [vmem:[#allocation16 + $0x340] sm:$0xff]
    %v706 = vld [vmem:[#allocation16 + $0x348] sm:$0xff]
    %v707 = vld [vmem:[#allocation16 + $0x350] sm:$0xff]
    %v708 = vld [vmem:[#allocation16 + $0x358] sm:$0xff]
    %v709 = vld [vmem:[#allocation16 + $0x360] sm:$0xff]
    %v710 = vld [vmem:[#allocation16 + $0x368] sm:$0xff]
    %v711 = vld [vmem:[#allocation16 + $0x370] sm:$0xff]
    %v712 = vld [vmem:[#allocation16 + $0x378] sm:$0xff]
    %v713 = vld [vmem:[#allocation16 + $0x380] sm:$0xff]
    %v714 = vld [vmem:[#allocation16 + $0x388] sm:$0xff]
    %v715 = vld [vmem:[#allocation16 + $0x390] sm:$0xff]
    %v716 = vld [vmem:[#allocation16 + $0x398] sm:$0xff]
    %v717 = vld [vmem:[#allocation16 + $0x3a0] sm:$0xff]
    %v718 = vld [vmem:[#allocation16 + $0x3a8] sm:$0xff]
    %v719 = vld [vmem:[#allocation16 + $0x3b0] sm:$0xff]
    %v720 = vld [vmem:[#allocation16 + $0x3b8] sm:$0xff]
    %v721 = vld [vmem:[#allocation16 + $0x3c0] sm:$0xff]
    %v722 = vld [vmem:[#allocation16 + $0x3c8] sm:$0xff]
    %v723 = vld [vmem:[#allocation16 + $0x3d0] sm:$0xff]
    %v724 = vld [vmem:[#allocation16 + $0x3d8] sm:$0xff]
    %v725 = vld [vmem:[#allocation16 + $0x3e0] sm:$0xff]
    %v726 = vld [vmem:[#allocation16 + $0x3e8] sm:$0xff]
    %v727 = vld [vmem:[#allocation16 + $0x3f0] sm:$0xff]
    %v728 = vld [vmem:[#allocation16 + $0x3f8] sm:$0xff]
    %v729 = vld [vmem:[%s6] sm:$0xf]
    %v731 = vlaneseq
    %v732 = vshrl.u32 %v731, 7
    %v733 = vsub.s32 0, %v732
    %v734 = vrot.slane %v729, %v733
    %v735 = vlaneseq
    %v736 = vshrl.u32 %v735, 7
    %v737 = vsub.s32 1, %v736
    %v738 = vrot.slane %v729, %v737
    %v739 = vlaneseq
    %v740 = vshrl.u32 %v739, 7
    %v741 = vsub.s32 2, %v740
    %v742 = vrot.slane %v729, %v741
    %v743 = vlaneseq
    %v744 = vshrl.u32 %v743, 7
    %v745 = vsub.s32 3, %v744
    %v746 = vrot.slane %v729, %v745
    %751 = vmatprep.subr.mxu0 %v662
    %752 = vmatpush1.msra.mxu0 %v661
    %753 = vmatprep.subr.mxu0 %v658
    %754 = vmatpush1.msra.mxu0 %v657
    %755 = vmatprep.subr.mxu0 %v654
    %756 = vmatpush1.msra.mxu0 %v653
    %757 = vmatprep.subr.mxu0 %v650
    %758 = vmatpush1.msra.mxu0 %v649
    %759 = vmatprep.subr.mxu0 %v646
    %760 = vmatpush1.msra.mxu0 %v645
    %761 = vmatprep.subr.mxu0 %v642
    %762 = vmatpush1.msra.mxu0 %v641
    %763 = vmatprep.subr.mxu0 %v638
    %764 = vmatpush1.msra.mxu0 %v637
    %765 = vmatprep.subr.mxu0 %v634
    %766 = vmatpush1.msra.mxu0 %v633
    %767 = vmatprep.subr.mxu0 %v630
    %768 = vmatpush1.msra.mxu0 %v629
    %769 = vmatprep.subr.mxu0 %v626
    %770 = vmatpush1.msra.mxu0 %v625
    %771 = vmatprep.subr.mxu0 %v622
    %772 = vmatpush1.msra.mxu0 %v621
    %773 = vmatprep.subr.mxu0 %v618
    %774 = vmatpush1.msra.mxu0 %v617
    %775 = vmatprep.subr.mxu0 %v614
    %776 = vmatpush1.msra.mxu0 %v613
    %777 = vmatprep.subr.mxu0 %v610
    %778 = vmatpush1.msra.mxu0 %v609
    %779 = vmatprep.subr.mxu0 %v606
    %780 = vmatpush1.msra.mxu0 %v605
    %781 = vmatprep.subr.mxu0 %v602
    %782 = vmatpush1.msra.mxu0 %v601
    %783 = vmatprep.subr.mxu0 %v726
    %784 = vmatpush2.msra.mxu0 %v725
    %785 = vmatprep.subr.mxu0 %v722
    %786 = vmatpush2.msra.mxu0 %v721
    %787 = vmatprep.subr.mxu0 %v718
    %788 = vmatpush2.msra.mxu0 %v717
    %789 = vmatprep.subr.mxu0 %v714
    %790 = vmatpush2.msra.mxu0 %v713
    %791 = vmatprep.subr.mxu0 %v710
    %792 = vmatpush2.msra.mxu0 %v709
    %793 = vmatprep.subr.mxu0 %v706
    %794 = vmatpush2.msra.mxu0 %v705
    %795 = vmatprep.subr.mxu0 %v702
    %796 = vmatpush2.msra.mxu0 %v701
    %797 = vmatprep.subr.mxu0 %v698
    %798 = vmatpush2.msra.mxu0 %v697
    %799 = vmatprep.subr.mxu0 %v694
    %800 = vmatpush2.msra.mxu0 %v693
    %801 = vmatprep.subr.mxu0 %v690
    %802 = vmatpush2.msra.mxu0 %v689
    %803 = vmatprep.subr.mxu0 %v686
    %804 = vmatpush2.msra.mxu0 %v685
    %805 = vmatprep.subr.mxu0 %v682
    %806 = vmatpush2.msra.mxu0 %v681
    %807 = vmatprep.subr.mxu0 %v678
    %808 = vmatpush2.msra.mxu0 %v677
    %809 = vmatprep.subr.mxu0 %v674
    %810 = vmatpush2.msra.mxu0 %v673
    %811 = vmatprep.subr.mxu0 %v670
    %812 = vmatpush2.msra.mxu0 %v669
    %813 = vmatprep.subr.mxu0 %v666
    %814 = vmatpush2.msra.mxu0 %v665
    %815 = vmatprep.mubr.f32.mxu0 %v331
    %816 = vmatmul.mubr.f32.gmra.mxu0 %v600
    %v817 = vpop.f32.mrf.mxu0
    %v818 = vadd.f32 %v734, %v817
    %v819 = vpop.f32.mrf.mxu0
    %v820 = vadd.f32 %v738, %v819
    %821 = vdwg.mxu0
    %822 = vmatprep.subr.mxu0 %v664
    %823 = vmatpush1.msra.mxu0 %v663
    %824 = vmatprep.subr.mxu0 %v660
    %825 = vmatpush1.msra.mxu0 %v659
    %826 = vmatprep.subr.mxu0 %v656
    %827 = vmatpush1.msra.mxu0 %v655
    %828 = vmatprep.subr.mxu0 %v652
    %829 = vmatpush1.msra.mxu0 %v651
    %830 = vmatprep.subr.mxu0 %v648
    %831 = vmatpush1.msra.mxu0 %v647
    %832 = vmatprep.subr.mxu0 %v644
    %833 = vmatpush1.msra.mxu0 %v643
    %834 = vmatprep.subr.mxu0 %v640
    %835 = vmatpush1.msra.mxu0 %v639
    %836 = vmatprep.subr.mxu0 %v636
    %837 = vmatpush1.msra.mxu0 %v635
    %838 = vmatprep.subr.mxu0 %v632
    %839 = vmatpush1.msra.mxu0 %v631
    %840 = vmatprep.subr.mxu0 %v628
    %841 = vmatpush1.msra.mxu0 %v627
    %842 = vmatprep.subr.mxu0 %v624
    %843 = vmatpush1.msra.mxu0 %v623
    %844 = vmatprep.subr.mxu0 %v620
    %845 = vmatpush1.msra.mxu0 %v619
    %846 = vmatprep.subr.mxu0 %v616
    %847 = vmatpush1.msra.mxu0 %v615
    %848 = vmatprep.subr.mxu0 %v612
    %849 = vmatpush1.msra.mxu0 %v611
    %850 = vmatprep.subr.mxu0 %v608
    %851 = vmatpush1.msra.mxu0 %v607
    %852 = vmatprep.subr.mxu0 %v604
    %853 = vmatpush1.msra.mxu0 %v603
    %854 = vmatprep.subr.mxu0 %v728
    %855 = vmatpush2.msra.mxu0 %v727
    %856 = vmatprep.subr.mxu0 %v724
    %857 = vmatpush2.msra.mxu0 %v723
    %858 = vmatprep.subr.mxu0 %v720
    %859 = vmatpush2.msra.mxu0 %v719
    %860 = vmatprep.subr.mxu0 %v716
    %861 = vmatpush2.msra.mxu0 %v715
    %862 = vmatprep.subr.mxu0 %v712
    %863 = vmatpush2.msra.mxu0 %v711
    %864 = vmatprep.subr.mxu0 %v708
    %865 = vmatpush2.msra.mxu0 %v707
    %866 = vmatprep.subr.mxu0 %v704
    %867 = vmatpush2.msra.mxu0 %v703
    %868 = vmatprep.subr.mxu0 %v700
    %869 = vmatpush2.msra.mxu0 %v699
    %870 = vmatprep.subr.mxu0 %v696
    %871 = vmatpush2.msra.mxu0 %v695
    %872 = vmatprep.subr.mxu0 %v692
    %873 = vmatpush2.msra.mxu0 %v691
    %874 = vmatprep.subr.mxu0 %v688
    %875 = vmatpush2.msra.mxu0 %v687
    %876 = vmatprep.subr.mxu0 %v684
    %877 = vmatpush2.msra.mxu0 %v683
    %878 = vmatprep.subr.mxu0 %v680
    %879 = vmatpush2.msra.mxu0 %v679
    %880 = vmatprep.subr.mxu0 %v676
    %881 = vmatpush2.msra.mxu0 %v675
    %882 = vmatprep.subr.mxu0 %v672
    %883 = vmatpush2.msra.mxu0 %v671
    %884 = vmatprep.subr.mxu0 %v668
    %885 = vmatpush2.msra.mxu0 %v667
    %886 = vmatprep.mubr.f32.mxu0 %v331
    %887 = vmatmul.mubr.f32.gmra.mxu0 %v600
    %v888 = vpop.f32.mrf.mxu0
    %v889 = vadd.f32 %v742, %v888
    %v890 = vpop.f32.mrf.mxu0
    %v891 = vadd.f32 %v746, %v890
    %892 = vdwg.mxu0
    %v893 = vxor.u32 %v818, 2147483648
    %v894 = vmul.f32 %v893, 1.442695
    %v895 = vpow.pop %v894
    %v896 = vadd.f32 %v895, 1.0
    %v897 = vrcp.pop %v896
    %v898 = vmul.f32 1.0, %v897
    %v899 = vxor.u32 %v820, 2147483648
    %v900 = vmul.f32 %v899, 1.442695
    %v901 = vpow.pop %v900
    %v902 = vadd.f32 %v901, 1.0
    %v903 = vrcp.pop %v902
    %v904 = vmul.f32 1.0, %v903
    %v905 = vtanh.pop %v889
    %v906 = vxor.u32 %v891, 2147483648
    %v907 = vmul.f32 %v906, 1.442695
    %v908 = vpow.pop %v907
    %v909 = vadd.f32 %v908, 1.0
    %v910 = vrcp.pop %v909
    %v911 = vmul.f32 1.0, %v910
    %v912 = vmul.f32 %v904, %v332
    %v913 = vmul.f32 %v898, %v905
    %v914 = vadd.f32 %v912, %v913
    %v915 = vtanh.pop %v914
    %v916 = vmul.f32 %v911, %v915
    %917 = vst [vmem:[#allocation3] sm:$0x1] %v916
    %s918 = scalar_lea.vmem [#allocation2], 1
    %v919 = vld [vmem:[%s918] ss:$8 sm:$0xf]
    %v920 = vld [vmem:[#allocation14] sm:$0xff]
    %v921 = vld [vmem:[#allocation14 + $0x8] sm:$0xff]
    %v922 = vld [vmem:[#allocation14 + $0x10] sm:$0xff]
    %v923 = vld [vmem:[#allocation14 + $0x18] sm:$0xff]
    %v924 = vld [vmem:[#allocation14 + $0x20] sm:$0xff]
    %v925 = vld [vmem:[#allocation14 + $0x28] sm:$0xff]
    %v926 = vld [vmem:[#allocation14 + $0x30] sm:$0xff]
    %v927 = vld [vmem:[#allocation14 + $0x38] sm:$0xff]
    %v928 = vld [vmem:[#allocation14 + $0x40] sm:$0xff]
    %v929 = vld [vmem:[#allocation14 + $0x48] sm:$0xff]
    %v930 = vld [vmem:[#allocation14 + $0x50] sm:$0xff]
    %v931 = vld [vmem:[#allocation14 + $0x58] sm:$0xff]
    %v932 = vld [vmem:[#allocation14 + $0x60] sm:$0xff]
    %v933 = vld [vmem:[#allocation14 + $0x68] sm:$0xff]
    %v934 = vld [vmem:[#allocation14 + $0x70] sm:$0xff]
    %v935 = vld [vmem:[#allocation14 + $0x78] sm:$0xff]
    %v936 = vld [vmem:[#allocation14 + $0x80] sm:$0xff]
    %v937 = vld [vmem:[#allocation14 + $0x88] sm:$0xff]
    %v938 = vld [vmem:[#allocation14 + $0x90] sm:$0xff]
    %v939 = vld [vmem:[#allocation14 + $0x98] sm:$0xff]
    %v940 = vld [vmem:[#allocation14 + $0xa0] sm:$0xff]
    %v941 = vld [vmem:[#allocation14 + $0xa8] sm:$0xff]
    %v942 = vld [vmem:[#allocation14 + $0xb0] sm:$0xff]
    %v943 = vld [vmem:[#allocation14 + $0xb8] sm:$0xff]
    %v944 = vld [vmem:[#allocation14 + $0xc0] sm:$0xff]
    %v945 = vld [vmem:[#allocation14 + $0xc8] sm:$0xff]
    %v946 = vld [vmem:[#allocation14 + $0xd0] sm:$0xff]
    %v947 = vld [vmem:[#allocation14 + $0xd8] sm:$0xff]
    %v948 = vld [vmem:[#allocation14 + $0xe0] sm:$0xff]
    %v949 = vld [vmem:[#allocation14 + $0xe8] sm:$0xff]
    %v950 = vld [vmem:[#allocation14 + $0xf0] sm:$0xff]
    %v951 = vld [vmem:[#allocation14 + $0xf8] sm:$0xff]
    %v952 = vld [vmem:[#allocation14 + $0x100] sm:$0xff]
    %v953 = vld [vmem:[#allocation14 + $0x108] sm:$0xff]
    %v954 = vld [vmem:[#allocation14 + $0x110] sm:$0xff]
    %v955 = vld [vmem:[#allocation14 + $0x118] sm:$0xff]
    %v956 = vld [vmem:[#allocation14 + $0x120] sm:$0xff]
    %v957 = vld [vmem:[#allocation14 + $0x128] sm:$0xff]
    %v958 = vld [vmem:[#allocation14 + $0x130] sm:$0xff]
    %v959 = vld [vmem:[#allocation14 + $0x138] sm:$0xff]
    %v960 = vld [vmem:[#allocation14 + $0x140] sm:$0xff]
    %v961 = vld [vmem:[#allocation14 + $0x148] sm:$0xff]
    %v962 = vld [vmem:[#allocation14 + $0x150] sm:$0xff]
    %v963 = vld [vmem:[#allocation14 + $0x158] sm:$0xff]
    %v964 = vld [vmem:[#allocation14 + $0x160] sm:$0xff]
    %v965 = vld [vmem:[#allocation14 + $0x168] sm:$0xff]
    %v966 = vld [vmem:[#allocation14 + $0x170] sm:$0xff]
    %v967 = vld [vmem:[#allocation14 + $0x178] sm:$0xff]
    %v968 = vld [vmem:[#allocation14 + $0x180] sm:$0xff]
    %v969 = vld [vmem:[#allocation14 + $0x188] sm:$0xff]
    %v970 = vld [vmem:[#allocation14 + $0x190] sm:$0xff]
    %v971 = vld [vmem:[#allocation14 + $0x198] sm:$0xff]
    %v972 = vld [vmem:[#allocation14 + $0x1a0] sm:$0xff]
    %v973 = vld [vmem:[#allocation14 + $0x1a8] sm:$0xff]
    %v974 = vld [vmem:[#allocation14 + $0x1b0] sm:$0xff]
    %v975 = vld [vmem:[#allocation14 + $0x1b8] sm:$0xff]
    %v976 = vld [vmem:[#allocation14 + $0x1c0] sm:$0xff]
    %v977 = vld [vmem:[#allocation14 + $0x1c8] sm:$0xff]
    %v978 = vld [vmem:[#allocation14 + $0x1d0] sm:$0xff]
    %v979 = vld [vmem:[#allocation14 + $0x1d8] sm:$0xff]
    %v980 = vld [vmem:[#allocation14 + $0x1e0] sm:$0xff]
    %v981 = vld [vmem:[#allocation14 + $0x1e8] sm:$0xff]
    %v982 = vld [vmem:[#allocation14 + $0x1f0] sm:$0xff]
    %v983 = vld [vmem:[#allocation14 + $0x1f8] sm:$0xff]
    %984 = vmatprep.subr.mxu0 %v981
    %985 = vmatpush1.msra.mxu0 %v980
    %986 = vmatprep.subr.mxu0 %v977
    %987 = vmatpush1.msra.mxu0 %v976
    %988 = vmatprep.subr.mxu0 %v973
    %989 = vmatpush1.msra.mxu0 %v972
    %990 = vmatprep.subr.mxu0 %v969
    %991 = vmatpush1.msra.mxu0 %v968
    %992 = vmatprep.subr.mxu0 %v965
    %993 = vmatpush1.msra.mxu0 %v964
    %994 = vmatprep.subr.mxu0 %v961
    %995 = vmatpush1.msra.mxu0 %v960
    %996 = vmatprep.subr.mxu0 %v957
    %997 = vmatpush1.msra.mxu0 %v956
    %998 = vmatprep.subr.mxu0 %v953
    %999 = vmatpush1.msra.mxu0 %v952
    %1000 = vmatprep.subr.mxu0 %v949
    %1001 = vmatpush1.msra.mxu0 %v948
    %1002 = vmatprep.subr.mxu0 %v945
    %1003 = vmatpush1.msra.mxu0 %v944
    %1004 = vmatprep.subr.mxu0 %v941
    %1005 = vmatpush1.msra.mxu0 %v940
    %1006 = vmatprep.subr.mxu0 %v937
    %1007 = vmatpush1.msra.mxu0 %v936
    %1008 = vmatprep.subr.mxu0 %v933
    %1009 = vmatpush1.msra.mxu0 %v932
    %1010 = vmatprep.subr.mxu0 %v929
    %1011 = vmatpush1.msra.mxu0 %v928
    %1012 = vmatprep.subr.mxu0 %v925
    %1013 = vmatpush1.msra.mxu0 %v924
    %1014 = vmatprep.subr.mxu0 %v921
    %1015 = vmatpush1.msra.mxu0 %v920
    %1016 = vmatprep.subr.mxu0 0.0
    %1017 = vmatpush2.msra.mxu0 0.0
    %1018 = vmatprep.subr.mxu0 0.0
    %1019 = vmatpush2.msra.mxu0 0.0
    %1020 = vmatprep.subr.mxu0 0.0
    %1021 = vmatpush2.msra.mxu0 0.0
    %1022 = vmatprep.subr.mxu0 0.0
    %1023 = vmatpush2.msra.mxu0 0.0
    %1024 = vmatprep.subr.mxu0 0.0
    %1025 = vmatpush2.msra.mxu0 0.0
    %1026 = vmatprep.subr.mxu0 0.0
    %1027 = vmatpush2.msra.mxu0 0.0
    %1028 = vmatprep.subr.mxu0 0.0
    %1029 = vmatpush2.msra.mxu0 0.0
    %1030 = vmatprep.subr.mxu0 0.0
    %1031 = vmatpush2.msra.mxu0 0.0
    %1032 = vmatprep.subr.mxu0 0.0
    %1033 = vmatpush2.msra.mxu0 0.0
    %1034 = vmatprep.subr.mxu0 0.0
    %1035 = vmatpush2.msra.mxu0 0.0
    %1036 = vmatprep.subr.mxu0 0.0
    %1037 = vmatpush2.msra.mxu0 0.0
    %1038 = vmatprep.subr.mxu0 0.0
    %1039 = vmatpush2.msra.mxu0 0.0
    %1040 = vmatprep.subr.mxu0 0.0
    %1041 = vmatpush2.msra.mxu0 0.0
    %1042 = vmatprep.subr.mxu0 0.0
    %1043 = vmatpush2.msra.mxu0 0.0
    %1044 = vmatprep.subr.mxu0 0.0
    %1045 = vmatpush2.msra.mxu0 0.0
    %1046 = vmatprep.subr.mxu0 0.0
    %1047 = vmatpush2.msra.mxu0 0.0
    %1048 = vmatprep.mubr.f32.mxu0 0.0
    %1049 = vmatmul.mubr.f32.gmra.mxu0 %v600
    %v1050 = vpop.f32.mrf.mxu0
    %v1051 = vadd.f32 0.0, %v1050
    %v1052 = vpop.f32.mrf.mxu0
    %v1053 = vadd.f32 0.0, %v1052
    %1054 = vdwg.mxu0
    %1055 = vmatprep.subr.mxu0 %v983
    %1056 = vmatpush1.msra.mxu0 %v982
    %1057 = vmatprep.subr.mxu0 %v979
    %1058 = vmatpush1.msra.mxu0 %v978
    %1059 = vmatprep.subr.mxu0 %v975
    %1060 = vmatpush1.msra.mxu0 %v974
    %1061 = vmatprep.subr.mxu0 %v971
    %1062 = vmatpush1.msra.mxu0 %v970
    %1063 = vmatprep.subr.mxu0 %v967
    %1064 = vmatpush1.msra.mxu0 %v966
    %1065 = vmatprep.subr.mxu0 %v963
    %1066 = vmatpush1.msra.mxu0 %v962
    %1067 = vmatprep.subr.mxu0 %v959
    %1068 = vmatpush1.msra.mxu0 %v958
    %1069 = vmatprep.subr.mxu0 %v955
    %1070 = vmatpush1.msra.mxu0 %v954
    %1071 = vmatprep.subr.mxu0 %v951
    %1072 = vmatpush1.msra.mxu0 %v950
    %1073 = vmatprep.subr.mxu0 %v947
    %1074 = vmatpush1.msra.mxu0 %v946
    %1075 = vmatprep.subr.mxu0 %v943
    %1076 = vmatpush1.msra.mxu0 %v942
    %1077 = vmatprep.subr.mxu0 %v939
    %1078 = vmatpush1.msra.mxu0 %v938
    %1079 = vmatprep.subr.mxu0 %v935
    %1080 = vmatpush1.msra.mxu0 %v934
    %1081 = vmatprep.subr.mxu0 %v931
    %1082 = vmatpush1.msra.mxu0 %v930
    %1083 = vmatprep.subr.mxu0 %v927
    %1084 = vmatpush1.msra.mxu0 %v926
    %1085 = vmatprep.subr.mxu0 %v923
    %1086 = vmatpush1.msra.mxu0 %v922
    %1087 = vmatprep.subr.mxu0 0.0
    %1088 = vmatpush2.msra.mxu0 0.0
    %1089 = vmatprep.subr.mxu0 0.0
    %1090 = vmatpush2.msra.mxu0 0.0
    %1091 = vmatprep.subr.mxu0 0.0
    %1092 = vmatpush2.msra.mxu0 0.0
    %1093 = vmatprep.subr.mxu0 0.0
    %1094 = vmatpush2.msra.mxu0 0.0
    %1095 = vmatprep.subr.mxu0 0.0
    %1096 = vmatpush2.msra.mxu0 0.0
    %1097 = vmatprep.subr.mxu0 0.0
    %1098 = vmatpush2.msra.mxu0 0.0
    %1099 = vmatprep.subr.mxu0 0.0
    %1100 = vmatpush2.msra.mxu0 0.0
    %1101 = vmatprep.subr.mxu0 0.0
    %1102 = vmatpush2.msra.mxu0 0.0
    %1103 = vmatprep.subr.mxu0 0.0
    %1104 = vmatpush2.msra.mxu0 0.0
    %1105 = vmatprep.subr.mxu0 0.0
    %1106 = vmatpush2.msra.mxu0 0.0
    %1107 = vmatprep.subr.mxu0 0.0
    %1108 = vmatpush2.msra.mxu0 0.0
    %1109 = vmatprep.subr.mxu0 0.0
    %1110 = vmatpush2.msra.mxu0 0.0
    %1111 = vmatprep.subr.mxu0 0.0
    %1112 = vmatpush2.msra.mxu0 0.0
    %1113 = vmatprep.subr.mxu0 0.0
    %1114 = vmatpush2.msra.mxu0 0.0
    %1115 = vmatprep.subr.mxu0 0.0
    %1116 = vmatpush2.msra.mxu0 0.0
    %1117 = vmatprep.subr.mxu0 0.0
    %1118 = vmatpush2.msra.mxu0 0.0
    %1119 = vmatprep.mubr.f32.mxu0 0.0
    %1120 = vmatmul.mubr.f32.gmra.mxu0 %v600
    %v1121 = vpop.f32.mrf.mxu0
    %v1122 = vadd.f32 0.0, %v1121
    %v1123 = vpop.f32.mrf.mxu0
    %v1124 = vadd.f32 0.0, %v1123
    %1125 = vdwg.mxu0
    %v1130 = vcombine.low %v1051, %v1053
    %v1131 = vcombine.low %v1122, %v1124
    %v1133 = vunpack.c.l.s4 1966171168
    %v1134 = vunpack.c.0.s8 %v1133
    %v1135 = vlaneseq
    %v1136 = vshrl.u32 %v1135, 7
    %v1137 = vsub.s32 %v1134, %v1136
    %v1138 = vrot.slane %v1130, %v1137
    %v1140 = vunpack.c.l.s4 1966171168
    %v1141 = vunpack.c.0.s8 %v1140
    %v1142 = vlaneseq
    %v1143 = vshrl.u32 %v1142, 7
    %v1144 = vsub.s32 %v1141, %v1143
    %v1145 = vrot.slane %v1131, %v1144
    %v1146 = vcombine.low %v1138, %v1145
    %v1148 = vunpack.c.l.s4 1966171168
    %v1149 = vunpack.c.0.s8 %v1148
    %v1150 = vlaneseq
    %v1151 = vshrl.u32 %v1150, 7
    %v1152 = vsub.s32 %v1149, %v1151
    %v1153 = vrot.slane %v1146, %v1152
    %v1155 = vadd.f32 %v919, %v1153
    %v1156 = vxor.u32 %v1155, 2147483648
    %v1157 = vmul.f32 %v1156, 1.442695
    %v1158 = vpow.pop %v1157
    %v1159 = vadd.f32 %v1158, 1.0
    %v1160 = vrcp.pop %v1159
    %v1161 = vmul.f32 1.0, %v1160
    %v1163 = vrot.slane %v1155, 1
    %v1165 = vxor.u32 %v1163, 2147483648
    %v1166 = vmul.f32 %v1165, 1.442695
    %v1167 = vpow.pop %v1166
    %v1168 = vadd.f32 %v1167, 1.0
    %v1169 = vrcp.pop %v1168
    %v1170 = vmul.f32 1.0, %v1169
    %v1171 = vrot.slane %v1155, 2
    %v1173 = vtanh.pop %v1171
    %v1174 = vrot.slane %v1155, 3
    %v1176 = vxor.u32 %v1174, 2147483648
    %v1177 = vmul.f32 %v1176, 1.442695
    %v1178 = vpow.pop %v1177
    %v1179 = vadd.f32 %v1178, 1.0
    %v1180 = vrcp.pop %v1179
    %v1181 = vmul.f32 1.0, %v1180
    %v1182 = vmul.f32 %v1170, %v598
    %v1183 = vmul.f32 %v1161, %v1173
    %v1184 = vadd.f32 %v1182, %v1183
    %v1185 = vtanh.pop %v1184
    %v1186 = vmul.f32 %v1181, %v1185
    %v1187 = vld [vmem:[#allocation16] sm:$0xff]
    %v1188 = vld [vmem:[#allocation16 + $0x8] sm:$0xff]
    %v1189 = vld [vmem:[#allocation16 + $0x10] sm:$0xff]
    %v1190 = vld [vmem:[#allocation16 + $0x18] sm:$0xff]
    %v1191 = vld [vmem:[#allocation16 + $0x20] sm:$0xff]
    %v1192 = vld [vmem:[#allocation16 + $0x28] sm:$0xff]
    %v1193 = vld [vmem:[#allocation16 + $0x30] sm:$0xff]
    %v1194 = vld [vmem:[#allocation16 + $0x38] sm:$0xff]
    %v1195 = vld [vmem:[#allocation16 + $0x40] sm:$0xff]
    %v1196 = vld [vmem:[#allocation16 + $0x48] sm:$0xff]
    %v1197 = vld [vmem:[#allocation16 + $0x50] sm:$0xff]
    %v1198 = vld [vmem:[#allocation16 + $0x58] sm:$0xff]
    %v1199 = vld [vmem:[#allocation16 + $0x60] sm:$0xff]
    %v1200 = vld [vmem:[#allocation16 + $0x68] sm:$0xff]
    %v1201 = vld [vmem:[#allocation16 + $0x70] sm:$0xff]
    %v1202 = vld [vmem:[#allocation16 + $0x78] sm:$0xff]
    %v1203 = vld [vmem:[#allocation16 + $0x80] sm:$0xff]
    %v1204 = vld [vmem:[#allocation16 + $0x88] sm:$0xff]
    %v1205 = vld [vmem:[#allocation16 + $0x90] sm:$0xff]
    %v1206 = vld [vmem:[#allocation16 + $0x98] sm:$0xff]
    %v1207 = vld [vmem:[#allocation16 + $0xa0] sm:$0xff]
    %v1208 = vld [vmem:[#allocation16 + $0xa8] sm:$0xff]
    %v1209 = vld [vmem:[#allocation16 + $0xb0] sm:$0xff]
    %v1210 = vld [vmem:[#allocation16 + $0xb8] sm:$0xff]
    %v1211 = vld [vmem:[#allocation16 + $0xc0] sm:$0xff]
    %v1212 = vld [vmem:[#allocation16 + $0xc8] sm:$0xff]
    %v1213 = vld [vmem:[#allocation16 + $0xd0] sm:$0xff]
    %v1214 = vld [vmem:[#allocation16 + $0xd8] sm:$0xff]
    %v1215 = vld [vmem:[#allocation16 + $0xe0] sm:$0xff]
    %v1216 = vld [vmem:[#allocation16 + $0xe8] sm:$0xff]
    %v1217 = vld [vmem:[#allocation16 + $0xf0] sm:$0xff]
    %v1218 = vld [vmem:[#allocation16 + $0xf8] sm:$0xff]
    %v1219 = vld [vmem:[#allocation16 + $0x100] sm:$0xff]
    %v1220 = vld [vmem:[#allocation16 + $0x108] sm:$0xff]
    %v1221 = vld [vmem:[#allocation16 + $0x110] sm:$0xff]
    %v1222 = vld [vmem:[#allocation16 + $0x118] sm:$0xff]
    %v1223 = vld [vmem:[#allocation16 + $0x120] sm:$0xff]
    %v1224 = vld [vmem:[#allocation16 + $0x128] sm:$0xff]
    %v1225 = vld [vmem:[#allocation16 + $0x130] sm:$0xff]
    %v1226 = vld [vmem:[#allocation16 + $0x138] sm:$0xff]
    %v1227 = vld [vmem:[#allocation16 + $0x140] sm:$0xff]
    %v1228 = vld [vmem:[#allocation16 + $0x148] sm:$0xff]
    %v1229 = vld [vmem:[#allocation16 + $0x150] sm:$0xff]
    %v1230 = vld [vmem:[#allocation16 + $0x158] sm:$0xff]
    %v1231 = vld [vmem:[#allocation16 + $0x160] sm:$0xff]
    %v1232 = vld [vmem:[#allocation16 + $0x168] sm:$0xff]
    %v1233 = vld [vmem:[#allocation16 + $0x170] sm:$0xff]
    %v1234 = vld [vmem:[#allocation16 + $0x178] sm:$0xff]
    %v1235 = vld [vmem:[#allocation16 + $0x180] sm:$0xff]
    %v1236 = vld [vmem:[#allocation16 + $0x188] sm:$0xff]
    %v1237 = vld [vmem:[#allocation16 + $0x190] sm:$0xff]
    %v1238 = vld [vmem:[#allocation16 + $0x198] sm:$0xff]
    %v1239 = vld [vmem:[#allocation16 + $0x1a0] sm:$0xff]
    %v1240 = vld [vmem:[#allocation16 + $0x1a8] sm:$0xff]
    %v1241 = vld [vmem:[#allocation16 + $0x1b0] sm:$0xff]
    %v1242 = vld [vmem:[#allocation16 + $0x1b8] sm:$0xff]
    %v1243 = vld [vmem:[#allocation16 + $0x1c0] sm:$0xff]
    %v1244 = vld [vmem:[#allocation16 + $0x1c8] sm:$0xff]
    %v1245 = vld [vmem:[#allocation16 + $0x1d0] sm:$0xff]
    %v1246 = vld [vmem:[#allocation16 + $0x1d8] sm:$0xff]
    %v1247 = vld [vmem:[#allocation16 + $0x1e0] sm:$0xff]
    %v1248 = vld [vmem:[#allocation16 + $0x1e8] sm:$0xff]
    %v1249 = vld [vmem:[#allocation16 + $0x1f0] sm:$0xff]
    %v1250 = vld [vmem:[#allocation16 + $0x1f8] sm:$0xff]
    %v1251 = vld [vmem:[#allocation16 + $0x200] sm:$0xff]
    %v1252 = vld [vmem:[#allocation16 + $0x208] sm:$0xff]
    %v1253 = vld [vmem:[#allocation16 + $0x210] sm:$0xff]
    %v1254 = vld [vmem:[#allocation16 + $0x218] sm:$0xff]
    %v1255 = vld [vmem:[#allocation16 + $0x220] sm:$0xff]
    %v1256 = vld [vmem:[#allocation16 + $0x228] sm:$0xff]
    %v1257 = vld [vmem:[#allocation16 + $0x230] sm:$0xff]
    %v1258 = vld [vmem:[#allocation16 + $0x238] sm:$0xff]
    %v1259 = vld [vmem:[#allocation16 + $0x240] sm:$0xff]
    %v1260 = vld [vmem:[#allocation16 + $0x248] sm:$0xff]
    %v1261 = vld [vmem:[#allocation16 + $0x250] sm:$0xff]
    %v1262 = vld [vmem:[#allocation16 + $0x258] sm:$0xff]
    %v1263 = vld [vmem:[#allocation16 + $0x260] sm:$0xff]
    %v1264 = vld [vmem:[#allocation16 + $0x268] sm:$0xff]
    %v1265 = vld [vmem:[#allocation16 + $0x270] sm:$0xff]
    %v1266 = vld [vmem:[#allocation16 + $0x278] sm:$0xff]
    %v1267 = vld [vmem:[#allocation16 + $0x280] sm:$0xff]
    %v1268 = vld [vmem:[#allocation16 + $0x288] sm:$0xff]
    %v1269 = vld [vmem:[#allocation16 + $0x290] sm:$0xff]
    %v1270 = vld [vmem:[#allocation16 + $0x298] sm:$0xff]
    %v1271 = vld [vmem:[#allocation16 + $0x2a0] sm:$0xff]
    %v1272 = vld [vmem:[#allocation16 + $0x2a8] sm:$0xff]
    %v1273 = vld [vmem:[#allocation16 + $0x2b0] sm:$0xff]
    %v1274 = vld [vmem:[#allocation16 + $0x2b8] sm:$0xff]
    %v1275 = vld [vmem:[#allocation16 + $0x2c0] sm:$0xff]
    %v1276 = vld [vmem:[#allocation16 + $0x2c8] sm:$0xff]
    %v1277 = vld [vmem:[#allocation16 + $0x2d0] sm:$0xff]
    %v1278 = vld [vmem:[#allocation16 + $0x2d8] sm:$0xff]
    %v1279 = vld [vmem:[#allocation16 + $0x2e0] sm:$0xff]
    %v1280 = vld [vmem:[#allocation16 + $0x2e8] sm:$0xff]
    %v1281 = vld [vmem:[#allocation16 + $0x2f0] sm:$0xff]
    %v1282 = vld [vmem:[#allocation16 + $0x2f8] sm:$0xff]
    %v1283 = vld [vmem:[#allocation16 + $0x300] sm:$0xff]
    %v1284 = vld [vmem:[#allocation16 + $0x308] sm:$0xff]
    %v1285 = vld [vmem:[#allocation16 + $0x310] sm:$0xff]
    %v1286 = vld [vmem:[#allocation16 + $0x318] sm:$0xff]
    %v1287 = vld [vmem:[#allocation16 + $0x320] sm:$0xff]
    %v1288 = vld [vmem:[#allocation16 + $0x328] sm:$0xff]
    %v1289 = vld [vmem:[#allocation16 + $0x330] sm:$0xff]
    %v1290 = vld [vmem:[#allocation16 + $0x338] sm:$0xff]
    %v1291 = vld [vmem:[#allocation16 + $0x340] sm:$0xff]
    %v1292 = vld [vmem:[#allocation16 + $0x348] sm:$0xff]
    %v1293 = vld [vmem:[#allocation16 + $0x350] sm:$0xff]
    %v1294 = vld [vmem:[#allocation16 + $0x358] sm:$0xff]
    %v1295 = vld [vmem:[#allocation16 + $0x360] sm:$0xff]
    %v1296 = vld [vmem:[#allocation16 + $0x368] sm:$0xff]
    %v1297 = vld [vmem:[#allocation16 + $0x370] sm:$0xff]
    %v1298 = vld [vmem:[#allocation16 + $0x378] sm:$0xff]
    %v1299 = vld [vmem:[#allocation16 + $0x380] sm:$0xff]
    %v1300 = vld [vmem:[#allocation16 + $0x388] sm:$0xff]
    %v1301 = vld [vmem:[#allocation16 + $0x390] sm:$0xff]
    %v1302 = vld [vmem:[#allocation16 + $0x398] sm:$0xff]
    %v1303 = vld [vmem:[#allocation16 + $0x3a0] sm:$0xff]
    %v1304 = vld [vmem:[#allocation16 + $0x3a8] sm:$0xff]
    %v1305 = vld [vmem:[#allocation16 + $0x3b0] sm:$0xff]
    %v1306 = vld [vmem:[#allocation16 + $0x3b8] sm:$0xff]
    %v1307 = vld [vmem:[#allocation16 + $0x3c0] sm:$0xff]
    %v1308 = vld [vmem:[#allocation16 + $0x3c8] sm:$0xff]
    %v1309 = vld [vmem:[#allocation16 + $0x3d0] sm:$0xff]
    %v1310 = vld [vmem:[#allocation16 + $0x3d8] sm:$0xff]
    %v1311 = vld [vmem:[#allocation16 + $0x3e0] sm:$0xff]
    %v1312 = vld [vmem:[#allocation16 + $0x3e8] sm:$0xff]
    %v1313 = vld [vmem:[#allocation16 + $0x3f0] sm:$0xff]
    %v1314 = vld [vmem:[#allocation16 + $0x3f8] sm:$0xff]
    %v1315 = vld [vmem:[%s6] sm:$0xf]
    %v1317 = vlaneseq
    %v1318 = vshrl.u32 %v1317, 7
    %v1319 = vsub.s32 0, %v1318
    %v1320 = vrot.slane %v1315, %v1319
    %v1321 = vlaneseq
    %v1322 = vshrl.u32 %v1321, 7
    %v1323 = vsub.s32 1, %v1322
    %v1324 = vrot.slane %v1315, %v1323
    %v1325 = vlaneseq
    %v1326 = vshrl.u32 %v1325, 7
    %v1327 = vsub.s32 2, %v1326
    %v1328 = vrot.slane %v1315, %v1327
    %v1329 = vlaneseq
    %v1330 = vshrl.u32 %v1329, 7
    %v1331 = vsub.s32 3, %v1330
    %v1332 = vrot.slane %v1315, %v1331
    %1337 = vmatprep.subr.mxu0 %v1248
    %1338 = vmatpush1.msra.mxu0 %v1247
    %1339 = vmatprep.subr.mxu0 %v1244
    %1340 = vmatpush1.msra.mxu0 %v1243
    %1341 = vmatprep.subr.mxu0 %v1240
    %1342 = vmatpush1.msra.mxu0 %v1239
    %1343 = vmatprep.subr.mxu0 %v1236
    %1344 = vmatpush1.msra.mxu0 %v1235
    %1345 = vmatprep.subr.mxu0 %v1232
    %1346 = vmatpush1.msra.mxu0 %v1231
    %1347 = vmatprep.subr.mxu0 %v1228
    %1348 = vmatpush1.msra.mxu0 %v1227
    %1349 = vmatprep.subr.mxu0 %v1224
    %1350 = vmatpush1.msra.mxu0 %v1223
    %1351 = vmatprep.subr.mxu0 %v1220
    %1352 = vmatpush1.msra.mxu0 %v1219
    %1353 = vmatprep.subr.mxu0 %v1216
    %1354 = vmatpush1.msra.mxu0 %v1215
    %1355 = vmatprep.subr.mxu0 %v1212
    %1356 = vmatpush1.msra.mxu0 %v1211
    %1357 = vmatprep.subr.mxu0 %v1208
    %1358 = vmatpush1.msra.mxu0 %v1207
    %1359 = vmatprep.subr.mxu0 %v1204
    %1360 = vmatpush1.msra.mxu0 %v1203
    %1361 = vmatprep.subr.mxu0 %v1200
    %1362 = vmatpush1.msra.mxu0 %v1199
    %1363 = vmatprep.subr.mxu0 %v1196
    %1364 = vmatpush1.msra.mxu0 %v1195
    %1365 = vmatprep.subr.mxu0 %v1192
    %1366 = vmatpush1.msra.mxu0 %v1191
    %1367 = vmatprep.subr.mxu0 %v1188
    %1368 = vmatpush1.msra.mxu0 %v1187
    %1369 = vmatprep.subr.mxu0 %v1312
    %1370 = vmatpush2.msra.mxu0 %v1311
    %1371 = vmatprep.subr.mxu0 %v1308
    %1372 = vmatpush2.msra.mxu0 %v1307
    %1373 = vmatprep.subr.mxu0 %v1304
    %1374 = vmatpush2.msra.mxu0 %v1303
    %1375 = vmatprep.subr.mxu0 %v1300
    %1376 = vmatpush2.msra.mxu0 %v1299
    %1377 = vmatprep.subr.mxu0 %v1296
    %1378 = vmatpush2.msra.mxu0 %v1295
    %1379 = vmatprep.subr.mxu0 %v1292
    %1380 = vmatpush2.msra.mxu0 %v1291
    %1381 = vmatprep.subr.mxu0 %v1288
    %1382 = vmatpush2.msra.mxu0 %v1287
    %1383 = vmatprep.subr.mxu0 %v1284
    %1384 = vmatpush2.msra.mxu0 %v1283
    %1385 = vmatprep.subr.mxu0 %v1280
    %1386 = vmatpush2.msra.mxu0 %v1279
    %1387 = vmatprep.subr.mxu0 %v1276
    %1388 = vmatpush2.msra.mxu0 %v1275
    %1389 = vmatprep.subr.mxu0 %v1272
    %1390 = vmatpush2.msra.mxu0 %v1271
    %1391 = vmatprep.subr.mxu0 %v1268
    %1392 = vmatpush2.msra.mxu0 %v1267
    %1393 = vmatprep.subr.mxu0 %v1264
    %1394 = vmatpush2.msra.mxu0 %v1263
    %1395 = vmatprep.subr.mxu0 %v1260
    %1396 = vmatpush2.msra.mxu0 %v1259
    %1397 = vmatprep.subr.mxu0 %v1256
    %1398 = vmatpush2.msra.mxu0 %v1255
    %1399 = vmatprep.subr.mxu0 %v1252
    %1400 = vmatpush2.msra.mxu0 %v1251
    %1401 = vmatprep.mubr.f32.mxu0 %v916
    %1402 = vmatmul.mubr.f32.gmra.mxu0 %v1186
    %v1403 = vpop.f32.mrf.mxu0
    %v1404 = vadd.f32 %v1320, %v1403
    %v1405 = vpop.f32.mrf.mxu0
    %v1406 = vadd.f32 %v1324, %v1405
    %1407 = vdwg.mxu0
    %1408 = vmatprep.subr.mxu0 %v1250
    %1409 = vmatpush1.msra.mxu0 %v1249
    %1410 = vmatprep.subr.mxu0 %v1246
    %1411 = vmatpush1.msra.mxu0 %v1245
    %1412 = vmatprep.subr.mxu0 %v1242
    %1413 = vmatpush1.msra.mxu0 %v1241
    %1414 = vmatprep.subr.mxu0 %v1238
    %1415 = vmatpush1.msra.mxu0 %v1237
    %1416 = vmatprep.subr.mxu0 %v1234
    %1417 = vmatpush1.msra.mxu0 %v1233
    %1418 = vmatprep.subr.mxu0 %v1230
    %1419 = vmatpush1.msra.mxu0 %v1229
    %1420 = vmatprep.subr.mxu0 %v1226
    %1421 = vmatpush1.msra.mxu0 %v1225
    %1422 = vmatprep.subr.mxu0 %v1222
    %1423 = vmatpush1.msra.mxu0 %v1221
    %1424 = vmatprep.subr.mxu0 %v1218
    %1425 = vmatpush1.msra.mxu0 %v1217
    %1426 = vmatprep.subr.mxu0 %v1214
    %1427 = vmatpush1.msra.mxu0 %v1213
    %1428 = vmatprep.subr.mxu0 %v1210
    %1429 = vmatpush1.msra.mxu0 %v1209
    %1430 = vmatprep.subr.mxu0 %v1206
    %1431 = vmatpush1.msra.mxu0 %v1205
    %1432 = vmatprep.subr.mxu0 %v1202
    %1433 = vmatpush1.msra.mxu0 %v1201
    %1434 = vmatprep.subr.mxu0 %v1198
    %1435 = vmatpush1.msra.mxu0 %v1197
    %1436 = vmatprep.subr.mxu0 %v1194
    %1437 = vmatpush1.msra.mxu0 %v1193
    %1438 = vmatprep.subr.mxu0 %v1190
    %1439 = vmatpush1.msra.mxu0 %v1189
    %1440 = vmatprep.subr.mxu0 %v1314
    %1441 = vmatpush2.msra.mxu0 %v1313
    %1442 = vmatprep.subr.mxu0 %v1310
    %1443 = vmatpush2.msra.mxu0 %v1309
    %1444 = vmatprep.subr.mxu0 %v1306
    %1445 = vmatpush2.msra.mxu0 %v1305
    %1446 = vmatprep.subr.mxu0 %v1302
    %1447 = vmatpush2.msra.mxu0 %v1301
    %1448 = vmatprep.subr.mxu0 %v1298
    %1449 = vmatpush2.msra.mxu0 %v1297
    %1450 = vmatprep.subr.mxu0 %v1294
    %1451 = vmatpush2.msra.mxu0 %v1293
    %1452 = vmatprep.subr.mxu0 %v1290
    %1453 = vmatpush2.msra.mxu0 %v1289
    %1454 = vmatprep.subr.mxu0 %v1286
    %1455 = vmatpush2.msra.mxu0 %v1285
    %1456 = vmatprep.subr.mxu0 %v1282
    %1457 = vmatpush2.msra.mxu0 %v1281
    %1458 = vmatprep.subr.mxu0 %v1278
    %1459 = vmatpush2.msra.mxu0 %v1277
    %1460 = vmatprep.subr.mxu0 %v1274
    %1461 = vmatpush2.msra.mxu0 %v1273
    %1462 = vmatprep.subr.mxu0 %v1270
    %1463 = vmatpush2.msra.mxu0 %v1269
    %1464 = vmatprep.subr.mxu0 %v1266
    %1465 = vmatpush2.msra.mxu0 %v1265
    %1466 = vmatprep.subr.mxu0 %v1262
    %1467 = vmatpush2.msra.mxu0 %v1261
    %1468 = vmatprep.subr.mxu0 %v1258
    %1469 = vmatpush2.msra.mxu0 %v1257
    %1470 = vmatprep.subr.mxu0 %v1254
    %1471 = vmatpush2.msra.mxu0 %v1253
    %1472 = vmatprep.mubr.f32.mxu0 %v916
    %1473 = vmatmul.mubr.f32.gmra.mxu0 %v1186
    %v1474 = vpop.f32.mrf.mxu0
    %v1475 = vadd.f32 %v1328, %v1474
    %v1476 = vpop.f32.mrf.mxu0
    %v1477 = vadd.f32 %v1332, %v1476
    %1478 = vdwg.mxu0
    %v1479 = vxor.u32 %v1404, 2147483648
    %v1480 = vmul.f32 %v1479, 1.442695
    %v1481 = vpow.pop %v1480
    %v1482 = vadd.f32 %v1481, 1.0
    %v1483 = vrcp.pop %v1482
    %v1484 = vmul.f32 1.0, %v1483
    %v1485 = vxor.u32 %v1406, 2147483648
    %v1486 = vmul.f32 %v1485, 1.442695
    %v1487 = vpow.pop %v1486
    %v1488 = vadd.f32 %v1487, 1.0
    %v1489 = vrcp.pop %v1488
    %v1490 = vmul.f32 1.0, %v1489
    %v1491 = vtanh.pop %v1475
    %v1492 = vxor.u32 %v1477, 2147483648
    %v1493 = vmul.f32 %v1492, 1.442695
    %v1494 = vpow.pop %v1493
    %v1495 = vadd.f32 %v1494, 1.0
    %v1496 = vrcp.pop %v1495
    %v1497 = vmul.f32 1.0, %v1496
    %v1498 = vmul.f32 %v1490, %v914
    %v1499 = vmul.f32 %v1484, %v1491
    %v1500 = vadd.f32 %v1498, %v1499
    %v1501 = vtanh.pop %v1500
    %v1502 = vmul.f32 %v1497, %v1501
    %1503 = vst [vmem:[#allocation3 + $0x1] sm:$0x1] %v1502
    %s1504 = scalar_lea.vmem [#allocation2], 2
    %v1505 = vld [vmem:[%s1504] ss:$8 sm:$0xf]
    %v1506 = vld [vmem:[#allocation14] sm:$0xff]
    %v1507 = vld [vmem:[#allocation14 + $0x8] sm:$0xff]
    %v1508 = vld [vmem:[#allocation14 + $0x10] sm:$0xff]
    %v1509 = vld [vmem:[#allocation14 + $0x18] sm:$0xff]
    %v1510 = vld [vmem:[#allocation14 + $0x20] sm:$0xff]
    %v1511 = vld [vmem:[#allocation14 + $0x28] sm:$0xff]
    %v1512 = vld [vmem:[#allocation14 + $0x30] sm:$0xff]
    %v1513 = vld [vmem:[#allocation14 + $0x38] sm:$0xff]
    %v1514 = vld [vmem:[#allocation14 + $0x40] sm:$0xff]
    %v1515 = vld [vmem:[#allocation14 + $0x48] sm:$0xff]
    %v1516 = vld [vmem:[#allocation14 + $0x50] sm:$0xff]
    %v1517 = vld [vmem:[#allocation14 + $0x58] sm:$0xff]
    %v1518 = vld [vmem:[#allocation14 + $0x60] sm:$0xff]
    %v1519 = vld [vmem:[#allocation14 + $0x68] sm:$0xff]
    %v1520 = vld [vmem:[#allocation14 + $0x70] sm:$0xff]
    %v1521 = vld [vmem:[#allocation14 + $0x78] sm:$0xff]
    %v1522 = vld [vmem:[#allocation14 + $0x80] sm:$0xff]
    %v1523 = vld [vmem:[#allocation14 + $0x88] sm:$0xff]
    %v1524 = vld [vmem:[#allocation14 + $0x90] sm:$0xff]
    %v1525 = vld [vmem:[#allocation14 + $0x98] sm:$0xff]
    %v1526 = vld [vmem:[#allocation14 + $0xa0] sm:$0xff]
    %v1527 = vld [vmem:[#allocation14 + $0xa8] sm:$0xff]
    %v1528 = vld [vmem:[#allocation14 + $0xb0] sm:$0xff]
    %v1529 = vld [vmem:[#allocation14 + $0xb8] sm:$0xff]
    %v1530 = vld [vmem:[#allocation14 + $0xc0] sm:$0xff]
    %v1531 = vld [vmem:[#allocation14 + $0xc8] sm:$0xff]
    %v1532 = vld [vmem:[#allocation14 + $0xd0] sm:$0xff]
    %v1533 = vld [vmem:[#allocation14 + $0xd8] sm:$0xff]
    %v1534 = vld [vmem:[#allocation14 + $0xe0] sm:$0xff]
    %v1535 = vld [vmem:[#allocation14 + $0xe8] sm:$0xff]
    %v1536 = vld [vmem:[#allocation14 + $0xf0] sm:$0xff]
    %v1537 = vld [vmem:[#allocation14 + $0xf8] sm:$0xff]
    %v1538 = vld [vmem:[#allocation14 + $0x100] sm:$0xff]
    %v1539 = vld [vmem:[#allocation14 + $0x108] sm:$0xff]
    %v1540 = vld [vmem:[#allocation14 + $0x110] sm:$0xff]
    %v1541 = vld [vmem:[#allocation14 + $0x118] sm:$0xff]
    %v1542 = vld [vmem:[#allocation14 + $0x120] sm:$0xff]
    %v1543 = vld [vmem:[#allocation14 + $0x128] sm:$0xff]
    %v1544 = vld [vmem:[#allocation14 + $0x130] sm:$0xff]
    %v1545 = vld [vmem:[#allocation14 + $0x138] sm:$0xff]
    %v1546 = vld [vmem:[#allocation14 + $0x140] sm:$0xff]
    %v1547 = vld [vmem:[#allocation14 + $0x148] sm:$0xff]
    %v1548 = vld [vmem:[#allocation14 + $0x150] sm:$0xff]
    %v1549 = vld [vmem:[#allocation14 + $0x158] sm:$0xff]
    %v1550 = vld [vmem:[#allocation14 + $0x160] sm:$0xff]
    %v1551 = vld [vmem:[#allocation14 + $0x168] sm:$0xff]
    %v1552 = vld [vmem:[#allocation14 + $0x170] sm:$0xff]
    %v1553 = vld [vmem:[#allocation14 + $0x178] sm:$0xff]
    %v1554 = vld [vmem:[#allocation14 + $0x180] sm:$0xff]
    %v1555 = vld [vmem:[#allocation14 + $0x188] sm:$0xff]
    %v1556 = vld [vmem:[#allocation14 + $0x190] sm:$0xff]
    %v1557 = vld [vmem:[#allocation14 + $0x198] sm:$0xff]
    %v1558 = vld [vmem:[#allocation14 + $0x1a0] sm:$0xff]
    %v1559 = vld [vmem:[#allocation14 + $0x1a8] sm:$0xff]
    %v1560 = vld [vmem:[#allocation14 + $0x1b0] sm:$0xff]
    %v1561 = vld [vmem:[#allocation14 + $0x1b8] sm:$0xff]
    %v1562 = vld [vmem:[#allocation14 + $0x1c0] sm:$0xff]
    %v1563 = vld [vmem:[#allocation14 + $0x1c8] sm:$0xff]
    %v1564 = vld [vmem:[#allocation14 + $0x1d0] sm:$0xff]
    %v1565 = vld [vmem:[#allocation14 + $0x1d8] sm:$0xff]
    %v1566 = vld [vmem:[#allocation14 + $0x1e0] sm:$0xff]
    %v1567 = vld [vmem:[#allocation14 + $0x1e8] sm:$0xff]
    %v1568 = vld [vmem:[#allocation14 + $0x1f0] sm:$0xff]
    %v1569 = vld [vmem:[#allocation14 + $0x1f8] sm:$0xff]
    %1570 = vmatprep.subr.mxu0 %v1567
    %1571 = vmatpush1.msra.mxu0 %v1566
    %1572 = vmatprep.subr.mxu0 %v1563
    %1573 = vmatpush1.msra.mxu0 %v1562
    %1574 = vmatprep.subr.mxu0 %v1559
    %1575 = vmatpush1.msra.mxu0 %v1558
    %1576 = vmatprep.subr.mxu0 %v1555
    %1577 = vmatpush1.msra.mxu0 %v1554
    %1578 = vmatprep.subr.mxu0 %v1551
    %1579 = vmatpush1.msra.mxu0 %v1550
    %1580 = vmatprep.subr.mxu0 %v1547
    %1581 = vmatpush1.msra.mxu0 %v1546
    %1582 = vmatprep.subr.mxu0 %v1543
    %1583 = vmatpush1.msra.mxu0 %v1542
    %1584 = vmatprep.subr.mxu0 %v1539
    %1585 = vmatpush1.msra.mxu0 %v1538
    %1586 = vmatprep.subr.mxu0 %v1535
    %1587 = vmatpush1.msra.mxu0 %v1534
    %1588 = vmatprep.subr.mxu0 %v1531
    %1589 = vmatpush1.msra.mxu0 %v1530
    %1590 = vmatprep.subr.mxu0 %v1527
    %1591 = vmatpush1.msra.mxu0 %v1526
    %1592 = vmatprep.subr.mxu0 %v1523
    %1593 = vmatpush1.msra.mxu0 %v1522
    %1594 = vmatprep.subr.mxu0 %v1519
    %1595 = vmatpush1.msra.mxu0 %v1518
    %1596 = vmatprep.subr.mxu0 %v1515
    %1597 = vmatpush1.msra.mxu0 %v1514
    %1598 = vmatprep.subr.mxu0 %v1511
    %1599 = vmatpush1.msra.mxu0 %v1510
    %1600 = vmatprep.subr.mxu0 %v1507
    %1601 = vmatpush1.msra.mxu0 %v1506
    %1602 = vmatprep.subr.mxu0 0.0
    %1603 = vmatpush2.msra.mxu0 0.0
    %1604 = vmatprep.subr.mxu0 0.0
    %1605 = vmatpush2.msra.mxu0 0.0
    %1606 = vmatprep.subr.mxu0 0.0
    %1607 = vmatpush2.msra.mxu0 0.0
    %1608 = vmatprep.subr.mxu0 0.0
    %1609 = vmatpush2.msra.mxu0 0.0
    %1610 = vmatprep.subr.mxu0 0.0
    %1611 = vmatpush2.msra.mxu0 0.0
    %1612 = vmatprep.subr.mxu0 0.0
    %1613 = vmatpush2.msra.mxu0 0.0
    %1614 = vmatprep.subr.mxu0 0.0
    %1615 = vmatpush2.msra.mxu0 0.0
    %1616 = vmatprep.subr.mxu0 0.0
    %1617 = vmatpush2.msra.mxu0 0.0
    %1618 = vmatprep.subr.mxu0 0.0
    %1619 = vmatpush2.msra.mxu0 0.0
    %1620 = vmatprep.subr.mxu0 0.0
    %1621 = vmatpush2.msra.mxu0 0.0
    %1622 = vmatprep.subr.mxu0 0.0
    %1623 = vmatpush2.msra.mxu0 0.0
    %1624 = vmatprep.subr.mxu0 0.0
    %1625 = vmatpush2.msra.mxu0 0.0
    %1626 = vmatprep.subr.mxu0 0.0
    %1627 = vmatpush2.msra.mxu0 0.0
    %1628 = vmatprep.subr.mxu0 0.0
    %1629 = vmatpush2.msra.mxu0 0.0
    %1630 = vmatprep.subr.mxu0 0.0
    %1631 = vmatpush2.msra.mxu0 0.0
    %1632 = vmatprep.subr.mxu0 0.0
    %1633 = vmatpush2.msra.mxu0 0.0
    %1634 = vmatprep.mubr.f32.mxu0 0.0
    %1635 = vmatmul.mubr.f32.gmra.mxu0 %v1186
    %v1636 = vpop.f32.mrf.mxu0
    %v1637 = vadd.f32 0.0, %v1636
    %v1638 = vpop.f32.mrf.mxu0
    %v1639 = vadd.f32 0.0, %v1638
    %1640 = vdwg.mxu0
    %1641 = vmatprep.subr.mxu0 %v1569
    %1642 = vmatpush1.msra.mxu0 %v1568
    %1643 = vmatprep.subr.mxu0 %v1565
    %1644 = vmatpush1.msra.mxu0 %v1564
    %1645 = vmatprep.subr.mxu0 %v1561
    %1646 = vmatpush1.msra.mxu0 %v1560
    %1647 = vmatprep.subr.mxu0 %v1557
    %1648 = vmatpush1.msra.mxu0 %v1556
    %1649 = vmatprep.subr.mxu0 %v1553
    %1650 = vmatpush1.msra.mxu0 %v1552
    %1651 = vmatprep.subr.mxu0 %v1549
    %1652 = vmatpush1.msra.mxu0 %v1548
    %1653 = vmatprep.subr.mxu0 %v1545
    %1654 = vmatpush1.msra.mxu0 %v1544
    %1655 = vmatprep.subr.mxu0 %v1541
    %1656 = vmatpush1.msra.mxu0 %v1540
    %1657 = vmatprep.subr.mxu0 %v1537
    %1658 = vmatpush1.msra.mxu0 %v1536
    %1659 = vmatprep.subr.mxu0 %v1533
    %1660 = vmatpush1.msra.mxu0 %v1532
    %1661 = vmatprep.subr.mxu0 %v1529
    %1662 = vmatpush1.msra.mxu0 %v1528
    %1663 = vmatprep.subr.mxu0 %v1525
    %1664 = vmatpush1.msra.mxu0 %v1524
    %1665 = vmatprep.subr.mxu0 %v1521
    %1666 = vmatpush1.msra.mxu0 %v1520
    %1667 = vmatprep.subr.mxu0 %v1517
    %1668 = vmatpush1.msra.mxu0 %v1516
    %1669 = vmatprep.subr.mxu0 %v1513
    %1670 = vmatpush1.msra.mxu0 %v1512
    %1671 = vmatprep.subr.mxu0 %v1509
    %1672 = vmatpush1.msra.mxu0 %v1508
    %1673 = vmatprep.subr.mxu0 0.0
    %1674 = vmatpush2.msra.mxu0 0.0
    %1675 = vmatprep.subr.mxu0 0.0
    %1676 = vmatpush2.msra.mxu0 0.0
    %1677 = vmatprep.subr.mxu0 0.0
    %1678 = vmatpush2.msra.mxu0 0.0
    %1679 = vmatprep.subr.mxu0 0.0
    %1680 = vmatpush2.msra.mxu0 0.0
    %1681 = vmatprep.subr.mxu0 0.0
    %1682 = vmatpush2.msra.mxu0 0.0
    %1683 = vmatprep.subr.mxu0 0.0
    %1684 = vmatpush2.msra.mxu0 0.0
    %1685 = vmatprep.subr.mxu0 0.0
    %1686 = vmatpush2.msra.mxu0 0.0
    %1687 = vmatprep.subr.mxu0 0.0
    %1688 = vmatpush2.msra.mxu0 0.0
    %1689 = vmatprep.subr.mxu0 0.0
    %1690 = vmatpush2.msra.mxu0 0.0
    %1691 = vmatprep.subr.mxu0 0.0
    %1692 = vmatpush2.msra.mxu0 0.0
    %1693 = vmatprep.subr.mxu0 0.0
    %1694 = vmatpush2.msra.mxu0 0.0
    %1695 = vmatprep.subr.mxu0 0.0
    %1696 = vmatpush2.msra.mxu0 0.0
    %1697 = vmatprep.subr.mxu0 0.0
    %1698 = vmatpush2.msra.mxu0 0.0
    %1699 = vmatprep.subr.mxu0 0.0
    %1700 = vmatpush2.msra.mxu0 0.0
    %1701 = vmatprep.subr.mxu0 0.0
    %1702 = vmatpush2.msra.mxu0 0.0
    %1703 = vmatprep.subr.mxu0 0.0
    %1704 = vmatpush2.msra.mxu0 0.0
    %1705 = vmatprep.mubr.f32.mxu0 0.0
    %1706 = vmatmul.mubr.f32.gmra.mxu0 %v1186
    %v1707 = vpop.f32.mrf.mxu0
    %v1708 = vadd.f32 0.0, %v1707
    %v1709 = vpop.f32.mrf.mxu0
    %v1710 = vadd.f32 0.0, %v1709
    %1711 = vdwg.mxu0
    %v1716 = vcombine.low %v1637, %v1639
    %v1717 = vcombine.low %v1708, %v1710
    %v1719 = vunpack.c.l.s4 1966171168
    %v1720 = vunpack.c.0.s8 %v1719
    %v1721 = vlaneseq
    %v1722 = vshrl.u32 %v1721, 7
    %v1723 = vsub.s32 %v1720, %v1722
    %v1724 = vrot.slane %v1716, %v1723
    %v1726 = vunpack.c.l.s4 1966171168
    %v1727 = vunpack.c.0.s8 %v1726
    %v1728 = vlaneseq
    %v1729 = vshrl.u32 %v1728, 7
    %v1730 = vsub.s32 %v1727, %v1729
    %v1731 = vrot.slane %v1717, %v1730
    %v1732 = vcombine.low %v1724, %v1731
    %v1734 = vunpack.c.l.s4 1966171168
    %v1735 = vunpack.c.0.s8 %v1734
    %v1736 = vlaneseq
    %v1737 = vshrl.u32 %v1736, 7
    %v1738 = vsub.s32 %v1735, %v1737
    %v1739 = vrot.slane %v1732, %v1738
    %v1741 = vadd.f32 %v1505, %v1739
    %v1742 = vxor.u32 %v1741, 2147483648
    %v1743 = vmul.f32 %v1742, 1.442695
    %v1744 = vpow.pop %v1743
    %v1745 = vadd.f32 %v1744, 1.0
    %v1746 = vrcp.pop %v1745
    %v1747 = vmul.f32 1.0, %v1746
    %v1749 = vrot.slane %v1741, 1
    %v1751 = vxor.u32 %v1749, 2147483648
    %v1752 = vmul.f32 %v1751, 1.442695
    %v1753 = vpow.pop %v1752
    %v1754 = vadd.f32 %v1753, 1.0
    %v1755 = vrcp.pop %v1754
    %v1756 = vmul.f32 1.0, %v1755
    %v1757 = vrot.slane %v1741, 2
    %v1759 = vtanh.pop %v1757
    %v1760 = vrot.slane %v1741, 3
    %v1762 = vxor.u32 %v1760, 2147483648
    %v1763 = vmul.f32 %v1762, 1.442695
    %v1764 = vpow.pop %v1763
    %v1765 = vadd.f32 %v1764, 1.0
    %v1766 = vrcp.pop %v1765
    %v1767 = vmul.f32 1.0, %v1766
    %v1768 = vmul.f32 %v1756, %v1184
    %v1769 = vmul.f32 %v1747, %v1759
    %v1770 = vadd.f32 %v1768, %v1769
    %v1771 = vtanh.pop %v1770
    %v1772 = vmul.f32 %v1767, %v1771
    %v1773 = vld [vmem:[#allocation16] sm:$0xff]
    %v1774 = vld [vmem:[#allocation16 + $0x8] sm:$0xff]
    %v1775 = vld [vmem:[#allocation16 + $0x10] sm:$0xff]
    %v1776 = vld [vmem:[#allocation16 + $0x18] sm:$0xff]
    %v1777 = vld [vmem:[#allocation16 + $0x20] sm:$0xff]
    %v1778 = vld [vmem:[#allocation16 + $0x28] sm:$0xff]
    %v1779 = vld [vmem:[#allocation16 + $0x30] sm:$0xff]
    %v1780 = vld [vmem:[#allocation16 + $0x38] sm:$0xff]
    %v1781 = vld [vmem:[#allocation16 + $0x40] sm:$0xff]
    %v1782 = vld [vmem:[#allocation16 + $0x48] sm:$0xff]
    %v1783 = vld [vmem:[#allocation16 + $0x50] sm:$0xff]
    %v1784 = vld [vmem:[#allocation16 + $0x58] sm:$0xff]
    %v1785 = vld [vmem:[#allocation16 + $0x60] sm:$0xff]
    %v1786 = vld [vmem:[#allocation16 + $0x68] sm:$0xff]
    %v1787 = vld [vmem:[#allocation16 + $0x70] sm:$0xff]
    %v1788 = vld [vmem:[#allocation16 + $0x78] sm:$0xff]
    %v1789 = vld [vmem:[#allocation16 + $0x80] sm:$0xff]
    %v1790 = vld [vmem:[#allocation16 + $0x88] sm:$0xff]
    %v1791 = vld [vmem:[#allocation16 + $0x90] sm:$0xff]
    %v1792 = vld [vmem:[#allocation16 + $0x98] sm:$0xff]
    %v1793 = vld [vmem:[#allocation16 + $0xa0] sm:$0xff]
    %v1794 = vld [vmem:[#allocation16 + $0xa8] sm:$0xff]
    %v1795 = vld [vmem:[#allocation16 + $0xb0] sm:$0xff]
    %v1796 = vld [vmem:[#allocation16 + $0xb8] sm:$0xff]
    %v1797 = vld [vmem:[#allocation16 + $0xc0] sm:$0xff]
    %v1798 = vld [vmem:[#allocation16 + $0xc8] sm:$0xff]
    %v1799 = vld [vmem:[#allocation16 + $0xd0] sm:$0xff]
    %v1800 = vld [vmem:[#allocation16 + $0xd8] sm:$0xff]
    %v1801 = vld [vmem:[#allocation16 + $0xe0] sm:$0xff]
    %v1802 = vld [vmem:[#allocation16 + $0xe8] sm:$0xff]
    %v1803 = vld [vmem:[#allocation16 + $0xf0] sm:$0xff]
    %v1804 = vld [vmem:[#allocation16 + $0xf8] sm:$0xff]
    %v1805 = vld [vmem:[#allocation16 + $0x100] sm:$0xff]
    %v1806 = vld [vmem:[#allocation16 + $0x108] sm:$0xff]
    %v1807 = vld [vmem:[#allocation16 + $0x110] sm:$0xff]
    %v1808 = vld [vmem:[#allocation16 + $0x118] sm:$0xff]
    %v1809 = vld [vmem:[#allocation16 + $0x120] sm:$0xff]
    %v1810 = vld [vmem:[#allocation16 + $0x128] sm:$0xff]
    %v1811 = vld [vmem:[#allocation16 + $0x130] sm:$0xff]
    %v1812 = vld [vmem:[#allocation16 + $0x138] sm:$0xff]
    %v1813 = vld [vmem:[#allocation16 + $0x140] sm:$0xff]
    %v1814 = vld [vmem:[#allocation16 + $0x148] sm:$0xff]
    %v1815 = vld [vmem:[#allocation16 + $0x150] sm:$0xff]
    %v1816 = vld [vmem:[#allocation16 + $0x158] sm:$0xff]
    %v1817 = vld [vmem:[#allocation16 + $0x160] sm:$0xff]
    %v1818 = vld [vmem:[#allocation16 + $0x168] sm:$0xff]
    %v1819 = vld [vmem:[#allocation16 + $0x170] sm:$0xff]
    %v1820 = vld [vmem:[#allocation16 + $0x178] sm:$0xff]
    %v1821 = vld [vmem:[#allocation16 + $0x180] sm:$0xff]
    %v1822 = vld [vmem:[#allocation16 + $0x188] sm:$0xff]
    %v1823 = vld [vmem:[#allocation16 + $0x190] sm:$0xff]
    %v1824 = vld [vmem:[#allocation16 + $0x198] sm:$0xff]
    %v1825 = vld [vmem:[#allocation16 + $0x1a0] sm:$0xff]
    %v1826 = vld [vmem:[#allocation16 + $0x1a8] sm:$0xff]
    %v1827 = vld [vmem:[#allocation16 + $0x1b0] sm:$0xff]
    %v1828 = vld [vmem:[#allocation16 + $0x1b8] sm:$0xff]
    %v1829 = vld [vmem:[#allocation16 + $0x1c0] sm:$0xff]
    %v1830 = vld [vmem:[#allocation16 + $0x1c8] sm:$0xff]
    %v1831 = vld [vmem:[#allocation16 + $0x1d0] sm:$0xff]
    %v1832 = vld [vmem:[#allocation16 + $0x1d8] sm:$0xff]
    %v1833 = vld [vmem:[#allocation16 + $0x1e0] sm:$0xff]
    %v1834 = vld [vmem:[#allocation16 + $0x1e8] sm:$0xff]
    %v1835 = vld [vmem:[#allocation16 + $0x1f0] sm:$0xff]
    %v1836 = vld [vmem:[#allocation16 + $0x1f8] sm:$0xff]
    %v1837 = vld [vmem:[#allocation16 + $0x200] sm:$0xff]
    %v1838 = vld [vmem:[#allocation16 + $0x208] sm:$0xff]
    %v1839 = vld [vmem:[#allocation16 + $0x210] sm:$0xff]
    %v1840 = vld [vmem:[#allocation16 + $0x218] sm:$0xff]
    %v1841 = vld [vmem:[#allocation16 + $0x220] sm:$0xff]
    %v1842 = vld [vmem:[#allocation16 + $0x228] sm:$0xff]
    %v1843 = vld [vmem:[#allocation16 + $0x230] sm:$0xff]
    %v1844 = vld [vmem:[#allocation16 + $0x238] sm:$0xff]
    %v1845 = vld [vmem:[#allocation16 + $0x240] sm:$0xff]
    %v1846 = vld [vmem:[#allocation16 + $0x248] sm:$0xff]
    %v1847 = vld [vmem:[#allocation16 + $0x250] sm:$0xff]
    %v1848 = vld [vmem:[#allocation16 + $0x258] sm:$0xff]
    %v1849 = vld [vmem:[#allocation16 + $0x260] sm:$0xff]
    %v1850 = vld [vmem:[#allocation16 + $0x268] sm:$0xff]
    %v1851 = vld [vmem:[#allocation16 + $0x270] sm:$0xff]
    %v1852 = vld [vmem:[#allocation16 + $0x278] sm:$0xff]
    %v1853 = vld [vmem:[#allocation16 + $0x280] sm:$0xff]
    %v1854 = vld [vmem:[#allocation16 + $0x288] sm:$0xff]
    %v1855 = vld [vmem:[#allocation16 + $0x290] sm:$0xff]
    %v1856 = vld [vmem:[#allocation16 + $0x298] sm:$0xff]
    %v1857 = vld [vmem:[#allocation16 + $0x2a0] sm:$0xff]
    %v1858 = vld [vmem:[#allocation16 + $0x2a8] sm:$0xff]
    %v1859 = vld [vmem:[#allocation16 + $0x2b0] sm:$0xff]
    %v1860 = vld [vmem:[#allocation16 + $0x2b8] sm:$0xff]
    %v1861 = vld [vmem:[#allocation16 + $0x2c0] sm:$0xff]
    %v1862 = vld [vmem:[#allocation16 + $0x2c8] sm:$0xff]
    %v1863 = vld [vmem:[#allocation16 + $0x2d0] sm:$0xff]
    %v1864 = vld [vmem:[#allocation16 + $0x2d8] sm:$0xff]
    %v1865 = vld [vmem:[#allocation16 + $0x2e0] sm:$0xff]
    %v1866 = vld [vmem:[#allocation16 + $0x2e8] sm:$0xff]
    %v1867 = vld [vmem:[#allocation16 + $0x2f0] sm:$0xff]
    %v1868 = vld [vmem:[#allocation16 + $0x2f8] sm:$0xff]
    %v1869 = vld [vmem:[#allocation16 + $0x300] sm:$0xff]
    %v1870 = vld [vmem:[#allocation16 + $0x308] sm:$0xff]
    %v1871 = vld [vmem:[#allocation16 + $0x310] sm:$0xff]
    %v1872 = vld [vmem:[#allocation16 + $0x318] sm:$0xff]
    %v1873 = vld [vmem:[#allocation16 + $0x320] sm:$0xff]
    %v1874 = vld [vmem:[#allocation16 + $0x328] sm:$0xff]
    %v1875 = vld [vmem:[#allocation16 + $0x330] sm:$0xff]
    %v1876 = vld [vmem:[#allocation16 + $0x338] sm:$0xff]
    %v1877 = vld [vmem:[#allocation16 + $0x340] sm:$0xff]
    %v1878 = vld [vmem:[#allocation16 + $0x348] sm:$0xff]
    %v1879 = vld [vmem:[#allocation16 + $0x350] sm:$0xff]
    %v1880 = vld [vmem:[#allocation16 + $0x358] sm:$0xff]
    %v1881 = vld [vmem:[#allocation16 + $0x360] sm:$0xff]
    %v1882 = vld [vmem:[#allocation16 + $0x368] sm:$0xff]
    %v1883 = vld [vmem:[#allocation16 + $0x370] sm:$0xff]
    %v1884 = vld [vmem:[#allocation16 + $0x378] sm:$0xff]
    %v1885 = vld [vmem:[#allocation16 + $0x380] sm:$0xff]
    %v1886 = vld [vmem:[#allocation16 + $0x388] sm:$0xff]
    %v1887 = vld [vmem:[#allocation16 + $0x390] sm:$0xff]
    %v1888 = vld [vmem:[#allocation16 + $0x398] sm:$0xff]
    %v1889 = vld [vmem:[#allocation16 + $0x3a0] sm:$0xff]
    %v1890 = vld [vmem:[#allocation16 + $0x3a8] sm:$0xff]
    %v1891 = vld [vmem:[#allocation16 + $0x3b0] sm:$0xff]
    %v1892 = vld [vmem:[#allocation16 + $0x3b8] sm:$0xff]
    %v1893 = vld [vmem:[#allocation16 + $0x3c0] sm:$0xff]
    %v1894 = vld [vmem:[#allocation16 + $0x3c8] sm:$0xff]
    %v1895 = vld [vmem:[#allocation16 + $0x3d0] sm:$0xff]
    %v1896 = vld [vmem:[#allocation16 + $0x3d8] sm:$0xff]
    %v1897 = vld [vmem:[#allocation16 + $0x3e0] sm:$0xff]
    %v1898 = vld [vmem:[#allocation16 + $0x3e8] sm:$0xff]
    %v1899 = vld [vmem:[#allocation16 + $0x3f0] sm:$0xff]
    %v1900 = vld [vmem:[#allocation16 + $0x3f8] sm:$0xff]
    %v1901 = vld [vmem:[%s6] sm:$0xf]
    %v1903 = vlaneseq
    %v1904 = vshrl.u32 %v1903, 7
    %v1905 = vsub.s32 0, %v1904
    %v1906 = vrot.slane %v1901, %v1905
    %v1907 = vlaneseq
    %v1908 = vshrl.u32 %v1907, 7
    %v1909 = vsub.s32 1, %v1908
    %v1910 = vrot.slane %v1901, %v1909
    %v1911 = vlaneseq
    %v1912 = vshrl.u32 %v1911, 7
    %v1913 = vsub.s32 2, %v1912
    %v1914 = vrot.slane %v1901, %v1913
    %v1915 = vlaneseq
    %v1916 = vshrl.u32 %v1915, 7
    %v1917 = vsub.s32 3, %v1916
    %v1918 = vrot.slane %v1901, %v1917
    %1923 = vmatprep.subr.mxu0 %v1834
    %1924 = vmatpush1.msra.mxu0 %v1833
    %1925 = vmatprep.subr.mxu0 %v1830
    %1926 = vmatpush1.msra.mxu0 %v1829
    %1927 = vmatprep.subr.mxu0 %v1826
    %1928 = vmatpush1.msra.mxu0 %v1825
    %1929 = vmatprep.subr.mxu0 %v1822
    %1930 = vmatpush1.msra.mxu0 %v1821
    %1931 = vmatprep.subr.mxu0 %v1818
    %1932 = vmatpush1.msra.mxu0 %v1817
    %1933 = vmatprep.subr.mxu0 %v1814
    %1934 = vmatpush1.msra.mxu0 %v1813
    %1935 = vmatprep.subr.mxu0 %v1810
    %1936 = vmatpush1.msra.mxu0 %v1809
    %1937 = vmatprep.subr.mxu0 %v1806
    %1938 = vmatpush1.msra.mxu0 %v1805
    %1939 = vmatprep.subr.mxu0 %v1802
    %1940 = vmatpush1.msra.mxu0 %v1801
    %1941 = vmatprep.subr.mxu0 %v1798
    %1942 = vmatpush1.msra.mxu0 %v1797
    %1943 = vmatprep.subr.mxu0 %v1794
    %1944 = vmatpush1.msra.mxu0 %v1793
    %1945 = vmatprep.subr.mxu0 %v1790
    %1946 = vmatpush1.msra.mxu0 %v1789
    %1947 = vmatprep.subr.mxu0 %v1786
    %1948 = vmatpush1.msra.mxu0 %v1785
    %1949 = vmatprep.subr.mxu0 %v1782
    %1950 = vmatpush1.msra.mxu0 %v1781
    %1951 = vmatprep.subr.mxu0 %v1778
    %1952 = vmatpush1.msra.mxu0 %v1777
    %1953 = vmatprep.subr.mxu0 %v1774
    %1954 = vmatpush1.msra.mxu0 %v1773
    %1955 = vmatprep.subr.mxu0 %v1898
    %1956 = vmatpush2.msra.mxu0 %v1897
    %1957 = vmatprep.subr.mxu0 %v1894
    %1958 = vmatpush2.msra.mxu0 %v1893
    %1959 = vmatprep.subr.mxu0 %v1890
    %1960 = vmatpush2.msra.mxu0 %v1889
    %1961 = vmatprep.subr.mxu0 %v1886
    %1962 = vmatpush2.msra.mxu0 %v1885
    %1963 = vmatprep.subr.mxu0 %v1882
    %1964 = vmatpush2.msra.mxu0 %v1881
    %1965 = vmatprep.subr.mxu0 %v1878
    %1966 = vmatpush2.msra.mxu0 %v1877
    %1967 = vmatprep.subr.mxu0 %v1874
    %1968 = vmatpush2.msra.mxu0 %v1873
    %1969 = vmatprep.subr.mxu0 %v1870
    %1970 = vmatpush2.msra.mxu0 %v1869
    %1971 = vmatprep.subr.mxu0 %v1866
    %1972 = vmatpush2.msra.mxu0 %v1865
    %1973 = vmatprep.subr.mxu0 %v1862
    %1974 = vmatpush2.msra.mxu0 %v1861
    %1975 = vmatprep.subr.mxu0 %v1858
    %1976 = vmatpush2.msra.mxu0 %v1857
    %1977 = vmatprep.subr.mxu0 %v1854
    %1978 = vmatpush2.msra.mxu0 %v1853
    %1979 = vmatprep.subr.mxu0 %v1850
    %1980 = vmatpush2.msra.mxu0 %v1849
    %1981 = vmatprep.subr.mxu0 %v1846
    %1982 = vmatpush2.msra.mxu0 %v1845
    %1983 = vmatprep.subr.mxu0 %v1842
    %1984 = vmatpush2.msra.mxu0 %v1841
    %1985 = vmatprep.subr.mxu0 %v1838
    %1986 = vmatpush2.msra.mxu0 %v1837
    %1987 = vmatprep.mubr.f32.mxu0 %v1502
    %1988 = vmatmul.mubr.f32.gmra.mxu0 %v1772
    %v1989 = vpop.f32.mrf.mxu0
    %v1990 = vadd.f32 %v1906, %v1989
    %v1991 = vpop.f32.mrf.mxu0
    %v1992 = vadd.f32 %v1910, %v1991
    %1993 = vdwg.mxu0
    %1994 = vmatprep.subr.mxu0 %v1836
    %1995 = vmatpush1.msra.mxu0 %v1835
    %1996 = vmatprep.subr.mxu0 %v1832
    %1997 = vmatpush1.msra.mxu0 %v1831
    %1998 = vmatprep.subr.mxu0 %v1828
    %1999 = vmatpush1.msra.mxu0 %v1827
    %2000 = vmatprep.subr.mxu0 %v1824
    %2001 = vmatpush1.msra.mxu0 %v1823
    %2002 = vmatprep.subr.mxu0 %v1820
    %2003 = vmatpush1.msra.mxu0 %v1819
    %2004 = vmatprep.subr.mxu0 %v1816
    %2005 = vmatpush1.msra.mxu0 %v1815
    %2006 = vmatprep.subr.mxu0 %v1812
    %2007 = vmatpush1.msra.mxu0 %v1811
    %2008 = vmatprep.subr.mxu0 %v1808
    %2009 = vmatpush1.msra.mxu0 %v1807
    %2010 = vmatprep.subr.mxu0 %v1804
    %2011 = vmatpush1.msra.mxu0 %v1803
    %2012 = vmatprep.subr.mxu0 %v1800
    %2013 = vmatpush1.msra.mxu0 %v1799
    %2014 = vmatprep.subr.mxu0 %v1796
    %2015 = vmatpush1.msra.mxu0 %v1795
    %2016 = vmatprep.subr.mxu0 %v1792
    %2017 = vmatpush1.msra.mxu0 %v1791
    %2018 = vmatprep.subr.mxu0 %v1788
    %2019 = vmatpush1.msra.mxu0 %v1787
    %2020 = vmatprep.subr.mxu0 %v1784
    %2021 = vmatpush1.msra.mxu0 %v1783
    %2022 = vmatprep.subr.mxu0 %v1780
    %2023 = vmatpush1.msra.mxu0 %v1779
    %2024 = vmatprep.subr.mxu0 %v1776
    %2025 = vmatpush1.msra.mxu0 %v1775
    %2026 = vmatprep.subr.mxu0 %v1900
    %2027 = vmatpush2.msra.mxu0 %v1899
    %2028 = vmatprep.subr.mxu0 %v1896
    %2029 = vmatpush2.msra.mxu0 %v1895
    %2030 = vmatprep.subr.mxu0 %v1892
    %2031 = vmatpush2.msra.mxu0 %v1891
    %2032 = vmatprep.subr.mxu0 %v1888
    %2033 = vmatpush2.msra.mxu0 %v1887
    %2034 = vmatprep.subr.mxu0 %v1884
    %2035 = vmatpush2.msra.mxu0 %v1883
    %2036 = vmatprep.subr.mxu0 %v1880
    %2037 = vmatpush2.msra.mxu0 %v1879
    %2038 = vmatprep.subr.mxu0 %v1876
    %2039 = vmatpush2.msra.mxu0 %v1875
    %2040 = vmatprep.subr.mxu0 %v1872
    %2041 = vmatpush2.msra.mxu0 %v1871
    %2042 = vmatprep.subr.mxu0 %v1868
    %2043 = vmatpush2.msra.mxu0 %v1867
    %2044 = vmatprep.subr.mxu0 %v1864
    %2045 = vmatpush2.msra.mxu0 %v1863
    %2046 = vmatprep.subr.mxu0 %v1860
    %2047 = vmatpush2.msra.mxu0 %v1859
    %2048 = vmatprep.subr.mxu0 %v1856
    %2049 = vmatpush2.msra.mxu0 %v1855
    %2050 = vmatprep.subr.mxu0 %v1852
    %2051 = vmatpush2.msra.mxu0 %v1851
    %2052 = vmatprep.subr.mxu0 %v1848
    %2053 = vmatpush2.msra.mxu0 %v1847
    %2054 = vmatprep.subr.mxu0 %v1844
    %2055 = vmatpush2.msra.mxu0 %v1843
    %2056 = vmatprep.subr.mxu0 %v1840
    %2057 = vmatpush2.msra.mxu0 %v1839
    %2058 = vmatprep.mubr.f32.mxu0 %v1502
    %2059 = vmatmul.mubr.f32.gmra.mxu0 %v1772
    %v2060 = vpop.f32.mrf.mxu0
    %v2061 = vadd.f32 %v1914, %v2060
    %v2062 = vpop.f32.mrf.mxu0
    %v2063 = vadd.f32 %v1918, %v2062
    %2064 = vdwg.mxu0
    %v2065 = vxor.u32 %v1990, 2147483648
    %v2066 = vmul.f32 %v2065, 1.442695
    %v2067 = vpow.pop %v2066
    %v2068 = vadd.f32 %v2067, 1.0
    %v2069 = vrcp.pop %v2068
    %v2070 = vmul.f32 1.0, %v2069
    %v2071 = vxor.u32 %v1992, 2147483648
    %v2072 = vmul.f32 %v2071, 1.442695
    %v2073 = vpow.pop %v2072
    %v2074 = vadd.f32 %v2073, 1.0
    %v2075 = vrcp.pop %v2074
    %v2076 = vmul.f32 1.0, %v2075
    %v2077 = vtanh.pop %v2061
    %v2078 = vxor.u32 %v2063, 2147483648
    %v2079 = vmul.f32 %v2078, 1.442695
    %v2080 = vpow.pop %v2079
    %v2081 = vadd.f32 %v2080, 1.0
    %v2082 = vrcp.pop %v2081
    %v2083 = vmul.f32 1.0, %v2082
    %v2084 = vmul.f32 %v2076, %v1500
    %v2085 = vmul.f32 %v2070, %v2077
    %v2086 = vadd.f32 %v2084, %v2085
    %v2087 = vtanh.pop %v2086
    %v2088 = vmul.f32 %v2083, %v2087
    %2089 = vst [vmem:[#allocation3 + $0x2] sm:$0x1] %v2088
    %s2090 = scalar_lea.vmem [#allocation2], 3
    %v2091 = vld [vmem:[%s2090] ss:$8 sm:$0xf]
    %v2092 = vld [vmem:[#allocation14] sm:$0xff]
    %v2093 = vld [vmem:[#allocation14 + $0x8] sm:$0xff]
    %v2094 = vld [vmem:[#allocation14 + $0x10] sm:$0xff]
    %v2095 = vld [vmem:[#allocation14 + $0x18] sm:$0xff]
    %v2096 = vld [vmem:[#allocation14 + $0x20] sm:$0xff]
    %v2097 = vld [vmem:[#allocation14 + $0x28] sm:$0xff]
    %v2098 = vld [vmem:[#allocation14 + $0x30] sm:$0xff]
    %v2099 = vld [vmem:[#allocation14 + $0x38] sm:$0xff]
    %v2100 = vld [vmem:[#allocation14 + $0x40] sm:$0xff]
    %v2101 = vld [vmem:[#allocation14 + $0x48] sm:$0xff]
    %v2102 = vld [vmem:[#allocation14 + $0x50] sm:$0xff]
    %v2103 = vld [vmem:[#allocation14 + $0x58] sm:$0xff]
    %v2104 = vld [vmem:[#allocation14 + $0x60] sm:$0xff]
    %v2105 = vld [vmem:[#allocation14 + $0x68] sm:$0xff]
    %v2106 = vld [vmem:[#allocation14 + $0x70] sm:$0xff]
    %v2107 = vld [vmem:[#allocation14 + $0x78] sm:$0xff]
    %v2108 = vld [vmem:[#allocation14 + $0x80] sm:$0xff]
    %v2109 = vld [vmem:[#allocation14 + $0x88] sm:$0xff]
    %v2110 = vld [vmem:[#allocation14 + $0x90] sm:$0xff]
    %v2111 = vld [vmem:[#allocation14 + $0x98] sm:$0xff]
    %v2112 = vld [vmem:[#allocation14 + $0xa0] sm:$0xff]
    %v2113 = vld [vmem:[#allocation14 + $0xa8] sm:$0xff]
    %v2114 = vld [vmem:[#allocation14 + $0xb0] sm:$0xff]
    %v2115 = vld [vmem:[#allocation14 + $0xb8] sm:$0xff]
    %v2116 = vld [vmem:[#allocation14 + $0xc0] sm:$0xff]
    %v2117 = vld [vmem:[#allocation14 + $0xc8] sm:$0xff]
    %v2118 = vld [vmem:[#allocation14 + $0xd0] sm:$0xff]
    %v2119 = vld [vmem:[#allocation14 + $0xd8] sm:$0xff]
    %v2120 = vld [vmem:[#allocation14 + $0xe0] sm:$0xff]
    %v2121 = vld [vmem:[#allocation14 + $0xe8] sm:$0xff]
    %v2122 = vld [vmem:[#allocation14 + $0xf0] sm:$0xff]
    %v2123 = vld [vmem:[#allocation14 + $0xf8] sm:$0xff]
    %v2124 = vld [vmem:[#allocation14 + $0x100] sm:$0xff]
    %v2125 = vld [vmem:[#allocation14 + $0x108] sm:$0xff]
    %v2126 = vld [vmem:[#allocation14 + $0x110] sm:$0xff]
    %v2127 = vld [vmem:[#allocation14 + $0x118] sm:$0xff]
    %v2128 = vld [vmem:[#allocation14 + $0x120] sm:$0xff]
    %v2129 = vld [vmem:[#allocation14 + $0x128] sm:$0xff]
    %v2130 = vld [vmem:[#allocation14 + $0x130] sm:$0xff]
    %v2131 = vld [vmem:[#allocation14 + $0x138] sm:$0xff]
    %v2132 = vld [vmem:[#allocation14 + $0x140] sm:$0xff]
    %v2133 = vld [vmem:[#allocation14 + $0x148] sm:$0xff]
    %v2134 = vld [vmem:[#allocation14 + $0x150] sm:$0xff]
    %v2135 = vld [vmem:[#allocation14 + $0x158] sm:$0xff]
    %v2136 = vld [vmem:[#allocation14 + $0x160] sm:$0xff]
    %v2137 = vld [vmem:[#allocation14 + $0x168] sm:$0xff]
    %v2138 = vld [vmem:[#allocation14 + $0x170] sm:$0xff]
    %v2139 = vld [vmem:[#allocation14 + $0x178] sm:$0xff]
    %v2140 = vld [vmem:[#allocation14 + $0x180] sm:$0xff]
    %v2141 = vld [vmem:[#allocation14 + $0x188] sm:$0xff]
    %v2142 = vld [vmem:[#allocation14 + $0x190] sm:$0xff]
    %v2143 = vld [vmem:[#allocation14 + $0x198] sm:$0xff]
    %v2144 = vld [vmem:[#allocation14 + $0x1a0] sm:$0xff]
    %v2145 = vld [vmem:[#allocation14 + $0x1a8] sm:$0xff]
    %v2146 = vld [vmem:[#allocation14 + $0x1b0] sm:$0xff]
    %v2147 = vld [vmem:[#allocation14 + $0x1b8] sm:$0xff]
    %v2148 = vld [vmem:[#allocation14 + $0x1c0] sm:$0xff]
    %v2149 = vld [vmem:[#allocation14 + $0x1c8] sm:$0xff]
    %v2150 = vld [vmem:[#allocation14 + $0x1d0] sm:$0xff]
    %v2151 = vld [vmem:[#allocation14 + $0x1d8] sm:$0xff]
    %v2152 = vld [vmem:[#allocation14 + $0x1e0] sm:$0xff]
    %v2153 = vld [vmem:[#allocation14 + $0x1e8] sm:$0xff]
    %v2154 = vld [vmem:[#allocation14 + $0x1f0] sm:$0xff]
    %v2155 = vld [vmem:[#allocation14 + $0x1f8] sm:$0xff]
    %2156 = vmatprep.subr.mxu0 %v2153
    %2157 = vmatpush1.msra.mxu0 %v2152
    %2158 = vmatprep.subr.mxu0 %v2149
    %2159 = vmatpush1.msra.mxu0 %v2148
    %2160 = vmatprep.subr.mxu0 %v2145
    %2161 = vmatpush1.msra.mxu0 %v2144
    %2162 = vmatprep.subr.mxu0 %v2141
    %2163 = vmatpush1.msra.mxu0 %v2140
    %2164 = vmatprep.subr.mxu0 %v2137
    %2165 = vmatpush1.msra.mxu0 %v2136
    %2166 = vmatprep.subr.mxu0 %v2133
    %2167 = vmatpush1.msra.mxu0 %v2132
    %2168 = vmatprep.subr.mxu0 %v2129
    %2169 = vmatpush1.msra.mxu0 %v2128
    %2170 = vmatprep.subr.mxu0 %v2125
    %2171 = vmatpush1.msra.mxu0 %v2124
    %2172 = vmatprep.subr.mxu0 %v2121
    %2173 = vmatpush1.msra.mxu0 %v2120
    %2174 = vmatprep.subr.mxu0 %v2117
    %2175 = vmatpush1.msra.mxu0 %v2116
    %2176 = vmatprep.subr.mxu0 %v2113
    %2177 = vmatpush1.msra.mxu0 %v2112
    %2178 = vmatprep.subr.mxu0 %v2109
    %2179 = vmatpush1.msra.mxu0 %v2108
    %2180 = vmatprep.subr.mxu0 %v2105
    %2181 = vmatpush1.msra.mxu0 %v2104
    %2182 = vmatprep.subr.mxu0 %v2101
    %2183 = vmatpush1.msra.mxu0 %v2100
    %2184 = vmatprep.subr.mxu0 %v2097
    %2185 = vmatpush1.msra.mxu0 %v2096
    %2186 = vmatprep.subr.mxu0 %v2093
    %2187 = vmatpush1.msra.mxu0 %v2092
    %2188 = vmatprep.subr.mxu0 0.0
    %2189 = vmatpush2.msra.mxu0 0.0
    %2190 = vmatprep.subr.mxu0 0.0
    %2191 = vmatpush2.msra.mxu0 0.0
    %2192 = vmatprep.subr.mxu0 0.0
    %2193 = vmatpush2.msra.mxu0 0.0
    %2194 = vmatprep.subr.mxu0 0.0
    %2195 = vmatpush2.msra.mxu0 0.0
    %2196 = vmatprep.subr.mxu0 0.0
    %2197 = vmatpush2.msra.mxu0 0.0
    %2198 = vmatprep.subr.mxu0 0.0
    %2199 = vmatpush2.msra.mxu0 0.0
    %2200 = vmatprep.subr.mxu0 0.0
    %2201 = vmatpush2.msra.mxu0 0.0
    %2202 = vmatprep.subr.mxu0 0.0
    %2203 = vmatpush2.msra.mxu0 0.0
    %2204 = vmatprep.subr.mxu0 0.0
    %2205 = vmatpush2.msra.mxu0 0.0
    %2206 = vmatprep.subr.mxu0 0.0
    %2207 = vmatpush2.msra.mxu0 0.0
    %2208 = vmatprep.subr.mxu0 0.0
    %2209 = vmatpush2.msra.mxu0 0.0
    %2210 = vmatprep.subr.mxu0 0.0
    %2211 = vmatpush2.msra.mxu0 0.0
    %2212 = vmatprep.subr.mxu0 0.0
    %2213 = vmatpush2.msra.mxu0 0.0
    %2214 = vmatprep.subr.mxu0 0.0
    %2215 = vmatpush2.msra.mxu0 0.0
    %2216 = vmatprep.subr.mxu0 0.0
    %2217 = vmatpush2.msra.mxu0 0.0
    %2218 = vmatprep.subr.mxu0 0.0
    %2219 = vmatpush2.msra.mxu0 0.0
    %2220 = vmatprep.mubr.f32.mxu0 0.0
    %2221 = vmatmul.mubr.f32.gmra.mxu0 %v1772
    %v2222 = vpop.f32.mrf.mxu0
    %v2223 = vadd.f32 0.0, %v2222
    %v2224 = vpop.f32.mrf.mxu0
    %v2225 = vadd.f32 0.0, %v2224
    %2226 = vdwg.mxu0
    %2227 = vmatprep.subr.mxu0 %v2155
    %2228 = vmatpush1.msra.mxu0 %v2154
    %2229 = vmatprep.subr.mxu0 %v2151
    %2230 = vmatpush1.msra.mxu0 %v2150
    %2231 = vmatprep.subr.mxu0 %v2147
    %2232 = vmatpush1.msra.mxu0 %v2146
    %2233 = vmatprep.subr.mxu0 %v2143
    %2234 = vmatpush1.msra.mxu0 %v2142
    %2235 = vmatprep.subr.mxu0 %v2139
    %2236 = vmatpush1.msra.mxu0 %v2138
    %2237 = vmatprep.subr.mxu0 %v2135
    %2238 = vmatpush1.msra.mxu0 %v2134
    %2239 = vmatprep.subr.mxu0 %v2131
    %2240 = vmatpush1.msra.mxu0 %v2130
    %2241 = vmatprep.subr.mxu0 %v2127
    %2242 = vmatpush1.msra.mxu0 %v2126
    %2243 = vmatprep.subr.mxu0 %v2123
    %2244 = vmatpush1.msra.mxu0 %v2122
    %2245 = vmatprep.subr.mxu0 %v2119
    %2246 = vmatpush1.msra.mxu0 %v2118
    %2247 = vmatprep.subr.mxu0 %v2115
    %2248 = vmatpush1.msra.mxu0 %v2114
    %2249 = vmatprep.subr.mxu0 %v2111
    %2250 = vmatpush1.msra.mxu0 %v2110
    %2251 = vmatprep.subr.mxu0 %v2107
    %2252 = vmatpush1.msra.mxu0 %v2106
    %2253 = vmatprep.subr.mxu0 %v2103
    %2254 = vmatpush1.msra.mxu0 %v2102
    %2255 = vmatprep.subr.mxu0 %v2099
    %2256 = vmatpush1.msra.mxu0 %v2098
    %2257 = vmatprep.subr.mxu0 %v2095
    %2258 = vmatpush1.msra.mxu0 %v2094
    %2259 = vmatprep.subr.mxu0 0.0
    %2260 = vmatpush2.msra.mxu0 0.0
    %2261 = vmatprep.subr.mxu0 0.0
    %2262 = vmatpush2.msra.mxu0 0.0
    %2263 = vmatprep.subr.mxu0 0.0
    %2264 = vmatpush2.msra.mxu0 0.0
    %2265 = vmatprep.subr.mxu0 0.0
    %2266 = vmatpush2.msra.mxu0 0.0
    %2267 = vmatprep.subr.mxu0 0.0
    %2268 = vmatpush2.msra.mxu0 0.0
    %2269 = vmatprep.subr.mxu0 0.0
    %2270 = vmatpush2.msra.mxu0 0.0
    %2271 = vmatprep.subr.mxu0 0.0
    %2272 = vmatpush2.msra.mxu0 0.0
    %2273 = vmatprep.subr.mxu0 0.0
    %2274 = vmatpush2.msra.mxu0 0.0
    %2275 = vmatprep.subr.mxu0 0.0
    %2276 = vmatpush2.msra.mxu0 0.0
    %2277 = vmatprep.subr.mxu0 0.0
    %2278 = vmatpush2.msra.mxu0 0.0
    %2279 = vmatprep.subr.mxu0 0.0
    %2280 = vmatpush2.msra.mxu0 0.0
    %2281 = vmatprep.subr.mxu0 0.0
    %2282 = vmatpush2.msra.mxu0 0.0
    %2283 = vmatprep.subr.mxu0 0.0
    %2284 = vmatpush2.msra.mxu0 0.0
    %2285 = vmatprep.subr.mxu0 0.0
    %2286 = vmatpush2.msra.mxu0 0.0
    %2287 = vmatprep.subr.mxu0 0.0
    %2288 = vmatpush2.msra.mxu0 0.0
    %2289 = vmatprep.subr.mxu0 0.0
    %2290 = vmatpush2.msra.mxu0 0.0
    %2291 = vmatprep.mubr.f32.mxu0 0.0
    %2292 = vmatmul.mubr.f32.gmra.mxu0 %v1772
    %v2293 = vpop.f32.mrf.mxu0
    %v2294 = vadd.f32 0.0, %v2293
    %v2295 = vpop.f32.mrf.mxu0
    %v2296 = vadd.f32 0.0, %v2295
    %2297 = vdwg.mxu0
    %v2302 = vcombine.low %v2223, %v2225
    %v2303 = vcombine.low %v2294, %v2296
    %v2305 = vunpack.c.l.s4 1966171168
    %v2306 = vunpack.c.0.s8 %v2305
    %v2307 = vlaneseq
    %v2308 = vshrl.u32 %v2307, 7
    %v2309 = vsub.s32 %v2306, %v2308
    %v2310 = vrot.slane %v2302, %v2309
    %v2312 = vunpack.c.l.s4 1966171168
    %v2313 = vunpack.c.0.s8 %v2312
    %v2314 = vlaneseq
    %v2315 = vshrl.u32 %v2314, 7
    %v2316 = vsub.s32 %v2313, %v2315
    %v2317 = vrot.slane %v2303, %v2316
    %v2318 = vcombine.low %v2310, %v2317
    %v2320 = vunpack.c.l.s4 1966171168
    %v2321 = vunpack.c.0.s8 %v2320
    %v2322 = vlaneseq
    %v2323 = vshrl.u32 %v2322, 7
    %v2324 = vsub.s32 %v2321, %v2323
    %v2325 = vrot.slane %v2318, %v2324
    %v2327 = vadd.f32 %v2091, %v2325
    %v2328 = vxor.u32 %v2327, 2147483648
    %v2329 = vmul.f32 %v2328, 1.442695
    %v2330 = vpow.pop %v2329
    %v2331 = vadd.f32 %v2330, 1.0
    %v2332 = vrcp.pop %v2331
    %v2333 = vmul.f32 1.0, %v2332
    %v2335 = vrot.slane %v2327, 1
    %v2337 = vxor.u32 %v2335, 2147483648
    %v2338 = vmul.f32 %v2337, 1.442695
    %v2339 = vpow.pop %v2338
    %v2340 = vadd.f32 %v2339, 1.0
    %v2341 = vrcp.pop %v2340
    %v2342 = vmul.f32 1.0, %v2341
    %v2343 = vrot.slane %v2327, 2
    %v2345 = vtanh.pop %v2343
    %v2346 = vrot.slane %v2327, 3
    %v2348 = vxor.u32 %v2346, 2147483648
    %v2349 = vmul.f32 %v2348, 1.442695
    %v2350 = vpow.pop %v2349
    %v2351 = vadd.f32 %v2350, 1.0
    %v2352 = vrcp.pop %v2351
    %v2353 = vmul.f32 1.0, %v2352
    %v2354 = vmul.f32 %v2342, %v1770
    %v2355 = vmul.f32 %v2333, %v2345
    %v2356 = vadd.f32 %v2354, %v2355
    %v2357 = vtanh.pop %v2356
    %v2358 = vmul.f32 %v2353, %v2357
    %v2359 = vld [vmem:[#allocation16] sm:$0xff]
    %v2360 = vld [vmem:[#allocation16 + $0x8] sm:$0xff]
    %v2361 = vld [vmem:[#allocation16 + $0x10] sm:$0xff]
    %v2362 = vld [vmem:[#allocation16 + $0x18] sm:$0xff]
    %v2363 = vld [vmem:[#allocation16 + $0x20] sm:$0xff]
    %v2364 = vld [vmem:[#allocation16 + $0x28] sm:$0xff]
    %v2365 = vld [vmem:[#allocation16 + $0x30] sm:$0xff]
    %v2366 = vld [vmem:[#allocation16 + $0x38] sm:$0xff]
    %v2367 = vld [vmem:[#allocation16 + $0x40] sm:$0xff]
    %v2368 = vld [vmem:[#allocation16 + $0x48] sm:$0xff]
    %v2369 = vld [vmem:[#allocation16 + $0x50] sm:$0xff]
    %v2370 = vld [vmem:[#allocation16 + $0x58] sm:$0xff]
    %v2371 = vld [vmem:[#allocation16 + $0x60] sm:$0xff]
    %v2372 = vld [vmem:[#allocation16 + $0x68] sm:$0xff]
    %v2373 = vld [vmem:[#allocation16 + $0x70] sm:$0xff]
    %v2374 = vld [vmem:[#allocation16 + $0x78] sm:$0xff]
    %v2375 = vld [vmem:[#allocation16 + $0x80] sm:$0xff]
    %v2376 = vld [vmem:[#allocation16 + $0x88] sm:$0xff]
    %v2377 = vld [vmem:[#allocation16 + $0x90] sm:$0xff]
    %v2378 = vld [vmem:[#allocation16 + $0x98] sm:$0xff]
    %v2379 = vld [vmem:[#allocation16 + $0xa0] sm:$0xff]
    %v2380 = vld [vmem:[#allocation16 + $0xa8] sm:$0xff]
    %v2381 = vld [vmem:[#allocation16 + $0xb0] sm:$0xff]
    %v2382 = vld [vmem:[#allocation16 + $0xb8] sm:$0xff]
    %v2383 = vld [vmem:[#allocation16 + $0xc0] sm:$0xff]
    %v2384 = vld [vmem:[#allocation16 + $0xc8] sm:$0xff]
    %v2385 = vld [vmem:[#allocation16 + $0xd0] sm:$0xff]
    %v2386 = vld [vmem:[#allocation16 + $0xd8] sm:$0xff]
    %v2387 = vld [vmem:[#allocation16 + $0xe0] sm:$0xff]
    %v2388 = vld [vmem:[#allocation16 + $0xe8] sm:$0xff]
    %v2389 = vld [vmem:[#allocation16 + $0xf0] sm:$0xff]
    %v2390 = vld [vmem:[#allocation16 + $0xf8] sm:$0xff]
    %v2391 = vld [vmem:[#allocation16 + $0x100] sm:$0xff]
    %v2392 = vld [vmem:[#allocation16 + $0x108] sm:$0xff]
    %v2393 = vld [vmem:[#allocation16 + $0x110] sm:$0xff]
    %v2394 = vld [vmem:[#allocation16 + $0x118] sm:$0xff]
    %v2395 = vld [vmem:[#allocation16 + $0x120] sm:$0xff]
    %v2396 = vld [vmem:[#allocation16 + $0x128] sm:$0xff]
    %v2397 = vld [vmem:[#allocation16 + $0x130] sm:$0xff]
    %v2398 = vld [vmem:[#allocation16 + $0x138] sm:$0xff]
    %v2399 = vld [vmem:[#allocation16 + $0x140] sm:$0xff]
    %v2400 = vld [vmem:[#allocation16 + $0x148] sm:$0xff]
    %v2401 = vld [vmem:[#allocation16 + $0x150] sm:$0xff]
    %v2402 = vld [vmem:[#allocation16 + $0x158] sm:$0xff]
    %v2403 = vld [vmem:[#allocation16 + $0x160] sm:$0xff]
    %v2404 = vld [vmem:[#allocation16 + $0x168] sm:$0xff]
    %v2405 = vld [vmem:[#allocation16 + $0x170] sm:$0xff]
    %v2406 = vld [vmem:[#allocation16 + $0x178] sm:$0xff]
    %v2407 = vld [vmem:[#allocation16 + $0x180] sm:$0xff]
    %v2408 = vld [vmem:[#allocation16 + $0x188] sm:$0xff]
    %v2409 = vld [vmem:[#allocation16 + $0x190] sm:$0xff]
    %v2410 = vld [vmem:[#allocation16 + $0x198] sm:$0xff]
    %v2411 = vld [vmem:[#allocation16 + $0x1a0] sm:$0xff]
    %v2412 = vld [vmem:[#allocation16 + $0x1a8] sm:$0xff]
    %v2413 = vld [vmem:[#allocation16 + $0x1b0] sm:$0xff]
    %v2414 = vld [vmem:[#allocation16 + $0x1b8] sm:$0xff]
    %v2415 = vld [vmem:[#allocation16 + $0x1c0] sm:$0xff]
    %v2416 = vld [vmem:[#allocation16 + $0x1c8] sm:$0xff]
    %v2417 = vld [vmem:[#allocation16 + $0x1d0] sm:$0xff]
    %v2418 = vld [vmem:[#allocation16 + $0x1d8] sm:$0xff]
    %v2419 = vld [vmem:[#allocation16 + $0x1e0] sm:$0xff]
    %v2420 = vld [vmem:[#allocation16 + $0x1e8] sm:$0xff]
    %v2421 = vld [vmem:[#allocation16 + $0x1f0] sm:$0xff]
    %v2422 = vld [vmem:[#allocation16 + $0x1f8] sm:$0xff]
    %v2423 = vld [vmem:[#allocation16 + $0x200] sm:$0xff]
    %v2424 = vld [vmem:[#allocation16 + $0x208] sm:$0xff]
    %v2425 = vld [vmem:[#allocation16 + $0x210] sm:$0xff]
    %v2426 = vld [vmem:[#allocation16 + $0x218] sm:$0xff]
    %v2427 = vld [vmem:[#allocation16 + $0x220] sm:$0xff]
    %v2428 = vld [vmem:[#allocation16 + $0x228] sm:$0xff]
    %v2429 = vld [vmem:[#allocation16 + $0x230] sm:$0xff]
    %v2430 = vld [vmem:[#allocation16 + $0x238] sm:$0xff]
    %v2431 = vld [vmem:[#allocation16 + $0x240] sm:$0xff]
    %v2432 = vld [vmem:[#allocation16 + $0x248] sm:$0xff]
    %v2433 = vld [vmem:[#allocation16 + $0x250] sm:$0xff]
    %v2434 = vld [vmem:[#allocation16 + $0x258] sm:$0xff]
    %v2435 = vld [vmem:[#allocation16 + $0x260] sm:$0xff]
    %v2436 = vld [vmem:[#allocation16 + $0x268] sm:$0xff]
    %v2437 = vld [vmem:[#allocation16 + $0x270] sm:$0xff]
    %v2438 = vld [vmem:[#allocation16 + $0x278] sm:$0xff]
    %v2439 = vld [vmem:[#allocation16 + $0x280] sm:$0xff]
    %v2440 = vld [vmem:[#allocation16 + $0x288] sm:$0xff]
    %v2441 = vld [vmem:[#allocation16 + $0x290] sm:$0xff]
    %v2442 = vld [vmem:[#allocation16 + $0x298] sm:$0xff]
    %v2443 = vld [vmem:[#allocation16 + $0x2a0] sm:$0xff]
    %v2444 = vld [vmem:[#allocation16 + $0x2a8] sm:$0xff]
    %v2445 = vld [vmem:[#allocation16 + $0x2b0] sm:$0xff]
    %v2446 = vld [vmem:[#allocation16 + $0x2b8] sm:$0xff]
    %v2447 = vld [vmem:[#allocation16 + $0x2c0] sm:$0xff]
    %v2448 = vld [vmem:[#allocation16 + $0x2c8] sm:$0xff]
    %v2449 = vld [vmem:[#allocation16 + $0x2d0] sm:$0xff]
    %v2450 = vld [vmem:[#allocation16 + $0x2d8] sm:$0xff]
    %v2451 = vld [vmem:[#allocation16 + $0x2e0] sm:$0xff]
    %v2452 = vld [vmem:[#allocation16 + $0x2e8] sm:$0xff]
    %v2453 = vld [vmem:[#allocation16 + $0x2f0] sm:$0xff]
    %v2454 = vld [vmem:[#allocation16 + $0x2f8] sm:$0xff]
    %v2455 = vld [vmem:[#allocation16 + $0x300] sm:$0xff]
    %v2456 = vld [vmem:[#allocation16 + $0x308] sm:$0xff]
    %v2457 = vld [vmem:[#allocation16 + $0x310] sm:$0xff]
    %v2458 = vld [vmem:[#allocation16 + $0x318] sm:$0xff]
    %v2459 = vld [vmem:[#allocation16 + $0x320] sm:$0xff]
    %v2460 = vld [vmem:[#allocation16 + $0x328] sm:$0xff]
    %v2461 = vld [vmem:[#allocation16 + $0x330] sm:$0xff]
    %v2462 = vld [vmem:[#allocation16 + $0x338] sm:$0xff]
    %v2463 = vld [vmem:[#allocation16 + $0x340] sm:$0xff]
    %v2464 = vld [vmem:[#allocation16 + $0x348] sm:$0xff]
    %v2465 = vld [vmem:[#allocation16 + $0x350] sm:$0xff]
    %v2466 = vld [vmem:[#allocation16 + $0x358] sm:$0xff]
    %v2467 = vld [vmem:[#allocation16 + $0x360] sm:$0xff]
    %v2468 = vld [vmem:[#allocation16 + $0x368] sm:$0xff]
    %v2469 = vld [vmem:[#allocation16 + $0x370] sm:$0xff]
    %v2470 = vld [vmem:[#allocation16 + $0x378] sm:$0xff]
    %v2471 = vld [vmem:[#allocation16 + $0x380] sm:$0xff]
    %v2472 = vld [vmem:[#allocation16 + $0x388] sm:$0xff]
    %v2473 = vld [vmem:[#allocation16 + $0x390] sm:$0xff]
    %v2474 = vld [vmem:[#allocation16 + $0x398] sm:$0xff]
    %v2475 = vld [vmem:[#allocation16 + $0x3a0] sm:$0xff]
    %v2476 = vld [vmem:[#allocation16 + $0x3a8] sm:$0xff]
    %v2477 = vld [vmem:[#allocation16 + $0x3b0] sm:$0xff]
    %v2478 = vld [vmem:[#allocation16 + $0x3b8] sm:$0xff]
    %v2479 = vld [vmem:[#allocation16 + $0x3c0] sm:$0xff]
    %v2480 = vld [vmem:[#allocation16 + $0x3c8] sm:$0xff]
    %v2481 = vld [vmem:[#allocation16 + $0x3d0] sm:$0xff]
    %v2482 = vld [vmem:[#allocation16 + $0x3d8] sm:$0xff]
    %v2483 = vld [vmem:[#allocation16 + $0x3e0] sm:$0xff]
    %v2484 = vld [vmem:[#allocation16 + $0x3e8] sm:$0xff]
    %v2485 = vld [vmem:[#allocation16 + $0x3f0] sm:$0xff]
    %v2486 = vld [vmem:[#allocation16 + $0x3f8] sm:$0xff]
    %v2487 = vld [vmem:[%s6] sm:$0xf]
    %v2489 = vlaneseq
    %v2490 = vshrl.u32 %v2489, 7
    %v2491 = vsub.s32 0, %v2490
    %v2492 = vrot.slane %v2487, %v2491
    %v2493 = vlaneseq
    %v2494 = vshrl.u32 %v2493, 7
    %v2495 = vsub.s32 1, %v2494
    %v2496 = vrot.slane %v2487, %v2495
    %v2497 = vlaneseq
    %v2498 = vshrl.u32 %v2497, 7
    %v2499 = vsub.s32 2, %v2498
    %v2500 = vrot.slane %v2487, %v2499
    %v2501 = vlaneseq
    %v2502 = vshrl.u32 %v2501, 7
    %v2503 = vsub.s32 3, %v2502
    %v2504 = vrot.slane %v2487, %v2503
    %2509 = vmatprep.subr.mxu0 %v2420
    %2510 = vmatpush1.msra.mxu0 %v2419
    %2511 = vmatprep.subr.mxu0 %v2416
    %2512 = vmatpush1.msra.mxu0 %v2415
    %2513 = vmatprep.subr.mxu0 %v2412
    %2514 = vmatpush1.msra.mxu0 %v2411
    %2515 = vmatprep.subr.mxu0 %v2408
    %2516 = vmatpush1.msra.mxu0 %v2407
    %2517 = vmatprep.subr.mxu0 %v2404
    %2518 = vmatpush1.msra.mxu0 %v2403
    %2519 = vmatprep.subr.mxu0 %v2400
    %2520 = vmatpush1.msra.mxu0 %v2399
    %2521 = vmatprep.subr.mxu0 %v2396
    %2522 = vmatpush1.msra.mxu0 %v2395
    %2523 = vmatprep.subr.mxu0 %v2392
    %2524 = vmatpush1.msra.mxu0 %v2391
    %2525 = vmatprep.subr.mxu0 %v2388
    %2526 = vmatpush1.msra.mxu0 %v2387
    %2527 = vmatprep.subr.mxu0 %v2384
    %2528 = vmatpush1.msra.mxu0 %v2383
    %2529 = vmatprep.subr.mxu0 %v2380
    %2530 = vmatpush1.msra.mxu0 %v2379
    %2531 = vmatprep.subr.mxu0 %v2376
    %2532 = vmatpush1.msra.mxu0 %v2375
    %2533 = vmatprep.subr.mxu0 %v2372
    %2534 = vmatpush1.msra.mxu0 %v2371
    %2535 = vmatprep.subr.mxu0 %v2368
    %2536 = vmatpush1.msra.mxu0 %v2367
    %2537 = vmatprep.subr.mxu0 %v2364
    %2538 = vmatpush1.msra.mxu0 %v2363
    %2539 = vmatprep.subr.mxu0 %v2360
    %2540 = vmatpush1.msra.mxu0 %v2359
    %2541 = vmatprep.subr.mxu0 %v2484
    %2542 = vmatpush2.msra.mxu0 %v2483
    %2543 = vmatprep.subr.mxu0 %v2480
    %2544 = vmatpush2.msra.mxu0 %v2479
    %2545 = vmatprep.subr.mxu0 %v2476
    %2546 = vmatpush2.msra.mxu0 %v2475
    %2547 = vmatprep.subr.mxu0 %v2472
    %2548 = vmatpush2.msra.mxu0 %v2471
    %2549 = vmatprep.subr.mxu0 %v2468
    %2550 = vmatpush2.msra.mxu0 %v2467
    %2551 = vmatprep.subr.mxu0 %v2464
    %2552 = vmatpush2.msra.mxu0 %v2463
    %2553 = vmatprep.subr.mxu0 %v2460
    %2554 = vmatpush2.msra.mxu0 %v2459
    %2555 = vmatprep.subr.mxu0 %v2456
    %2556 = vmatpush2.msra.mxu0 %v2455
    %2557 = vmatprep.subr.mxu0 %v2452
    %2558 = vmatpush2.msra.mxu0 %v2451
    %2559 = vmatprep.subr.mxu0 %v2448
    %2560 = vmatpush2.msra.mxu0 %v2447
    %2561 = vmatprep.subr.mxu0 %v2444
    %2562 = vmatpush2.msra.mxu0 %v2443
    %2563 = vmatprep.subr.mxu0 %v2440
    %2564 = vmatpush2.msra.mxu0 %v2439
    %2565 = vmatprep.subr.mxu0 %v2436
    %2566 = vmatpush2.msra.mxu0 %v2435
    %2567 = vmatprep.subr.mxu0 %v2432
    %2568 = vmatpush2.msra.mxu0 %v2431
    %2569 = vmatprep.subr.mxu0 %v2428
    %2570 = vmatpush2.msra.mxu0 %v2427
    %2571 = vmatprep.subr.mxu0 %v2424
    %2572 = vmatpush2.msra.mxu0 %v2423
    %2573 = vmatprep.mubr.f32.mxu0 %v2088
    %2574 = vmatmul.mubr.f32.gmra.mxu0 %v2358
    %v2575 = vpop.f32.mrf.mxu0
    %v2576 = vadd.f32 %v2492, %v2575
    %v2577 = vpop.f32.mrf.mxu0
    %v2578 = vadd.f32 %v2496, %v2577
    %2579 = vdwg.mxu0
    %2580 = vmatprep.subr.mxu0 %v2422
    %2581 = vmatpush1.msra.mxu0 %v2421
    %2582 = vmatprep.subr.mxu0 %v2418
    %2583 = vmatpush1.msra.mxu0 %v2417
    %2584 = vmatprep.subr.mxu0 %v2414
    %2585 = vmatpush1.msra.mxu0 %v2413
    %2586 = vmatprep.subr.mxu0 %v2410
    %2587 = vmatpush1.msra.mxu0 %v2409
    %2588 = vmatprep.subr.mxu0 %v2406
    %2589 = vmatpush1.msra.mxu0 %v2405
    %2590 = vmatprep.subr.mxu0 %v2402
    %2591 = vmatpush1.msra.mxu0 %v2401
    %2592 = vmatprep.subr.mxu0 %v2398
    %2593 = vmatpush1.msra.mxu0 %v2397
    %2594 = vmatprep.subr.mxu0 %v2394
    %2595 = vmatpush1.msra.mxu0 %v2393
    %2596 = vmatprep.subr.mxu0 %v2390
    %2597 = vmatpush1.msra.mxu0 %v2389
    %2598 = vmatprep.subr.mxu0 %v2386
    %2599 = vmatpush1.msra.mxu0 %v2385
    %2600 = vmatprep.subr.mxu0 %v2382
    %2601 = vmatpush1.msra.mxu0 %v2381
    %2602 = vmatprep.subr.mxu0 %v2378
    %2603 = vmatpush1.msra.mxu0 %v2377
    %2604 = vmatprep.subr.mxu0 %v2374
    %2605 = vmatpush1.msra.mxu0 %v2373
    %2606 = vmatprep.subr.mxu0 %v2370
    %2607 = vmatpush1.msra.mxu0 %v2369
    %2608 = vmatprep.subr.mxu0 %v2366
    %2609 = vmatpush1.msra.mxu0 %v2365
    %2610 = vmatprep.subr.mxu0 %v2362
    %2611 = vmatpush1.msra.mxu0 %v2361
    %2612 = vmatprep.subr.mxu0 %v2486
    %2613 = vmatpush2.msra.mxu0 %v2485
    %2614 = vmatprep.subr.mxu0 %v2482
    %2615 = vmatpush2.msra.mxu0 %v2481
    %2616 = vmatprep.subr.mxu0 %v2478
    %2617 = vmatpush2.msra.mxu0 %v2477
    %2618 = vmatprep.subr.mxu0 %v2474
    %2619 = vmatpush2.msra.mxu0 %v2473
    %2620 = vmatprep.subr.mxu0 %v2470
    %2621 = vmatpush2.msra.mxu0 %v2469
    %2622 = vmatprep.subr.mxu0 %v2466
    %2623 = vmatpush2.msra.mxu0 %v2465
    %2624 = vmatprep.subr.mxu0 %v2462
    %2625 = vmatpush2.msra.mxu0 %v2461
    %2626 = vmatprep.subr.mxu0 %v2458
    %2627 = vmatpush2.msra.mxu0 %v2457
    %2628 = vmatprep.subr.mxu0 %v2454
    %2629 = vmatpush2.msra.mxu0 %v2453
    %2630 = vmatprep.subr.mxu0 %v2450
    %2631 = vmatpush2.msra.mxu0 %v2449
    %2632 = vmatprep.subr.mxu0 %v2446
    %2633 = vmatpush2.msra.mxu0 %v2445
    %2634 = vmatprep.subr.mxu0 %v2442
    %2635 = vmatpush2.msra.mxu0 %v2441
    %2636 = vmatprep.subr.mxu0 %v2438
    %2637 = vmatpush2.msra.mxu0 %v2437
    %2638 = vmatprep.subr.mxu0 %v2434
    %2639 = vmatpush2.msra.mxu0 %v2433
    %2640 = vmatprep.subr.mxu0 %v2430
    %2641 = vmatpush2.msra.mxu0 %v2429
    %2642 = vmatprep.subr.mxu0 %v2426
    %2643 = vmatpush2.msra.mxu0 %v2425
    %2644 = vmatprep.mubr.f32.mxu0 %v2088
    %2645 = vmatmul.mubr.f32.gmra.mxu0 %v2358
    %v2646 = vpop.f32.mrf.mxu0
    %v2647 = vadd.f32 %v2500, %v2646
    %v2648 = vpop.f32.mrf.mxu0
    %v2649 = vadd.f32 %v2504, %v2648
    %2650 = vdwg.mxu0
    %v2651 = vxor.u32 %v2576, 2147483648
    %v2652 = vmul.f32 %v2651, 1.442695
    %v2653 = vpow.pop %v2652
    %v2654 = vadd.f32 %v2653, 1.0
    %v2655 = vrcp.pop %v2654
    %v2656 = vmul.f32 1.0, %v2655
    %v2657 = vxor.u32 %v2578, 2147483648
    %v2658 = vmul.f32 %v2657, 1.442695
    %v2659 = vpow.pop %v2658
    %v2660 = vadd.f32 %v2659, 1.0
    %v2661 = vrcp.pop %v2660
    %v2662 = vmul.f32 1.0, %v2661
    %v2663 = vtanh.pop %v2647
    %v2664 = vxor.u32 %v2649, 2147483648
    %v2665 = vmul.f32 %v2664, 1.442695
    %v2666 = vpow.pop %v2665
    %v2667 = vadd.f32 %v2666, 1.0
    %v2668 = vrcp.pop %v2667
    %v2669 = vmul.f32 1.0, %v2668
    %v2670 = vmul.f32 %v2662, %v2086
    %v2671 = vmul.f32 %v2656, %v2663
    %v2672 = vadd.f32 %v2670, %v2671
    %v2673 = vtanh.pop %v2672
    %v2674 = vmul.f32 %v2669, %v2673
    %2675 = vst [vmem:[#allocation3 + $0x3] sm:$0x1] %v2674
    %s2676 = scalar_lea.vmem [#allocation2], 4
    %v2677 = vld [vmem:[%s2676] ss:$8 sm:$0xf]
    %v2678 = vld [vmem:[#allocation14] sm:$0xff]
    %v2679 = vld [vmem:[#allocation14 + $0x8] sm:$0xff]
    %v2680 = vld [vmem:[#allocation14 + $0x10] sm:$0xff]
    %v2681 = vld [vmem:[#allocation14 + $0x18] sm:$0xff]
    %v2682 = vld [vmem:[#allocation14 + $0x20] sm:$0xff]
    %v2683 = vld [vmem:[#allocation14 + $0x28] sm:$0xff]
    %v2684 = vld [vmem:[#allocation14 + $0x30] sm:$0xff]
    %v2685 = vld [vmem:[#allocation14 + $0x38] sm:$0xff]
    %v2686 = vld [vmem:[#allocation14 + $0x40] sm:$0xff]
    %v2687 = vld [vmem:[#allocation14 + $0x48] sm:$0xff]
    %v2688 = vld [vmem:[#allocation14 + $0x50] sm:$0xff]
    %v2689 = vld [vmem:[#allocation14 + $0x58] sm:$0xff]
    %v2690 = vld [vmem:[#allocation14 + $0x60] sm:$0xff]
    %v2691 = vld [vmem:[#allocation14 + $0x68] sm:$0xff]
    %v2692 = vld [vmem:[#allocation14 + $0x70] sm:$0xff]
    %v2693 = vld [vmem:[#allocation14 + $0x78] sm:$0xff]
    %v2694 = vld [vmem:[#allocation14 + $0x80] sm:$0xff]
    %v2695 = vld [vmem:[#allocation14 + $0x88] sm:$0xff]
    %v2696 = vld [vmem:[#allocation14 + $0x90] sm:$0xff]
    %v2697 = vld [vmem:[#allocation14 + $0x98] sm:$0xff]
    %v2698 = vld [vmem:[#allocation14 + $0xa0] sm:$0xff]
    %v2699 = vld [vmem:[#allocation14 + $0xa8] sm:$0xff]
    %v2700 = vld [vmem:[#allocation14 + $0xb0] sm:$0xff]
    %v2701 = vld [vmem:[#allocation14 + $0xb8] sm:$0xff]
    %v2702 = vld [vmem:[#allocation14 + $0xc0] sm:$0xff]
    %v2703 = vld [vmem:[#allocation14 + $0xc8] sm:$0xff]
    %v2704 = vld [vmem:[#allocation14 + $0xd0] sm:$0xff]
    %v2705 = vld [vmem:[#allocation14 + $0xd8] sm:$0xff]
    %v2706 = vld [vmem:[#allocation14 + $0xe0] sm:$0xff]
    %v2707 = vld [vmem:[#allocation14 + $0xe8] sm:$0xff]
    %v2708 = vld [vmem:[#allocation14 + $0xf0] sm:$0xff]
    %v2709 = vld [vmem:[#allocation14 + $0xf8] sm:$0xff]
    %v2710 = vld [vmem:[#allocation14 + $0x100] sm:$0xff]
    %v2711 = vld [vmem:[#allocation14 + $0x108] sm:$0xff]
    %v2712 = vld [vmem:[#allocation14 + $0x110] sm:$0xff]
    %v2713 = vld [vmem:[#allocation14 + $0x118] sm:$0xff]
    %v2714 = vld [vmem:[#allocation14 + $0x120] sm:$0xff]
    %v2715 = vld [vmem:[#allocation14 + $0x128] sm:$0xff]
    %v2716 = vld [vmem:[#allocation14 + $0x130] sm:$0xff]
    %v2717 = vld [vmem:[#allocation14 + $0x138] sm:$0xff]
    %v2718 = vld [vmem:[#allocation14 + $0x140] sm:$0xff]
    %v2719 = vld [vmem:[#allocation14 + $0x148] sm:$0xff]
    %v2720 = vld [vmem:[#allocation14 + $0x150] sm:$0xff]
    %v2721 = vld [vmem:[#allocation14 + $0x158] sm:$0xff]
    %v2722 = vld [vmem:[#allocation14 + $0x160] sm:$0xff]
    %v2723 = vld [vmem:[#allocation14 + $0x168] sm:$0xff]
    %v2724 = vld [vmem:[#allocation14 + $0x170] sm:$0xff]
    %v2725 = vld [vmem:[#allocation14 + $0x178] sm:$0xff]
    %v2726 = vld [vmem:[#allocation14 + $0x180] sm:$0xff]
    %v2727 = vld [vmem:[#allocation14 + $0x188] sm:$0xff]
    %v2728 = vld [vmem:[#allocation14 + $0x190] sm:$0xff]
    %v2729 = vld [vmem:[#allocation14 + $0x198] sm:$0xff]
    %v2730 = vld [vmem:[#allocation14 + $0x1a0] sm:$0xff]
    %v2731 = vld [vmem:[#allocation14 + $0x1a8] sm:$0xff]
    %v2732 = vld [vmem:[#allocation14 + $0x1b0] sm:$0xff]
    %v2733 = vld [vmem:[#allocation14 + $0x1b8] sm:$0xff]
    %v2734 = vld [vmem:[#allocation14 + $0x1c0] sm:$0xff]
    %v2735 = vld [vmem:[#allocation14 + $0x1c8] sm:$0xff]
    %v2736 = vld [vmem:[#allocation14 + $0x1d0] sm:$0xff]
    %v2737 = vld [vmem:[#allocation14 + $0x1d8] sm:$0xff]
    %v2738 = vld [vmem:[#allocation14 + $0x1e0] sm:$0xff]
    %v2739 = vld [vmem:[#allocation14 + $0x1e8] sm:$0xff]
    %v2740 = vld [vmem:[#allocation14 + $0x1f0] sm:$0xff]
    %v2741 = vld [vmem:[#allocation14 + $0x1f8] sm:$0xff]
    %2742 = vmatprep.subr.mxu0 %v2739
    %2743 = vmatpush1.msra.mxu0 %v2738
    %2744 = vmatprep.subr.mxu0 %v2735
    %2745 = vmatpush1.msra.mxu0 %v2734
    %2746 = vmatprep.subr.mxu0 %v2731
    %2747 = vmatpush1.msra.mxu0 %v2730
    %2748 = vmatprep.subr.mxu0 %v2727
    %2749 = vmatpush1.msra.mxu0 %v2726
    %2750 = vmatprep.subr.mxu0 %v2723
    %2751 = vmatpush1.msra.mxu0 %v2722
    %2752 = vmatprep.subr.mxu0 %v2719
    %2753 = vmatpush1.msra.mxu0 %v2718
    %2754 = vmatprep.subr.mxu0 %v2715
    %2755 = vmatpush1.msra.mxu0 %v2714
    %2756 = vmatprep.subr.mxu0 %v2711
    %2757 = vmatpush1.msra.mxu0 %v2710
    %2758 = vmatprep.subr.mxu0 %v2707
    %2759 = vmatpush1.msra.mxu0 %v2706
    %2760 = vmatprep.subr.mxu0 %v2703
    %2761 = vmatpush1.msra.mxu0 %v2702
    %2762 = vmatprep.subr.mxu0 %v2699
    %2763 = vmatpush1.msra.mxu0 %v2698
    %2764 = vmatprep.subr.mxu0 %v2695
    %2765 = vmatpush1.msra.mxu0 %v2694
    %2766 = vmatprep.subr.mxu0 %v2691
    %2767 = vmatpush1.msra.mxu0 %v2690
    %2768 = vmatprep.subr.mxu0 %v2687
    %2769 = vmatpush1.msra.mxu0 %v2686
    %2770 = vmatprep.subr.mxu0 %v2683
    %2771 = vmatpush1.msra.mxu0 %v2682
    %2772 = vmatprep.subr.mxu0 %v2679
    %2773 = vmatpush1.msra.mxu0 %v2678
    %2774 = vmatprep.subr.mxu0 0.0
    %2775 = vmatpush2.msra.mxu0 0.0
    %2776 = vmatprep.subr.mxu0 0.0
    %2777 = vmatpush2.msra.mxu0 0.0
    %2778 = vmatprep.subr.mxu0 0.0
    %2779 = vmatpush2.msra.mxu0 0.0
    %2780 = vmatprep.subr.mxu0 0.0
    %2781 = vmatpush2.msra.mxu0 0.0
    %2782 = vmatprep.subr.mxu0 0.0
    %2783 = vmatpush2.msra.mxu0 0.0
    %2784 = vmatprep.subr.mxu0 0.0
    %2785 = vmatpush2.msra.mxu0 0.0
    %2786 = vmatprep.subr.mxu0 0.0
    %2787 = vmatpush2.msra.mxu0 0.0
    %2788 = vmatprep.subr.mxu0 0.0
    %2789 = vmatpush2.msra.mxu0 0.0
    %2790 = vmatprep.subr.mxu0 0.0
    %2791 = vmatpush2.msra.mxu0 0.0
    %2792 = vmatprep.subr.mxu0 0.0
    %2793 = vmatpush2.msra.mxu0 0.0
    %2794 = vmatprep.subr.mxu0 0.0
    %2795 = vmatpush2.msra.mxu0 0.0
    %2796 = vmatprep.subr.mxu0 0.0
    %2797 = vmatpush2.msra.mxu0 0.0
    %2798 = vmatprep.subr.mxu0 0.0
    %2799 = vmatpush2.msra.mxu0 0.0
    %2800 = vmatprep.subr.mxu0 0.0
    %2801 = vmatpush2.msra.mxu0 0.0
    %2802 = vmatprep.subr.mxu0 0.0
    %2803 = vmatpush2.msra.mxu0 0.0
    %2804 = vmatprep.subr.mxu0 0.0
    %2805 = vmatpush2.msra.mxu0 0.0
    %2806 = vmatprep.mubr.f32.mxu0 0.0
    %2807 = vmatmul.mubr.f32.gmra.mxu0 %v2358
    %v2808 = vpop.f32.mrf.mxu0
    %v2809 = vadd.f32 0.0, %v2808
    %v2810 = vpop.f32.mrf.mxu0
    %v2811 = vadd.f32 0.0, %v2810
    %2812 = vdwg.mxu0
    %2813 = vmatprep.subr.mxu0 %v2741
    %2814 = vmatpush1.msra.mxu0 %v2740
    %2815 = vmatprep.subr.mxu0 %v2737
    %2816 = vmatpush1.msra.mxu0 %v2736
    %2817 = vmatprep.subr.mxu0 %v2733
    %2818 = vmatpush1.msra.mxu0 %v2732
    %2819 = vmatprep.subr.mxu0 %v2729
    %2820 = vmatpush1.msra.mxu0 %v2728
    %2821 = vmatprep.subr.mxu0 %v2725
    %2822 = vmatpush1.msra.mxu0 %v2724
    %2823 = vmatprep.subr.mxu0 %v2721
    %2824 = vmatpush1.msra.mxu0 %v2720
    %2825 = vmatprep.subr.mxu0 %v2717
    %2826 = vmatpush1.msra.mxu0 %v2716
    %2827 = vmatprep.subr.mxu0 %v2713
    %2828 = vmatpush1.msra.mxu0 %v2712
    %2829 = vmatprep.subr.mxu0 %v2709
    %2830 = vmatpush1.msra.mxu0 %v2708
    %2831 = vmatprep.subr.mxu0 %v2705
    %2832 = vmatpush1.msra.mxu0 %v2704
    %2833 = vmatprep.subr.mxu0 %v2701
    %2834 = vmatpush1.msra.mxu0 %v2700
    %2835 = vmatprep.subr.mxu0 %v2697
    %2836 = vmatpush1.msra.mxu0 %v2696
    %2837 = vmatprep.subr.mxu0 %v2693
    %2838 = vmatpush1.msra.mxu0 %v2692
    %2839 = vmatprep.subr.mxu0 %v2689
    %2840 = vmatpush1.msra.mxu0 %v2688
    %2841 = vmatprep.subr.mxu0 %v2685
    %2842 = vmatpush1.msra.mxu0 %v2684
    %2843 = vmatprep.subr.mxu0 %v2681
    %2844 = vmatpush1.msra.mxu0 %v2680
    %2845 = vmatprep.subr.mxu0 0.0
    %2846 = vmatpush2.msra.mxu0 0.0
    %2847 = vmatprep.subr.mxu0 0.0
    %2848 = vmatpush2.msra.mxu0 0.0
    %2849 = vmatprep.subr.mxu0 0.0
    %2850 = vmatpush2.msra.mxu0 0.0
    %2851 = vmatprep.subr.mxu0 0.0
    %2852 = vmatpush2.msra.mxu0 0.0
    %2853 = vmatprep.subr.mxu0 0.0
    %2854 = vmatpush2.msra.mxu0 0.0
    %2855 = vmatprep.subr.mxu0 0.0
    %2856 = vmatpush2.msra.mxu0 0.0
    %2857 = vmatprep.subr.mxu0 0.0
    %2858 = vmatpush2.msra.mxu0 0.0
    %2859 = vmatprep.subr.mxu0 0.0
    %2860 = vmatpush2.msra.mxu0 0.0
    %2861 = vmatprep.subr.mxu0 0.0
    %2862 = vmatpush2.msra.mxu0 0.0
    %2863 = vmatprep.subr.mxu0 0.0
    %2864 = vmatpush2.msra.mxu0 0.0
    %2865 = vmatprep.subr.mxu0 0.0
    %2866 = vmatpush2.msra.mxu0 0.0
    %2867 = vmatprep.subr.mxu0 0.0
    %2868 = vmatpush2.msra.mxu0 0.0
    %2869 = vmatprep.subr.mxu0 0.0
    %2870 = vmatpush2.msra.mxu0 0.0
    %2871 = vmatprep.subr.mxu0 0.0
    %2872 = vmatpush2.msra.mxu0 0.0
    %2873 = vmatprep.subr.mxu0 0.0
    %2874 = vmatpush2.msra.mxu0 0.0
    %2875 = vmatprep.subr.mxu0 0.0
    %2876 = vmatpush2.msra.mxu0 0.0
    %2877 = vmatprep.mubr.f32.mxu0 0.0
    %2878 = vmatmul.mubr.f32.gmra.mxu0 %v2358
    %v2879 = vpop.f32.mrf.mxu0
    %v2880 = vadd.f32 0.0, %v2879
    %v2881 = vpop.f32.mrf.mxu0
    %v2882 = vadd.f32 0.0, %v2881
    %2883 = vdwg.mxu0
    %v2888 = vcombine.low %v2809, %v2811
    %v2889 = vcombine.low %v2880, %v2882
    %v2891 = vunpack.c.l.s4 1966171168
    %v2892 = vunpack.c.0.s8 %v2891
    %v2893 = vlaneseq
    %v2894 = vshrl.u32 %v2893, 7
    %v2895 = vsub.s32 %v2892, %v2894
    %v2896 = vrot.slane %v2888, %v2895
    %v2898 = vunpack.c.l.s4 1966171168
    %v2899 = vunpack.c.0.s8 %v2898
    %v2900 = vlaneseq
    %v2901 = vshrl.u32 %v2900, 7
    %v2902 = vsub.s32 %v2899, %v2901
    %v2903 = vrot.slane %v2889, %v2902
    %v2904 = vcombine.low %v2896, %v2903
    %v2906 = vunpack.c.l.s4 1966171168
    %v2907 = vunpack.c.0.s8 %v2906
    %v2908 = vlaneseq
    %v2909 = vshrl.u32 %v2908, 7
    %v2910 = vsub.s32 %v2907, %v2909
    %v2911 = vrot.slane %v2904, %v2910
    %v2913 = vadd.f32 %v2677, %v2911
    %v2914 = vxor.u32 %v2913, 2147483648
    %v2915 = vmul.f32 %v2914, 1.442695
    %v2916 = vpow.pop %v2915
    %v2917 = vadd.f32 %v2916, 1.0
    %v2918 = vrcp.pop %v2917
    %v2919 = vmul.f32 1.0, %v2918
    %v2921 = vrot.slane %v2913, 1
    %v2923 = vxor.u32 %v2921, 2147483648
    %v2924 = vmul.f32 %v2923, 1.442695
    %v2925 = vpow.pop %v2924
    %v2926 = vadd.f32 %v2925, 1.0
    %v2927 = vrcp.pop %v2926
    %v2928 = vmul.f32 1.0, %v2927
    %v2929 = vrot.slane %v2913, 2
    %v2931 = vtanh.pop %v2929
    %v2932 = vrot.slane %v2913, 3
    %v2934 = vxor.u32 %v2932, 2147483648
    %v2935 = vmul.f32 %v2934, 1.442695
    %v2936 = vpow.pop %v2935
    %v2937 = vadd.f32 %v2936, 1.0
    %v2938 = vrcp.pop %v2937
    %v2939 = vmul.f32 1.0, %v2938
    %v2940 = vmul.f32 %v2928, %v2356
    %v2941 = vmul.f32 %v2919, %v2931
    %v2942 = vadd.f32 %v2940, %v2941
    %v2943 = vtanh.pop %v2942
    %v2944 = vmul.f32 %v2939, %v2943
    %v2945 = vld [vmem:[#allocation16] sm:$0xff]
    %v2946 = vld [vmem:[#allocation16 + $0x8] sm:$0xff]
    %v2947 = vld [vmem:[#allocation16 + $0x10] sm:$0xff]
    %v2948 = vld [vmem:[#allocation16 + $0x18] sm:$0xff]
    %v2949 = vld [vmem:[#allocation16 + $0x20] sm:$0xff]
    %v2950 = vld [vmem:[#allocation16 + $0x28] sm:$0xff]
    %v2951 = vld [vmem:[#allocation16 + $0x30] sm:$0xff]
    %v2952 = vld [vmem:[#allocation16 + $0x38] sm:$0xff]
    %v2953 = vld [vmem:[#allocation16 + $0x40] sm:$0xff]
    %v2954 = vld [vmem:[#allocation16 + $0x48] sm:$0xff]
    %v2955 = vld [vmem:[#allocation16 + $0x50] sm:$0xff]
    %v2956 = vld [vmem:[#allocation16 + $0x58] sm:$0xff]
    %v2957 = vld [vmem:[#allocation16 + $0x60] sm:$0xff]
    %v2958 = vld [vmem:[#allocation16 + $0x68] sm:$0xff]
    %v2959 = vld [vmem:[#allocation16 + $0x70] sm:$0xff]
    %v2960 = vld [vmem:[#allocation16 + $0x78] sm:$0xff]
    %v2961 = vld [vmem:[#allocation16 + $0x80] sm:$0xff]
    %v2962 = vld [vmem:[#allocation16 + $0x88] sm:$0xff]
    %v2963 = vld [vmem:[#allocation16 + $0x90] sm:$0xff]
    %v2964 = vld [vmem:[#allocation16 + $0x98] sm:$0xff]
    %v2965 = vld [vmem:[#allocation16 + $0xa0] sm:$0xff]
    %v2966 = vld [vmem:[#allocation16 + $0xa8] sm:$0xff]
    %v2967 = vld [vmem:[#allocation16 + $0xb0] sm:$0xff]
    %v2968 = vld [vmem:[#allocation16 + $0xb8] sm:$0xff]
    %v2969 = vld [vmem:[#allocation16 + $0xc0] sm:$0xff]
    %v2970 = vld [vmem:[#allocation16 + $0xc8] sm:$0xff]
    %v2971 = vld [vmem:[#allocation16 + $0xd0] sm:$0xff]
    %v2972 = vld [vmem:[#allocation16 + $0xd8] sm:$0xff]
    %v2973 = vld [vmem:[#allocation16 + $0xe0] sm:$0xff]
    %v2974 = vld [vmem:[#allocation16 + $0xe8] sm:$0xff]
    %v2975 = vld [vmem:[#allocation16 + $0xf0] sm:$0xff]
    %v2976 = vld [vmem:[#allocation16 + $0xf8] sm:$0xff]
    %v2977 = vld [vmem:[#allocation16 + $0x100] sm:$0xff]
    %v2978 = vld [vmem:[#allocation16 + $0x108] sm:$0xff]
    %v2979 = vld [vmem:[#allocation16 + $0x110] sm:$0xff]
    %v2980 = vld [vmem:[#allocation16 + $0x118] sm:$0xff]
    %v2981 = vld [vmem:[#allocation16 + $0x120] sm:$0xff]
    %v2982 = vld [vmem:[#allocation16 + $0x128] sm:$0xff]
    %v2983 = vld [vmem:[#allocation16 + $0x130] sm:$0xff]
    %v2984 = vld [vmem:[#allocation16 + $0x138] sm:$0xff]
    %v2985 = vld [vmem:[#allocation16 + $0x140] sm:$0xff]
    %v2986 = vld [vmem:[#allocation16 + $0x148] sm:$0xff]
    %v2987 = vld [vmem:[#allocation16 + $0x150] sm:$0xff]
    %v2988 = vld [vmem:[#allocation16 + $0x158] sm:$0xff]
    %v2989 = vld [vmem:[#allocation16 + $0x160] sm:$0xff]
    %v2990 = vld [vmem:[#allocation16 + $0x168] sm:$0xff]
    %v2991 = vld [vmem:[#allocation16 + $0x170] sm:$0xff]
    %v2992 = vld [vmem:[#allocation16 + $0x178] sm:$0xff]
    %v2993 = vld [vmem:[#allocation16 + $0x180] sm:$0xff]
    %v2994 = vld [vmem:[#allocation16 + $0x188] sm:$0xff]
    %v2995 = vld [vmem:[#allocation16 + $0x190] sm:$0xff]
    %v2996 = vld [vmem:[#allocation16 + $0x198] sm:$0xff]
    %v2997 = vld [vmem:[#allocation16 + $0x1a0] sm:$0xff]
    %v2998 = vld [vmem:[#allocation16 + $0x1a8] sm:$0xff]
    %v2999 = vld [vmem:[#allocation16 + $0x1b0] sm:$0xff]
    %v3000 = vld [vmem:[#allocation16 + $0x1b8] sm:$0xff]
    %v3001 = vld [vmem:[#allocation16 + $0x1c0] sm:$0xff]
    %v3002 = vld [vmem:[#allocation16 + $0x1c8] sm:$0xff]
    %v3003 = vld [vmem:[#allocation16 + $0x1d0] sm:$0xff]
    %v3004 = vld [vmem:[#allocation16 + $0x1d8] sm:$0xff]
    %v3005 = vld [vmem:[#allocation16 + $0x1e0] sm:$0xff]
    %v3006 = vld [vmem:[#allocation16 + $0x1e8] sm:$0xff]
    %v3007 = vld [vmem:[#allocation16 + $0x1f0] sm:$0xff]
    %v3008 = vld [vmem:[#allocation16 + $0x1f8] sm:$0xff]
    %v3009 = vld [vmem:[#allocation16 + $0x200] sm:$0xff]
    %v3010 = vld [vmem:[#allocation16 + $0x208] sm:$0xff]
    %v3011 = vld [vmem:[#allocation16 + $0x210] sm:$0xff]
    %v3012 = vld [vmem:[#allocation16 + $0x218] sm:$0xff]
    %v3013 = vld [vmem:[#allocation16 + $0x220] sm:$0xff]
    %v3014 = vld [vmem:[#allocation16 + $0x228] sm:$0xff]
    %v3015 = vld [vmem:[#allocation16 + $0x230] sm:$0xff]
    %v3016 = vld [vmem:[#allocation16 + $0x238] sm:$0xff]
    %v3017 = vld [vmem:[#allocation16 + $0x240] sm:$0xff]
    %v3018 = vld [vmem:[#allocation16 + $0x248] sm:$0xff]
    %v3019 = vld [vmem:[#allocation16 + $0x250] sm:$0xff]
    %v3020 = vld [vmem:[#allocation16 + $0x258] sm:$0xff]
    %v3021 = vld [vmem:[#allocation16 + $0x260] sm:$0xff]
    %v3022 = vld [vmem:[#allocation16 + $0x268] sm:$0xff]
    %v3023 = vld [vmem:[#allocation16 + $0x270] sm:$0xff]
    %v3024 = vld [vmem:[#allocation16 + $0x278] sm:$0xff]
    %v3025 = vld [vmem:[#allocation16 + $0x280] sm:$0xff]
    %v3026 = vld [vmem:[#allocation16 + $0x288] sm:$0xff]
    %v3027 = vld [vmem:[#allocation16 + $0x290] sm:$0xff]
    %v3028 = vld [vmem:[#allocation16 + $0x298] sm:$0xff]
    %v3029 = vld [vmem:[#allocation16 + $0x2a0] sm:$0xff]
    %v3030 = vld [vmem:[#allocation16 + $0x2a8] sm:$0xff]
    %v3031 = vld [vmem:[#allocation16 + $0x2b0] sm:$0xff]
    %v3032 = vld [vmem:[#allocation16 + $0x2b8] sm:$0xff]
    %v3033 = vld [vmem:[#allocation16 + $0x2c0] sm:$0xff]
    %v3034 = vld [vmem:[#allocation16 + $0x2c8] sm:$0xff]
    %v3035 = vld [vmem:[#allocation16 + $0x2d0] sm:$0xff]
    %v3036 = vld [vmem:[#allocation16 + $0x2d8] sm:$0xff]
    %v3037 = vld [vmem:[#allocation16 + $0x2e0] sm:$0xff]
    %v3038 = vld [vmem:[#allocation16 + $0x2e8] sm:$0xff]
    %v3039 = vld [vmem:[#allocation16 + $0x2f0] sm:$0xff]
    %v3040 = vld [vmem:[#allocation16 + $0x2f8] sm:$0xff]
    %v3041 = vld [vmem:[#allocation16 + $0x300] sm:$0xff]
    %v3042 = vld [vmem:[#allocation16 + $0x308] sm:$0xff]
    %v3043 = vld [vmem:[#allocation16 + $0x310] sm:$0xff]
    %v3044 = vld [vmem:[#allocation16 + $0x318] sm:$0xff]
    %v3045 = vld [vmem:[#allocation16 + $0x320] sm:$0xff]
    %v3046 = vld [vmem:[#allocation16 + $0x328] sm:$0xff]
    %v3047 = vld [vmem:[#allocation16 + $0x330] sm:$0xff]
    %v3048 = vld [vmem:[#allocation16 + $0x338] sm:$0xff]
    %v3049 = vld [vmem:[#allocation16 + $0x340] sm:$0xff]
    %v3050 = vld [vmem:[#allocation16 + $0x348] sm:$0xff]
    %v3051 = vld [vmem:[#allocation16 + $0x350] sm:$0xff]
    %v3052 = vld [vmem:[#allocation16 + $0x358] sm:$0xff]
    %v3053 = vld [vmem:[#allocation16 + $0x360] sm:$0xff]
    %v3054 = vld [vmem:[#allocation16 + $0x368] sm:$0xff]
    %v3055 = vld [vmem:[#allocation16 + $0x370] sm:$0xff]
    %v3056 = vld [vmem:[#allocation16 + $0x378] sm:$0xff]
    %v3057 = vld [vmem:[#allocation16 + $0x380] sm:$0xff]
    %v3058 = vld [vmem:[#allocation16 + $0x388] sm:$0xff]
    %v3059 = vld [vmem:[#allocation16 + $0x390] sm:$0xff]
    %v3060 = vld [vmem:[#allocation16 + $0x398] sm:$0xff]
    %v3061 = vld [vmem:[#allocation16 + $0x3a0] sm:$0xff]
    %v3062 = vld [vmem:[#allocation16 + $0x3a8] sm:$0xff]
    %v3063 = vld [vmem:[#allocation16 + $0x3b0] sm:$0xff]
    %v3064 = vld [vmem:[#allocation16 + $0x3b8] sm:$0xff]
    %v3065 = vld [vmem:[#allocation16 + $0x3c0] sm:$0xff]
    %v3066 = vld [vmem:[#allocation16 + $0x3c8] sm:$0xff]
    %v3067 = vld [vmem:[#allocation16 + $0x3d0] sm:$0xff]
    %v3068 = vld [vmem:[#allocation16 + $0x3d8] sm:$0xff]
    %v3069 = vld [vmem:[#allocation16 + $0x3e0] sm:$0xff]
    %v3070 = vld [vmem:[#allocation16 + $0x3e8] sm:$0xff]
    %v3071 = vld [vmem:[#allocation16 + $0x3f0] sm:$0xff]
    %v3072 = vld [vmem:[#allocation16 + $0x3f8] sm:$0xff]
    %v3073 = vld [vmem:[%s6] sm:$0xf]
    %v3075 = vlaneseq
    %v3076 = vshrl.u32 %v3075, 7
    %v3077 = vsub.s32 0, %v3076
    %v3078 = vrot.slane %v3073, %v3077
    %v3079 = vlaneseq
    %v3080 = vshrl.u32 %v3079, 7
    %v3081 = vsub.s32 1, %v3080
    %v3082 = vrot.slane %v3073, %v3081
    %v3083 = vlaneseq
    %v3084 = vshrl.u32 %v3083, 7
    %v3085 = vsub.s32 2, %v3084
    %v3086 = vrot.slane %v3073, %v3085
    %v3087 = vlaneseq
    %v3088 = vshrl.u32 %v3087, 7
    %v3089 = vsub.s32 3, %v3088
    %v3090 = vrot.slane %v3073, %v3089
    %3095 = vmatprep.subr.mxu0 %v3006
    %3096 = vmatpush1.msra.mxu0 %v3005
    %3097 = vmatprep.subr.mxu0 %v3002
    %3098 = vmatpush1.msra.mxu0 %v3001
    %3099 = vmatprep.subr.mxu0 %v2998
    %3100 = vmatpush1.msra.mxu0 %v2997
    %3101 = vmatprep.subr.mxu0 %v2994
    %3102 = vmatpush1.msra.mxu0 %v2993
    %3103 = vmatprep.subr.mxu0 %v2990
    %3104 = vmatpush1.msra.mxu0 %v2989
    %3105 = vmatprep.subr.mxu0 %v2986
    %3106 = vmatpush1.msra.mxu0 %v2985
    %3107 = vmatprep.subr.mxu0 %v2982
    %3108 = vmatpush1.msra.mxu0 %v2981
    %3109 = vmatprep.subr.mxu0 %v2978
    %3110 = vmatpush1.msra.mxu0 %v2977
    %3111 = vmatprep.subr.mxu0 %v2974
    %3112 = vmatpush1.msra.mxu0 %v2973
    %3113 = vmatprep.subr.mxu0 %v2970
    %3114 = vmatpush1.msra.mxu0 %v2969
    %3115 = vmatprep.subr.mxu0 %v2966
    %3116 = vmatpush1.msra.mxu0 %v2965
    %3117 = vmatprep.subr.mxu0 %v2962
    %3118 = vmatpush1.msra.mxu0 %v2961
    %3119 = vmatprep.subr.mxu0 %v2958
    %3120 = vmatpush1.msra.mxu0 %v2957
    %3121 = vmatprep.subr.mxu0 %v2954
    %3122 = vmatpush1.msra.mxu0 %v2953
    %3123 = vmatprep.subr.mxu0 %v2950
    %3124 = vmatpush1.msra.mxu0 %v2949
    %3125 = vmatprep.subr.mxu0 %v2946
    %3126 = vmatpush1.msra.mxu0 %v2945
    %3127 = vmatprep.subr.mxu0 %v3070
    %3128 = vmatpush2.msra.mxu0 %v3069
    %3129 = vmatprep.subr.mxu0 %v3066
    %3130 = vmatpush2.msra.mxu0 %v3065
    %3131 = vmatprep.subr.mxu0 %v3062
    %3132 = vmatpush2.msra.mxu0 %v3061
    %3133 = vmatprep.subr.mxu0 %v3058
    %3134 = vmatpush2.msra.mxu0 %v3057
    %3135 = vmatprep.subr.mxu0 %v3054
    %3136 = vmatpush2.msra.mxu0 %v3053
    %3137 = vmatprep.subr.mxu0 %v3050
    %3138 = vmatpush2.msra.mxu0 %v3049
    %3139 = vmatprep.subr.mxu0 %v3046
    %3140 = vmatpush2.msra.mxu0 %v3045
    %3141 = vmatprep.subr.mxu0 %v3042
    %3142 = vmatpush2.msra.mxu0 %v3041
    %3143 = vmatprep.subr.mxu0 %v3038
    %3144 = vmatpush2.msra.mxu0 %v3037
    %3145 = vmatprep.subr.mxu0 %v3034
    %3146 = vmatpush2.msra.mxu0 %v3033
    %3147 = vmatprep.subr.mxu0 %v3030
    %3148 = vmatpush2.msra.mxu0 %v3029
    %3149 = vmatprep.subr.mxu0 %v3026
    %3150 = vmatpush2.msra.mxu0 %v3025
    %3151 = vmatprep.subr.mxu0 %v3022
    %3152 = vmatpush2.msra.mxu0 %v3021
    %3153 = vmatprep.subr.mxu0 %v3018
    %3154 = vmatpush2.msra.mxu0 %v3017
    %3155 = vmatprep.subr.mxu0 %v3014
    %3156 = vmatpush2.msra.mxu0 %v3013
    %3157 = vmatprep.subr.mxu0 %v3010
    %3158 = vmatpush2.msra.mxu0 %v3009
    %3159 = vmatprep.mubr.f32.mxu0 %v2674
    %3160 = vmatmul.mubr.f32.gmra.mxu0 %v2944
    %v3161 = vpop.f32.mrf.mxu0
    %v3162 = vadd.f32 %v3078, %v3161
    %v3163 = vpop.f32.mrf.mxu0
    %v3164 = vadd.f32 %v3082, %v3163
    %3165 = vdwg.mxu0
    %3166 = vmatprep.subr.mxu0 %v3008
    %3167 = vmatpush1.msra.mxu0 %v3007
    %3168 = vmatprep.subr.mxu0 %v3004
    %3169 = vmatpush1.msra.mxu0 %v3003
    %3170 = vmatprep.subr.mxu0 %v3000
    %3171 = vmatpush1.msra.mxu0 %v2999
    %3172 = vmatprep.subr.mxu0 %v2996
    %3173 = vmatpush1.msra.mxu0 %v2995
    %3174 = vmatprep.subr.mxu0 %v2992
    %3175 = vmatpush1.msra.mxu0 %v2991
    %3176 = vmatprep.subr.mxu0 %v2988
    %3177 = vmatpush1.msra.mxu0 %v2987
    %3178 = vmatprep.subr.mxu0 %v2984
    %3179 = vmatpush1.msra.mxu0 %v2983
    %3180 = vmatprep.subr.mxu0 %v2980
    %3181 = vmatpush1.msra.mxu0 %v2979
    %3182 = vmatprep.subr.mxu0 %v2976
    %3183 = vmatpush1.msra.mxu0 %v2975
    %3184 = vmatprep.subr.mxu0 %v2972
    %3185 = vmatpush1.msra.mxu0 %v2971
    %3186 = vmatprep.subr.mxu0 %v2968
    %3187 = vmatpush1.msra.mxu0 %v2967
    %3188 = vmatprep.subr.mxu0 %v2964
    %3189 = vmatpush1.msra.mxu0 %v2963
    %3190 = vmatprep.subr.mxu0 %v2960
    %3191 = vmatpush1.msra.mxu0 %v2959
    %3192 = vmatprep.subr.mxu0 %v2956
    %3193 = vmatpush1.msra.mxu0 %v2955
    %3194 = vmatprep.subr.mxu0 %v2952
    %3195 = vmatpush1.msra.mxu0 %v2951
    %3196 = vmatprep.subr.mxu0 %v2948
    %3197 = vmatpush1.msra.mxu0 %v2947
    %3198 = vmatprep.subr.mxu0 %v3072
    %3199 = vmatpush2.msra.mxu0 %v3071
    %3200 = vmatprep.subr.mxu0 %v3068
    %3201 = vmatpush2.msra.mxu0 %v3067
    %3202 = vmatprep.subr.mxu0 %v3064
    %3203 = vmatpush2.msra.mxu0 %v3063
    %3204 = vmatprep.subr.mxu0 %v3060
    %3205 = vmatpush2.msra.mxu0 %v3059
    %3206 = vmatprep.subr.mxu0 %v3056
    %3207 = vmatpush2.msra.mxu0 %v3055
    %3208 = vmatprep.subr.mxu0 %v3052
    %3209 = vmatpush2.msra.mxu0 %v3051
    %3210 = vmatprep.subr.mxu0 %v3048
    %3211 = vmatpush2.msra.mxu0 %v3047
    %3212 = vmatprep.subr.mxu0 %v3044
    %3213 = vmatpush2.msra.mxu0 %v3043
    %3214 = vmatprep.subr.mxu0 %v3040
    %3215 = vmatpush2.msra.mxu0 %v3039
    %3216 = vmatprep.subr.mxu0 %v3036
    %3217 = vmatpush2.msra.mxu0 %v3035
    %3218 = vmatprep.subr.mxu0 %v3032
    %3219 = vmatpush2.msra.mxu0 %v3031
    %3220 = vmatprep.subr.mxu0 %v3028
    %3221 = vmatpush2.msra.mxu0 %v3027
    %3222 = vmatprep.subr.mxu0 %v3024
    %3223 = vmatpush2.msra.mxu0 %v3023
    %3224 = vmatprep.subr.mxu0 %v3020
    %3225 = vmatpush2.msra.mxu0 %v3019
    %3226 = vmatprep.subr.mxu0 %v3016
    %3227 = vmatpush2.msra.mxu0 %v3015
    %3228 = vmatprep.subr.mxu0 %v3012
    %3229 = vmatpush2.msra.mxu0 %v3011
    %3230 = vmatprep.mubr.f32.mxu0 %v2674
    %3231 = vmatmul.mubr.f32.gmra.mxu0 %v2944
    %v3232 = vpop.f32.mrf.mxu0
    %v3233 = vadd.f32 %v3086, %v3232
    %v3234 = vpop.f32.mrf.mxu0
    %v3235 = vadd.f32 %v3090, %v3234
    %3236 = vdwg.mxu0
    %v3237 = vxor.u32 %v3162, 2147483648
    %v3238 = vmul.f32 %v3237, 1.442695
    %v3239 = vpow.pop %v3238
    %v3240 = vadd.f32 %v3239, 1.0
    %v3241 = vrcp.pop %v3240
    %v3242 = vmul.f32 1.0, %v3241
    %v3243 = vxor.u32 %v3164, 2147483648
    %v3244 = vmul.f32 %v3243, 1.442695
    %v3245 = vpow.pop %v3244
    %v3246 = vadd.f32 %v3245, 1.0
    %v3247 = vrcp.pop %v3246
    %v3248 = vmul.f32 1.0, %v3247
    %v3249 = vtanh.pop %v3233
    %v3250 = vxor.u32 %v3235, 2147483648
    %v3251 = vmul.f32 %v3250, 1.442695
    %v3252 = vpow.pop %v3251
    %v3253 = vadd.f32 %v3252, 1.0
    %v3254 = vrcp.pop %v3253
    %v3255 = vmul.f32 1.0, %v3254
    %v3256 = vmul.f32 %v3248, %v2672
    %v3257 = vmul.f32 %v3242, %v3249
    %v3258 = vadd.f32 %v3256, %v3257
    %v3259 = vtanh.pop %v3258
    %v3260 = vmul.f32 %v3255, %v3259
    %3261 = vst [vmem:[#allocation3 + $0x4] sm:$0x1] %v3260
    %s3262 = scalar_lea.vmem [#allocation2], 5
    %v3263 = vld [vmem:[%s3262] ss:$8 sm:$0xf]
    %v3264 = vld [vmem:[#allocation14] sm:$0xff]
    %v3265 = vld [vmem:[#allocation14 + $0x8] sm:$0xff]
    %v3266 = vld [vmem:[#allocation14 + $0x10] sm:$0xff]
    %v3267 = vld [vmem:[#allocation14 + $0x18] sm:$0xff]
    %v3268 = vld [vmem:[#allocation14 + $0x20] sm:$0xff]
    %v3269 = vld [vmem:[#allocation14 + $0x28] sm:$0xff]
    %v3270 = vld [vmem:[#allocation14 + $0x30] sm:$0xff]
    %v3271 = vld [vmem:[#allocation14 + $0x38] sm:$0xff]
    %v3272 = vld [vmem:[#allocation14 + $0x40] sm:$0xff]
    %v3273 = vld [vmem:[#allocation14 + $0x48] sm:$0xff]
    %v3274 = vld [vmem:[#allocation14 + $0x50] sm:$0xff]
    %v3275 = vld [vmem:[#allocation14 + $0x58] sm:$0xff]
    %v3276 = vld [vmem:[#allocation14 + $0x60] sm:$0xff]
    %v3277 = vld [vmem:[#allocation14 + $0x68] sm:$0xff]
    %v3278 = vld [vmem:[#allocation14 + $0x70] sm:$0xff]
    %v3279 = vld [vmem:[#allocation14 + $0x78] sm:$0xff]
    %v3280 = vld [vmem:[#allocation14 + $0x80] sm:$0xff]
    %v3281 = vld [vmem:[#allocation14 + $0x88] sm:$0xff]
    %v3282 = vld [vmem:[#allocation14 + $0x90] sm:$0xff]
    %v3283 = vld [vmem:[#allocation14 + $0x98] sm:$0xff]
    %v3284 = vld [vmem:[#allocation14 + $0xa0] sm:$0xff]
    %v3285 = vld [vmem:[#allocation14 + $0xa8] sm:$0xff]
    %v3286 = vld [vmem:[#allocation14 + $0xb0] sm:$0xff]
    %v3287 = vld [vmem:[#allocation14 + $0xb8] sm:$0xff]
    %v3288 = vld [vmem:[#allocation14 + $0xc0] sm:$0xff]
    %v3289 = vld [vmem:[#allocation14 + $0xc8] sm:$0xff]
    %v3290 = vld [vmem:[#allocation14 + $0xd0] sm:$0xff]
    %v3291 = vld [vmem:[#allocation14 + $0xd8] sm:$0xff]
    %v3292 = vld [vmem:[#allocation14 + $0xe0] sm:$0xff]
    %v3293 = vld [vmem:[#allocation14 + $0xe8] sm:$0xff]
    %v3294 = vld [vmem:[#allocation14 + $0xf0] sm:$0xff]
    %v3295 = vld [vmem:[#allocation14 + $0xf8] sm:$0xff]
    %v3296 = vld [vmem:[#allocation14 + $0x100] sm:$0xff]
    %v3297 = vld [vmem:[#allocation14 + $0x108] sm:$0xff]
    %v3298 = vld [vmem:[#allocation14 + $0x110] sm:$0xff]
    %v3299 = vld [vmem:[#allocation14 + $0x118] sm:$0xff]
    %v3300 = vld [vmem:[#allocation14 + $0x120] sm:$0xff]
    %v3301 = vld [vmem:[#allocation14 + $0x128] sm:$0xff]
    %v3302 = vld [vmem:[#allocation14 + $0x130] sm:$0xff]
    %v3303 = vld [vmem:[#allocation14 + $0x138] sm:$0xff]
    %v3304 = vld [vmem:[#allocation14 + $0x140] sm:$0xff]
    %v3305 = vld [vmem:[#allocation14 + $0x148] sm:$0xff]
    %v3306 = vld [vmem:[#allocation14 + $0x150] sm:$0xff]
    %v3307 = vld [vmem:[#allocation14 + $0x158] sm:$0xff]
    %v3308 = vld [vmem:[#allocation14 + $0x160] sm:$0xff]
    %v3309 = vld [vmem:[#allocation14 + $0x168] sm:$0xff]
    %v3310 = vld [vmem:[#allocation14 + $0x170] sm:$0xff]
    %v3311 = vld [vmem:[#allocation14 + $0x178] sm:$0xff]
    %v3312 = vld [vmem:[#allocation14 + $0x180] sm:$0xff]
    %v3313 = vld [vmem:[#allocation14 + $0x188] sm:$0xff]
    %v3314 = vld [vmem:[#allocation14 + $0x190] sm:$0xff]
    %v3315 = vld [vmem:[#allocation14 + $0x198] sm:$0xff]
    %v3316 = vld [vmem:[#allocation14 + $0x1a0] sm:$0xff]
    %v3317 = vld [vmem:[#allocation14 + $0x1a8] sm:$0xff]
    %v3318 = vld [vmem:[#allocation14 + $0x1b0] sm:$0xff]
    %v3319 = vld [vmem:[#allocation14 + $0x1b8] sm:$0xff]
    %v3320 = vld [vmem:[#allocation14 + $0x1c0] sm:$0xff]
    %v3321 = vld [vmem:[#allocation14 + $0x1c8] sm:$0xff]
    %v3322 = vld [vmem:[#allocation14 + $0x1d0] sm:$0xff]
    %v3323 = vld [vmem:[#allocation14 + $0x1d8] sm:$0xff]
    %v3324 = vld [vmem:[#allocation14 + $0x1e0] sm:$0xff]
    %v3325 = vld [vmem:[#allocation14 + $0x1e8] sm:$0xff]
    %v3326 = vld [vmem:[#allocation14 + $0x1f0] sm:$0xff]
    %v3327 = vld [vmem:[#allocation14 + $0x1f8] sm:$0xff]
    %3328 = vmatprep.subr.mxu0 %v3325
    %3329 = vmatpush1.msra.mxu0 %v3324
    %3330 = vmatprep.subr.mxu0 %v3321
    %3331 = vmatpush1.msra.mxu0 %v3320
    %3332 = vmatprep.subr.mxu0 %v3317
    %3333 = vmatpush1.msra.mxu0 %v3316
    %3334 = vmatprep.subr.mxu0 %v3313
    %3335 = vmatpush1.msra.mxu0 %v3312
    %3336 = vmatprep.subr.mxu0 %v3309
    %3337 = vmatpush1.msra.mxu0 %v3308
    %3338 = vmatprep.subr.mxu0 %v3305
    %3339 = vmatpush1.msra.mxu0 %v3304
    %3340 = vmatprep.subr.mxu0 %v3301
    %3341 = vmatpush1.msra.mxu0 %v3300
    %3342 = vmatprep.subr.mxu0 %v3297
    %3343 = vmatpush1.msra.mxu0 %v3296
    %3344 = vmatprep.subr.mxu0 %v3293
    %3345 = vmatpush1.msra.mxu0 %v3292
    %3346 = vmatprep.subr.mxu0 %v3289
    %3347 = vmatpush1.msra.mxu0 %v3288
    %3348 = vmatprep.subr.mxu0 %v3285
    %3349 = vmatpush1.msra.mxu0 %v3284
    %3350 = vmatprep.subr.mxu0 %v3281
    %3351 = vmatpush1.msra.mxu0 %v3280
    %3352 = vmatprep.subr.mxu0 %v3277
    %3353 = vmatpush1.msra.mxu0 %v3276
    %3354 = vmatprep.subr.mxu0 %v3273
    %3355 = vmatpush1.msra.mxu0 %v3272
    %3356 = vmatprep.subr.mxu0 %v3269
    %3357 = vmatpush1.msra.mxu0 %v3268
    %3358 = vmatprep.subr.mxu0 %v3265
    %3359 = vmatpush1.msra.mxu0 %v3264
    %3360 = vmatprep.subr.mxu0 0.0
    %3361 = vmatpush2.msra.mxu0 0.0
    %3362 = vmatprep.subr.mxu0 0.0
    %3363 = vmatpush2.msra.mxu0 0.0
    %3364 = vmatprep.subr.mxu0 0.0
    %3365 = vmatpush2.msra.mxu0 0.0
    %3366 = vmatprep.subr.mxu0 0.0
    %3367 = vmatpush2.msra.mxu0 0.0
    %3368 = vmatprep.subr.mxu0 0.0
    %3369 = vmatpush2.msra.mxu0 0.0
    %3370 = vmatprep.subr.mxu0 0.0
    %3371 = vmatpush2.msra.mxu0 0.0
    %3372 = vmatprep.subr.mxu0 0.0
    %3373 = vmatpush2.msra.mxu0 0.0
    %3374 = vmatprep.subr.mxu0 0.0
    %3375 = vmatpush2.msra.mxu0 0.0
    %3376 = vmatprep.subr.mxu0 0.0
    %3377 = vmatpush2.msra.mxu0 0.0
    %3378 = vmatprep.subr.mxu0 0.0
    %3379 = vmatpush2.msra.mxu0 0.0
    %3380 = vmatprep.subr.mxu0 0.0
    %3381 = vmatpush2.msra.mxu0 0.0
    %3382 = vmatprep.subr.mxu0 0.0
    %3383 = vmatpush2.msra.mxu0 0.0
    %3384 = vmatprep.subr.mxu0 0.0
    %3385 = vmatpush2.msra.mxu0 0.0
    %3386 = vmatprep.subr.mxu0 0.0
    %3387 = vmatpush2.msra.mxu0 0.0
    %3388 = vmatprep.subr.mxu0 0.0
    %3389 = vmatpush2.msra.mxu0 0.0
    %3390 = vmatprep.subr.mxu0 0.0
    %3391 = vmatpush2.msra.mxu0 0.0
    %3392 = vmatprep.mubr.f32.mxu0 0.0
    %3393 = vmatmul.mubr.f32.gmra.mxu0 %v2944
    %v3394 = vpop.f32.mrf.mxu0
    %v3395 = vadd.f32 0.0, %v3394
    %v3396 = vpop.f32.mrf.mxu0
    %v3397 = vadd.f32 0.0, %v3396
    %3398 = vdwg.mxu0
    %3399 = vmatprep.subr.mxu0 %v3327
    %3400 = vmatpush1.msra.mxu0 %v3326
    %3401 = vmatprep.subr.mxu0 %v3323
    %3402 = vmatpush1.msra.mxu0 %v3322
    %3403 = vmatprep.subr.mxu0 %v3319
    %3404 = vmatpush1.msra.mxu0 %v3318
    %3405 = vmatprep.subr.mxu0 %v3315
    %3406 = vmatpush1.msra.mxu0 %v3314
    %3407 = vmatprep.subr.mxu0 %v3311
    %3408 = vmatpush1.msra.mxu0 %v3310
    %3409 = vmatprep.subr.mxu0 %v3307
    %3410 = vmatpush1.msra.mxu0 %v3306
    %3411 = vmatprep.subr.mxu0 %v3303
    %3412 = vmatpush1.msra.mxu0 %v3302
    %3413 = vmatprep.subr.mxu0 %v3299
    %3414 = vmatpush1.msra.mxu0 %v3298
    %3415 = vmatprep.subr.mxu0 %v3295
    %3416 = vmatpush1.msra.mxu0 %v3294
    %3417 = vmatprep.subr.mxu0 %v3291
    %3418 = vmatpush1.msra.mxu0 %v3290
    %3419 = vmatprep.subr.mxu0 %v3287
    %3420 = vmatpush1.msra.mxu0 %v3286
    %3421 = vmatprep.subr.mxu0 %v3283
    %3422 = vmatpush1.msra.mxu0 %v3282
    %3423 = vmatprep.subr.mxu0 %v3279
    %3424 = vmatpush1.msra.mxu0 %v3278
    %3425 = vmatprep.subr.mxu0 %v3275
    %3426 = vmatpush1.msra.mxu0 %v3274
    %3427 = vmatprep.subr.mxu0 %v3271
    %3428 = vmatpush1.msra.mxu0 %v3270
    %3429 = vmatprep.subr.mxu0 %v3267
    %3430 = vmatpush1.msra.mxu0 %v3266
    %3431 = vmatprep.subr.mxu0 0.0
    %3432 = vmatpush2.msra.mxu0 0.0
    %3433 = vmatprep.subr.mxu0 0.0
    %3434 = vmatpush2.msra.mxu0 0.0
    %3435 = vmatprep.subr.mxu0 0.0
    %3436 = vmatpush2.msra.mxu0 0.0
    %3437 = vmatprep.subr.mxu0 0.0
    %3438 = vmatpush2.msra.mxu0 0.0
    %3439 = vmatprep.subr.mxu0 0.0
    %3440 = vmatpush2.msra.mxu0 0.0
    %3441 = vmatprep.subr.mxu0 0.0
    %3442 = vmatpush2.msra.mxu0 0.0
    %3443 = vmatprep.subr.mxu0 0.0
    %3444 = vmatpush2.msra.mxu0 0.0
    %3445 = vmatprep.subr.mxu0 0.0
    %3446 = vmatpush2.msra.mxu0 0.0
    %3447 = vmatprep.subr.mxu0 0.0
    %3448 = vmatpush2.msra.mxu0 0.0
    %3449 = vmatprep.subr.mxu0 0.0
    %3450 = vmatpush2.msra.mxu0 0.0
    %3451 = vmatprep.subr.mxu0 0.0
    %3452 = vmatpush2.msra.mxu0 0.0
    %3453 = vmatprep.subr.mxu0 0.0
    %3454 = vmatpush2.msra.mxu0 0.0
    %3455 = vmatprep.subr.mxu0 0.0
    %3456 = vmatpush2.msra.mxu0 0.0
    %3457 = vmatprep.subr.mxu0 0.0
    %3458 = vmatpush2.msra.mxu0 0.0
    %3459 = vmatprep.subr.mxu0 0.0
    %3460 = vmatpush2.msra.mxu0 0.0
    %3461 = vmatprep.subr.mxu0 0.0
    %3462 = vmatpush2.msra.mxu0 0.0
    %3463 = vmatprep.mubr.f32.mxu0 0.0
    %3464 = vmatmul.mubr.f32.gmra.mxu0 %v2944
    %v3465 = vpop.f32.mrf.mxu0
    %v3466 = vadd.f32 0.0, %v3465
    %v3467 = vpop.f32.mrf.mxu0
    %v3468 = vadd.f32 0.0, %v3467
    %3469 = vdwg.mxu0
    %v3474 = vcombine.low %v3395, %v3397
    %v3475 = vcombine.low %v3466, %v3468
    %v3477 = vunpack.c.l.s4 1966171168
    %v3478 = vunpack.c.0.s8 %v3477
    %v3479 = vlaneseq
    %v3480 = vshrl.u32 %v3479, 7
    %v3481 = vsub.s32 %v3478, %v3480
    %v3482 = vrot.slane %v3474, %v3481
    %v3484 = vunpack.c.l.s4 1966171168
    %v3485 = vunpack.c.0.s8 %v3484
    %v3486 = vlaneseq
    %v3487 = vshrl.u32 %v3486, 7
    %v3488 = vsub.s32 %v3485, %v3487
    %v3489 = vrot.slane %v3475, %v3488
    %v3490 = vcombine.low %v3482, %v3489
    %v3492 = vunpack.c.l.s4 1966171168
    %v3493 = vunpack.c.0.s8 %v3492
    %v3494 = vlaneseq
    %v3495 = vshrl.u32 %v3494, 7
    %v3496 = vsub.s32 %v3493, %v3495
    %v3497 = vrot.slane %v3490, %v3496
    %v3499 = vadd.f32 %v3263, %v3497
    %v3500 = vxor.u32 %v3499, 2147483648
    %v3501 = vmul.f32 %v3500, 1.442695
    %v3502 = vpow.pop %v3501
    %v3503 = vadd.f32 %v3502, 1.0
    %v3504 = vrcp.pop %v3503
    %v3505 = vmul.f32 1.0, %v3504
    %v3507 = vrot.slane %v3499, 1
    %v3509 = vxor.u32 %v3507, 2147483648
    %v3510 = vmul.f32 %v3509, 1.442695
    %v3511 = vpow.pop %v3510
    %v3512 = vadd.f32 %v3511, 1.0
    %v3513 = vrcp.pop %v3512
    %v3514 = vmul.f32 1.0, %v3513
    %v3515 = vrot.slane %v3499, 2
    %v3517 = vtanh.pop %v3515
    %v3518 = vrot.slane %v3499, 3
    %v3520 = vxor.u32 %v3518, 2147483648
    %v3521 = vmul.f32 %v3520, 1.442695
    %v3522 = vpow.pop %v3521
    %v3523 = vadd.f32 %v3522, 1.0
    %v3524 = vrcp.pop %v3523
    %v3525 = vmul.f32 1.0, %v3524
    %v3526 = vmul.f32 %v3514, %v2942
    %v3527 = vmul.f32 %v3505, %v3517
    %v3528 = vadd.f32 %v3526, %v3527
    %v3529 = vtanh.pop %v3528
    %v3530 = vmul.f32 %v3525, %v3529
    %v3531 = vld [vmem:[#allocation16] sm:$0xff]
    %v3532 = vld [vmem:[#allocation16 + $0x8] sm:$0xff]
    %v3533 = vld [vmem:[#allocation16 + $0x10] sm:$0xff]
    %v3534 = vld [vmem:[#allocation16 + $0x18] sm:$0xff]
    %v3535 = vld [vmem:[#allocation16 + $0x20] sm:$0xff]
    %v3536 = vld [vmem:[#allocation16 + $0x28] sm:$0xff]
    %v3537 = vld [vmem:[#allocation16 + $0x30] sm:$0xff]
    %v3538 = vld [vmem:[#allocation16 + $0x38] sm:$0xff]
    %v3539 = vld [vmem:[#allocation16 + $0x40] sm:$0xff]
    %v3540 = vld [vmem:[#allocation16 + $0x48] sm:$0xff]
    %v3541 = vld [vmem:[#allocation16 + $0x50] sm:$0xff]
    %v3542 = vld [vmem:[#allocation16 + $0x58] sm:$0xff]
    %v3543 = vld [vmem:[#allocation16 + $0x60] sm:$0xff]
    %v3544 = vld [vmem:[#allocation16 + $0x68] sm:$0xff]
    %v3545 = vld [vmem:[#allocation16 + $0x70] sm:$0xff]
    %v3546 = vld [vmem:[#allocation16 + $0x78] sm:$0xff]
    %v3547 = vld [vmem:[#allocation16 + $0x80] sm:$0xff]
    %v3548 = vld [vmem:[#allocation16 + $0x88] sm:$0xff]
    %v3549 = vld [vmem:[#allocation16 + $0x90] sm:$0xff]
    %v3550 = vld [vmem:[#allocation16 + $0x98] sm:$0xff]
    %v3551 = vld [vmem:[#allocation16 + $0xa0] sm:$0xff]
    %v3552 = vld [vmem:[#allocation16 + $0xa8] sm:$0xff]
    %v3553 = vld [vmem:[#allocation16 + $0xb0] sm:$0xff]
    %v3554 = vld [vmem:[#allocation16 + $0xb8] sm:$0xff]
    %v3555 = vld [vmem:[#allocation16 + $0xc0] sm:$0xff]
    %v3556 = vld [vmem:[#allocation16 + $0xc8] sm:$0xff]
    %v3557 = vld [vmem:[#allocation16 + $0xd0] sm:$0xff]
    %v3558 = vld [vmem:[#allocation16 + $0xd8] sm:$0xff]
    %v3559 = vld [vmem:[#allocation16 + $0xe0] sm:$0xff]
    %v3560 = vld [vmem:[#allocation16 + $0xe8] sm:$0xff]
    %v3561 = vld [vmem:[#allocation16 + $0xf0] sm:$0xff]
    %v3562 = vld [vmem:[#allocation16 + $0xf8] sm:$0xff]
    %v3563 = vld [vmem:[#allocation16 + $0x100] sm:$0xff]
    %v3564 = vld [vmem:[#allocation16 + $0x108] sm:$0xff]
    %v3565 = vld [vmem:[#allocation16 + $0x110] sm:$0xff]
    %v3566 = vld [vmem:[#allocation16 + $0x118] sm:$0xff]
    %v3567 = vld [vmem:[#allocation16 + $0x120] sm:$0xff]
    %v3568 = vld [vmem:[#allocation16 + $0x128] sm:$0xff]
    %v3569 = vld [vmem:[#allocation16 + $0x130] sm:$0xff]
    %v3570 = vld [vmem:[#allocation16 + $0x138] sm:$0xff]
    %v3571 = vld [vmem:[#allocation16 + $0x140] sm:$0xff]
    %v3572 = vld [vmem:[#allocation16 + $0x148] sm:$0xff]
    %v3573 = vld [vmem:[#allocation16 + $0x150] sm:$0xff]
    %v3574 = vld [vmem:[#allocation16 + $0x158] sm:$0xff]
    %v3575 = vld [vmem:[#allocation16 + $0x160] sm:$0xff]
    %v3576 = vld [vmem:[#allocation16 + $0x168] sm:$0xff]
    %v3577 = vld [vmem:[#allocation16 + $0x170] sm:$0xff]
    %v3578 = vld [vmem:[#allocation16 + $0x178] sm:$0xff]
    %v3579 = vld [vmem:[#allocation16 + $0x180] sm:$0xff]
    %v3580 = vld [vmem:[#allocation16 + $0x188] sm:$0xff]
    %v3581 = vld [vmem:[#allocation16 + $0x190] sm:$0xff]
    %v3582 = vld [vmem:[#allocation16 + $0x198] sm:$0xff]
    %v3583 = vld [vmem:[#allocation16 + $0x1a0] sm:$0xff]
    %v3584 = vld [vmem:[#allocation16 + $0x1a8] sm:$0xff]
    %v3585 = vld [vmem:[#allocation16 + $0x1b0] sm:$0xff]
    %v3586 = vld [vmem:[#allocation16 + $0x1b8] sm:$0xff]
    %v3587 = vld [vmem:[#allocation16 + $0x1c0] sm:$0xff]
    %v3588 = vld [vmem:[#allocation16 + $0x1c8] sm:$0xff]
    %v3589 = vld [vmem:[#allocation16 + $0x1d0] sm:$0xff]
    %v3590 = vld [vmem:[#allocation16 + $0x1d8] sm:$0xff]
    %v3591 = vld [vmem:[#allocation16 + $0x1e0] sm:$0xff]
    %v3592 = vld [vmem:[#allocation16 + $0x1e8] sm:$0xff]
    %v3593 = vld [vmem:[#allocation16 + $0x1f0] sm:$0xff]
    %v3594 = vld [vmem:[#allocation16 + $0x1f8] sm:$0xff]
    %v3595 = vld [vmem:[#allocation16 + $0x200] sm:$0xff]
    %v3596 = vld [vmem:[#allocation16 + $0x208] sm:$0xff]
    %v3597 = vld [vmem:[#allocation16 + $0x210] sm:$0xff]
    %v3598 = vld [vmem:[#allocation16 + $0x218] sm:$0xff]
    %v3599 = vld [vmem:[#allocation16 + $0x220] sm:$0xff]
    %v3600 = vld [vmem:[#allocation16 + $0x228] sm:$0xff]
    %v3601 = vld [vmem:[#allocation16 + $0x230] sm:$0xff]
    %v3602 = vld [vmem:[#allocation16 + $0x238] sm:$0xff]
    %v3603 = vld [vmem:[#allocation16 + $0x240] sm:$0xff]
    %v3604 = vld [vmem:[#allocation16 + $0x248] sm:$0xff]
    %v3605 = vld [vmem:[#allocation16 + $0x250] sm:$0xff]
    %v3606 = vld [vmem:[#allocation16 + $0x258] sm:$0xff]
    %v3607 = vld [vmem:[#allocation16 + $0x260] sm:$0xff]
    %v3608 = vld [vmem:[#allocation16 + $0x268] sm:$0xff]
    %v3609 = vld [vmem:[#allocation16 + $0x270] sm:$0xff]
    %v3610 = vld [vmem:[#allocation16 + $0x278] sm:$0xff]
    %v3611 = vld [vmem:[#allocation16 + $0x280] sm:$0xff]
    %v3612 = vld [vmem:[#allocation16 + $0x288] sm:$0xff]
    %v3613 = vld [vmem:[#allocation16 + $0x290] sm:$0xff]
    %v3614 = vld [vmem:[#allocation16 + $0x298] sm:$0xff]
    %v3615 = vld [vmem:[#allocation16 + $0x2a0] sm:$0xff]
    %v3616 = vld [vmem:[#allocation16 + $0x2a8] sm:$0xff]
    %v3617 = vld [vmem:[#allocation16 + $0x2b0] sm:$0xff]
    %v3618 = vld [vmem:[#allocation16 + $0x2b8] sm:$0xff]
    %v3619 = vld [vmem:[#allocation16 + $0x2c0] sm:$0xff]
    %v3620 = vld [vmem:[#allocation16 + $0x2c8] sm:$0xff]
    %v3621 = vld [vmem:[#allocation16 + $0x2d0] sm:$0xff]
    %v3622 = vld [vmem:[#allocation16 + $0x2d8] sm:$0xff]
    %v3623 = vld [vmem:[#allocation16 + $0x2e0] sm:$0xff]
    %v3624 = vld [vmem:[#allocation16 + $0x2e8] sm:$0xff]
    %v3625 = vld [vmem:[#allocation16 + $0x2f0] sm:$0xff]
    %v3626 = vld [vmem:[#allocation16 + $0x2f8] sm:$0xff]
    %v3627 = vld [vmem:[#allocation16 + $0x300] sm:$0xff]
    %v3628 = vld [vmem:[#allocation16 + $0x308] sm:$0xff]
    %v3629 = vld [vmem:[#allocation16 + $0x310] sm:$0xff]
    %v3630 = vld [vmem:[#allocation16 + $0x318] sm:$0xff]
    %v3631 = vld [vmem:[#allocation16 + $0x320] sm:$0xff]
    %v3632 = vld [vmem:[#allocation16 + $0x328] sm:$0xff]
    %v3633 = vld [vmem:[#allocation16 + $0x330] sm:$0xff]
    %v3634 = vld [vmem:[#allocation16 + $0x338] sm:$0xff]
    %v3635 = vld [vmem:[#allocation16 + $0x340] sm:$0xff]
    %v3636 = vld [vmem:[#allocation16 + $0x348] sm:$0xff]
    %v3637 = vld [vmem:[#allocation16 + $0x350] sm:$0xff]
    %v3638 = vld [vmem:[#allocation16 + $0x358] sm:$0xff]
    %v3639 = vld [vmem:[#allocation16 + $0x360] sm:$0xff]
    %v3640 = vld [vmem:[#allocation16 + $0x368] sm:$0xff]
    %v3641 = vld [vmem:[#allocation16 + $0x370] sm:$0xff]
    %v3642 = vld [vmem:[#allocation16 + $0x378] sm:$0xff]
    %v3643 = vld [vmem:[#allocation16 + $0x380] sm:$0xff]
    %v3644 = vld [vmem:[#allocation16 + $0x388] sm:$0xff]
    %v3645 = vld [vmem:[#allocation16 + $0x390] sm:$0xff]
    %v3646 = vld [vmem:[#allocation16 + $0x398] sm:$0xff]
    %v3647 = vld [vmem:[#allocation16 + $0x3a0] sm:$0xff]
    %v3648 = vld [vmem:[#allocation16 + $0x3a8] sm:$0xff]
    %v3649 = vld [vmem:[#allocation16 + $0x3b0] sm:$0xff]
    %v3650 = vld [vmem:[#allocation16 + $0x3b8] sm:$0xff]
    %v3651 = vld [vmem:[#allocation16 + $0x3c0] sm:$0xff]
    %v3652 = vld [vmem:[#allocation16 + $0x3c8] sm:$0xff]
    %v3653 = vld [vmem:[#allocation16 + $0x3d0] sm:$0xff]
    %v3654 = vld [vmem:[#allocation16 + $0x3d8] sm:$0xff]
    %v3655 = vld [vmem:[#allocation16 + $0x3e0] sm:$0xff]
    %v3656 = vld [vmem:[#allocation16 + $0x3e8] sm:$0xff]
    %v3657 = vld [vmem:[#allocation16 + $0x3f0] sm:$0xff]
    %v3658 = vld [vmem:[#allocation16 + $0x3f8] sm:$0xff]
    %v3659 = vld [vmem:[%s6] sm:$0xf]
    %v3661 = vlaneseq
    %v3662 = vshrl.u32 %v3661, 7
    %v3663 = vsub.s32 0, %v3662
    %v3664 = vrot.slane %v3659, %v3663
    %v3665 = vlaneseq
    %v3666 = vshrl.u32 %v3665, 7
    %v3667 = vsub.s32 1, %v3666
    %v3668 = vrot.slane %v3659, %v3667
    %v3669 = vlaneseq
    %v3670 = vshrl.u32 %v3669, 7
    %v3671 = vsub.s32 2, %v3670
    %v3672 = vrot.slane %v3659, %v3671
    %v3673 = vlaneseq
    %v3674 = vshrl.u32 %v3673, 7
    %v3675 = vsub.s32 3, %v3674
    %v3676 = vrot.slane %v3659, %v3675
    %3681 = vmatprep.subr.mxu0 %v3592
    %3682 = vmatpush1.msra.mxu0 %v3591
    %3683 = vmatprep.subr.mxu0 %v3588
    %3684 = vmatpush1.msra.mxu0 %v3587
    %3685 = vmatprep.subr.mxu0 %v3584
    %3686 = vmatpush1.msra.mxu0 %v3583
    %3687 = vmatprep.subr.mxu0 %v3580
    %3688 = vmatpush1.msra.mxu0 %v3579
    %3689 = vmatprep.subr.mxu0 %v3576
    %3690 = vmatpush1.msra.mxu0 %v3575
    %3691 = vmatprep.subr.mxu0 %v3572
    %3692 = vmatpush1.msra.mxu0 %v3571
    %3693 = vmatprep.subr.mxu0 %v3568
    %3694 = vmatpush1.msra.mxu0 %v3567
    %3695 = vmatprep.subr.mxu0 %v3564
    %3696 = vmatpush1.msra.mxu0 %v3563
    %3697 = vmatprep.subr.mxu0 %v3560
    %3698 = vmatpush1.msra.mxu0 %v3559
    %3699 = vmatprep.subr.mxu0 %v3556
    %3700 = vmatpush1.msra.mxu0 %v3555
    %3701 = vmatprep.subr.mxu0 %v3552
    %3702 = vmatpush1.msra.mxu0 %v3551
    %3703 = vmatprep.subr.mxu0 %v3548
    %3704 = vmatpush1.msra.mxu0 %v3547
    %3705 = vmatprep.subr.mxu0 %v3544
    %3706 = vmatpush1.msra.mxu0 %v3543
    %3707 = vmatprep.subr.mxu0 %v3540
    %3708 = vmatpush1.msra.mxu0 %v3539
    %3709 = vmatprep.subr.mxu0 %v3536
    %3710 = vmatpush1.msra.mxu0 %v3535
    %3711 = vmatprep.subr.mxu0 %v3532
    %3712 = vmatpush1.msra.mxu0 %v3531
    %3713 = vmatprep.subr.mxu0 %v3656
    %3714 = vmatpush2.msra.mxu0 %v3655
    %3715 = vmatprep.subr.mxu0 %v3652
    %3716 = vmatpush2.msra.mxu0 %v3651
    %3717 = vmatprep.subr.mxu0 %v3648
    %3718 = vmatpush2.msra.mxu0 %v3647
    %3719 = vmatprep.subr.mxu0 %v3644
    %3720 = vmatpush2.msra.mxu0 %v3643
    %3721 = vmatprep.subr.mxu0 %v3640
    %3722 = vmatpush2.msra.mxu0 %v3639
    %3723 = vmatprep.subr.mxu0 %v3636
    %3724 = vmatpush2.msra.mxu0 %v3635
    %3725 = vmatprep.subr.mxu0 %v3632
    %3726 = vmatpush2.msra.mxu0 %v3631
    %3727 = vmatprep.subr.mxu0 %v3628
    %3728 = vmatpush2.msra.mxu0 %v3627
    %3729 = vmatprep.subr.mxu0 %v3624
    %3730 = vmatpush2.msra.mxu0 %v3623
    %3731 = vmatprep.subr.mxu0 %v3620
    %3732 = vmatpush2.msra.mxu0 %v3619
    %3733 = vmatprep.subr.mxu0 %v3616
    %3734 = vmatpush2.msra.mxu0 %v3615
    %3735 = vmatprep.subr.mxu0 %v3612
    %3736 = vmatpush2.msra.mxu0 %v3611
    %3737 = vmatprep.subr.mxu0 %v3608
    %3738 = vmatpush2.msra.mxu0 %v3607
    %3739 = vmatprep.subr.mxu0 %v3604
    %3740 = vmatpush2.msra.mxu0 %v3603
    %3741 = vmatprep.subr.mxu0 %v3600
    %3742 = vmatpush2.msra.mxu0 %v3599
    %3743 = vmatprep.subr.mxu0 %v3596
    %3744 = vmatpush2.msra.mxu0 %v3595
    %3745 = vmatprep.mubr.f32.mxu0 %v3260
    %3746 = vmatmul.mubr.f32.gmra.mxu0 %v3530
    %v3747 = vpop.f32.mrf.mxu0
    %v3748 = vadd.f32 %v3664, %v3747
    %v3749 = vpop.f32.mrf.mxu0
    %v3750 = vadd.f32 %v3668, %v3749
    %3751 = vdwg.mxu0
    %3752 = vmatprep.subr.mxu0 %v3594
    %3753 = vmatpush1.msra.mxu0 %v3593
    %3754 = vmatprep.subr.mxu0 %v3590
    %3755 = vmatpush1.msra.mxu0 %v3589
    %3756 = vmatprep.subr.mxu0 %v3586
    %3757 = vmatpush1.msra.mxu0 %v3585
    %3758 = vmatprep.subr.mxu0 %v3582
    %3759 = vmatpush1.msra.mxu0 %v3581
    %3760 = vmatprep.subr.mxu0 %v3578
    %3761 = vmatpush1.msra.mxu0 %v3577
    %3762 = vmatprep.subr.mxu0 %v3574
    %3763 = vmatpush1.msra.mxu0 %v3573
    %3764 = vmatprep.subr.mxu0 %v3570
    %3765 = vmatpush1.msra.mxu0 %v3569
    %3766 = vmatprep.subr.mxu0 %v3566
    %3767 = vmatpush1.msra.mxu0 %v3565
    %3768 = vmatprep.subr.mxu0 %v3562
    %3769 = vmatpush1.msra.mxu0 %v3561
    %3770 = vmatprep.subr.mxu0 %v3558
    %3771 = vmatpush1.msra.mxu0 %v3557
    %3772 = vmatprep.subr.mxu0 %v3554
    %3773 = vmatpush1.msra.mxu0 %v3553
    %3774 = vmatprep.subr.mxu0 %v3550
    %3775 = vmatpush1.msra.mxu0 %v3549
    %3776 = vmatprep.subr.mxu0 %v3546
    %3777 = vmatpush1.msra.mxu0 %v3545
    %3778 = vmatprep.subr.mxu0 %v3542
    %3779 = vmatpush1.msra.mxu0 %v3541
    %3780 = vmatprep.subr.mxu0 %v3538
    %3781 = vmatpush1.msra.mxu0 %v3537
    %3782 = vmatprep.subr.mxu0 %v3534
    %3783 = vmatpush1.msra.mxu0 %v3533
    %3784 = vmatprep.subr.mxu0 %v3658
    %3785 = vmatpush2.msra.mxu0 %v3657
    %3786 = vmatprep.subr.mxu0 %v3654
    %3787 = vmatpush2.msra.mxu0 %v3653
    %3788 = vmatprep.subr.mxu0 %v3650
    %3789 = vmatpush2.msra.mxu0 %v3649
    %3790 = vmatprep.subr.mxu0 %v3646
    %3791 = vmatpush2.msra.mxu0 %v3645
    %3792 = vmatprep.subr.mxu0 %v3642
    %3793 = vmatpush2.msra.mxu0 %v3641
    %3794 = vmatprep.subr.mxu0 %v3638
    %3795 = vmatpush2.msra.mxu0 %v3637
    %3796 = vmatprep.subr.mxu0 %v3634
    %3797 = vmatpush2.msra.mxu0 %v3633
    %3798 = vmatprep.subr.mxu0 %v3630
    %3799 = vmatpush2.msra.mxu0 %v3629
    %3800 = vmatprep.subr.mxu0 %v3626
    %3801 = vmatpush2.msra.mxu0 %v3625
    %3802 = vmatprep.subr.mxu0 %v3622
    %3803 = vmatpush2.msra.mxu0 %v3621
    %3804 = vmatprep.subr.mxu0 %v3618
    %3805 = vmatpush2.msra.mxu0 %v3617
    %3806 = vmatprep.subr.mxu0 %v3614
    %3807 = vmatpush2.msra.mxu0 %v3613
    %3808 = vmatprep.subr.mxu0 %v3610
    %3809 = vmatpush2.msra.mxu0 %v3609
    %3810 = vmatprep.subr.mxu0 %v3606
    %3811 = vmatpush2.msra.mxu0 %v3605
    %3812 = vmatprep.subr.mxu0 %v3602
    %3813 = vmatpush2.msra.mxu0 %v3601
    %3814 = vmatprep.subr.mxu0 %v3598
    %3815 = vmatpush2.msra.mxu0 %v3597
    %3816 = vmatprep.mubr.f32.mxu0 %v3260
    %3817 = vmatmul.mubr.f32.gmra.mxu0 %v3530
    %v3818 = vpop.f32.mrf.mxu0
    %v3819 = vadd.f32 %v3672, %v3818
    %v3820 = vpop.f32.mrf.mxu0
    %v3821 = vadd.f32 %v3676, %v3820
    %3822 = vdwg.mxu0
    %v3823 = vxor.u32 %v3748, 2147483648
    %v3824 = vmul.f32 %v3823, 1.442695
    %v3825 = vpow.pop %v3824
    %v3826 = vadd.f32 %v3825, 1.0
    %v3827 = vrcp.pop %v3826
    %v3828 = vmul.f32 1.0, %v3827
    %v3829 = vxor.u32 %v3750, 2147483648
    %v3830 = vmul.f32 %v3829, 1.442695
    %v3831 = vpow.pop %v3830
    %v3832 = vadd.f32 %v3831, 1.0
    %v3833 = vrcp.pop %v3832
    %v3834 = vmul.f32 1.0, %v3833
    %v3835 = vtanh.pop %v3819
    %v3836 = vxor.u32 %v3821, 2147483648
    %v3837 = vmul.f32 %v3836, 1.442695
    %v3838 = vpow.pop %v3837
    %v3839 = vadd.f32 %v3838, 1.0
    %v3840 = vrcp.pop %v3839
    %v3841 = vmul.f32 1.0, %v3840
    %v3842 = vmul.f32 %v3834, %v3258
    %v3843 = vmul.f32 %v3828, %v3835
    %v3844 = vadd.f32 %v3842, %v3843
    %v3845 = vtanh.pop %v3844
    %v3846 = vmul.f32 %v3841, %v3845
    %3847 = vst [vmem:[#allocation3 + $0x5] sm:$0x1] %v3846
    %s3848 = scalar_lea.vmem [#allocation2], 6
    %v3849 = vld [vmem:[%s3848] ss:$8 sm:$0xf]
    %v3850 = vld [vmem:[#allocation14] sm:$0xff]
    %v3851 = vld [vmem:[#allocation14 + $0x8] sm:$0xff]
    %v3852 = vld [vmem:[#allocation14 + $0x10] sm:$0xff]
    %v3853 = vld [vmem:[#allocation14 + $0x18] sm:$0xff]
    %v3854 = vld [vmem:[#allocation14 + $0x20] sm:$0xff]
    %v3855 = vld [vmem:[#allocation14 + $0x28] sm:$0xff]
    %v3856 = vld [vmem:[#allocation14 + $0x30] sm:$0xff]
    %v3857 = vld [vmem:[#allocation14 + $0x38] sm:$0xff]
    %v3858 = vld [vmem:[#allocation14 + $0x40] sm:$0xff]
    %v3859 = vld [vmem:[#allocation14 + $0x48] sm:$0xff]
    %v3860 = vld [vmem:[#allocation14 + $0x50] sm:$0xff]
    %v3861 = vld [vmem:[#allocation14 + $0x58] sm:$0xff]
    %v3862 = vld [vmem:[#allocation14 + $0x60] sm:$0xff]
    %v3863 = vld [vmem:[#allocation14 + $0x68] sm:$0xff]
    %v3864 = vld [vmem:[#allocation14 + $0x70] sm:$0xff]
    %v3865 = vld [vmem:[#allocation14 + $0x78] sm:$0xff]
    %v3866 = vld [vmem:[#allocation14 + $0x80] sm:$0xff]
    %v3867 = vld [vmem:[#allocation14 + $0x88] sm:$0xff]
    %v3868 = vld [vmem:[#allocation14 + $0x90] sm:$0xff]
    %v3869 = vld [vmem:[#allocation14 + $0x98] sm:$0xff]
    %v3870 = vld [vmem:[#allocation14 + $0xa0] sm:$0xff]
    %v3871 = vld [vmem:[#allocation14 + $0xa8] sm:$0xff]
    %v3872 = vld [vmem:[#allocation14 + $0xb0] sm:$0xff]
    %v3873 = vld [vmem:[#allocation14 + $0xb8] sm:$0xff]
    %v3874 = vld [vmem:[#allocation14 + $0xc0] sm:$0xff]
    %v3875 = vld [vmem:[#allocation14 + $0xc8] sm:$0xff]
    %v3876 = vld [vmem:[#allocation14 + $0xd0] sm:$0xff]
    %v3877 = vld [vmem:[#allocation14 + $0xd8] sm:$0xff]
    %v3878 = vld [vmem:[#allocation14 + $0xe0] sm:$0xff]
    %v3879 = vld [vmem:[#allocation14 + $0xe8] sm:$0xff]
    %v3880 = vld [vmem:[#allocation14 + $0xf0] sm:$0xff]
    %v3881 = vld [vmem:[#allocation14 + $0xf8] sm:$0xff]
    %v3882 = vld [vmem:[#allocation14 + $0x100] sm:$0xff]
    %v3883 = vld [vmem:[#allocation14 + $0x108] sm:$0xff]
    %v3884 = vld [vmem:[#allocation14 + $0x110] sm:$0xff]
    %v3885 = vld [vmem:[#allocation14 + $0x118] sm:$0xff]
    %v3886 = vld [vmem:[#allocation14 + $0x120] sm:$0xff]
    %v3887 = vld [vmem:[#allocation14 + $0x128] sm:$0xff]
    %v3888 = vld [vmem:[#allocation14 + $0x130] sm:$0xff]
    %v3889 = vld [vmem:[#allocation14 + $0x138] sm:$0xff]
    %v3890 = vld [vmem:[#allocation14 + $0x140] sm:$0xff]
    %v3891 = vld [vmem:[#allocation14 + $0x148] sm:$0xff]
    %v3892 = vld [vmem:[#allocation14 + $0x150] sm:$0xff]
    %v3893 = vld [vmem:[#allocation14 + $0x158] sm:$0xff]
    %v3894 = vld [vmem:[#allocation14 + $0x160] sm:$0xff]
    %v3895 = vld [vmem:[#allocation14 + $0x168] sm:$0xff]
    %v3896 = vld [vmem:[#allocation14 + $0x170] sm:$0xff]
    %v3897 = vld [vmem:[#allocation14 + $0x178] sm:$0xff]
    %v3898 = vld [vmem:[#allocation14 + $0x180] sm:$0xff]
    %v3899 = vld [vmem:[#allocation14 + $0x188] sm:$0xff]
    %v3900 = vld [vmem:[#allocation14 + $0x190] sm:$0xff]
    %v3901 = vld [vmem:[#allocation14 + $0x198] sm:$0xff]
    %v3902 = vld [vmem:[#allocation14 + $0x1a0] sm:$0xff]
    %v3903 = vld [vmem:[#allocation14 + $0x1a8] sm:$0xff]
    %v3904 = vld [vmem:[#allocation14 + $0x1b0] sm:$0xff]
    %v3905 = vld [vmem:[#allocation14 + $0x1b8] sm:$0xff]
    %v3906 = vld [vmem:[#allocation14 + $0x1c0] sm:$0xff]
    %v3907 = vld [vmem:[#allocation14 + $0x1c8] sm:$0xff]
    %v3908 = vld [vmem:[#allocation14 + $0x1d0] sm:$0xff]
    %v3909 = vld [vmem:[#allocation14 + $0x1d8] sm:$0xff]
    %v3910 = vld [vmem:[#allocation14 + $0x1e0] sm:$0xff]
    %v3911 = vld [vmem:[#allocation14 + $0x1e8] sm:$0xff]
    %v3912 = vld [vmem:[#allocation14 + $0x1f0] sm:$0xff]
    %v3913 = vld [vmem:[#allocation14 + $0x1f8] sm:$0xff]
    %3914 = vmatprep.subr.mxu0 %v3911
    %3915 = vmatpush1.msra.mxu0 %v3910
    %3916 = vmatprep.subr.mxu0 %v3907
    %3917 = vmatpush1.msra.mxu0 %v3906
    %3918 = vmatprep.subr.mxu0 %v3903
    %3919 = vmatpush1.msra.mxu0 %v3902
    %3920 = vmatprep.subr.mxu0 %v3899
    %3921 = vmatpush1.msra.mxu0 %v3898
    %3922 = vmatprep.subr.mxu0 %v3895
    %3923 = vmatpush1.msra.mxu0 %v3894
    %3924 = vmatprep.subr.mxu0 %v3891
    %3925 = vmatpush1.msra.mxu0 %v3890
    %3926 = vmatprep.subr.mxu0 %v3887
    %3927 = vmatpush1.msra.mxu0 %v3886
    %3928 = vmatprep.subr.mxu0 %v3883
    %3929 = vmatpush1.msra.mxu0 %v3882
    %3930 = vmatprep.subr.mxu0 %v3879
    %3931 = vmatpush1.msra.mxu0 %v3878
    %3932 = vmatprep.subr.mxu0 %v3875
    %3933 = vmatpush1.msra.mxu0 %v3874
    %3934 = vmatprep.subr.mxu0 %v3871
    %3935 = vmatpush1.msra.mxu0 %v3870
    %3936 = vmatprep.subr.mxu0 %v3867
    %3937 = vmatpush1.msra.mxu0 %v3866
    %3938 = vmatprep.subr.mxu0 %v3863
    %3939 = vmatpush1.msra.mxu0 %v3862
    %3940 = vmatprep.subr.mxu0 %v3859
    %3941 = vmatpush1.msra.mxu0 %v3858
    %3942 = vmatprep.subr.mxu0 %v3855
    %3943 = vmatpush1.msra.mxu0 %v3854
    %3944 = vmatprep.subr.mxu0 %v3851
    %3945 = vmatpush1.msra.mxu0 %v3850
    %3946 = vmatprep.subr.mxu0 0.0
    %3947 = vmatpush2.msra.mxu0 0.0
    %3948 = vmatprep.subr.mxu0 0.0
    %3949 = vmatpush2.msra.mxu0 0.0
    %3950 = vmatprep.subr.mxu0 0.0
    %3951 = vmatpush2.msra.mxu0 0.0
    %3952 = vmatprep.subr.mxu0 0.0
    %3953 = vmatpush2.msra.mxu0 0.0
    %3954 = vmatprep.subr.mxu0 0.0
    %3955 = vmatpush2.msra.mxu0 0.0
    %3956 = vmatprep.subr.mxu0 0.0
    %3957 = vmatpush2.msra.mxu0 0.0
    %3958 = vmatprep.subr.mxu0 0.0
    %3959 = vmatpush2.msra.mxu0 0.0
    %3960 = vmatprep.subr.mxu0 0.0
    %3961 = vmatpush2.msra.mxu0 0.0
    %3962 = vmatprep.subr.mxu0 0.0
    %3963 = vmatpush2.msra.mxu0 0.0
    %3964 = vmatprep.subr.mxu0 0.0
    %3965 = vmatpush2.msra.mxu0 0.0
    %3966 = vmatprep.subr.mxu0 0.0
    %3967 = vmatpush2.msra.mxu0 0.0
    %3968 = vmatprep.subr.mxu0 0.0
    %3969 = vmatpush2.msra.mxu0 0.0
    %3970 = vmatprep.subr.mxu0 0.0
    %3971 = vmatpush2.msra.mxu0 0.0
    %3972 = vmatprep.subr.mxu0 0.0
    %3973 = vmatpush2.msra.mxu0 0.0
    %3974 = vmatprep.subr.mxu0 0.0
    %3975 = vmatpush2.msra.mxu0 0.0
    %3976 = vmatprep.subr.mxu0 0.0
    %3977 = vmatpush2.msra.mxu0 0.0
    %3978 = vmatprep.mubr.f32.mxu0 0.0
    %3979 = vmatmul.mubr.f32.gmra.mxu0 %v3530
    %v3980 = vpop.f32.mrf.mxu0
    %v3981 = vadd.f32 0.0, %v3980
    %v3982 = vpop.f32.mrf.mxu0
    %v3983 = vadd.f32 0.0, %v3982
    %3984 = vdwg.mxu0
    %3985 = vmatprep.subr.mxu0 %v3913
    %3986 = vmatpush1.msra.mxu0 %v3912
    %3987 = vmatprep.subr.mxu0 %v3909
    %3988 = vmatpush1.msra.mxu0 %v3908
    %3989 = vmatprep.subr.mxu0 %v3905
    %3990 = vmatpush1.msra.mxu0 %v3904
    %3991 = vmatprep.subr.mxu0 %v3901
    %3992 = vmatpush1.msra.mxu0 %v3900
    %3993 = vmatprep.subr.mxu0 %v3897
    %3994 = vmatpush1.msra.mxu0 %v3896
    %3995 = vmatprep.subr.mxu0 %v3893
    %3996 = vmatpush1.msra.mxu0 %v3892
    %3997 = vmatprep.subr.mxu0 %v3889
    %3998 = vmatpush1.msra.mxu0 %v3888
    %3999 = vmatprep.subr.mxu0 %v3885
    %4000 = vmatpush1.msra.mxu0 %v3884
    %4001 = vmatprep.subr.mxu0 %v3881
    %4002 = vmatpush1.msra.mxu0 %v3880
    %4003 = vmatprep.subr.mxu0 %v3877
    %4004 = vmatpush1.msra.mxu0 %v3876
    %4005 = vmatprep.subr.mxu0 %v3873
    %4006 = vmatpush1.msra.mxu0 %v3872
    %4007 = vmatprep.subr.mxu0 %v3869
    %4008 = vmatpush1.msra.mxu0 %v3868
    %4009 = vmatprep.subr.mxu0 %v3865
    %4010 = vmatpush1.msra.mxu0 %v3864
    %4011 = vmatprep.subr.mxu0 %v3861
    %4012 = vmatpush1.msra.mxu0 %v3860
    %4013 = vmatprep.subr.mxu0 %v3857
    %4014 = vmatpush1.msra.mxu0 %v3856
    %4015 = vmatprep.subr.mxu0 %v3853
    %4016 = vmatpush1.msra.mxu0 %v3852
    %4017 = vmatprep.subr.mxu0 0.0
    %4018 = vmatpush2.msra.mxu0 0.0
    %4019 = vmatprep.subr.mxu0 0.0
    %4020 = vmatpush2.msra.mxu0 0.0
    %4021 = vmatprep.subr.mxu0 0.0
    %4022 = vmatpush2.msra.mxu0 0.0
    %4023 = vmatprep.subr.mxu0 0.0
    %4024 = vmatpush2.msra.mxu0 0.0
    %4025 = vmatprep.subr.mxu0 0.0
    %4026 = vmatpush2.msra.mxu0 0.0
    %4027 = vmatprep.subr.mxu0 0.0
    %4028 = vmatpush2.msra.mxu0 0.0
    %4029 = vmatprep.subr.mxu0 0.0
    %4030 = vmatpush2.msra.mxu0 0.0
    %4031 = vmatprep.subr.mxu0 0.0
    %4032 = vmatpush2.msra.mxu0 0.0
    %4033 = vmatprep.subr.mxu0 0.0
    %4034 = vmatpush2.msra.mxu0 0.0
    %4035 = vmatprep.subr.mxu0 0.0
    %4036 = vmatpush2.msra.mxu0 0.0
    %4037 = vmatprep.subr.mxu0 0.0
    %4038 = vmatpush2.msra.mxu0 0.0
    %4039 = vmatprep.subr.mxu0 0.0
    %4040 = vmatpush2.msra.mxu0 0.0
    %4041 = vmatprep.subr.mxu0 0.0
    %4042 = vmatpush2.msra.mxu0 0.0
    %4043 = vmatprep.subr.mxu0 0.0
    %4044 = vmatpush2.msra.mxu0 0.0
    %4045 = vmatprep.subr.mxu0 0.0
    %4046 = vmatpush2.msra.mxu0 0.0
    %4047 = vmatprep.subr.mxu0 0.0
    %4048 = vmatpush2.msra.mxu0 0.0
    %4049 = vmatprep.mubr.f32.mxu0 0.0
    %4050 = vmatmul.mubr.f32.gmra.mxu0 %v3530
    %v4051 = vpop.f32.mrf.mxu0
    %v4052 = vadd.f32 0.0, %v4051
    %v4053 = vpop.f32.mrf.mxu0
    %v4054 = vadd.f32 0.0, %v4053
    %4055 = vdwg.mxu0
    %v4060 = vcombine.low %v3981, %v3983
    %v4061 = vcombine.low %v4052, %v4054
    %v4063 = vunpack.c.l.s4 1966171168
    %v4064 = vunpack.c.0.s8 %v4063
    %v4065 = vlaneseq
    %v4066 = vshrl.u32 %v4065, 7
    %v4067 = vsub.s32 %v4064, %v4066
    %v4068 = vrot.slane %v4060, %v4067
    %v4070 = vunpack.c.l.s4 1966171168
    %v4071 = vunpack.c.0.s8 %v4070
    %v4072 = vlaneseq
    %v4073 = vshrl.u32 %v4072, 7
    %v4074 = vsub.s32 %v4071, %v4073
    %v4075 = vrot.slane %v4061, %v4074
    %v4076 = vcombine.low %v4068, %v4075
    %v4078 = vunpack.c.l.s4 1966171168
    %v4079 = vunpack.c.0.s8 %v4078
    %v4080 = vlaneseq
    %v4081 = vshrl.u32 %v4080, 7
    %v4082 = vsub.s32 %v4079, %v4081
    %v4083 = vrot.slane %v4076, %v4082
    %v4085 = vadd.f32 %v3849, %v4083
    %v4086 = vxor.u32 %v4085, 2147483648
    %v4087 = vmul.f32 %v4086, 1.442695
    %v4088 = vpow.pop %v4087
    %v4089 = vadd.f32 %v4088, 1.0
    %v4090 = vrcp.pop %v4089
    %v4091 = vmul.f32 1.0, %v4090
    %v4093 = vrot.slane %v4085, 1
    %v4095 = vxor.u32 %v4093, 2147483648
    %v4096 = vmul.f32 %v4095, 1.442695
    %v4097 = vpow.pop %v4096
    %v4098 = vadd.f32 %v4097, 1.0
    %v4099 = vrcp.pop %v4098
    %v4100 = vmul.f32 1.0, %v4099
    %v4101 = vrot.slane %v4085, 2
    %v4103 = vtanh.pop %v4101
    %v4104 = vrot.slane %v4085, 3
    %v4106 = vxor.u32 %v4104, 2147483648
    %v4107 = vmul.f32 %v4106, 1.442695
    %v4108 = vpow.pop %v4107
    %v4109 = vadd.f32 %v4108, 1.0
    %v4110 = vrcp.pop %v4109
    %v4111 = vmul.f32 1.0, %v4110
    %v4112 = vmul.f32 %v4100, %v3528
    %v4113 = vmul.f32 %v4091, %v4103
    %v4114 = vadd.f32 %v4112, %v4113
    %v4115 = vtanh.pop %v4114
    %v4116 = vmul.f32 %v4111, %v4115
    %v4117 = vld [vmem:[#allocation16] sm:$0xff]
    %v4118 = vld [vmem:[#allocation16 + $0x8] sm:$0xff]
    %v4119 = vld [vmem:[#allocation16 + $0x10] sm:$0xff]
    %v4120 = vld [vmem:[#allocation16 + $0x18] sm:$0xff]
    %v4121 = vld [vmem:[#allocation16 + $0x20] sm:$0xff]
    %v4122 = vld [vmem:[#allocation16 + $0x28] sm:$0xff]
    %v4123 = vld [vmem:[#allocation16 + $0x30] sm:$0xff]
    %v4124 = vld [vmem:[#allocation16 + $0x38] sm:$0xff]
    %v4125 = vld [vmem:[#allocation16 + $0x40] sm:$0xff]
    %v4126 = vld [vmem:[#allocation16 + $0x48] sm:$0xff]
    %v4127 = vld [vmem:[#allocation16 + $0x50] sm:$0xff]
    %v4128 = vld [vmem:[#allocation16 + $0x58] sm:$0xff]
    %v4129 = vld [vmem:[#allocation16 + $0x60] sm:$0xff]
    %v4130 = vld [vmem:[#allocation16 + $0x68] sm:$0xff]
    %v4131 = vld [vmem:[#allocation16 + $0x70] sm:$0xff]
    %v4132 = vld [vmem:[#allocation16 + $0x78] sm:$0xff]
    %v4133 = vld [vmem:[#allocation16 + $0x80] sm:$0xff]
    %v4134 = vld [vmem:[#allocation16 + $0x88] sm:$0xff]
    %v4135 = vld [vmem:[#allocation16 + $0x90] sm:$0xff]
    %v4136 = vld [vmem:[#allocation16 + $0x98] sm:$0xff]
    %v4137 = vld [vmem:[#allocation16 + $0xa0] sm:$0xff]
    %v4138 = vld [vmem:[#allocation16 + $0xa8] sm:$0xff]
    %v4139 = vld [vmem:[#allocation16 + $0xb0] sm:$0xff]
    %v4140 = vld [vmem:[#allocation16 + $0xb8] sm:$0xff]
    %v4141 = vld [vmem:[#allocation16 + $0xc0] sm:$0xff]
    %v4142 = vld [vmem:[#allocation16 + $0xc8] sm:$0xff]
    %v4143 = vld [vmem:[#allocation16 + $0xd0] sm:$0xff]
    %v4144 = vld [vmem:[#allocation16 + $0xd8] sm:$0xff]
    %v4145 = vld [vmem:[#allocation16 + $0xe0] sm:$0xff]
    %v4146 = vld [vmem:[#allocation16 + $0xe8] sm:$0xff]
    %v4147 = vld [vmem:[#allocation16 + $0xf0] sm:$0xff]
    %v4148 = vld [vmem:[#allocation16 + $0xf8] sm:$0xff]
    %v4149 = vld [vmem:[#allocation16 + $0x100] sm:$0xff]
    %v4150 = vld [vmem:[#allocation16 + $0x108] sm:$0xff]
    %v4151 = vld [vmem:[#allocation16 + $0x110] sm:$0xff]
    %v4152 = vld [vmem:[#allocation16 + $0x118] sm:$0xff]
    %v4153 = vld [vmem:[#allocation16 + $0x120] sm:$0xff]
    %v4154 = vld [vmem:[#allocation16 + $0x128] sm:$0xff]
    %v4155 = vld [vmem:[#allocation16 + $0x130] sm:$0xff]
    %v4156 = vld [vmem:[#allocation16 + $0x138] sm:$0xff]
    %v4157 = vld [vmem:[#allocation16 + $0x140] sm:$0xff]
    %v4158 = vld [vmem:[#allocation16 + $0x148] sm:$0xff]
    %v4159 = vld [vmem:[#allocation16 + $0x150] sm:$0xff]
    %v4160 = vld [vmem:[#allocation16 + $0x158] sm:$0xff]
    %v4161 = vld [vmem:[#allocation16 + $0x160] sm:$0xff]
    %v4162 = vld [vmem:[#allocation16 + $0x168] sm:$0xff]
    %v4163 = vld [vmem:[#allocation16 + $0x170] sm:$0xff]
    %v4164 = vld [vmem:[#allocation16 + $0x178] sm:$0xff]
    %v4165 = vld [vmem:[#allocation16 + $0x180] sm:$0xff]
    %v4166 = vld [vmem:[#allocation16 + $0x188] sm:$0xff]
    %v4167 = vld [vmem:[#allocation16 + $0x190] sm:$0xff]
    %v4168 = vld [vmem:[#allocation16 + $0x198] sm:$0xff]
    %v4169 = vld [vmem:[#allocation16 + $0x1a0] sm:$0xff]
    %v4170 = vld [vmem:[#allocation16 + $0x1a8] sm:$0xff]
    %v4171 = vld [vmem:[#allocation16 + $0x1b0] sm:$0xff]
    %v4172 = vld [vmem:[#allocation16 + $0x1b8] sm:$0xff]
    %v4173 = vld [vmem:[#allocation16 + $0x1c0] sm:$0xff]
    %v4174 = vld [vmem:[#allocation16 + $0x1c8] sm:$0xff]
    %v4175 = vld [vmem:[#allocation16 + $0x1d0] sm:$0xff]
    %v4176 = vld [vmem:[#allocation16 + $0x1d8] sm:$0xff]
    %v4177 = vld [vmem:[#allocation16 + $0x1e0] sm:$0xff]
    %v4178 = vld [vmem:[#allocation16 + $0x1e8] sm:$0xff]
    %v4179 = vld [vmem:[#allocation16 + $0x1f0] sm:$0xff]
    %v4180 = vld [vmem:[#allocation16 + $0x1f8] sm:$0xff]
    %v4181 = vld [vmem:[#allocation16 + $0x200] sm:$0xff]
    %v4182 = vld [vmem:[#allocation16 + $0x208] sm:$0xff]
    %v4183 = vld [vmem:[#allocation16 + $0x210] sm:$0xff]
    %v4184 = vld [vmem:[#allocation16 + $0x218] sm:$0xff]
    %v4185 = vld [vmem:[#allocation16 + $0x220] sm:$0xff]
    %v4186 = vld [vmem:[#allocation16 + $0x228] sm:$0xff]
    %v4187 = vld [vmem:[#allocation16 + $0x230] sm:$0xff]
    %v4188 = vld [vmem:[#allocation16 + $0x238] sm:$0xff]
    %v4189 = vld [vmem:[#allocation16 + $0x240] sm:$0xff]
    %v4190 = vld [vmem:[#allocation16 + $0x248] sm:$0xff]
    %v4191 = vld [vmem:[#allocation16 + $0x250] sm:$0xff]
    %v4192 = vld [vmem:[#allocation16 + $0x258] sm:$0xff]
    %v4193 = vld [vmem:[#allocation16 + $0x260] sm:$0xff]
    %v4194 = vld [vmem:[#allocation16 + $0x268] sm:$0xff]
    %v4195 = vld [vmem:[#allocation16 + $0x270] sm:$0xff]
    %v4196 = vld [vmem:[#allocation16 + $0x278] sm:$0xff]
    %v4197 = vld [vmem:[#allocation16 + $0x280] sm:$0xff]
    %v4198 = vld [vmem:[#allocation16 + $0x288] sm:$0xff]
    %v4199 = vld [vmem:[#allocation16 + $0x290] sm:$0xff]
    %v4200 = vld [vmem:[#allocation16 + $0x298] sm:$0xff]
    %v4201 = vld [vmem:[#allocation16 + $0x2a0] sm:$0xff]
    %v4202 = vld [vmem:[#allocation16 + $0x2a8] sm:$0xff]
    %v4203 = vld [vmem:[#allocation16 + $0x2b0] sm:$0xff]
    %v4204 = vld [vmem:[#allocation16 + $0x2b8] sm:$0xff]
    %v4205 = vld [vmem:[#allocation16 + $0x2c0] sm:$0xff]
    %v4206 = vld [vmem:[#allocation16 + $0x2c8] sm:$0xff]
    %v4207 = vld [vmem:[#allocation16 + $0x2d0] sm:$0xff]
    %v4208 = vld [vmem:[#allocation16 + $0x2d8] sm:$0xff]
    %v4209 = vld [vmem:[#allocation16 + $0x2e0] sm:$0xff]
    %v4210 = vld [vmem:[#allocation16 + $0x2e8] sm:$0xff]
    %v4211 = vld [vmem:[#allocation16 + $0x2f0] sm:$0xff]
    %v4212 = vld [vmem:[#allocation16 + $0x2f8] sm:$0xff]
    %v4213 = vld [vmem:[#allocation16 + $0x300] sm:$0xff]
    %v4214 = vld [vmem:[#allocation16 + $0x308] sm:$0xff]
    %v4215 = vld [vmem:[#allocation16 + $0x310] sm:$0xff]
    %v4216 = vld [vmem:[#allocation16 + $0x318] sm:$0xff]
    %v4217 = vld [vmem:[#allocation16 + $0x320] sm:$0xff]
    %v4218 = vld [vmem:[#allocation16 + $0x328] sm:$0xff]
    %v4219 = vld [vmem:[#allocation16 + $0x330] sm:$0xff]
    %v4220 = vld [vmem:[#allocation16 + $0x338] sm:$0xff]
    %v4221 = vld [vmem:[#allocation16 + $0x340] sm:$0xff]
    %v4222 = vld [vmem:[#allocation16 + $0x348] sm:$0xff]
    %v4223 = vld [vmem:[#allocation16 + $0x350] sm:$0xff]
    %v4224 = vld [vmem:[#allocation16 + $0x358] sm:$0xff]
    %v4225 = vld [vmem:[#allocation16 + $0x360] sm:$0xff]
    %v4226 = vld [vmem:[#allocation16 + $0x368] sm:$0xff]
    %v4227 = vld [vmem:[#allocation16 + $0x370] sm:$0xff]
    %v4228 = vld [vmem:[#allocation16 + $0x378] sm:$0xff]
    %v4229 = vld [vmem:[#allocation16 + $0x380] sm:$0xff]
    %v4230 = vld [vmem:[#allocation16 + $0x388] sm:$0xff]
    %v4231 = vld [vmem:[#allocation16 + $0x390] sm:$0xff]
    %v4232 = vld [vmem:[#allocation16 + $0x398] sm:$0xff]
    %v4233 = vld [vmem:[#allocation16 + $0x3a0] sm:$0xff]
    %v4234 = vld [vmem:[#allocation16 + $0x3a8] sm:$0xff]
    %v4235 = vld [vmem:[#allocation16 + $0x3b0] sm:$0xff]
    %v4236 = vld [vmem:[#allocation16 + $0x3b8] sm:$0xff]
    %v4237 = vld [vmem:[#allocation16 + $0x3c0] sm:$0xff]
    %v4238 = vld [vmem:[#allocation16 + $0x3c8] sm:$0xff]
    %v4239 = vld [vmem:[#allocation16 + $0x3d0] sm:$0xff]
    %v4240 = vld [vmem:[#allocation16 + $0x3d8] sm:$0xff]
    %v4241 = vld [vmem:[#allocation16 + $0x3e0] sm:$0xff]
    %v4242 = vld [vmem:[#allocation16 + $0x3e8] sm:$0xff]
    %v4243 = vld [vmem:[#allocation16 + $0x3f0] sm:$0xff]
    %v4244 = vld [vmem:[#allocation16 + $0x3f8] sm:$0xff]
    %v4245 = vld [vmem:[%s6] sm:$0xf]
    %v4247 = vlaneseq
    %v4248 = vshrl.u32 %v4247, 7
    %v4249 = vsub.s32 0, %v4248
    %v4250 = vrot.slane %v4245, %v4249
    %v4251 = vlaneseq
    %v4252 = vshrl.u32 %v4251, 7
    %v4253 = vsub.s32 1, %v4252
    %v4254 = vrot.slane %v4245, %v4253
    %v4255 = vlaneseq
    %v4256 = vshrl.u32 %v4255, 7
    %v4257 = vsub.s32 2, %v4256
    %v4258 = vrot.slane %v4245, %v4257
    %v4259 = vlaneseq
    %v4260 = vshrl.u32 %v4259, 7
    %v4261 = vsub.s32 3, %v4260
    %v4262 = vrot.slane %v4245, %v4261
    %4267 = vmatprep.subr.mxu0 %v4178
    %4268 = vmatpush1.msra.mxu0 %v4177
    %4269 = vmatprep.subr.mxu0 %v4174
    %4270 = vmatpush1.msra.mxu0 %v4173
    %4271 = vmatprep.subr.mxu0 %v4170
    %4272 = vmatpush1.msra.mxu0 %v4169
    %4273 = vmatprep.subr.mxu0 %v4166
    %4274 = vmatpush1.msra.mxu0 %v4165
    %4275 = vmatprep.subr.mxu0 %v4162
    %4276 = vmatpush1.msra.mxu0 %v4161
    %4277 = vmatprep.subr.mxu0 %v4158
    %4278 = vmatpush1.msra.mxu0 %v4157
    %4279 = vmatprep.subr.mxu0 %v4154
    %4280 = vmatpush1.msra.mxu0 %v4153
    %4281 = vmatprep.subr.mxu0 %v4150
    %4282 = vmatpush1.msra.mxu0 %v4149
    %4283 = vmatprep.subr.mxu0 %v4146
    %4284 = vmatpush1.msra.mxu0 %v4145
    %4285 = vmatprep.subr.mxu0 %v4142
    %4286 = vmatpush1.msra.mxu0 %v4141
    %4287 = vmatprep.subr.mxu0 %v4138
    %4288 = vmatpush1.msra.mxu0 %v4137
    %4289 = vmatprep.subr.mxu0 %v4134
    %4290 = vmatpush1.msra.mxu0 %v4133
    %4291 = vmatprep.subr.mxu0 %v4130
    %4292 = vmatpush1.msra.mxu0 %v4129
    %4293 = vmatprep.subr.mxu0 %v4126
    %4294 = vmatpush1.msra.mxu0 %v4125
    %4295 = vmatprep.subr.mxu0 %v4122
    %4296 = vmatpush1.msra.mxu0 %v4121
    %4297 = vmatprep.subr.mxu0 %v4118
    %4298 = vmatpush1.msra.mxu0 %v4117
    %4299 = vmatprep.subr.mxu0 %v4242
    %4300 = vmatpush2.msra.mxu0 %v4241
    %4301 = vmatprep.subr.mxu0 %v4238
    %4302 = vmatpush2.msra.mxu0 %v4237
    %4303 = vmatprep.subr.mxu0 %v4234
    %4304 = vmatpush2.msra.mxu0 %v4233
    %4305 = vmatprep.subr.mxu0 %v4230
    %4306 = vmatpush2.msra.mxu0 %v4229
    %4307 = vmatprep.subr.mxu0 %v4226
    %4308 = vmatpush2.msra.mxu0 %v4225
    %4309 = vmatprep.subr.mxu0 %v4222
    %4310 = vmatpush2.msra.mxu0 %v4221
    %4311 = vmatprep.subr.mxu0 %v4218
    %4312 = vmatpush2.msra.mxu0 %v4217
    %4313 = vmatprep.subr.mxu0 %v4214
    %4314 = vmatpush2.msra.mxu0 %v4213
    %4315 = vmatprep.subr.mxu0 %v4210
    %4316 = vmatpush2.msra.mxu0 %v4209
    %4317 = vmatprep.subr.mxu0 %v4206
    %4318 = vmatpush2.msra.mxu0 %v4205
    %4319 = vmatprep.subr.mxu0 %v4202
    %4320 = vmatpush2.msra.mxu0 %v4201
    %4321 = vmatprep.subr.mxu0 %v4198
    %4322 = vmatpush2.msra.mxu0 %v4197
    %4323 = vmatprep.subr.mxu0 %v4194
    %4324 = vmatpush2.msra.mxu0 %v4193
    %4325 = vmatprep.subr.mxu0 %v4190
    %4326 = vmatpush2.msra.mxu0 %v4189
    %4327 = vmatprep.subr.mxu0 %v4186
    %4328 = vmatpush2.msra.mxu0 %v4185
    %4329 = vmatprep.subr.mxu0 %v4182
    %4330 = vmatpush2.msra.mxu0 %v4181
    %4331 = vmatprep.mubr.f32.mxu0 %v3846
    %4332 = vmatmul.mubr.f32.gmra.mxu0 %v4116
    %v4333 = vpop.f32.mrf.mxu0
    %v4334 = vadd.f32 %v4250, %v4333
    %v4335 = vpop.f32.mrf.mxu0
    %v4336 = vadd.f32 %v4254, %v4335
    %4337 = vdwg.mxu0
    %4338 = vmatprep.subr.mxu0 %v4180
    %4339 = vmatpush1.msra.mxu0 %v4179
    %4340 = vmatprep.subr.mxu0 %v4176
    %4341 = vmatpush1.msra.mxu0 %v4175
    %4342 = vmatprep.subr.mxu0 %v4172
    %4343 = vmatpush1.msra.mxu0 %v4171
    %4344 = vmatprep.subr.mxu0 %v4168
    %4345 = vmatpush1.msra.mxu0 %v4167
    %4346 = vmatprep.subr.mxu0 %v4164
    %4347 = vmatpush1.msra.mxu0 %v4163
    %4348 = vmatprep.subr.mxu0 %v4160
    %4349 = vmatpush1.msra.mxu0 %v4159
    %4350 = vmatprep.subr.mxu0 %v4156
    %4351 = vmatpush1.msra.mxu0 %v4155
    %4352 = vmatprep.subr.mxu0 %v4152
    %4353 = vmatpush1.msra.mxu0 %v4151
    %4354 = vmatprep.subr.mxu0 %v4148
    %4355 = vmatpush1.msra.mxu0 %v4147
    %4356 = vmatprep.subr.mxu0 %v4144
    %4357 = vmatpush1.msra.mxu0 %v4143
    %4358 = vmatprep.subr.mxu0 %v4140
    %4359 = vmatpush1.msra.mxu0 %v4139
    %4360 = vmatprep.subr.mxu0 %v4136
    %4361 = vmatpush1.msra.mxu0 %v4135
    %4362 = vmatprep.subr.mxu0 %v4132
    %4363 = vmatpush1.msra.mxu0 %v4131
    %4364 = vmatprep.subr.mxu0 %v4128
    %4365 = vmatpush1.msra.mxu0 %v4127
    %4366 = vmatprep.subr.mxu0 %v4124
    %4367 = vmatpush1.msra.mxu0 %v4123
    %4368 = vmatprep.subr.mxu0 %v4120
    %4369 = vmatpush1.msra.mxu0 %v4119
    %4370 = vmatprep.subr.mxu0 %v4244
    %4371 = vmatpush2.msra.mxu0 %v4243
    %4372 = vmatprep.subr.mxu0 %v4240
    %4373 = vmatpush2.msra.mxu0 %v4239
    %4374 = vmatprep.subr.mxu0 %v4236
    %4375 = vmatpush2.msra.mxu0 %v4235
    %4376 = vmatprep.subr.mxu0 %v4232
    %4377 = vmatpush2.msra.mxu0 %v4231
    %4378 = vmatprep.subr.mxu0 %v4228
    %4379 = vmatpush2.msra.mxu0 %v4227
    %4380 = vmatprep.subr.mxu0 %v4224
    %4381 = vmatpush2.msra.mxu0 %v4223
    %4382 = vmatprep.subr.mxu0 %v4220
    %4383 = vmatpush2.msra.mxu0 %v4219
    %4384 = vmatprep.subr.mxu0 %v4216
    %4385 = vmatpush2.msra.mxu0 %v4215
    %4386 = vmatprep.subr.mxu0 %v4212
    %4387 = vmatpush2.msra.mxu0 %v4211
    %4388 = vmatprep.subr.mxu0 %v4208
    %4389 = vmatpush2.msra.mxu0 %v4207
    %4390 = vmatprep.subr.mxu0 %v4204
    %4391 = vmatpush2.msra.mxu0 %v4203
    %4392 = vmatprep.subr.mxu0 %v4200
    %4393 = vmatpush2.msra.mxu0 %v4199
    %4394 = vmatprep.subr.mxu0 %v4196
    %4395 = vmatpush2.msra.mxu0 %v4195
    %4396 = vmatprep.subr.mxu0 %v4192
    %4397 = vmatpush2.msra.mxu0 %v4191
    %4398 = vmatprep.subr.mxu0 %v4188
    %4399 = vmatpush2.msra.mxu0 %v4187
    %4400 = vmatprep.subr.mxu0 %v4184
    %4401 = vmatpush2.msra.mxu0 %v4183
    %4402 = vmatprep.mubr.f32.mxu0 %v3846
    %4403 = vmatmul.mubr.f32.gmra.mxu0 %v4116
    %v4404 = vpop.f32.mrf.mxu0
    %v4405 = vadd.f32 %v4258, %v4404
    %v4406 = vpop.f32.mrf.mxu0
    %v4407 = vadd.f32 %v4262, %v4406
    %4408 = vdwg.mxu0
    %v4409 = vxor.u32 %v4334, 2147483648
    %v4410 = vmul.f32 %v4409, 1.442695
    %v4411 = vpow.pop %v4410
    %v4412 = vadd.f32 %v4411, 1.0
    %v4413 = vrcp.pop %v4412
    %v4414 = vmul.f32 1.0, %v4413
    %v4415 = vxor.u32 %v4336, 2147483648
    %v4416 = vmul.f32 %v4415, 1.442695
    %v4417 = vpow.pop %v4416
    %v4418 = vadd.f32 %v4417, 1.0
    %v4419 = vrcp.pop %v4418
    %v4420 = vmul.f32 1.0, %v4419
    %v4421 = vtanh.pop %v4405
    %v4422 = vxor.u32 %v4407, 2147483648
    %v4423 = vmul.f32 %v4422, 1.442695
    %v4424 = vpow.pop %v4423
    %v4425 = vadd.f32 %v4424, 1.0
    %v4426 = vrcp.pop %v4425
    %v4427 = vmul.f32 1.0, %v4426
    %v4428 = vmul.f32 %v4420, %v3844
    %v4429 = vmul.f32 %v4414, %v4421
    %v4430 = vadd.f32 %v4428, %v4429
    %v4431 = vtanh.pop %v4430
    %v4432 = vmul.f32 %v4427, %v4431
    %4433 = vst [vmem:[#allocation3 + $0x6] sm:$0x1] %v4432
    %s4434 = scalar_lea.vmem [#allocation2], 7
    %v4435 = vld [vmem:[%s4434] ss:$8 sm:$0xf]
    %v4436 = vld [vmem:[#allocation14] sm:$0xff]
    %v4437 = vld [vmem:[#allocation14 + $0x8] sm:$0xff]
    %v4438 = vld [vmem:[#allocation14 + $0x10] sm:$0xff]
    %v4439 = vld [vmem:[#allocation14 + $0x18] sm:$0xff]
    %v4440 = vld [vmem:[#allocation14 + $0x20] sm:$0xff]
    %v4441 = vld [vmem:[#allocation14 + $0x28] sm:$0xff]
    %v4442 = vld [vmem:[#allocation14 + $0x30] sm:$0xff]
    %v4443 = vld [vmem:[#allocation14 + $0x38] sm:$0xff]
    %v4444 = vld [vmem:[#allocation14 + $0x40] sm:$0xff]
    %v4445 = vld [vmem:[#allocation14 + $0x48] sm:$0xff]
    %v4446 = vld [vmem:[#allocation14 + $0x50] sm:$0xff]
    %v4447 = vld [vmem:[#allocation14 + $0x58] sm:$0xff]
    %v4448 = vld [vmem:[#allocation14 + $0x60] sm:$0xff]
    %v4449 = vld [vmem:[#allocation14 + $0x68] sm:$0xff]
    %v4450 = vld [vmem:[#allocation14 + $0x70] sm:$0xff]
    %v4451 = vld [vmem:[#allocation14 + $0x78] sm:$0xff]
    %v4452 = vld [vmem:[#allocation14 + $0x80] sm:$0xff]
    %v4453 = vld [vmem:[#allocation14 + $0x88] sm:$0xff]
    %v4454 = vld [vmem:[#allocation14 + $0x90] sm:$0xff]
    %v4455 = vld [vmem:[#allocation14 + $0x98] sm:$0xff]
    %v4456 = vld [vmem:[#allocation14 + $0xa0] sm:$0xff]
    %v4457 = vld [vmem:[#allocation14 + $0xa8] sm:$0xff]
    %v4458 = vld [vmem:[#allocation14 + $0xb0] sm:$0xff]
    %v4459 = vld [vmem:[#allocation14 + $0xb8] sm:$0xff]
    %v4460 = vld [vmem:[#allocation14 + $0xc0] sm:$0xff]
    %v4461 = vld [vmem:[#allocation14 + $0xc8] sm:$0xff]
    %v4462 = vld [vmem:[#allocation14 + $0xd0] sm:$0xff]
    %v4463 = vld [vmem:[#allocation14 + $0xd8] sm:$0xff]
    %v4464 = vld [vmem:[#allocation14 + $0xe0] sm:$0xff]
    %v4465 = vld [vmem:[#allocation14 + $0xe8] sm:$0xff]
    %v4466 = vld [vmem:[#allocation14 + $0xf0] sm:$0xff]
    %v4467 = vld [vmem:[#allocation14 + $0xf8] sm:$0xff]
    %v4468 = vld [vmem:[#allocation14 + $0x100] sm:$0xff]
    %v4469 = vld [vmem:[#allocation14 + $0x108] sm:$0xff]
    %v4470 = vld [vmem:[#allocation14 + $0x110] sm:$0xff]
    %v4471 = vld [vmem:[#allocation14 + $0x118] sm:$0xff]
    %v4472 = vld [vmem:[#allocation14 + $0x120] sm:$0xff]
    %v4473 = vld [vmem:[#allocation14 + $0x128] sm:$0xff]
    %v4474 = vld [vmem:[#allocation14 + $0x130] sm:$0xff]
    %v4475 = vld [vmem:[#allocation14 + $0x138] sm:$0xff]
    %v4476 = vld [vmem:[#allocation14 + $0x140] sm:$0xff]
    %v4477 = vld [vmem:[#allocation14 + $0x148] sm:$0xff]
    %v4478 = vld [vmem:[#allocation14 + $0x150] sm:$0xff]
    %v4479 = vld [vmem:[#allocation14 + $0x158] sm:$0xff]
    %v4480 = vld [vmem:[#allocation14 + $0x160] sm:$0xff]
    %v4481 = vld [vmem:[#allocation14 + $0x168] sm:$0xff]
    %v4482 = vld [vmem:[#allocation14 + $0x170] sm:$0xff]
    %v4483 = vld [vmem:[#allocation14 + $0x178] sm:$0xff]
    %v4484 = vld [vmem:[#allocation14 + $0x180] sm:$0xff]
    %v4485 = vld [vmem:[#allocation14 + $0x188] sm:$0xff]
    %v4486 = vld [vmem:[#allocation14 + $0x190] sm:$0xff]
    %v4487 = vld [vmem:[#allocation14 + $0x198] sm:$0xff]
    %v4488 = vld [vmem:[#allocation14 + $0x1a0] sm:$0xff]
    %v4489 = vld [vmem:[#allocation14 + $0x1a8] sm:$0xff]
    %v4490 = vld [vmem:[#allocation14 + $0x1b0] sm:$0xff]
    %v4491 = vld [vmem:[#allocation14 + $0x1b8] sm:$0xff]
    %v4492 = vld [vmem:[#allocation14 + $0x1c0] sm:$0xff]
    %v4493 = vld [vmem:[#allocation14 + $0x1c8] sm:$0xff]
    %v4494 = vld [vmem:[#allocation14 + $0x1d0] sm:$0xff]
    %v4495 = vld [vmem:[#allocation14 + $0x1d8] sm:$0xff]
    %v4496 = vld [vmem:[#allocation14 + $0x1e0] sm:$0xff]
    %v4497 = vld [vmem:[#allocation14 + $0x1e8] sm:$0xff]
    %v4498 = vld [vmem:[#allocation14 + $0x1f0] sm:$0xff]
    %v4499 = vld [vmem:[#allocation14 + $0x1f8] sm:$0xff]
    %4500 = vmatprep.subr.mxu0 %v4497
    %4501 = vmatpush1.msra.mxu0 %v4496
    %4502 = vmatprep.subr.mxu0 %v4493
    %4503 = vmatpush1.msra.mxu0 %v4492
    %4504 = vmatprep.subr.mxu0 %v4489
    %4505 = vmatpush1.msra.mxu0 %v4488
    %4506 = vmatprep.subr.mxu0 %v4485
    %4507 = vmatpush1.msra.mxu0 %v4484
    %4508 = vmatprep.subr.mxu0 %v4481
    %4509 = vmatpush1.msra.mxu0 %v4480
    %4510 = vmatprep.subr.mxu0 %v4477
    %4511 = vmatpush1.msra.mxu0 %v4476
    %4512 = vmatprep.subr.mxu0 %v4473
    %4513 = vmatpush1.msra.mxu0 %v4472
    %4514 = vmatprep.subr.mxu0 %v4469
    %4515 = vmatpush1.msra.mxu0 %v4468
    %4516 = vmatprep.subr.mxu0 %v4465
    %4517 = vmatpush1.msra.mxu0 %v4464
    %4518 = vmatprep.subr.mxu0 %v4461
    %4519 = vmatpush1.msra.mxu0 %v4460
    %4520 = vmatprep.subr.mxu0 %v4457
    %4521 = vmatpush1.msra.mxu0 %v4456
    %4522 = vmatprep.subr.mxu0 %v4453
    %4523 = vmatpush1.msra.mxu0 %v4452
    %4524 = vmatprep.subr.mxu0 %v4449
    %4525 = vmatpush1.msra.mxu0 %v4448
    %4526 = vmatprep.subr.mxu0 %v4445
    %4527 = vmatpush1.msra.mxu0 %v4444
    %4528 = vmatprep.subr.mxu0 %v4441
    %4529 = vmatpush1.msra.mxu0 %v4440
    %4530 = vmatprep.subr.mxu0 %v4437
    %4531 = vmatpush1.msra.mxu0 %v4436
    %4532 = vmatprep.subr.mxu0 0.0
    %4533 = vmatpush2.msra.mxu0 0.0
    %4534 = vmatprep.subr.mxu0 0.0
    %4535 = vmatpush2.msra.mxu0 0.0
    %4536 = vmatprep.subr.mxu0 0.0
    %4537 = vmatpush2.msra.mxu0 0.0
    %4538 = vmatprep.subr.mxu0 0.0
    %4539 = vmatpush2.msra.mxu0 0.0
    %4540 = vmatprep.subr.mxu0 0.0
    %4541 = vmatpush2.msra.mxu0 0.0
    %4542 = vmatprep.subr.mxu0 0.0
    %4543 = vmatpush2.msra.mxu0 0.0
    %4544 = vmatprep.subr.mxu0 0.0
    %4545 = vmatpush2.msra.mxu0 0.0
    %4546 = vmatprep.subr.mxu0 0.0
    %4547 = vmatpush2.msra.mxu0 0.0
    %4548 = vmatprep.subr.mxu0 0.0
    %4549 = vmatpush2.msra.mxu0 0.0
    %4550 = vmatprep.subr.mxu0 0.0
    %4551 = vmatpush2.msra.mxu0 0.0
    %4552 = vmatprep.subr.mxu0 0.0
    %4553 = vmatpush2.msra.mxu0 0.0
    %4554 = vmatprep.subr.mxu0 0.0
    %4555 = vmatpush2.msra.mxu0 0.0
    %4556 = vmatprep.subr.mxu0 0.0
    %4557 = vmatpush2.msra.mxu0 0.0
    %4558 = vmatprep.subr.mxu0 0.0
    %4559 = vmatpush2.msra.mxu0 0.0
    %4560 = vmatprep.subr.mxu0 0.0
    %4561 = vmatpush2.msra.mxu0 0.0
    %4562 = vmatprep.subr.mxu0 0.0
    %4563 = vmatpush2.msra.mxu0 0.0
    %4564 = vmatprep.mubr.f32.mxu0 0.0
    %4565 = vmatmul.mubr.f32.gmra.mxu0 %v4116
    %v4566 = vpop.f32.mrf.mxu0
    %v4567 = vadd.f32 0.0, %v4566
    %v4568 = vpop.f32.mrf.mxu0
    %v4569 = vadd.f32 0.0, %v4568
    %4570 = vdwg.mxu0
    %4571 = vmatprep.subr.mxu0 %v4499
    %4572 = vmatpush1.msra.mxu0 %v4498
    %4573 = vmatprep.subr.mxu0 %v4495
    %4574 = vmatpush1.msra.mxu0 %v4494
    %4575 = vmatprep.subr.mxu0 %v4491
    %4576 = vmatpush1.msra.mxu0 %v4490
    %4577 = vmatprep.subr.mxu0 %v4487
    %4578 = vmatpush1.msra.mxu0 %v4486
    %4579 = vmatprep.subr.mxu0 %v4483
    %4580 = vmatpush1.msra.mxu0 %v4482
    %4581 = vmatprep.subr.mxu0 %v4479
    %4582 = vmatpush1.msra.mxu0 %v4478
    %4583 = vmatprep.subr.mxu0 %v4475
    %4584 = vmatpush1.msra.mxu0 %v4474
    %4585 = vmatprep.subr.mxu0 %v4471
    %4586 = vmatpush1.msra.mxu0 %v4470
    %4587 = vmatprep.subr.mxu0 %v4467
    %4588 = vmatpush1.msra.mxu0 %v4466
    %4589 = vmatprep.subr.mxu0 %v4463
    %4590 = vmatpush1.msra.mxu0 %v4462
    %4591 = vmatprep.subr.mxu0 %v4459
    %4592 = vmatpush1.msra.mxu0 %v4458
    %4593 = vmatprep.subr.mxu0 %v4455
    %4594 = vmatpush1.msra.mxu0 %v4454
    %4595 = vmatprep.subr.mxu0 %v4451
    %4596 = vmatpush1.msra.mxu0 %v4450
    %4597 = vmatprep.subr.mxu0 %v4447
    %4598 = vmatpush1.msra.mxu0 %v4446
    %4599 = vmatprep.subr.mxu0 %v4443
    %4600 = vmatpush1.msra.mxu0 %v4442
    %4601 = vmatprep.subr.mxu0 %v4439
    %4602 = vmatpush1.msra.mxu0 %v4438
    %4603 = vmatprep.subr.mxu0 0.0
    %4604 = vmatpush2.msra.mxu0 0.0
    %4605 = vmatprep.subr.mxu0 0.0
    %4606 = vmatpush2.msra.mxu0 0.0
    %4607 = vmatprep.subr.mxu0 0.0
    %4608 = vmatpush2.msra.mxu0 0.0
    %4609 = vmatprep.subr.mxu0 0.0
    %4610 = vmatpush2.msra.mxu0 0.0
    %4611 = vmatprep.subr.mxu0 0.0
    %4612 = vmatpush2.msra.mxu0 0.0
    %4613 = vmatprep.subr.mxu0 0.0
    %4614 = vmatpush2.msra.mxu0 0.0
    %4615 = vmatprep.subr.mxu0 0.0
    %4616 = vmatpush2.msra.mxu0 0.0
    %4617 = vmatprep.subr.mxu0 0.0
    %4618 = vmatpush2.msra.mxu0 0.0
    %4619 = vmatprep.subr.mxu0 0.0
    %4620 = vmatpush2.msra.mxu0 0.0
    %4621 = vmatprep.subr.mxu0 0.0
    %4622 = vmatpush2.msra.mxu0 0.0
    %4623 = vmatprep.subr.mxu0 0.0
    %4624 = vmatpush2.msra.mxu0 0.0
    %4625 = vmatprep.subr.mxu0 0.0
    %4626 = vmatpush2.msra.mxu0 0.0
    %4627 = vmatprep.subr.mxu0 0.0
    %4628 = vmatpush2.msra.mxu0 0.0
    %4629 = vmatprep.subr.mxu0 0.0
    %4630 = vmatpush2.msra.mxu0 0.0
    %4631 = vmatprep.subr.mxu0 0.0
    %4632 = vmatpush2.msra.mxu0 0.0
    %4633 = vmatprep.subr.mxu0 0.0
    %4634 = vmatpush2.msra.mxu0 0.0
    %4635 = vmatprep.mubr.f32.mxu0 0.0
    %4636 = vmatmul.mubr.f32.gmra.mxu0 %v4116
    %v4637 = vpop.f32.mrf.mxu0
    %v4638 = vadd.f32 0.0, %v4637
    %v4639 = vpop.f32.mrf.mxu0
    %v4640 = vadd.f32 0.0, %v4639
    %4641 = vdwg.mxu0
    %v4646 = vcombine.low %v4567, %v4569
    %v4647 = vcombine.low %v4638, %v4640
    %v4649 = vunpack.c.l.s4 1966171168
    %v4650 = vunpack.c.0.s8 %v4649
    %v4651 = vlaneseq
    %v4652 = vshrl.u32 %v4651, 7
    %v4653 = vsub.s32 %v4650, %v4652
    %v4654 = vrot.slane %v4646, %v4653
    %v4656 = vunpack.c.l.s4 1966171168
    %v4657 = vunpack.c.0.s8 %v4656
    %v4658 = vlaneseq
    %v4659 = vshrl.u32 %v4658, 7
    %v4660 = vsub.s32 %v4657, %v4659
    %v4661 = vrot.slane %v4647, %v4660
    %v4662 = vcombine.low %v4654, %v4661
    %v4664 = vunpack.c.l.s4 1966171168
    %v4665 = vunpack.c.0.s8 %v4664
    %v4666 = vlaneseq
    %v4667 = vshrl.u32 %v4666, 7
    %v4668 = vsub.s32 %v4665, %v4667
    %v4669 = vrot.slane %v4662, %v4668
    %v4671 = vadd.f32 %v4435, %v4669
    %v4672 = vxor.u32 %v4671, 2147483648
    %v4673 = vmul.f32 %v4672, 1.442695
    %v4674 = vpow.pop %v4673
    %v4675 = vadd.f32 %v4674, 1.0
    %v4676 = vrcp.pop %v4675
    %v4677 = vmul.f32 1.0, %v4676
    %v4679 = vrot.slane %v4671, 1
    %v4681 = vxor.u32 %v4679, 2147483648
    %v4682 = vmul.f32 %v4681, 1.442695
    %v4683 = vpow.pop %v4682
    %v4684 = vadd.f32 %v4683, 1.0
    %v4685 = vrcp.pop %v4684
    %v4686 = vmul.f32 1.0, %v4685
    %v4687 = vrot.slane %v4671, 2
    %v4689 = vtanh.pop %v4687
    %v4690 = vrot.slane %v4671, 3
    %v4692 = vxor.u32 %v4690, 2147483648
    %v4693 = vmul.f32 %v4692, 1.442695
    %v4694 = vpow.pop %v4693
    %v4695 = vadd.f32 %v4694, 1.0
    %v4696 = vrcp.pop %v4695
    %v4697 = vmul.f32 1.0, %v4696
    %v4698 = vmul.f32 %v4686, %v4114
    %v4699 = vmul.f32 %v4677, %v4689
    %v4700 = vadd.f32 %v4698, %v4699
    %v4701 = vtanh.pop %v4700
    %v4702 = vmul.f32 %v4697, %v4701
    %v4703 = vld [vmem:[#allocation16] sm:$0xff]
    %v4704 = vld [vmem:[#allocation16 + $0x8] sm:$0xff]
    %v4705 = vld [vmem:[#allocation16 + $0x10] sm:$0xff]
    %v4706 = vld [vmem:[#allocation16 + $0x18] sm:$0xff]
    %v4707 = vld [vmem:[#allocation16 + $0x20] sm:$0xff]
    %v4708 = vld [vmem:[#allocation16 + $0x28] sm:$0xff]
    %v4709 = vld [vmem:[#allocation16 + $0x30] sm:$0xff]
    %v4710 = vld [vmem:[#allocation16 + $0x38] sm:$0xff]
    %v4711 = vld [vmem:[#allocation16 + $0x40] sm:$0xff]
    %v4712 = vld [vmem:[#allocation16 + $0x48] sm:$0xff]
    %v4713 = vld [vmem:[#allocation16 + $0x50] sm:$0xff]
    %v4714 = vld [vmem:[#allocation16 + $0x58] sm:$0xff]
    %v4715 = vld [vmem:[#allocation16 + $0x60] sm:$0xff]
    %v4716 = vld [vmem:[#allocation16 + $0x68] sm:$0xff]
    %v4717 = vld [vmem:[#allocation16 + $0x70] sm:$0xff]
    %v4718 = vld [vmem:[#allocation16 + $0x78] sm:$0xff]
    %v4719 = vld [vmem:[#allocation16 + $0x80] sm:$0xff]
    %v4720 = vld [vmem:[#allocation16 + $0x88] sm:$0xff]
    %v4721 = vld [vmem:[#allocation16 + $0x90] sm:$0xff]
    %v4722 = vld [vmem:[#allocation16 + $0x98] sm:$0xff]
    %v4723 = vld [vmem:[#allocation16 + $0xa0] sm:$0xff]
    %v4724 = vld [vmem:[#allocation16 + $0xa8] sm:$0xff]
    %v4725 = vld [vmem:[#allocation16 + $0xb0] sm:$0xff]
    %v4726 = vld [vmem:[#allocation16 + $0xb8] sm:$0xff]
    %v4727 = vld [vmem:[#allocation16 + $0xc0] sm:$0xff]
    %v4728 = vld [vmem:[#allocation16 + $0xc8] sm:$0xff]
    %v4729 = vld [vmem:[#allocation16 + $0xd0] sm:$0xff]
    %v4730 = vld [vmem:[#allocation16 + $0xd8] sm:$0xff]
    %v4731 = vld [vmem:[#allocation16 + $0xe0] sm:$0xff]
    %v4732 = vld [vmem:[#allocation16 + $0xe8] sm:$0xff]
    %v4733 = vld [vmem:[#allocation16 + $0xf0] sm:$0xff]
    %v4734 = vld [vmem:[#allocation16 + $0xf8] sm:$0xff]
    %v4735 = vld [vmem:[#allocation16 + $0x100] sm:$0xff]
    %v4736 = vld [vmem:[#allocation16 + $0x108] sm:$0xff]
    %v4737 = vld [vmem:[#allocation16 + $0x110] sm:$0xff]
    %v4738 = vld [vmem:[#allocation16 + $0x118] sm:$0xff]
    %v4739 = vld [vmem:[#allocation16 + $0x120] sm:$0xff]
    %v4740 = vld [vmem:[#allocation16 + $0x128] sm:$0xff]
    %v4741 = vld [vmem:[#allocation16 + $0x130] sm:$0xff]
    %v4742 = vld [vmem:[#allocation16 + $0x138] sm:$0xff]
    %v4743 = vld [vmem:[#allocation16 + $0x140] sm:$0xff]
    %v4744 = vld [vmem:[#allocation16 + $0x148] sm:$0xff]
    %v4745 = vld [vmem:[#allocation16 + $0x150] sm:$0xff]
    %v4746 = vld [vmem:[#allocation16 + $0x158] sm:$0xff]
    %v4747 = vld [vmem:[#allocation16 + $0x160] sm:$0xff]
    %v4748 = vld [vmem:[#allocation16 + $0x168] sm:$0xff]
    %v4749 = vld [vmem:[#allocation16 + $0x170] sm:$0xff]
    %v4750 = vld [vmem:[#allocation16 + $0x178] sm:$0xff]
    %v4751 = vld [vmem:[#allocation16 + $0x180] sm:$0xff]
    %v4752 = vld [vmem:[#allocation16 + $0x188] sm:$0xff]
    %v4753 = vld [vmem:[#allocation16 + $0x190] sm:$0xff]
    %v4754 = vld [vmem:[#allocation16 + $0x198] sm:$0xff]
    %v4755 = vld [vmem:[#allocation16 + $0x1a0] sm:$0xff]
    %v4756 = vld [vmem:[#allocation16 + $0x1a8] sm:$0xff]
    %v4757 = vld [vmem:[#allocation16 + $0x1b0] sm:$0xff]
    %v4758 = vld [vmem:[#allocation16 + $0x1b8] sm:$0xff]
    %v4759 = vld [vmem:[#allocation16 + $0x1c0] sm:$0xff]
    %v4760 = vld [vmem:[#allocation16 + $0x1c8] sm:$0xff]
    %v4761 = vld [vmem:[#allocation16 + $0x1d0] sm:$0xff]
    %v4762 = vld [vmem:[#allocation16 + $0x1d8] sm:$0xff]
    %v4763 = vld [vmem:[#allocation16 + $0x1e0] sm:$0xff]
    %v4764 = vld [vmem:[#allocation16 + $0x1e8] sm:$0xff]
    %v4765 = vld [vmem:[#allocation16 + $0x1f0] sm:$0xff]
    %v4766 = vld [vmem:[#allocation16 + $0x1f8] sm:$0xff]
    %v4767 = vld [vmem:[#allocation16 + $0x200] sm:$0xff]
    %v4768 = vld [vmem:[#allocation16 + $0x208] sm:$0xff]
    %v4769 = vld [vmem:[#allocation16 + $0x210] sm:$0xff]
    %v4770 = vld [vmem:[#allocation16 + $0x218] sm:$0xff]
    %v4771 = vld [vmem:[#allocation16 + $0x220] sm:$0xff]
    %v4772 = vld [vmem:[#allocation16 + $0x228] sm:$0xff]
    %v4773 = vld [vmem:[#allocation16 + $0x230] sm:$0xff]
    %v4774 = vld [vmem:[#allocation16 + $0x238] sm:$0xff]
    %v4775 = vld [vmem:[#allocation16 + $0x240] sm:$0xff]
    %v4776 = vld [vmem:[#allocation16 + $0x248] sm:$0xff]
    %v4777 = vld [vmem:[#allocation16 + $0x250] sm:$0xff]
    %v4778 = vld [vmem:[#allocation16 + $0x258] sm:$0xff]
    %v4779 = vld [vmem:[#allocation16 + $0x260] sm:$0xff]
    %v4780 = vld [vmem:[#allocation16 + $0x268] sm:$0xff]
    %v4781 = vld [vmem:[#allocation16 + $0x270] sm:$0xff]
    %v4782 = vld [vmem:[#allocation16 + $0x278] sm:$0xff]
    %v4783 = vld [vmem:[#allocation16 + $0x280] sm:$0xff]
    %v4784 = vld [vmem:[#allocation16 + $0x288] sm:$0xff]
    %v4785 = vld [vmem:[#allocation16 + $0x290] sm:$0xff]
    %v4786 = vld [vmem:[#allocation16 + $0x298] sm:$0xff]
    %v4787 = vld [vmem:[#allocation16 + $0x2a0] sm:$0xff]
    %v4788 = vld [vmem:[#allocation16 + $0x2a8] sm:$0xff]
    %v4789 = vld [vmem:[#allocation16 + $0x2b0] sm:$0xff]
    %v4790 = vld [vmem:[#allocation16 + $0x2b8] sm:$0xff]
    %v4791 = vld [vmem:[#allocation16 + $0x2c0] sm:$0xff]
    %v4792 = vld [vmem:[#allocation16 + $0x2c8] sm:$0xff]
    %v4793 = vld [vmem:[#allocation16 + $0x2d0] sm:$0xff]
    %v4794 = vld [vmem:[#allocation16 + $0x2d8] sm:$0xff]
    %v4795 = vld [vmem:[#allocation16 + $0x2e0] sm:$0xff]
    %v4796 = vld [vmem:[#allocation16 + $0x2e8] sm:$0xff]
    %v4797 = vld [vmem:[#allocation16 + $0x2f0] sm:$0xff]
    %v4798 = vld [vmem:[#allocation16 + $0x2f8] sm:$0xff]
    %v4799 = vld [vmem:[#allocation16 + $0x300] sm:$0xff]
    %v4800 = vld [vmem:[#allocation16 + $0x308] sm:$0xff]
    %v4801 = vld [vmem:[#allocation16 + $0x310] sm:$0xff]
    %v4802 = vld [vmem:[#allocation16 + $0x318] sm:$0xff]
    %v4803 = vld [vmem:[#allocation16 + $0x320] sm:$0xff]
    %v4804 = vld [vmem:[#allocation16 + $0x328] sm:$0xff]
    %v4805 = vld [vmem:[#allocation16 + $0x330] sm:$0xff]
    %v4806 = vld [vmem:[#allocation16 + $0x338] sm:$0xff]
    %v4807 = vld [vmem:[#allocation16 + $0x340] sm:$0xff]
    %v4808 = vld [vmem:[#allocation16 + $0x348] sm:$0xff]
    %v4809 = vld [vmem:[#allocation16 + $0x350] sm:$0xff]
    %v4810 = vld [vmem:[#allocation16 + $0x358] sm:$0xff]
    %v4811 = vld [vmem:[#allocation16 + $0x360] sm:$0xff]
    %v4812 = vld [vmem:[#allocation16 + $0x368] sm:$0xff]
    %v4813 = vld [vmem:[#allocation16 + $0x370] sm:$0xff]
    %v4814 = vld [vmem:[#allocation16 + $0x378] sm:$0xff]
    %v4815 = vld [vmem:[#allocation16 + $0x380] sm:$0xff]
    %v4816 = vld [vmem:[#allocation16 + $0x388] sm:$0xff]
    %v4817 = vld [vmem:[#allocation16 + $0x390] sm:$0xff]
    %v4818 = vld [vmem:[#allocation16 + $0x398] sm:$0xff]
    %v4819 = vld [vmem:[#allocation16 + $0x3a0] sm:$0xff]
    %v4820 = vld [vmem:[#allocation16 + $0x3a8] sm:$0xff]
    %v4821 = vld [vmem:[#allocation16 + $0x3b0] sm:$0xff]
    %v4822 = vld [vmem:[#allocation16 + $0x3b8] sm:$0xff]
    %v4823 = vld [vmem:[#allocation16 + $0x3c0] sm:$0xff]
    %v4824 = vld [vmem:[#allocation16 + $0x3c8] sm:$0xff]
    %v4825 = vld [vmem:[#allocation16 + $0x3d0] sm:$0xff]
    %v4826 = vld [vmem:[#allocation16 + $0x3d8] sm:$0xff]
    %v4827 = vld [vmem:[#allocation16 + $0x3e0] sm:$0xff]
    %v4828 = vld [vmem:[#allocation16 + $0x3e8] sm:$0xff]
    %v4829 = vld [vmem:[#allocation16 + $0x3f0] sm:$0xff]
    %v4830 = vld [vmem:[#allocation16 + $0x3f8] sm:$0xff]
    %v4831 = vld [vmem:[%s6] sm:$0xf]
    %v4833 = vlaneseq
    %v4834 = vshrl.u32 %v4833, 7
    %v4835 = vsub.s32 0, %v4834
    %v4836 = vrot.slane %v4831, %v4835
    %v4837 = vlaneseq
    %v4838 = vshrl.u32 %v4837, 7
    %v4839 = vsub.s32 1, %v4838
    %v4840 = vrot.slane %v4831, %v4839
    %v4841 = vlaneseq
    %v4842 = vshrl.u32 %v4841, 7
    %v4843 = vsub.s32 2, %v4842
    %v4844 = vrot.slane %v4831, %v4843
    %v4845 = vlaneseq
    %v4846 = vshrl.u32 %v4845, 7
    %v4847 = vsub.s32 3, %v4846
    %v4848 = vrot.slane %v4831, %v4847
    %4853 = vmatprep.subr.mxu0 %v4764
    %4854 = vmatpush1.msra.mxu0 %v4763
    %4855 = vmatprep.subr.mxu0 %v4760
    %4856 = vmatpush1.msra.mxu0 %v4759
    %4857 = vmatprep.subr.mxu0 %v4756
    %4858 = vmatpush1.msra.mxu0 %v4755
    %4859 = vmatprep.subr.mxu0 %v4752
    %4860 = vmatpush1.msra.mxu0 %v4751
    %4861 = vmatprep.subr.mxu0 %v4748
    %4862 = vmatpush1.msra.mxu0 %v4747
    %4863 = vmatprep.subr.mxu0 %v4744
    %4864 = vmatpush1.msra.mxu0 %v4743
    %4865 = vmatprep.subr.mxu0 %v4740
    %4866 = vmatpush1.msra.mxu0 %v4739
    %4867 = vmatprep.subr.mxu0 %v4736
    %4868 = vmatpush1.msra.mxu0 %v4735
    %4869 = vmatprep.subr.mxu0 %v4732
    %4870 = vmatpush1.msra.mxu0 %v4731
    %4871 = vmatprep.subr.mxu0 %v4728
    %4872 = vmatpush1.msra.mxu0 %v4727
    %4873 = vmatprep.subr.mxu0 %v4724
    %4874 = vmatpush1.msra.mxu0 %v4723
    %4875 = vmatprep.subr.mxu0 %v4720
    %4876 = vmatpush1.msra.mxu0 %v4719
    %4877 = vmatprep.subr.mxu0 %v4716
    %4878 = vmatpush1.msra.mxu0 %v4715
    %4879 = vmatprep.subr.mxu0 %v4712
    %4880 = vmatpush1.msra.mxu0 %v4711
    %4881 = vmatprep.subr.mxu0 %v4708
    %4882 = vmatpush1.msra.mxu0 %v4707
    %4883 = vmatprep.subr.mxu0 %v4704
    %4884 = vmatpush1.msra.mxu0 %v4703
    %4885 = vmatprep.subr.mxu0 %v4828
    %4886 = vmatpush2.msra.mxu0 %v4827
    %4887 = vmatprep.subr.mxu0 %v4824
    %4888 = vmatpush2.msra.mxu0 %v4823
    %4889 = vmatprep.subr.mxu0 %v4820
    %4890 = vmatpush2.msra.mxu0 %v4819
    %4891 = vmatprep.subr.mxu0 %v4816
    %4892 = vmatpush2.msra.mxu0 %v4815
    %4893 = vmatprep.subr.mxu0 %v4812
    %4894 = vmatpush2.msra.mxu0 %v4811
    %4895 = vmatprep.subr.mxu0 %v4808
    %4896 = vmatpush2.msra.mxu0 %v4807
    %4897 = vmatprep.subr.mxu0 %v4804
    %4898 = vmatpush2.msra.mxu0 %v4803
    %4899 = vmatprep.subr.mxu0 %v4800
    %4900 = vmatpush2.msra.mxu0 %v4799
    %4901 = vmatprep.subr.mxu0 %v4796
    %4902 = vmatpush2.msra.mxu0 %v4795
    %4903 = vmatprep.subr.mxu0 %v4792
    %4904 = vmatpush2.msra.mxu0 %v4791
    %4905 = vmatprep.subr.mxu0 %v4788
    %4906 = vmatpush2.msra.mxu0 %v4787
    %4907 = vmatprep.subr.mxu0 %v4784
    %4908 = vmatpush2.msra.mxu0 %v4783
    %4909 = vmatprep.subr.mxu0 %v4780
    %4910 = vmatpush2.msra.mxu0 %v4779
    %4911 = vmatprep.subr.mxu0 %v4776
    %4912 = vmatpush2.msra.mxu0 %v4775
    %4913 = vmatprep.subr.mxu0 %v4772
    %4914 = vmatpush2.msra.mxu0 %v4771
    %4915 = vmatprep.subr.mxu0 %v4768
    %4916 = vmatpush2.msra.mxu0 %v4767
    %4917 = vmatprep.mubr.f32.mxu0 %v4432
    %4918 = vmatmul.mubr.f32.gmra.mxu0 %v4702
    %v4919 = vpop.f32.mrf.mxu0
    %v4920 = vadd.f32 %v4836, %v4919
    %v4921 = vpop.f32.mrf.mxu0
    %v4922 = vadd.f32 %v4840, %v4921
    %4923 = vdwg.mxu0
    %4924 = vmatprep.subr.mxu0 %v4766
    %4925 = vmatpush1.msra.mxu0 %v4765
    %4926 = vmatprep.subr.mxu0 %v4762
    %4927 = vmatpush1.msra.mxu0 %v4761
    %4928 = vmatprep.subr.mxu0 %v4758
    %4929 = vmatpush1.msra.mxu0 %v4757
    %4930 = vmatprep.subr.mxu0 %v4754
    %4931 = vmatpush1.msra.mxu0 %v4753
    %4932 = vmatprep.subr.mxu0 %v4750
    %4933 = vmatpush1.msra.mxu0 %v4749
    %4934 = vmatprep.subr.mxu0 %v4746
    %4935 = vmatpush1.msra.mxu0 %v4745
    %4936 = vmatprep.subr.mxu0 %v4742
    %4937 = vmatpush1.msra.mxu0 %v4741
    %4938 = vmatprep.subr.mxu0 %v4738
    %4939 = vmatpush1.msra.mxu0 %v4737
    %4940 = vmatprep.subr.mxu0 %v4734
    %4941 = vmatpush1.msra.mxu0 %v4733
    %4942 = vmatprep.subr.mxu0 %v4730
    %4943 = vmatpush1.msra.mxu0 %v4729
    %4944 = vmatprep.subr.mxu0 %v4726
    %4945 = vmatpush1.msra.mxu0 %v4725
    %4946 = vmatprep.subr.mxu0 %v4722
    %4947 = vmatpush1.msra.mxu0 %v4721
    %4948 = vmatprep.subr.mxu0 %v4718
    %4949 = vmatpush1.msra.mxu0 %v4717
    %4950 = vmatprep.subr.mxu0 %v4714
    %4951 = vmatpush1.msra.mxu0 %v4713
    %4952 = vmatprep.subr.mxu0 %v4710
    %4953 = vmatpush1.msra.mxu0 %v4709
    %4954 = vmatprep.subr.mxu0 %v4706
    %4955 = vmatpush1.msra.mxu0 %v4705
    %4956 = vmatprep.subr.mxu0 %v4830
    %4957 = vmatpush2.msra.mxu0 %v4829
    %4958 = vmatprep.subr.mxu0 %v4826
    %4959 = vmatpush2.msra.mxu0 %v4825
    %4960 = vmatprep.subr.mxu0 %v4822
    %4961 = vmatpush2.msra.mxu0 %v4821
    %4962 = vmatprep.subr.mxu0 %v4818
    %4963 = vmatpush2.msra.mxu0 %v4817
    %4964 = vmatprep.subr.mxu0 %v4814
    %4965 = vmatpush2.msra.mxu0 %v4813
    %4966 = vmatprep.subr.mxu0 %v4810
    %4967 = vmatpush2.msra.mxu0 %v4809
    %4968 = vmatprep.subr.mxu0 %v4806
    %4969 = vmatpush2.msra.mxu0 %v4805
    %4970 = vmatprep.subr.mxu0 %v4802
    %4971 = vmatpush2.msra.mxu0 %v4801
    %4972 = vmatprep.subr.mxu0 %v4798
    %4973 = vmatpush2.msra.mxu0 %v4797
    %4974 = vmatprep.subr.mxu0 %v4794
    %4975 = vmatpush2.msra.mxu0 %v4793
    %4976 = vmatprep.subr.mxu0 %v4790
    %4977 = vmatpush2.msra.mxu0 %v4789
    %4978 = vmatprep.subr.mxu0 %v4786
    %4979 = vmatpush2.msra.mxu0 %v4785
    %4980 = vmatprep.subr.mxu0 %v4782
    %4981 = vmatpush2.msra.mxu0 %v4781
    %4982 = vmatprep.subr.mxu0 %v4778
    %4983 = vmatpush2.msra.mxu0 %v4777
    %4984 = vmatprep.subr.mxu0 %v4774
    %4985 = vmatpush2.msra.mxu0 %v4773
    %4986 = vmatprep.subr.mxu0 %v4770
    %4987 = vmatpush2.msra.mxu0 %v4769
    %4988 = vmatprep.mubr.f32.mxu0 %v4432
    %4989 = vmatmul.mubr.f32.gmra.mxu0 %v4702
    %v4990 = vpop.f32.mrf.mxu0
    %v4991 = vadd.f32 %v4844, %v4990
    %v4992 = vpop.f32.mrf.mxu0
    %v4993 = vadd.f32 %v4848, %v4992
    %4994 = vdwg.mxu0
    %v4995 = vxor.u32 %v4920, 2147483648
    %v4996 = vmul.f32 %v4995, 1.442695
    %v4997 = vpow.pop %v4996
    %v4998 = vadd.f32 %v4997, 1.0
    %v4999 = vrcp.pop %v4998
    %v5000 = vmul.f32 1.0, %v4999
    %v5001 = vxor.u32 %v4922, 2147483648
    %v5002 = vmul.f32 %v5001, 1.442695
    %v5003 = vpow.pop %v5002
    %v5004 = vadd.f32 %v5003, 1.0
    %v5005 = vrcp.pop %v5004
    %v5006 = vmul.f32 1.0, %v5005
    %v5007 = vtanh.pop %v4991
    %v5008 = vxor.u32 %v4993, 2147483648
    %v5009 = vmul.f32 %v5008, 1.442695
    %v5010 = vpow.pop %v5009
    %v5011 = vadd.f32 %v5010, 1.0
    %v5012 = vrcp.pop %v5011
    %v5013 = vmul.f32 1.0, %v5012
    %v5014 = vmul.f32 %v5006, %v4430
    %v5015 = vmul.f32 %v5000, %v5007
    %v5016 = vadd.f32 %v5014, %v5015
    %v5017 = vtanh.pop %v5016
    %v5018 = vmul.f32 %v5013, %v5017
    %5019 = vst [vmem:[#allocation3 + $0x7] sm:$0x1] %v5018
    %5020 = vst [vmem:[#allocation4] sm:$0x1] %v4702
    %5021 = vst [vmem:[#allocation5] sm:$0x1] %v4700
    %5022 = vst [vmem:[#allocation6] sm:$0x1] %v5018
    %5023 = vst [vmem:[#allocation7] sm:$0x1] %v5016
    %v5024 = vld [vmem:[#allocation3] sm:$0xff]
    %v5025 = vld [vmem:[#allocation17] sm:$0xff]
    %v5026 = vld [vmem:[#allocation17 + $0x8] sm:$0xff]
    %v5027 = vld [vmem:[#allocation17 + $0x10] sm:$0xff]
    %v5028 = vld [vmem:[#allocation17 + $0x18] sm:$0xff]
    %v5029 = vld [vmem:[#allocation17 + $0x20] sm:$0xff]
    %v5030 = vld [vmem:[#allocation17 + $0x28] sm:$0xff]
    %v5031 = vld [vmem:[#allocation17 + $0x30] sm:$0xff]
    %v5032 = vld [vmem:[#allocation17 + $0x38] sm:$0xff]
    %v5033 = vld [vmem:[#allocation17 + $0x40] sm:$0xff]
    %v5034 = vld [vmem:[#allocation17 + $0x48] sm:$0xff]
    %v5035 = vld [vmem:[#allocation17 + $0x50] sm:$0xff]
    %v5036 = vld [vmem:[#allocation17 + $0x58] sm:$0xff]
    %v5037 = vld [vmem:[#allocation17 + $0x60] sm:$0xff]
    %v5038 = vld [vmem:[#allocation17 + $0x68] sm:$0xff]
    %v5039 = vld [vmem:[#allocation17 + $0x70] sm:$0xff]
    %v5040 = vld [vmem:[#allocation17 + $0x78] sm:$0xff]
    %v5041 = vld [vmem:[%s8] sm:$0x1]
    %v5043 = vlaneseq
    %v5044 = vshrl.u32 %v5043, 7
    %v5045 = vsub.s32 0, %v5044
    %v5046 = vrot.slane %v5041, %v5045
    %5048 = vmatprep.subr.mxu0 0.0
    %5049 = vmatpush1.msra.mxu0 %v5040
    %5050 = vmatprep.subr.mxu0 0.0
    %5051 = vmatpush1.msra.mxu0 %v5039
    %5052 = vmatprep.subr.mxu0 0.0
    %5053 = vmatpush1.msra.mxu0 %v5038
    %5054 = vmatprep.subr.mxu0 0.0
    %5055 = vmatpush1.msra.mxu0 %v5037
    %5056 = vmatprep.subr.mxu0 0.0
    %5057 = vmatpush1.msra.mxu0 %v5036
    %5058 = vmatprep.subr.mxu0 0.0
    %5059 = vmatpush1.msra.mxu0 %v5035
    %5060 = vmatprep.subr.mxu0 0.0
    %5061 = vmatpush1.msra.mxu0 %v5034
    %5062 = vmatprep.subr.mxu0 0.0
    %5063 = vmatpush1.msra.mxu0 %v5033
    %5064 = vmatprep.subr.mxu0 0.0
    %5065 = vmatpush1.msra.mxu0 %v5032
    %5066 = vmatprep.subr.mxu0 0.0
    %5067 = vmatpush1.msra.mxu0 %v5031
    %5068 = vmatprep.subr.mxu0 0.0
    %5069 = vmatpush1.msra.mxu0 %v5030
    %5070 = vmatprep.subr.mxu0 0.0
    %5071 = vmatpush1.msra.mxu0 %v5029
    %5072 = vmatprep.subr.mxu0 0.0
    %5073 = vmatpush1.msra.mxu0 %v5028
    %5074 = vmatprep.subr.mxu0 0.0
    %5075 = vmatpush1.msra.mxu0 %v5027
    %5076 = vmatprep.subr.mxu0 0.0
    %5077 = vmatpush1.msra.mxu0 %v5026
    %5078 = vmatprep.subr.mxu0 0.0
    %5079 = vmatpush1.msra.mxu0 %v5025
    %5080 = vmatprep.subr.mxu0 0.0
    %5081 = vmatpush2.msra.mxu0 0.0
    %5082 = vmatprep.subr.mxu0 0.0
    %5083 = vmatpush2.msra.mxu0 0.0
    %5084 = vmatprep.subr.mxu0 0.0
    %5085 = vmatpush2.msra.mxu0 0.0
    %5086 = vmatprep.subr.mxu0 0.0
    %5087 = vmatpush2.msra.mxu0 0.0
    %5088 = vmatprep.subr.mxu0 0.0
    %5089 = vmatpush2.msra.mxu0 0.0
    %5090 = vmatprep.subr.mxu0 0.0
    %5091 = vmatpush2.msra.mxu0 0.0
    %5092 = vmatprep.subr.mxu0 0.0
    %5093 = vmatpush2.msra.mxu0 0.0
    %5094 = vmatprep.subr.mxu0 0.0
    %5095 = vmatpush2.msra.mxu0 0.0
    %5096 = vmatprep.subr.mxu0 0.0
    %5097 = vmatpush2.msra.mxu0 0.0
    %5098 = vmatprep.subr.mxu0 0.0
    %5099 = vmatpush2.msra.mxu0 0.0
    %5100 = vmatprep.subr.mxu0 0.0
    %5101 = vmatpush2.msra.mxu0 0.0
    %5102 = vmatprep.subr.mxu0 0.0
    %5103 = vmatpush2.msra.mxu0 0.0
    %5104 = vmatprep.subr.mxu0 0.0
    %5105 = vmatpush2.msra.mxu0 0.0
    %5106 = vmatprep.subr.mxu0 0.0
    %5107 = vmatpush2.msra.mxu0 0.0
    %5108 = vmatprep.subr.mxu0 0.0
    %5109 = vmatpush2.msra.mxu0 0.0
    %5110 = vmatprep.subr.mxu0 0.0
    %5111 = vmatpush2.msra.mxu0 0.0
    %5112 = vmatprep.mubr.f32.mxu0 0.0
    %5113 = vmatmul.mubr.f32.gmra.mxu0 %v5024
    %v5114 = vpop.f32.mrf.mxu0
    %v5115 = vadd.f32 %v5046, %v5114
    %v5116 = vpop.f32.mrf.mxu0
    %5117 = vdwg.mxu0
    %v5118 = vmax.f32 %v5115, 0.0
    %v5119 = vld [vmem:[#allocation19] sm:$0xff]
    %v5120 = vld [vmem:[#allocation19 + $0x8] sm:$0xff]
    %v5121 = vld [vmem:[#allocation19 + $0x10] sm:$0xff]
    %v5122 = vld [vmem:[#allocation19 + $0x18] sm:$0xff]
    %v5123 = vld [vmem:[#allocation19 + $0x20] sm:$0xff]
    %v5124 = vld [vmem:[#allocation19 + $0x28] sm:$0xff]
    %v5125 = vld [vmem:[#allocation19 + $0x30] sm:$0xff]
    %v5126 = vld [vmem:[#allocation19 + $0x38] sm:$0xff]
    %v5127 = vld [vmem:[#allocation19 + $0x40] sm:$0xff]
    %v5128 = vld [vmem:[#allocation19 + $0x48] sm:$0xff]
    %v5129 = vld [vmem:[#allocation19 + $0x50] sm:$0xff]
    %v5130 = vld [vmem:[#allocation19 + $0x58] sm:$0xff]
    %v5131 = vld [vmem:[#allocation19 + $0x60] sm:$0xff]
    %v5132 = vld [vmem:[#allocation19 + $0x68] sm:$0xff]
    %v5133 = vld [vmem:[#allocation19 + $0x70] sm:$0xff]
    %v5134 = vld [vmem:[#allocation19 + $0x78] sm:$0xff]
    %v5135 = vld [vmem:[%s10] sm:$0x1]
    %v5137 = vlaneseq
    %v5138 = vshrl.u32 %v5137, 7
    %v5139 = vsub.s32 0, %v5138
    %v5140 = vrot.slane %v5135, %v5139
    %5142 = vmatprep.subr.mxu0 0.0
    %5143 = vmatpush1.msra.mxu0 %v5134
    %5144 = vmatprep.subr.mxu0 0.0
    %5145 = vmatpush1.msra.mxu0 %v5133
    %5146 = vmatprep.subr.mxu0 0.0
    %5147 = vmatpush1.msra.mxu0 %v5132
    %5148 = vmatprep.subr.mxu0 0.0
    %5149 = vmatpush1.msra.mxu0 %v5131
    %5150 = vmatprep.subr.mxu0 0.0
    %5151 = vmatpush1.msra.mxu0 %v5130
    %5152 = vmatprep.subr.mxu0 0.0
    %5153 = vmatpush1.msra.mxu0 %v5129
    %5154 = vmatprep.subr.mxu0 0.0
    %5155 = vmatpush1.msra.mxu0 %v5128
    %5156 = vmatprep.subr.mxu0 0.0
    %5157 = vmatpush1.msra.mxu0 %v5127
    %5158 = vmatprep.subr.mxu0 0.0
    %5159 = vmatpush1.msra.mxu0 %v5126
    %5160 = vmatprep.subr.mxu0 0.0
    %5161 = vmatpush1.msra.mxu0 %v5125
    %5162 = vmatprep.subr.mxu0 0.0
    %5163 = vmatpush1.msra.mxu0 %v5124
    %5164 = vmatprep.subr.mxu0 0.0
    %5165 = vmatpush1.msra.mxu0 %v5123
    %5166 = vmatprep.subr.mxu0 0.0
    %5167 = vmatpush1.msra.mxu0 %v5122
    %5168 = vmatprep.subr.mxu0 0.0
    %5169 = vmatpush1.msra.mxu0 %v5121
    %5170 = vmatprep.subr.mxu0 0.0
    %5171 = vmatpush1.msra.mxu0 %v5120
    %5172 = vmatprep.subr.mxu0 0.0
    %5173 = vmatpush1.msra.mxu0 %v5119
    %5174 = vmatprep.subr.mxu0 0.0
    %5175 = vmatpush2.msra.mxu0 0.0
    %5176 = vmatprep.subr.mxu0 0.0
    %5177 = vmatpush2.msra.mxu0 0.0
    %5178 = vmatprep.subr.mxu0 0.0
    %5179 = vmatpush2.msra.mxu0 0.0
    %5180 = vmatprep.subr.mxu0 0.0
    %5181 = vmatpush2.msra.mxu0 0.0
    %5182 = vmatprep.subr.mxu0 0.0
    %5183 = vmatpush2.msra.mxu0 0.0
    %5184 = vmatprep.subr.mxu0 0.0
    %5185 = vmatpush2.msra.mxu0 0.0
    %5186 = vmatprep.subr.mxu0 0.0
    %5187 = vmatpush2.msra.mxu0 0.0
    %5188 = vmatprep.subr.mxu0 0.0
    %5189 = vmatpush2.msra.mxu0 0.0
    %5190 = vmatprep.subr.mxu0 0.0
    %5191 = vmatpush2.msra.mxu0 0.0
    %5192 = vmatprep.subr.mxu0 0.0
    %5193 = vmatpush2.msra.mxu0 0.0
    %5194 = vmatprep.subr.mxu0 0.0
    %5195 = vmatpush2.msra.mxu0 0.0
    %5196 = vmatprep.subr.mxu0 0.0
    %5197 = vmatpush2.msra.mxu0 0.0
    %5198 = vmatprep.subr.mxu0 0.0
    %5199 = vmatpush2.msra.mxu0 0.0
    %5200 = vmatprep.subr.mxu0 0.0
    %5201 = vmatpush2.msra.mxu0 0.0
    %5202 = vmatprep.subr.mxu0 0.0
    %5203 = vmatpush2.msra.mxu0 0.0
    %5204 = vmatprep.subr.mxu0 0.0
    %5205 = vmatpush2.msra.mxu0 0.0
    %5206 = vmatprep.mubr.f32.mxu0 0.0
    %5207 = vmatmul.mubr.f32.gmra.mxu0 %v5118
    %v5208 = vpop.f32.mrf.mxu0
    %v5209 = vadd.f32 %v5140, %v5208
    %v5210 = vpop.f32.mrf.mxu0
    %5211 = vdwg.mxu0
    %5212 = vst [vmem:[#allocation20] sm:$0xff] %v5209
    // Predicated region
    $region78: #{tpu_custom_call.1} parent=1 // pred_check
      _
    $region79: #{tpu_custom_call.1} parent=1 // pred_check_branch
      %5214 = sbr.rel (0) target = $region81
    $region80: #{tpu_custom_call.1} parent=1 // pred_region
      %s5216 = ssub.s32 128, 128
      %5217 = vsyncadd [#allocation10], %s5216
      %s5219 = sshll.u32 [#allocation20], 4
      %s5220 = int_to_ptr.vmem [resolvable:$true] %s5219
      %5222 = dma.vmem_to_hbm [thread:$0]  %s5220, 128, %s11, [#allocation10]
    $region81: #{tpu_custom_call.1} parent=1 // pred_fallthru
      _
    // Predicated region
    $region82: #{tpu_custom_call.1} parent=1 // pred_check
      _
    $region83: #{tpu_custom_call.1} parent=1 // pred_check_branch
      %5224 = sbr.rel (0) target = $region85
    $region84: #{tpu_custom_call.1} parent=1 // pred_region
      %5225 = dma.done [#allocation10], 128
    $region85: #{tpu_custom_call.1} parent=1 // pred_fallthru
      _
    %5226 = vsyncpa [#allocation9], 1
    %5227 = vsyncpa [#allocation12], 1
    %5228 = vsyncpa [#allocation15], 1
    %5229 = vsyncpa [#allocation18], 1
    %5230 = vsyncpa [#allocation10], 1

</llo_original>
